<compile_context>
chip_gen: v7x
topology: tpu7x:2x2x1
jax: 0.10.0
libtpu: 0.0.40
codegen_flags: <defaults>
</compile_context>

<pallas_src>
import jax
import jax.numpy as jnp
from jax.experimental import pallas as pl
from jax.experimental.pallas import tpu as pltpu


# --------------------------------------------------------------------------- #
# Grid-step sizing (per-chip): bt = batch elements fused per grid step.
# --------------------------------------------------------------------------- #
def _pick_bt(batch, n4):
    """Default: whole batch in one step (one block-diag matmul per adj op, no
    per-step overhead) -> best on single-TC chips (v5e/v6e).  On v7x keep a
    parallel grid of 2 across the two TensorCores.  Always keep bt*n4 <= 128
    (v5e 128x128 MXU contraction bound for the block-diagonal adjacency)."""
    bt = batch
    try:
        kind = jax.devices()[0].device_kind.lower()
    except Exception:  # pragma: no cover
        kind = ""
    if "v7" in kind and batch % 2 == 0:
        bt = batch // 2
    while bt > 1 and (bt * n4 > 128 or batch % bt != 0):
        bt -= 1
    return max(bt, 1)


# --------------------------------------------------------------------------- #
# Parameter initialization (deterministic, synthetic).
# TODO(synk): the original loads 'data/embedding/embedding_enc.pt'; synthetic
#             embedding weights are used here instead.
# --------------------------------------------------------------------------- #
def init_params(key, vocab, hidden, d_inner, layers=5):
    hd = hidden // layers
    hmax = hidden + hd * (layers - 1)
    keys = jax.random.split(key, 16)
    ki = iter(keys)

    def nrm(shape, scale=0.1):
        return jax.random.normal(next(ki), shape, dtype=jnp.float32) * scale

    emb = nrm((vocab, hidden))
    emb = emb.at[0].set(0.0)                      # padding_idx = 0

    # GCN weights for the 4 hierarchy levels, stacked and lane-dense:
    #   wg[lvl, :, i*hd:(i+1)*hd] is layer i's weight, stored [in, out].
    #   Rows >= hidden + hd*i are never read (the kernel slices the exact width).
    gcn = (nrm((4, hmax, layers * hd)),           # weight_list (weight_norm(dim=None) == plain weight)
           nrm((4, layers, hd)),                  # weight_list biases
           nrm((4, hidden, hidden)),              # linear_output weight^T
           nrm((4, 1, hidden)))                   # linear_output bias
    # AttFlatten params for levels 1-3 (sent4_level_feat exists but is unused).
    att = (nrm((3, hidden, d_inner)),             # MLP fc weight^T
           nrm((3, 1, d_inner)),                  # MLP fc bias
           nrm((3, 1, d_inner)),                  # MLP out weight (out_size=1), as a row vector
           nrm((3, 1, 1)),                        # MLP out bias
           nrm((3, hidden, hidden)),              # linear_merge weight^T
           nrm((3, 1, hidden)))                   # linear_merge bias
    return {"embedding": emb, "gcn": gcn, "att": att}


# --------------------------------------------------------------------------- #
# GCN_Module.forward: embedding/mask prep in XLA, everything else in ONE
# fused Pallas kernel.
# --------------------------------------------------------------------------- #
def gcn_module_forward(params, sent1, sent2, sent3, sent4,
                       adj1, adj2, adj3, adj4, *, compute_dtype=jnp.bfloat16):
    f32 = jnp.float32
    cdt = compute_dtype

    emb = params["embedding"]
    wg, bg, wo, bo = params["gcn"]
    w1, b1, w2, b2, wm, bm = params["att"]

    B, n_words = sent1.shape
    N0 = n_words
    H = emb.shape[1]
    L, hd = bg.shape[1], bg.shape[2]
    N4 = N0 + 3

    bt = _pick_bt(B, N4)
    G = B // bt

    sents = (sent1, sent2, sent3, sent4)
    adjs = (adj1, adj2, adj3, adj4)

    # -------------------- XLA-side prep (cheap, one-shot) -------------------- #
    # Padding masks (1.0 = pad) for AttFlatten levels 1-3, flattened per group.
    # (sent4's mask is computed but unused in the original forward -> skipped.)
    masks = []
    for lvl in range(3):
        nl = N0 + lvl
        m = (sents[lvl] == 0).astype(f32)[..., None]                   # (B, nl, 1)
        masks.append(m.reshape(G, bt * nl, 1))

    # Embedded tokens, zero-padded with the hierarchical feature slots, then
    # grouped/flattened to (G, bt*nl, H).  Row b*nl + N0 + j of a group is the
    # slot for level-(j+1)'s sentence feature; it is filled inside the kernel.
    xps = []
    for lvl in range(4):
        x = jnp.take(emb, sents[lvl][:, :n_words], axis=0).astype(f32)  # (B, N0, H)
        if lvl:
            x = jnp.concatenate([x, jnp.zeros((B, lvl, H), f32)], axis=1)
        xps.append(x.reshape(G, bt * (N0 + lvl), H))

    # Per-group block-diagonal adjacency so one 2-D matmul covers the group.
    adjps = []
    eye = jnp.eye(bt, dtype=cdt)
    for lvl in range(4):
        nl = N0 + lvl
        a = adjs[lvl].astype(cdt).reshape(G, bt, nl, nl)
        bd = a[:, :, :, None, :] * eye[None, :, None, :, None]          # (G,bt,nl,bt,nl)
        adjps.append(bd.reshape(G, bt * nl, bt * nl))

    wg_c, wo_c, w1_c, wm_c = (wg.astype(cdt), wo.astype(cdt),
                              w1.astype(cdt), wm.astype(cdt))

    # -------------------------- fused kernel --------------------------------- #
    def kernel(x1_ref, x2_ref, x3_ref, x4_ref,
               a1_ref, a2_ref, a3_ref, a4_ref,
               m1_ref, m2_ref, m3_ref,
               wg_ref, bg_ref, wo_ref, bo_ref,
               w1_ref, b1_ref, w2_ref, b2_ref, wm_ref, bm_ref,
               o_ref):

        def gcn(lvl, x_flat, adj):
            # x_flat: (M, H) f32 ; adj: (M, M) block-diagonal, compute dtype.
            denom = jnp.sum(adj.astype(f32), axis=-1, keepdims=True)    # XLU reduce
            inv_denom = 1.0 / denom                                     # exact divide
            x_c = x_flat.astype(cdt)
            wg_l = wg_ref[lvl]                                          # (Hmax, L*hd)
            bg_l = bg_ref[lvl]                                          # (L, hd) f32
            # s = [adj@x + x, adj@g0 + g0, ...] : register-resident growing buffer.
            s = (jnp.dot(adj, x_c, preferred_element_type=f32) + x_flat).astype(cdt)
            g_list = []
            for i in range(L):                                          # static unroll
                w_i = wg_l[: H + hd * i, i * hd:(i + 1) * hd]           # exact width
                axw = jnp.dot(s, w_i, preferred_element_type=f32)
                # W_i(Ax) + W_i(outputs): bias counted twice (PyTorch parity;
                # do NOT "fix" on one side only).
                axw = axw + 2.0 * bg_l[i:i + 1, :]
                g = jnp.maximum(axw * inv_denom, 0.0)                   # gcn_drop == id
                g_list.append(g)
                if i + 1 < L:                                           # last g feeds nothing
                    sg = jnp.dot(adj, g.astype(cdt),
                                 preferred_element_type=f32) + g
                    s = jnp.concatenate([s, sg.astype(cdt)], axis=-1)
            gcn_out = jnp.concatenate(g_list, axis=-1) + x_flat         # residual
            return (jnp.dot(gcn_out.astype(cdt), wo_ref[lvl],
                            preferred_element_type=f32) + bo_ref[lvl])  # (M, H) f32

        def attflat(lvl, g_flat, pad_mask, nl):
            # AttFlatten, flat_glimpses == 1 -> list of bt (1, H) features.
            h = jnp.maximum(jnp.dot(g_flat.astype(cdt), w1_ref[lvl],
                                    preferred_element_type=f32) + b1_ref[lvl], 0.0)
            # width-1 head on VPU/XLU (no MXU push): logits = h . w2 + b2
            logits = jnp.sum(h * w2_ref[lvl], axis=-1, keepdims=True) + b2_ref[lvl]
            logits = jnp.where(pad_mask > 0.5, jnp.float32(-1e9), logits)
            m = bt * nl
            row = jax.lax.broadcasted_iota(jnp.int32, (m, 1), 0)
            feats = []
            for b in range(bt):                      # static, bt is tiny
                seg = jnp.logical_and(row >= b * nl, row < (b + 1) * nl)
                m_b = jnp.max(jnp.where(seg, logits, jnp.float32(-1e9)),
                              axis=0, keepdims=True)
                e_b = jnp.where(seg, jnp.exp(logits - m_b), 0.0)
                p_b = e_b / jnp.sum(e_b, axis=0, keepdims=True)          # exact softmax
                xa = jnp.sum(p_b * g_flat, axis=0, keepdims=True)        # (1, H)
                feats.append(jnp.dot(xa.astype(cdt), wm_ref[lvl],
                                     preferred_element_type=f32) + bm_ref[lvl])
            return feats

        def insert_feats(x_pad, nl, feat_lists):
            # Fill the zero feature slots (row b*nl + N0 + j) with level features.
            row = jax.lax.broadcasted_iota(jnp.int32, (bt * nl, 1), 0)
            x = x_pad
            for j, fl in enumerate(feat_lists):
                for b in range(bt):
                    sel = (row == (b * nl + N0 + j)).astype(f32)
                    x = x + sel * fl[b]
            return x

        g1 = gcn(0, x1_ref[...], a1_ref[...])
        f1 = attflat(0, g1, m1_ref[...], N0)

        x2 = insert_feats(x2_ref[...], N0 + 1, [f1])
        g2 = gcn(1, x2, a2_ref[...])
        f2 = attflat(1, g2, m2_ref[...], N0 + 1)

        x3 = insert_feats(x3_ref[...], N0 + 2, [f1, f2])
        g3 = gcn(2, x3, a3_ref[...])
        f3 = attflat(2, g3, m3_ref[...], N0 + 2)

        x4 = insert_feats(x4_ref[...], N0 + 3, [f1, f2, f3])
        o_ref[...] = gcn(3, x4, a4_ref[...])          # level 4: no AttFlatten

    # --------------------------- specs & call --------------------------------- #
    def data_spec(tail):
        nd = len(tail)
        return pl.BlockSpec((None,) + tuple(tail),
                            lambda g, nd=nd: (g,) + (0,) * nd)

    def param_spec(arr):
        nd = arr.ndim
        return pl.BlockSpec(tuple(arr.shape), lambda g, nd=nd: (0,) * nd)

    in_specs = (
        [data_spec((bt * (N0 + lvl), H)) for lvl in range(4)]
        + [data_spec((bt * (N0 + lvl), bt * (N0 + lvl))) for lvl in range(4)]
        + [data_spec((bt * (N0 + lvl), 1)) for lvl in range(3)]
        + [param_spec(p) for p in (wg_c, bg, wo_c, bo, w1_c, b1, w2, b2, wm_c, bm)]
    )

    out = pl.pallas_call(
        kernel,
        grid=(G,),
        in_specs=in_specs,
        out_specs=data_spec((bt * N4, H)),
        out_shape=jax.ShapeDtypeStruct((G, bt * N4, H), f32),
        compiler_params=pltpu.CompilerParams(dimension_semantics=("parallel",)),
    )(*xps, *adjps, *masks,
      wg_c, bg, wo_c, bo, w1_c, b1, w2, b2, wm_c, bm)

    return out.reshape(B, N4, H)                      # contiguous, free reshape


# --------------------------------------------------------------------------- #
if __name__ == "__main__":
    B = 2
    N_WORDS = 20        # node_number in the module
    VOCAB = 50
    H = 40              # hidden_size == d_model (divisible by the 5 GCN layers)
    D_INNER = 16

    key = jax.random.PRNGKey(0)
    k_par, k_tok, k_adj = jax.random.split(key, 3)
    params = init_params(k_par, VOCAB, H, D_INNER)

    tok_keys = jax.random.split(k_tok, 4)
    # sent_i carries N_WORDS + (i-1) tokens so its mask matches GCN_i's node count.
    sents = [
        jax.random.randint(tok_keys[i], (B, N_WORDS + i), 0, VOCAB, dtype=jnp.int32)
        for i in range(4)
    ]

    adj_keys = jax.random.split(k_adj, 4)
    adjs = []
    for i in range(4):
        n = N_WORDS + i
        a = (jax.random.uniform(adj_keys[i], (B, n, n)) > 0.5).astype(jnp.float32)
        a = jnp.maximum(a, jnp.eye(n, dtype=jnp.float32)[None])   # keep denom > 0
        adjs.append(a)

    fwd = jax.jit(gcn_module_forward)
    out = jax.block_until_ready(fwd(params, *sents, *adjs))
    assert out.shape == (B, N_WORDS + 3, H)
    assert bool(jnp.all(jnp.isfinite(out)))
    print("KERNEL_OK")
</pallas_src>

<mosaic_0001>
module attributes {stable_mosaic.version = 11 : i64} {
  func.func @kernel(%arg0: i32, %arg1: memref<1x40x40xf32, #tpu.memory_space<vmem>>, %arg2: memref<1x42x40xf32, #tpu.memory_space<vmem>>, %arg3: memref<1x44x40xf32, #tpu.memory_space<vmem>>, %arg4: memref<1x46x40xf32, #tpu.memory_space<vmem>>, %arg5: memref<1x40x40xbf16, #tpu.memory_space<vmem>>, %arg6: memref<1x42x42xbf16, #tpu.memory_space<vmem>>, %arg7: memref<1x44x44xbf16, #tpu.memory_space<vmem>>, %arg8: memref<1x46x46xbf16, #tpu.memory_space<vmem>>, %arg9: memref<1x40x1xf32, #tpu.memory_space<vmem>>, %arg10: memref<1x42x1xf32, #tpu.memory_space<vmem>>, %arg11: memref<1x44x1xf32, #tpu.memory_space<vmem>>, %arg12: memref<4x72x40xbf16, #tpu.memory_space<vmem>>, %arg13: memref<4x5x8xf32, #tpu.memory_space<vmem>>, %arg14: memref<4x40x40xbf16, #tpu.memory_space<vmem>>, %arg15: memref<4x1x40xf32, #tpu.memory_space<vmem>>, %arg16: memref<3x40x16xbf16, #tpu.memory_space<vmem>>, %arg17: memref<3x1x16xf32, #tpu.memory_space<vmem>>, %arg18: memref<3x1x16xf32, #tpu.memory_space<vmem>>, %arg19: memref<3x1x1xf32, #tpu.memory_space<vmem>>, %arg20: memref<3x40x40xbf16, #tpu.memory_space<vmem>>, %arg21: memref<3x1x40xf32, #tpu.memory_space<vmem>>, %arg22: memref<1x46x40xf32, #tpu.memory_space<vmem>>) attributes {dimension_semantics = [#tpu.dimension_semantics<parallel>], iteration_bounds = array<i64: 1>, scalar_prefetch = 0 : i64, scratch_operands = 0 : i64, tpu.core_type = #tpu.core_type<tc>, window_params = [{transform_indices = @transform_0, window_bounds = array<i64: 1, 40, 40>}, {transform_indices = @transform_1, window_bounds = array<i64: 1, 42, 40>}, {transform_indices = @transform_2, window_bounds = array<i64: 1, 44, 40>}, {transform_indices = @transform_3, window_bounds = array<i64: 1, 46, 40>}, {transform_indices = @transform_4, window_bounds = array<i64: 1, 40, 40>}, {transform_indices = @transform_5, window_bounds = array<i64: 1, 42, 42>}, {transform_indices = @transform_6, window_bounds = array<i64: 1, 44, 44>}, {transform_indices = @transform_7, window_bounds = array<i64: 1, 46, 46>}, {transform_indices = @transform_8, window_bounds = array<i64: 1, 40, 1>}, {transform_indices = @transform_9, window_bounds = array<i64: 1, 42, 1>}, {transform_indices = @transform_10, window_bounds = array<i64: 1, 44, 1>}, {pipeline_mode = #tpu.pipeline_mode<synchronous>, transform_indices = @transform_11, window_bounds = array<i64: 4, 72, 40>}, {pipeline_mode = #tpu.pipeline_mode<synchronous>, transform_indices = @transform_12, window_bounds = array<i64: 4, 5, 8>}, {pipeline_mode = #tpu.pipeline_mode<synchronous>, transform_indices = @transform_13, window_bounds = array<i64: 4, 40, 40>}, {pipeline_mode = #tpu.pipeline_mode<synchronous>, transform_indices = @transform_14, window_bounds = array<i64: 4, 1, 40>}, {pipeline_mode = #tpu.pipeline_mode<synchronous>, transform_indices = @transform_15, window_bounds = array<i64: 3, 40, 16>}, {pipeline_mode = #tpu.pipeline_mode<synchronous>, transform_indices = @transform_16, window_bounds = array<i64: 3, 1, 16>}, {pipeline_mode = #tpu.pipeline_mode<synchronous>, transform_indices = @transform_17, window_bounds = array<i64: 3, 1, 16>}, {pipeline_mode = #tpu.pipeline_mode<synchronous>, transform_indices = @transform_18, window_bounds = array<i64: 3, 1, 1>}, {pipeline_mode = #tpu.pipeline_mode<synchronous>, transform_indices = @transform_19, window_bounds = array<i64: 3, 40, 40>}, {pipeline_mode = #tpu.pipeline_mode<synchronous>, transform_indices = @transform_20, window_bounds = array<i64: 3, 1, 40>}, {transform_indices = @transform_21, window_bounds = array<i64: 1, 46, 40>}]} {
    %c0 = arith.constant 0 : index
    %c0_0 = arith.constant 0 : index
    %c0_1 = arith.constant 0 : index
    %0 = vector.load %arg1[%c0, %c0_0, %c0_1] : memref<1x40x40xf32, #tpu.memory_space<vmem>>, vector<1x40x40xf32>
    %1 = vector.shape_cast %0 : vector<1x40x40xf32> to vector<40x40xf32>
    %c0_2 = arith.constant 0 : index
    %c0_3 = arith.constant 0 : index
    %c0_4 = arith.constant 0 : index
    %2 = vector.load %arg5[%c0_2, %c0_3, %c0_4] : memref<1x40x40xbf16, #tpu.memory_space<vmem>>, vector<1x40x40xbf16>
    %3 = vector.shape_cast %2 : vector<1x40x40xbf16> to vector<40x40xbf16>
    %4 = arith.extf %3 : vector<40x40xbf16> to vector<40x40xf32>
    %cst = arith.constant dense<0.000000e+00> : vector<40xf32>
    %5 = vector.multi_reduction <add>, %4, %cst [1] : vector<40x40xf32> to vector<40xf32>
    %6 = vector.shape_cast %5 : vector<40xf32> to vector<40x1xf32>
    %cst_5 = arith.constant 1.000000e+00 : f32
    %7 = vector.broadcast %cst_5 : f32 to vector<40x1xf32>
    %8 = arith.divf %7, %6 : vector<40x1xf32>
    %9 = arith.truncf %1 : vector<40x40xf32> to vector<40x40xbf16>
    %c0_6 = arith.constant 0 : index
    %c0_7 = arith.constant 0 : index
    %c0_8 = arith.constant 0 : index
    %10 = vector.load %arg12[%c0_6, %c0_7, %c0_8] : memref<4x72x40xbf16, #tpu.memory_space<vmem>>, vector<1x72x40xbf16>
    %11 = vector.shape_cast %10 : vector<1x72x40xbf16> to vector<72x40xbf16>
    %c0_9 = arith.constant 0 : index
    %c0_10 = arith.constant 0 : index
    %c0_11 = arith.constant 0 : index
    %12 = vector.load %arg13[%c0_9, %c0_10, %c0_11] : memref<4x5x8xf32, #tpu.memory_space<vmem>>, vector<1x5x8xf32>
    %13 = vector.shape_cast %12 : vector<1x5x8xf32> to vector<5x8xf32>
    %cst_12 = arith.constant dense<0.000000e+00> : vector<40x40xf32>
    %14 = tpu.matmul %3, %9, %cst_12 {dimension_numbers = #tpu.dot_dimension_numbers<[1], [0], [0], [1], [0, 0, 1, 1], [], []>} : vector<40x40xbf16>, vector<40x40xbf16>, vector<40x40xf32> -> vector<40x40xf32>
    %15 = arith.addf %14, %1 : vector<40x40xf32>
    %16 = arith.truncf %15 : vector<40x40xf32> to vector<40x40xbf16>
    %17 = vector.extract_strided_slice %11 {offsets = [0, 0], sizes = [40, 8], strides = [1, 1]} : vector<72x40xbf16> to vector<40x8xbf16>
    %cst_13 = arith.constant dense<0.000000e+00> : vector<40x8xf32>
    %18 = tpu.matmul %16, %17, %cst_13 {dimension_numbers = #tpu.dot_dimension_numbers<[1], [0], [0], [1], [0, 0, 1, 1], [], []>} : vector<40x40xbf16>, vector<40x8xbf16>, vector<40x8xf32> -> vector<40x8xf32>
    %19 = vector.extract_strided_slice %13 {offsets = [0, 0], sizes = [1, 8], strides = [1, 1]} : vector<5x8xf32> to vector<1x8xf32>
    %cst_14 = arith.constant 2.000000e+00 : f32
    %20 = vector.broadcast %cst_14 : f32 to vector<1x8xf32>
    %21 = arith.mulf %20, %19 : vector<1x8xf32>
    %22 = vector.broadcast %21 : vector<1x8xf32> to vector<40x8xf32>
    %23 = arith.addf %18, %22 : vector<40x8xf32>
    %24 = vector.broadcast %8 : vector<40x1xf32> to vector<40x8xf32>
    %25 = arith.mulf %23, %24 : vector<40x8xf32>
    %cst_15 = arith.constant 0.000000e+00 : f32
    %26 = vector.broadcast %cst_15 : f32 to vector<40x8xf32>
    %27 = arith.maximumf %25, %26 : vector<40x8xf32>
    %28 = arith.truncf %27 : vector<40x8xf32> to vector<40x8xbf16>
    %cst_16 = arith.constant dense<0.000000e+00> : vector<40x8xf32>
    %29 = tpu.matmul %3, %28, %cst_16 {dimension_numbers = #tpu.dot_dimension_numbers<[1], [0], [0], [1], [0, 0, 1, 1], [], []>} : vector<40x40xbf16>, vector<40x8xbf16>, vector<40x8xf32> -> vector<40x8xf32>
    %30 = arith.addf %29, %27 : vector<40x8xf32>
    %31 = arith.truncf %30 : vector<40x8xf32> to vector<40x8xbf16>
    %32 = tpu.concatenate %16, %31 in 1 : vector<40x40xbf16>, vector<40x8xbf16> -> vector<40x48xbf16>
    %33 = vector.extract_strided_slice %11 {offsets = [0, 8], sizes = [48, 8], strides = [1, 1]} : vector<72x40xbf16> to vector<48x8xbf16>
    %cst_17 = arith.constant dense<0.000000e+00> : vector<40x8xf32>
    %34 = tpu.matmul %32, %33, %cst_17 {dimension_numbers = #tpu.dot_dimension_numbers<[1], [0], [0], [1], [0, 0, 1, 1], [], []>} : vector<40x48xbf16>, vector<48x8xbf16>, vector<40x8xf32> -> vector<40x8xf32>
    %35 = vector.extract_strided_slice %13 {offsets = [1, 0], sizes = [1, 8], strides = [1, 1]} : vector<5x8xf32> to vector<1x8xf32>
    %cst_18 = arith.constant 2.000000e+00 : f32
    %36 = vector.broadcast %cst_18 : f32 to vector<1x8xf32>
    %37 = arith.mulf %36, %35 : vector<1x8xf32>
    %38 = vector.broadcast %37 : vector<1x8xf32> to vector<40x8xf32>
    %39 = arith.addf %34, %38 : vector<40x8xf32>
    %40 = vector.broadcast %8 : vector<40x1xf32> to vector<40x8xf32>
    %41 = arith.mulf %39, %40 : vector<40x8xf32>
    %cst_19 = arith.constant 0.000000e+00 : f32
    %42 = vector.broadcast %cst_19 : f32 to vector<40x8xf32>
    %43 = arith.maximumf %41, %42 : vector<40x8xf32>
    %44 = arith.truncf %43 : vector<40x8xf32> to vector<40x8xbf16>
    %cst_20 = arith.constant dense<0.000000e+00> : vector<40x8xf32>
    %45 = tpu.matmul %3, %44, %cst_20 {dimension_numbers = #tpu.dot_dimension_numbers<[1], [0], [0], [1], [0, 0, 1, 1], [], []>} : vector<40x40xbf16>, vector<40x8xbf16>, vector<40x8xf32> -> vector<40x8xf32>
    %46 = arith.addf %45, %43 : vector<40x8xf32>
    %47 = arith.truncf %46 : vector<40x8xf32> to vector<40x8xbf16>
    %48 = tpu.concatenate %32, %47 in 1 : vector<40x48xbf16>, vector<40x8xbf16> -> vector<40x56xbf16>
    %49 = vector.extract_strided_slice %11 {offsets = [0, 16], sizes = [56, 8], strides = [1, 1]} : vector<72x40xbf16> to vector<56x8xbf16>
    %cst_21 = arith.constant dense<0.000000e+00> : vector<40x8xf32>
    %50 = tpu.matmul %48, %49, %cst_21 {dimension_numbers = #tpu.dot_dimension_numbers<[1], [0], [0], [1], [0, 0, 1, 1], [], []>} : vector<40x56xbf16>, vector<56x8xbf16>, vector<40x8xf32> -> vector<40x8xf32>
    %51 = vector.extract_strided_slice %13 {offsets = [2, 0], sizes = [1, 8], strides = [1, 1]} : vector<5x8xf32> to vector<1x8xf32>
    %cst_22 = arith.constant 2.000000e+00 : f32
    %52 = vector.broadcast %cst_22 : f32 to vector<1x8xf32>
    %53 = arith.mulf %52, %51 : vector<1x8xf32>
    %54 = vector.broadcast %53 : vector<1x8xf32> to vector<40x8xf32>
    %55 = arith.addf %50, %54 : vector<40x8xf32>
    %56 = vector.broadcast %8 : vector<40x1xf32> to vector<40x8xf32>
    %57 = arith.mulf %55, %56 : vector<40x8xf32>
    %cst_23 = arith.constant 0.000000e+00 : f32
    %58 = vector.broadcast %cst_23 : f32 to vector<40x8xf32>
    %59 = arith.maximumf %57, %58 : vector<40x8xf32>
    %60 = arith.truncf %59 : vector<40x8xf32> to vector<40x8xbf16>
    %cst_24 = arith.constant dense<0.000000e+00> : vector<40x8xf32>
    %61 = tpu.matmul %3, %60, %cst_24 {dimension_numbers = #tpu.dot_dimension_numbers<[1], [0], [0], [1], [0, 0, 1, 1], [], []>} : vector<40x40xbf16>, vector<40x8xbf16>, vector<40x8xf32> -> vector<40x8xf32>
    %62 = arith.addf %61, %59 : vector<40x8xf32>
    %63 = arith.truncf %62 : vector<40x8xf32> to vector<40x8xbf16>
    %64 = tpu.concatenate %48, %63 in 1 : vector<40x56xbf16>, vector<40x8xbf16> -> vector<40x64xbf16>
    %65 = vector.extract_strided_slice %11 {offsets = [0, 24], sizes = [64, 8], strides = [1, 1]} : vector<72x40xbf16> to vector<64x8xbf16>
    %cst_25 = arith.constant dense<0.000000e+00> : vector<40x8xf32>
    %66 = tpu.matmul %64, %65, %cst_25 {dimension_numbers = #tpu.dot_dimension_numbers<[1], [0], [0], [1], [0, 0, 1, 1], [], []>} : vector<40x64xbf16>, vector<64x8xbf16>, vector<40x8xf32> -> vector<40x8xf32>
    %67 = vector.extract_strided_slice %13 {offsets = [3, 0], sizes = [1, 8], strides = [1, 1]} : vector<5x8xf32> to vector<1x8xf32>
    %cst_26 = arith.constant 2.000000e+00 : f32
    %68 = vector.broadcast %cst_26 : f32 to vector<1x8xf32>
    %69 = arith.mulf %68, %67 : vector<1x8xf32>
    %70 = vector.broadcast %69 : vector<1x8xf32> to vector<40x8xf32>
    %71 = arith.addf %66, %70 : vector<40x8xf32>
    %72 = vector.broadcast %8 : vector<40x1xf32> to vector<40x8xf32>
    %73 = arith.mulf %71, %72 : vector<40x8xf32>
    %cst_27 = arith.constant 0.000000e+00 : f32
    %74 = vector.broadcast %cst_27 : f32 to vector<40x8xf32>
    %75 = arith.maximumf %73, %74 : vector<40x8xf32>
    %76 = arith.truncf %75 : vector<40x8xf32> to vector<40x8xbf16>
    %cst_28 = arith.constant dense<0.000000e+00> : vector<40x8xf32>
    %77 = tpu.matmul %3, %76, %cst_28 {dimension_numbers = #tpu.dot_dimension_numbers<[1], [0], [0], [1], [0, 0, 1, 1], [], []>} : vector<40x40xbf16>, vector<40x8xbf16>, vector<40x8xf32> -> vector<40x8xf32>
    %78 = arith.addf %77, %75 : vector<40x8xf32>
    %79 = arith.truncf %78 : vector<40x8xf32> to vector<40x8xbf16>
    %80 = tpu.concatenate %64, %79 in 1 : vector<40x64xbf16>, vector<40x8xbf16> -> vector<40x72xbf16>
    %81 = vector.extract_strided_slice %11 {offsets = [0, 32], sizes = [72, 8], strides = [1, 1]} : vector<72x40xbf16> to vector<72x8xbf16>
    %cst_29 = arith.constant dense<0.000000e+00> : vector<40x8xf32>
    %82 = tpu.matmul %80, %81, %cst_29 {dimension_numbers = #tpu.dot_dimension_numbers<[1], [0], [0], [1], [0, 0, 1, 1], [], []>} : vector<40x72xbf16>, vector<72x8xbf16>, vector<40x8xf32> -> vector<40x8xf32>
    %83 = vector.extract_strided_slice %13 {offsets = [4, 0], sizes = [1, 8], strides = [1, 1]} : vector<5x8xf32> to vector<1x8xf32>
    %cst_30 = arith.constant 2.000000e+00 : f32
    %84 = vector.broadcast %cst_30 : f32 to vector<1x8xf32>
    %85 = arith.mulf %84, %83 : vector<1x8xf32>
    %86 = vector.broadcast %85 : vector<1x8xf32> to vector<40x8xf32>
    %87 = arith.addf %82, %86 : vector<40x8xf32>
    %88 = vector.broadcast %8 : vector<40x1xf32> to vector<40x8xf32>
    %89 = arith.mulf %87, %88 : vector<40x8xf32>
    %cst_31 = arith.constant 0.000000e+00 : f32
    %90 = vector.broadcast %cst_31 : f32 to vector<40x8xf32>
    %91 = arith.maximumf %89, %90 : vector<40x8xf32>
    %92 = tpu.concatenate %27, %43, %59, %75, %91 in 1 : vector<40x8xf32>, vector<40x8xf32>, vector<40x8xf32>, vector<40x8xf32>, vector<40x8xf32> -> vector<40x40xf32>
    %93 = arith.addf %92, %1 : vector<40x40xf32>
    %94 = arith.truncf %93 : vector<40x40xf32> to vector<40x40xbf16>
    %c0_32 = arith.constant 0 : index
    %c0_33 = arith.constant 0 : index
    %c0_34 = arith.constant 0 : index
    %95 = vector.load %arg14[%c0_32, %c0_33, %c0_34] : memref<4x40x40xbf16, #tpu.memory_space<vmem>>, vector<1x40x40xbf16>
    %96 = vector.shape_cast %95 : vector<1x40x40xbf16> to vector<40x40xbf16>
    %cst_35 = arith.constant dense<0.000000e+00> : vector<40x40xf32>
    %97 = tpu.matmul %94, %96, %cst_35 {dimension_numbers = #tpu.dot_dimension_numbers<[1], [0], [0], [1], [0, 0, 1, 1], [], []>} : vector<40x40xbf16>, vector<40x40xbf16>, vector<40x40xf32> -> vector<40x40xf32>
    %c0_36 = arith.constant 0 : index
    %c0_37 = arith.constant 0 : index
    %c0_38 = arith.constant 0 : index
    %98 = vector.load %arg15[%c0_36, %c0_37, %c0_38] : memref<4x1x40xf32, #tpu.memory_space<vmem>>, vector<1x1x40xf32>
    %99 = vector.shape_cast %98 : vector<1x1x40xf32> to vector<1x40xf32>
    %100 = vector.broadcast %99 : vector<1x40xf32> to vector<40x40xf32>
    %101 = arith.addf %97, %100 : vector<40x40xf32>
    %c0_39 = arith.constant 0 : index
    %c0_40 = arith.constant 0 : index
    %c0_41 = arith.constant 0 : index
    %102 = vector.load %arg9[%c0_39, %c0_40, %c0_41] : memref<1x40x1xf32, #tpu.memory_space<vmem>>, vector<1x40x1xf32>
    %103 = vector.shape_cast %102 : vector<1x40x1xf32> to vector<40x1xf32>
    %104 = arith.truncf %101 : vector<40x40xf32> to vector<40x40xbf16>
    %c0_42 = arith.constant 0 : index
    %c0_43 = arith.constant 0 : index
    %c0_44 = arith.constant 0 : index
    %105 = vector.load %arg16[%c0_42, %c0_43, %c0_44] : memref<3x40x16xbf16, #tpu.memory_space<vmem>>, vector<1x40x16xbf16>
    %106 = vector.shape_cast %105 : vector<1x40x16xbf16> to vector<40x16xbf16>
    %cst_45 = arith.constant dense<0.000000e+00> : vector<40x16xf32>
    %107 = tpu.matmul %104, %106, %cst_45 {dimension_numbers = #tpu.dot_dimension_numbers<[1], [0], [0], [1], [0, 0, 1, 1], [], []>} : vector<40x40xbf16>, vector<40x16xbf16>, vector<40x16xf32> -> vector<40x16xf32>
    %c0_46 = arith.constant 0 : index
    %c0_47 = arith.constant 0 : index
    %c0_48 = arith.constant 0 : index
    %108 = vector.load %arg17[%c0_46, %c0_47, %c0_48] : memref<3x1x16xf32, #tpu.memory_space<vmem>>, vector<1x1x16xf32>
    %109 = vector.shape_cast %108 : vector<1x1x16xf32> to vector<1x16xf32>
    %110 = vector.broadcast %109 : vector<1x16xf32> to vector<40x16xf32>
    %111 = arith.addf %107, %110 : vector<40x16xf32>
    %cst_49 = arith.constant 0.000000e+00 : f32
    %112 = vector.broadcast %cst_49 : f32 to vector<40x16xf32>
    %113 = arith.maximumf %111, %112 : vector<40x16xf32>
    %c0_50 = arith.constant 0 : index
    %c0_51 = arith.constant 0 : index
    %c0_52 = arith.constant 0 : index
    %114 = vector.load %arg18[%c0_50, %c0_51, %c0_52] : memref<3x1x16xf32, #tpu.memory_space<vmem>>, vector<1x1x16xf32>
    %115 = vector.shape_cast %114 : vector<1x1x16xf32> to vector<1x16xf32>
    %116 = vector.broadcast %115 : vector<1x16xf32> to vector<40x16xf32>
    %117 = arith.mulf %113, %116 : vector<40x16xf32>
    %cst_53 = arith.constant dense<0.000000e+00> : vector<40xf32>
    %118 = vector.multi_reduction <add>, %117, %cst_53 [1] : vector<40x16xf32> to vector<40xf32>
    %119 = vector.shape_cast %118 : vector<40xf32> to vector<40x1xf32>
    %c0_54 = arith.constant 0 : index
    %c0_55 = arith.constant 0 : index
    %c0_56 = arith.constant 0 : index
    %120 = vector.load %arg19[%c0_54, %c0_55, %c0_56] : memref<3x1x1xf32, #tpu.memory_space<vmem>>, vector<1x1x1xf32>
    %121 = vector.shape_cast %120 : vector<1x1x1xf32> to vector<1x1xf32>
    %122 = vector.broadcast %121 : vector<1x1xf32> to vector<40x1xf32>
    %123 = arith.addf %119, %122 : vector<40x1xf32>
    %cst_57 = arith.constant 5.000000e-01 : f32
    %124 = vector.broadcast %cst_57 : f32 to vector<40x1xf32>
    %125 = arith.cmpf ogt, %103, %124 : vector<40x1xf32>
    %cst_58 = arith.constant -1.000000e+09 : f32
    %126 = vector.broadcast %cst_58 : f32 to vector<40x1xf32>
    %127 = arith.select %125, %126, %123 : vector<40x1xi1>, vector<40x1xf32>
    %128 = tpu.iota {dimensions = array<i32: 0>} : vector<40x1xi32>
    %c0_i32 = arith.constant 0 : i32
    %129 = vector.broadcast %c0_i32 : i32 to vector<40x1xi32>
    %130 = arith.cmpi sge, %128, %129 : vector<40x1xi32>
    %c20_i32 = arith.constant 20 : i32
    %131 = vector.broadcast %c20_i32 : i32 to vector<40x1xi32>
    %132 = arith.cmpi slt, %128, %131 : vector<40x1xi32>
    %133 = arith.andi %130, %132 : vector<40x1xi1>
    %cst_59 = arith.constant -1.000000e+09 : f32
    %134 = vector.broadcast %cst_59 : f32 to vector<40x1xf32>
    %135 = arith.select %133, %127, %134 : vector<40x1xi1>, vector<40x1xf32>
    %cst_60 = arith.constant dense<0xFF800000> : vector<1xf32>
    %136 = vector.multi_reduction <maximumf>, %135, %cst_60 [0] : vector<40x1xf32> to vector<1xf32>
    %137 = vector.shape_cast %136 : vector<1xf32> to vector<1x1xf32>
    %138 = vector.broadcast %137 : vector<1x1xf32> to vector<40x1xf32>
    %139 = arith.subf %127, %138 : vector<40x1xf32>
    %140 = math.exp %139 : vector<40x1xf32>
    %cst_61 = arith.constant 0.000000e+00 : f32
    %141 = vector.broadcast %cst_61 : f32 to vector<40x1xf32>
    %142 = arith.select %133, %140, %141 : vector<40x1xi1>, vector<40x1xf32>
    %cst_62 = arith.constant dense<0.000000e+00> : vector<1xf32>
    %143 = vector.multi_reduction <add>, %142, %cst_62 [0] : vector<40x1xf32> to vector<1xf32>
    %144 = vector.shape_cast %143 : vector<1xf32> to vector<1x1xf32>
    %145 = vector.broadcast %144 : vector<1x1xf32> to vector<40x1xf32>
    %146 = arith.divf %142, %145 : vector<40x1xf32>
    %147 = vector.broadcast %146 : vector<40x1xf32> to vector<40x40xf32>
    %148 = arith.mulf %147, %101 : vector<40x40xf32>
    %cst_63 = arith.constant dense<0.000000e+00> : vector<40xf32>
    %149 = vector.multi_reduction <add>, %148, %cst_63 [0] : vector<40x40xf32> to vector<40xf32>
    %150 = vector.shape_cast %149 : vector<40xf32> to vector<1x40xf32>
    %151 = arith.truncf %150 : vector<1x40xf32> to vector<1x40xbf16>
    %c0_64 = arith.constant 0 : index
    %c0_65 = arith.constant 0 : index
    %c0_66 = arith.constant 0 : index
    %152 = vector.load %arg20[%c0_64, %c0_65, %c0_66] : memref<3x40x40xbf16, #tpu.memory_space<vmem>>, vector<1x40x40xbf16>
    %153 = vector.shape_cast %152 : vector<1x40x40xbf16> to vector<40x40xbf16>
    %cst_67 = arith.constant dense<0.000000e+00> : vector<1x40xf32>
    %154 = tpu.matmul %151, %153, %cst_67 {dimension_numbers = #tpu.dot_dimension_numbers<[1], [0], [0], [1], [0, 0, 1, 1], [], []>} : vector<1x40xbf16>, vector<40x40xbf16>, vector<1x40xf32> -> vector<1x40xf32>
    %c0_68 = arith.constant 0 : index
    %c0_69 = arith.constant 0 : index
    %c0_70 = arith.constant 0 : index
    %155 = vector.load %arg21[%c0_68, %c0_69, %c0_70] : memref<3x1x40xf32, #tpu.memory_space<vmem>>, vector<1x1x40xf32>
    %156 = vector.shape_cast %155 : vector<1x1x40xf32> to vector<1x40xf32>
    %157 = arith.addf %154, %156 : vector<1x40xf32>
    %c20_i32_71 = arith.constant 20 : i32
    %158 = vector.broadcast %c20_i32_71 : i32 to vector<40x1xi32>
    %159 = arith.cmpi sge, %128, %158 : vector<40x1xi32>
    %c40_i32 = arith.constant 40 : i32
    %160 = vector.broadcast %c40_i32 : i32 to vector<40x1xi32>
    %161 = arith.cmpi slt, %128, %160 : vector<40x1xi32>
    %162 = arith.andi %159, %161 : vector<40x1xi1>
    %cst_72 = arith.constant -1.000000e+09 : f32
    %163 = vector.broadcast %cst_72 : f32 to vector<40x1xf32>
    %164 = arith.select %162, %127, %163 : vector<40x1xi1>, vector<40x1xf32>
    %cst_73 = arith.constant dense<0xFF800000> : vector<1xf32>
    %165 = vector.multi_reduction <maximumf>, %164, %cst_73 [0] : vector<40x1xf32> to vector<1xf32>
    %166 = vector.shape_cast %165 : vector<1xf32> to vector<1x1xf32>
    %167 = vector.broadcast %166 : vector<1x1xf32> to vector<40x1xf32>
    %168 = arith.subf %127, %167 : vector<40x1xf32>
    %169 = math.exp %168 : vector<40x1xf32>
    %cst_74 = arith.constant 0.000000e+00 : f32
    %170 = vector.broadcast %cst_74 : f32 to vector<40x1xf32>
    %171 = arith.select %162, %169, %170 : vector<40x1xi1>, vector<40x1xf32>
    %cst_75 = arith.constant dense<0.000000e+00> : vector<1xf32>
    %172 = vector.multi_reduction <add>, %171, %cst_75 [0] : vector<40x1xf32> to vector<1xf32>
    %173 = vector.shape_cast %172 : vector<1xf32> to vector<1x1xf32>
    %174 = vector.broadcast %173 : vector<1x1xf32> to vector<40x1xf32>
    %175 = arith.divf %171, %174 : vector<40x1xf32>
    %176 = vector.broadcast %175 : vector<40x1xf32> to vector<40x40xf32>
    %177 = arith.mulf %176, %101 : vector<40x40xf32>
    %cst_76 = arith.constant dense<0.000000e+00> : vector<40xf32>
    %178 = vector.multi_reduction <add>, %177, %cst_76 [0] : vector<40x40xf32> to vector<40xf32>
    %179 = vector.shape_cast %178 : vector<40xf32> to vector<1x40xf32>
    %180 = arith.truncf %179 : vector<1x40xf32> to vector<1x40xbf16>
    %c0_77 = arith.constant 0 : index
    %c0_78 = arith.constant 0 : index
    %c0_79 = arith.constant 0 : index
    %181 = vector.load %arg20[%c0_77, %c0_78, %c0_79] : memref<3x40x40xbf16, #tpu.memory_space<vmem>>, vector<1x40x40xbf16>
    %182 = vector.shape_cast %181 : vector<1x40x40xbf16> to vector<40x40xbf16>
    %cst_80 = arith.constant dense<0.000000e+00> : vector<1x40xf32>
    %183 = tpu.matmul %180, %182, %cst_80 {dimension_numbers = #tpu.dot_dimension_numbers<[1], [0], [0], [1], [0, 0, 1, 1], [], []>} : vector<1x40xbf16>, vector<40x40xbf16>, vector<1x40xf32> -> vector<1x40xf32>
    %c0_81 = arith.constant 0 : index
    %c0_82 = arith.constant 0 : index
    %c0_83 = arith.constant 0 : index
    %184 = vector.load %arg21[%c0_81, %c0_82, %c0_83] : memref<3x1x40xf32, #tpu.memory_space<vmem>>, vector<1x1x40xf32>
    %185 = vector.shape_cast %184 : vector<1x1x40xf32> to vector<1x40xf32>
    %186 = arith.addf %183, %185 : vector<1x40xf32>
    %c0_84 = arith.constant 0 : index
    %c0_85 = arith.constant 0 : index
    %c0_86 = arith.constant 0 : index
    %187 = vector.load %arg2[%c0_84, %c0_85, %c0_86] : memref<1x42x40xf32, #tpu.memory_space<vmem>>, vector<1x42x40xf32>
    %188 = vector.shape_cast %187 : vector<1x42x40xf32> to vector<42x40xf32>
    %189 = tpu.iota {dimensions = array<i32: 0>} : vector<42x1xi32>
    %c20_i32_87 = arith.constant 20 : i32
    %190 = vector.broadcast %c20_i32_87 : i32 to vector<42x1xi32>
    %191 = arith.cmpi eq, %189, %190 : vector<42x1xi32>
    %192 = arith.extui %191 : vector<42x1xi1> to vector<42x1xi32>
    %193 = arith.sitofp %192 : vector<42x1xi32> to vector<42x1xf32>
    %194 = vector.broadcast %193 : vector<42x1xf32> to vector<42x40xf32>
    %195 = vector.broadcast %157 : vector<1x40xf32> to vector<42x40xf32>
    %196 = arith.mulf %194, %195 : vector<42x40xf32>
    %197 = arith.addf %188, %196 : vector<42x40xf32>
    %c41_i32 = arith.constant 41 : i32
    %198 = vector.broadcast %c41_i32 : i32 to vector<42x1xi32>
    %199 = arith.cmpi eq, %189, %198 : vector<42x1xi32>
    %200 = arith.extui %199 : vector<42x1xi1> to vector<42x1xi32>
    %201 = arith.sitofp %200 : vector<42x1xi32> to vector<42x1xf32>
    %202 = vector.broadcast %201 : vector<42x1xf32> to vector<42x40xf32>
    %203 = vector.broadcast %186 : vector<1x40xf32> to vector<42x40xf32>
    %204 = arith.mulf %202, %203 : vector<42x40xf32>
    %205 = arith.addf %197, %204 : vector<42x40xf32>
    %c0_88 = arith.constant 0 : index
    %c0_89 = arith.constant 0 : index
    %c0_90 = arith.constant 0 : index
    %206 = vector.load %arg6[%c0_88, %c0_89, %c0_90] : memref<1x42x42xbf16, #tpu.memory_space<vmem>>, vector<1x42x42xbf16>
    %207 = vector.shape_cast %206 : vector<1x42x42xbf16> to vector<42x42xbf16>
    %208 = arith.extf %207 : vector<42x42xbf16> to vector<42x42xf32>
    %cst_91 = arith.constant dense<0.000000e+00> : vector<42xf32>
    %209 = vector.multi_reduction <add>, %208, %cst_91 [1] : vector<42x42xf32> to vector<42xf32>
    %210 = vector.shape_cast %209 : vector<42xf32> to vector<42x1xf32>
    %cst_92 = arith.constant 1.000000e+00 : f32
    %211 = vector.broadcast %cst_92 : f32 to vector<42x1xf32>
    %212 = arith.divf %211, %210 : vector<42x1xf32>
    %213 = arith.truncf %205 : vector<42x40xf32> to vector<42x40xbf16>
    %c1 = arith.constant 1 : index
    %c0_93 = arith.constant 0 : index
    %c0_94 = arith.constant 0 : index
    %214 = vector.load %arg12[%c1, %c0_93, %c0_94] : memref<4x72x40xbf16, #tpu.memory_space<vmem>>, vector<1x72x40xbf16>
    %215 = vector.shape_cast %214 : vector<1x72x40xbf16> to vector<72x40xbf16>
    %c1_95 = arith.constant 1 : index
    %c0_96 = arith.constant 0 : index
    %c0_97 = arith.constant 0 : index
    %216 = vector.load %arg13[%c1_95, %c0_96, %c0_97] : memref<4x5x8xf32, #tpu.memory_space<vmem>>, vector<1x5x8xf32>
    %217 = vector.shape_cast %216 : vector<1x5x8xf32> to vector<5x8xf32>
    %cst_98 = arith.constant dense<0.000000e+00> : vector<42x40xf32>
    %218 = tpu.matmul %207, %213, %cst_98 {dimension_numbers = #tpu.dot_dimension_numbers<[1], [0], [0], [1], [0, 0, 1, 1], [], []>} : vector<42x42xbf16>, vector<42x40xbf16>, vector<42x40xf32> -> vector<42x40xf32>
    %219 = arith.addf %218, %205 : vector<42x40xf32>
    %220 = arith.truncf %219 : vector<42x40xf32> to vector<42x40xbf16>
    %221 = vector.extract_strided_slice %215 {offsets = [0, 0], sizes = [40, 8], strides = [1, 1]} : vector<72x40xbf16> to vector<40x8xbf16>
    %cst_99 = arith.constant dense<0.000000e+00> : vector<42x8xf32>
    %222 = tpu.matmul %220, %221, %cst_99 {dimension_numbers = #tpu.dot_dimension_numbers<[1], [0], [0], [1], [0, 0, 1, 1], [], []>} : vector<42x40xbf16>, vector<40x8xbf16>, vector<42x8xf32> -> vector<42x8xf32>
    %223 = vector.extract_strided_slice %217 {offsets = [0, 0], sizes = [1, 8], strides = [1, 1]} : vector<5x8xf32> to vector<1x8xf32>
    %cst_100 = arith.constant 2.000000e+00 : f32
    %224 = vector.broadcast %cst_100 : f32 to vector<1x8xf32>
    %225 = arith.mulf %224, %223 : vector<1x8xf32>
    %226 = vector.broadcast %225 : vector<1x8xf32> to vector<42x8xf32>
    %227 = arith.addf %222, %226 : vector<42x8xf32>
    %228 = vector.broadcast %212 : vector<42x1xf32> to vector<42x8xf32>
    %229 = arith.mulf %227, %228 : vector<42x8xf32>
    %cst_101 = arith.constant 0.000000e+00 : f32
    %230 = vector.broadcast %cst_101 : f32 to vector<42x8xf32>
    %231 = arith.maximumf %229, %230 : vector<42x8xf32>
    %232 = arith.truncf %231 : vector<42x8xf32> to vector<42x8xbf16>
    %cst_102 = arith.constant dense<0.000000e+00> : vector<42x8xf32>
    %233 = tpu.matmul %207, %232, %cst_102 {dimension_numbers = #tpu.dot_dimension_numbers<[1], [0], [0], [1], [0, 0, 1, 1], [], []>} : vector<42x42xbf16>, vector<42x8xbf16>, vector<42x8xf32> -> vector<42x8xf32>
    %234 = arith.addf %233, %231 : vector<42x8xf32>
    %235 = arith.truncf %234 : vector<42x8xf32> to vector<42x8xbf16>
    %236 = tpu.concatenate %220, %235 in 1 : vector<42x40xbf16>, vector<42x8xbf16> -> vector<42x48xbf16>
    %237 = vector.extract_strided_slice %215 {offsets = [0, 8], sizes = [48, 8], strides = [1, 1]} : vector<72x40xbf16> to vector<48x8xbf16>
    %cst_103 = arith.constant dense<0.000000e+00> : vector<42x8xf32>
    %238 = tpu.matmul %236, %237, %cst_103 {dimension_numbers = #tpu.dot_dimension_numbers<[1], [0], [0], [1], [0, 0, 1, 1], [], []>} : vector<42x48xbf16>, vector<48x8xbf16>, vector<42x8xf32> -> vector<42x8xf32>
    %239 = vector.extract_strided_slice %217 {offsets = [1, 0], sizes = [1, 8], strides = [1, 1]} : vector<5x8xf32> to vector<1x8xf32>
    %cst_104 = arith.constant 2.000000e+00 : f32
    %240 = vector.broadcast %cst_104 : f32 to vector<1x8xf32>
    %241 = arith.mulf %240, %239 : vector<1x8xf32>
    %242 = vector.broadcast %241 : vector<1x8xf32> to vector<42x8xf32>
    %243 = arith.addf %238, %242 : vector<42x8xf32>
    %244 = vector.broadcast %212 : vector<42x1xf32> to vector<42x8xf32>
    %245 = arith.mulf %243, %244 : vector<42x8xf32>
    %cst_105 = arith.constant 0.000000e+00 : f32
    %246 = vector.broadcast %cst_105 : f32 to vector<42x8xf32>
    %247 = arith.maximumf %245, %246 : vector<42x8xf32>
    %248 = arith.truncf %247 : vector<42x8xf32> to vector<42x8xbf16>
    %cst_106 = arith.constant dense<0.000000e+00> : vector<42x8xf32>
    %249 = tpu.matmul %207, %248, %cst_106 {dimension_numbers = #tpu.dot_dimension_numbers<[1], [0], [0], [1], [0, 0, 1, 1], [], []>} : vector<42x42xbf16>, vector<42x8xbf16>, vector<42x8xf32> -> vector<42x8xf32>
    %250 = arith.addf %249, %247 : vector<42x8xf32>
    %251 = arith.truncf %250 : vector<42x8xf32> to vector<42x8xbf16>
    %252 = tpu.concatenate %236, %251 in 1 : vector<42x48xbf16>, vector<42x8xbf16> -> vector<42x56xbf16>
    %253 = vector.extract_strided_slice %215 {offsets = [0, 16], sizes = [56, 8], strides = [1, 1]} : vector<72x40xbf16> to vector<56x8xbf16>
    %cst_107 = arith.constant dense<0.000000e+00> : vector<42x8xf32>
    %254 = tpu.matmul %252, %253, %cst_107 {dimension_numbers = #tpu.dot_dimension_numbers<[1], [0], [0], [1], [0, 0, 1, 1], [], []>} : vector<42x56xbf16>, vector<56x8xbf16>, vector<42x8xf32> -> vector<42x8xf32>
    %255 = vector.extract_strided_slice %217 {offsets = [2, 0], sizes = [1, 8], strides = [1, 1]} : vector<5x8xf32> to vector<1x8xf32>
    %cst_108 = arith.constant 2.000000e+00 : f32
    %256 = vector.broadcast %cst_108 : f32 to vector<1x8xf32>
    %257 = arith.mulf %256, %255 : vector<1x8xf32>
    %258 = vector.broadcast %257 : vector<1x8xf32> to vector<42x8xf32>
    %259 = arith.addf %254, %258 : vector<42x8xf32>
    %260 = vector.broadcast %212 : vector<42x1xf32> to vector<42x8xf32>
    %261 = arith.mulf %259, %260 : vector<42x8xf32>
    %cst_109 = arith.constant 0.000000e+00 : f32
    %262 = vector.broadcast %cst_109 : f32 to vector<42x8xf32>
    %263 = arith.maximumf %261, %262 : vector<42x8xf32>
    %264 = arith.truncf %263 : vector<42x8xf32> to vector<42x8xbf16>
    %cst_110 = arith.constant dense<0.000000e+00> : vector<42x8xf32>
    %265 = tpu.matmul %207, %264, %cst_110 {dimension_numbers = #tpu.dot_dimension_numbers<[1], [0], [0], [1], [0, 0, 1, 1], [], []>} : vector<42x42xbf16>, vector<42x8xbf16>, vector<42x8xf32> -> vector<42x8xf32>
    %266 = arith.addf %265, %263 : vector<42x8xf32>
    %267 = arith.truncf %266 : vector<42x8xf32> to vector<42x8xbf16>
    %268 = tpu.concatenate %252, %267 in 1 : vector<42x56xbf16>, vector<42x8xbf16> -> vector<42x64xbf16>
    %269 = vector.extract_strided_slice %215 {offsets = [0, 24], sizes = [64, 8], strides = [1, 1]} : vector<72x40xbf16> to vector<64x8xbf16>
    %cst_111 = arith.constant dense<0.000000e+00> : vector<42x8xf32>
    %270 = tpu.matmul %268, %269, %cst_111 {dimension_numbers = #tpu.dot_dimension_numbers<[1], [0], [0], [1], [0, 0, 1, 1], [], []>} : vector<42x64xbf16>, vector<64x8xbf16>, vector<42x8xf32> -> vector<42x8xf32>
    %271 = vector.extract_strided_slice %217 {offsets = [3, 0], sizes = [1, 8], strides = [1, 1]} : vector<5x8xf32> to vector<1x8xf32>
    %cst_112 = arith.constant 2.000000e+00 : f32
    %272 = vector.broadcast %cst_112 : f32 to vector<1x8xf32>
    %273 = arith.mulf %272, %271 : vector<1x8xf32>
    %274 = vector.broadcast %273 : vector<1x8xf32> to vector<42x8xf32>
    %275 = arith.addf %270, %274 : vector<42x8xf32>
    %276 = vector.broadcast %212 : vector<42x1xf32> to vector<42x8xf32>
    %277 = arith.mulf %275, %276 : vector<42x8xf32>
    %cst_113 = arith.constant 0.000000e+00 : f32
    %278 = vector.broadcast %cst_113 : f32 to vector<42x8xf32>
    %279 = arith.maximumf %277, %278 : vector<42x8xf32>
    %280 = arith.truncf %279 : vector<42x8xf32> to vector<42x8xbf16>
    %cst_114 = arith.constant dense<0.000000e+00> : vector<42x8xf32>
    %281 = tpu.matmul %207, %280, %cst_114 {dimension_numbers = #tpu.dot_dimension_numbers<[1], [0], [0], [1], [0, 0, 1, 1], [], []>} : vector<42x42xbf16>, vector<42x8xbf16>, vector<42x8xf32> -> vector<42x8xf32>
    %282 = arith.addf %281, %279 : vector<42x8xf32>
    %283 = arith.truncf %282 : vector<42x8xf32> to vector<42x8xbf16>
    %284 = tpu.concatenate %268, %283 in 1 : vector<42x64xbf16>, vector<42x8xbf16> -> vector<42x72xbf16>
    %285 = vector.extract_strided_slice %215 {offsets = [0, 32], sizes = [72, 8], strides = [1, 1]} : vector<72x40xbf16> to vector<72x8xbf16>
    %cst_115 = arith.constant dense<0.000000e+00> : vector<42x8xf32>
    %286 = tpu.matmul %284, %285, %cst_115 {dimension_numbers = #tpu.dot_dimension_numbers<[1], [0], [0], [1], [0, 0, 1, 1], [], []>} : vector<42x72xbf16>, vector<72x8xbf16>, vector<42x8xf32> -> vector<42x8xf32>
    %287 = vector.extract_strided_slice %217 {offsets = [4, 0], sizes = [1, 8], strides = [1, 1]} : vector<5x8xf32> to vector<1x8xf32>
    %cst_116 = arith.constant 2.000000e+00 : f32
    %288 = vector.broadcast %cst_116 : f32 to vector<1x8xf32>
    %289 = arith.mulf %288, %287 : vector<1x8xf32>
    %290 = vector.broadcast %289 : vector<1x8xf32> to vector<42x8xf32>
    %291 = arith.addf %286, %290 : vector<42x8xf32>
    %292 = vector.broadcast %212 : vector<42x1xf32> to vector<42x8xf32>
    %293 = arith.mulf %291, %292 : vector<42x8xf32>
    %cst_117 = arith.constant 0.000000e+00 : f32
    %294 = vector.broadcast %cst_117 : f32 to vector<42x8xf32>
    %295 = arith.maximumf %293, %294 : vector<42x8xf32>
    %296 = tpu.concatenate %231, %247, %263, %279, %295 in 1 : vector<42x8xf32>, vector<42x8xf32>, vector<42x8xf32>, vector<42x8xf32>, vector<42x8xf32> -> vector<42x40xf32>
    %297 = arith.addf %296, %205 : vector<42x40xf32>
    %298 = arith.truncf %297 : vector<42x40xf32> to vector<42x40xbf16>
    %c1_118 = arith.constant 1 : index
    %c0_119 = arith.constant 0 : index
    %c0_120 = arith.constant 0 : index
    %299 = vector.load %arg14[%c1_118, %c0_119, %c0_120] : memref<4x40x40xbf16, #tpu.memory_space<vmem>>, vector<1x40x40xbf16>
    %300 = vector.shape_cast %299 : vector<1x40x40xbf16> to vector<40x40xbf16>
    %cst_121 = arith.constant dense<0.000000e+00> : vector<42x40xf32>
    %301 = tpu.matmul %298, %300, %cst_121 {dimension_numbers = #tpu.dot_dimension_numbers<[1], [0], [0], [1], [0, 0, 1, 1], [], []>} : vector<42x40xbf16>, vector<40x40xbf16>, vector<42x40xf32> -> vector<42x40xf32>
    %c1_122 = arith.constant 1 : index
    %c0_123 = arith.constant 0 : index
    %c0_124 = arith.constant 0 : index
    %302 = vector.load %arg15[%c1_122, %c0_123, %c0_124] : memref<4x1x40xf32, #tpu.memory_space<vmem>>, vector<1x1x40xf32>
    %303 = vector.shape_cast %302 : vector<1x1x40xf32> to vector<1x40xf32>
    %304 = vector.broadcast %303 : vector<1x40xf32> to vector<42x40xf32>
    %305 = arith.addf %301, %304 : vector<42x40xf32>
    %c0_125 = arith.constant 0 : index
    %c0_126 = arith.constant 0 : index
    %c0_127 = arith.constant 0 : index
    %306 = vector.load %arg10[%c0_125, %c0_126, %c0_127] : memref<1x42x1xf32, #tpu.memory_space<vmem>>, vector<1x42x1xf32>
    %307 = vector.shape_cast %306 : vector<1x42x1xf32> to vector<42x1xf32>
    %308 = arith.truncf %305 : vector<42x40xf32> to vector<42x40xbf16>
    %c1_128 = arith.constant 1 : index
    %c0_129 = arith.constant 0 : index
    %c0_130 = arith.constant 0 : index
    %309 = vector.load %arg16[%c1_128, %c0_129, %c0_130] : memref<3x40x16xbf16, #tpu.memory_space<vmem>>, vector<1x40x16xbf16>
    %310 = vector.shape_cast %309 : vector<1x40x16xbf16> to vector<40x16xbf16>
    %cst_131 = arith.constant dense<0.000000e+00> : vector<42x16xf32>
    %311 = tpu.matmul %308, %310, %cst_131 {dimension_numbers = #tpu.dot_dimension_numbers<[1], [0], [0], [1], [0, 0, 1, 1], [], []>} : vector<42x40xbf16>, vector<40x16xbf16>, vector<42x16xf32> -> vector<42x16xf32>
    %c1_132 = arith.constant 1 : index
    %c0_133 = arith.constant 0 : index
    %c0_134 = arith.constant 0 : index
    %312 = vector.load %arg17[%c1_132, %c0_133, %c0_134] : memref<3x1x16xf32, #tpu.memory_space<vmem>>, vector<1x1x16xf32>
    %313 = vector.shape_cast %312 : vector<1x1x16xf32> to vector<1x16xf32>
    %314 = vector.broadcast %313 : vector<1x16xf32> to vector<42x16xf32>
    %315 = arith.addf %311, %314 : vector<42x16xf32>
    %cst_135 = arith.constant 0.000000e+00 : f32
    %316 = vector.broadcast %cst_135 : f32 to vector<42x16xf32>
    %317 = arith.maximumf %315, %316 : vector<42x16xf32>
    %c1_136 = arith.constant 1 : index
    %c0_137 = arith.constant 0 : index
    %c0_138 = arith.constant 0 : index
    %318 = vector.load %arg18[%c1_136, %c0_137, %c0_138] : memref<3x1x16xf32, #tpu.memory_space<vmem>>, vector<1x1x16xf32>
    %319 = vector.shape_cast %318 : vector<1x1x16xf32> to vector<1x16xf32>
    %320 = vector.broadcast %319 : vector<1x16xf32> to vector<42x16xf32>
    %321 = arith.mulf %317, %320 : vector<42x16xf32>
    %cst_139 = arith.constant dense<0.000000e+00> : vector<42xf32>
    %322 = vector.multi_reduction <add>, %321, %cst_139 [1] : vector<42x16xf32> to vector<42xf32>
    %323 = vector.shape_cast %322 : vector<42xf32> to vector<42x1xf32>
    %c1_140 = arith.constant 1 : index
    %c0_141 = arith.constant 0 : index
    %c0_142 = arith.constant 0 : index
    %324 = vector.load %arg19[%c1_140, %c0_141, %c0_142] : memref<3x1x1xf32, #tpu.memory_space<vmem>>, vector<1x1x1xf32>
    %325 = vector.shape_cast %324 : vector<1x1x1xf32> to vector<1x1xf32>
    %326 = vector.broadcast %325 : vector<1x1xf32> to vector<42x1xf32>
    %327 = arith.addf %323, %326 : vector<42x1xf32>
    %cst_143 = arith.constant 5.000000e-01 : f32
    %328 = vector.broadcast %cst_143 : f32 to vector<42x1xf32>
    %329 = arith.cmpf ogt, %307, %328 : vector<42x1xf32>
    %cst_144 = arith.constant -1.000000e+09 : f32
    %330 = vector.broadcast %cst_144 : f32 to vector<42x1xf32>
    %331 = arith.select %329, %330, %327 : vector<42x1xi1>, vector<42x1xf32>
    %332 = tpu.iota {dimensions = array<i32: 0>} : vector<42x1xi32>
    %c0_i32_145 = arith.constant 0 : i32
    %333 = vector.broadcast %c0_i32_145 : i32 to vector<42x1xi32>
    %334 = arith.cmpi sge, %332, %333 : vector<42x1xi32>
    %c21_i32 = arith.constant 21 : i32
    %335 = vector.broadcast %c21_i32 : i32 to vector<42x1xi32>
    %336 = arith.cmpi slt, %332, %335 : vector<42x1xi32>
    %337 = arith.andi %334, %336 : vector<42x1xi1>
    %cst_146 = arith.constant -1.000000e+09 : f32
    %338 = vector.broadcast %cst_146 : f32 to vector<42x1xf32>
    %339 = arith.select %337, %331, %338 : vector<42x1xi1>, vector<42x1xf32>
    %cst_147 = arith.constant dense<0xFF800000> : vector<1xf32>
    %340 = vector.multi_reduction <maximumf>, %339, %cst_147 [0] : vector<42x1xf32> to vector<1xf32>
    %341 = vector.shape_cast %340 : vector<1xf32> to vector<1x1xf32>
    %342 = vector.broadcast %341 : vector<1x1xf32> to vector<42x1xf32>
    %343 = arith.subf %331, %342 : vector<42x1xf32>
    %344 = math.exp %343 : vector<42x1xf32>
    %cst_148 = arith.constant 0.000000e+00 : f32
    %345 = vector.broadcast %cst_148 : f32 to vector<42x1xf32>
    %346 = arith.select %337, %344, %345 : vector<42x1xi1>, vector<42x1xf32>
    %cst_149 = arith.constant dense<0.000000e+00> : vector<1xf32>
    %347 = vector.multi_reduction <add>, %346, %cst_149 [0] : vector<42x1xf32> to vector<1xf32>
    %348 = vector.shape_cast %347 : vector<1xf32> to vector<1x1xf32>
    %349 = vector.broadcast %348 : vector<1x1xf32> to vector<42x1xf32>
    %350 = arith.divf %346, %349 : vector<42x1xf32>
    %351 = vector.broadcast %350 : vector<42x1xf32> to vector<42x40xf32>
    %352 = arith.mulf %351, %305 : vector<42x40xf32>
    %cst_150 = arith.constant dense<0.000000e+00> : vector<40xf32>
    %353 = vector.multi_reduction <add>, %352, %cst_150 [0] : vector<42x40xf32> to vector<40xf32>
    %354 = vector.shape_cast %353 : vector<40xf32> to vector<1x40xf32>
    %355 = arith.truncf %354 : vector<1x40xf32> to vector<1x40xbf16>
    %c1_151 = arith.constant 1 : index
    %c0_152 = arith.constant 0 : index
    %c0_153 = arith.constant 0 : index
    %356 = vector.load %arg20[%c1_151, %c0_152, %c0_153] : memref<3x40x40xbf16, #tpu.memory_space<vmem>>, vector<1x40x40xbf16>
    %357 = vector.shape_cast %356 : vector<1x40x40xbf16> to vector<40x40xbf16>
    %cst_154 = arith.constant dense<0.000000e+00> : vector<1x40xf32>
    %358 = tpu.matmul %355, %357, %cst_154 {dimension_numbers = #tpu.dot_dimension_numbers<[1], [0], [0], [1], [0, 0, 1, 1], [], []>} : vector<1x40xbf16>, vector<40x40xbf16>, vector<1x40xf32> -> vector<1x40xf32>
    %c1_155 = arith.constant 1 : index
    %c0_156 = arith.constant 0 : index
    %c0_157 = arith.constant 0 : index
    %359 = vector.load %arg21[%c1_155, %c0_156, %c0_157] : memref<3x1x40xf32, #tpu.memory_space<vmem>>, vector<1x1x40xf32>
    %360 = vector.shape_cast %359 : vector<1x1x40xf32> to vector<1x40xf32>
    %361 = arith.addf %358, %360 : vector<1x40xf32>
    %c21_i32_158 = arith.constant 21 : i32
    %362 = vector.broadcast %c21_i32_158 : i32 to vector<42x1xi32>
    %363 = arith.cmpi sge, %332, %362 : vector<42x1xi32>
    %c42_i32 = arith.constant 42 : i32
    %364 = vector.broadcast %c42_i32 : i32 to vector<42x1xi32>
    %365 = arith.cmpi slt, %332, %364 : vector<42x1xi32>
    %366 = arith.andi %363, %365 : vector<42x1xi1>
    %cst_159 = arith.constant -1.000000e+09 : f32
    %367 = vector.broadcast %cst_159 : f32 to vector<42x1xf32>
    %368 = arith.select %366, %331, %367 : vector<42x1xi1>, vector<42x1xf32>
    %cst_160 = arith.constant dense<0xFF800000> : vector<1xf32>
    %369 = vector.multi_reduction <maximumf>, %368, %cst_160 [0] : vector<42x1xf32> to vector<1xf32>
    %370 = vector.shape_cast %369 : vector<1xf32> to vector<1x1xf32>
    %371 = vector.broadcast %370 : vector<1x1xf32> to vector<42x1xf32>
    %372 = arith.subf %331, %371 : vector<42x1xf32>
    %373 = math.exp %372 : vector<42x1xf32>
    %cst_161 = arith.constant 0.000000e+00 : f32
    %374 = vector.broadcast %cst_161 : f32 to vector<42x1xf32>
    %375 = arith.select %366, %373, %374 : vector<42x1xi1>, vector<42x1xf32>
    %cst_162 = arith.constant dense<0.000000e+00> : vector<1xf32>
    %376 = vector.multi_reduction <add>, %375, %cst_162 [0] : vector<42x1xf32> to vector<1xf32>
    %377 = vector.shape_cast %376 : vector<1xf32> to vector<1x1xf32>
    %378 = vector.broadcast %377 : vector<1x1xf32> to vector<42x1xf32>
    %379 = arith.divf %375, %378 : vector<42x1xf32>
    %380 = vector.broadcast %379 : vector<42x1xf32> to vector<42x40xf32>
    %381 = arith.mulf %380, %305 : vector<42x40xf32>
    %cst_163 = arith.constant dense<0.000000e+00> : vector<40xf32>
    %382 = vector.multi_reduction <add>, %381, %cst_163 [0] : vector<42x40xf32> to vector<40xf32>
    %383 = vector.shape_cast %382 : vector<40xf32> to vector<1x40xf32>
    %384 = arith.truncf %383 : vector<1x40xf32> to vector<1x40xbf16>
    %c1_164 = arith.constant 1 : index
    %c0_165 = arith.constant 0 : index
    %c0_166 = arith.constant 0 : index
    %385 = vector.load %arg20[%c1_164, %c0_165, %c0_166] : memref<3x40x40xbf16, #tpu.memory_space<vmem>>, vector<1x40x40xbf16>
    %386 = vector.shape_cast %385 : vector<1x40x40xbf16> to vector<40x40xbf16>
    %cst_167 = arith.constant dense<0.000000e+00> : vector<1x40xf32>
    %387 = tpu.matmul %384, %386, %cst_167 {dimension_numbers = #tpu.dot_dimension_numbers<[1], [0], [0], [1], [0, 0, 1, 1], [], []>} : vector<1x40xbf16>, vector<40x40xbf16>, vector<1x40xf32> -> vector<1x40xf32>
    %c1_168 = arith.constant 1 : index
    %c0_169 = arith.constant 0 : index
    %c0_170 = arith.constant 0 : index
    %388 = vector.load %arg21[%c1_168, %c0_169, %c0_170] : memref<3x1x40xf32, #tpu.memory_space<vmem>>, vector<1x1x40xf32>
    %389 = vector.shape_cast %388 : vector<1x1x40xf32> to vector<1x40xf32>
    %390 = arith.addf %387, %389 : vector<1x40xf32>
    %c0_171 = arith.constant 0 : index
    %c0_172 = arith.constant 0 : index
    %c0_173 = arith.constant 0 : index
    %391 = vector.load %arg3[%c0_171, %c0_172, %c0_173] : memref<1x44x40xf32, #tpu.memory_space<vmem>>, vector<1x44x40xf32>
    %392 = vector.shape_cast %391 : vector<1x44x40xf32> to vector<44x40xf32>
    %393 = tpu.iota {dimensions = array<i32: 0>} : vector<44x1xi32>
    %c20_i32_174 = arith.constant 20 : i32
    %394 = vector.broadcast %c20_i32_174 : i32 to vector<44x1xi32>
    %395 = arith.cmpi eq, %393, %394 : vector<44x1xi32>
    %396 = arith.extui %395 : vector<44x1xi1> to vector<44x1xi32>
    %397 = arith.sitofp %396 : vector<44x1xi32> to vector<44x1xf32>
    %398 = vector.broadcast %397 : vector<44x1xf32> to vector<44x40xf32>
    %399 = vector.broadcast %157 : vector<1x40xf32> to vector<44x40xf32>
    %400 = arith.mulf %398, %399 : vector<44x40xf32>
    %401 = arith.addf %392, %400 : vector<44x40xf32>
    %c42_i32_175 = arith.constant 42 : i32
    %402 = vector.broadcast %c42_i32_175 : i32 to vector<44x1xi32>
    %403 = arith.cmpi eq, %393, %402 : vector<44x1xi32>
    %404 = arith.extui %403 : vector<44x1xi1> to vector<44x1xi32>
    %405 = arith.sitofp %404 : vector<44x1xi32> to vector<44x1xf32>
    %406 = vector.broadcast %405 : vector<44x1xf32> to vector<44x40xf32>
    %407 = vector.broadcast %186 : vector<1x40xf32> to vector<44x40xf32>
    %408 = arith.mulf %406, %407 : vector<44x40xf32>
    %409 = arith.addf %401, %408 : vector<44x40xf32>
    %c21_i32_176 = arith.constant 21 : i32
    %410 = vector.broadcast %c21_i32_176 : i32 to vector<44x1xi32>
    %411 = arith.cmpi eq, %393, %410 : vector<44x1xi32>
    %412 = arith.extui %411 : vector<44x1xi1> to vector<44x1xi32>
    %413 = arith.sitofp %412 : vector<44x1xi32> to vector<44x1xf32>
    %414 = vector.broadcast %413 : vector<44x1xf32> to vector<44x40xf32>
    %415 = vector.broadcast %361 : vector<1x40xf32> to vector<44x40xf32>
    %416 = arith.mulf %414, %415 : vector<44x40xf32>
    %417 = arith.addf %409, %416 : vector<44x40xf32>
    %c43_i32 = arith.constant 43 : i32
    %418 = vector.broadcast %c43_i32 : i32 to vector<44x1xi32>
    %419 = arith.cmpi eq, %393, %418 : vector<44x1xi32>
    %420 = arith.extui %419 : vector<44x1xi1> to vector<44x1xi32>
    %421 = arith.sitofp %420 : vector<44x1xi32> to vector<44x1xf32>
    %422 = vector.broadcast %421 : vector<44x1xf32> to vector<44x40xf32>
    %423 = vector.broadcast %390 : vector<1x40xf32> to vector<44x40xf32>
    %424 = arith.mulf %422, %423 : vector<44x40xf32>
    %425 = arith.addf %417, %424 : vector<44x40xf32>
    %c0_177 = arith.constant 0 : index
    %c0_178 = arith.constant 0 : index
    %c0_179 = arith.constant 0 : index
    %426 = vector.load %arg7[%c0_177, %c0_178, %c0_179] : memref<1x44x44xbf16, #tpu.memory_space<vmem>>, vector<1x44x44xbf16>
    %427 = vector.shape_cast %426 : vector<1x44x44xbf16> to vector<44x44xbf16>
    %428 = arith.extf %427 : vector<44x44xbf16> to vector<44x44xf32>
    %cst_180 = arith.constant dense<0.000000e+00> : vector<44xf32>
    %429 = vector.multi_reduction <add>, %428, %cst_180 [1] : vector<44x44xf32> to vector<44xf32>
    %430 = vector.shape_cast %429 : vector<44xf32> to vector<44x1xf32>
    %cst_181 = arith.constant 1.000000e+00 : f32
    %431 = vector.broadcast %cst_181 : f32 to vector<44x1xf32>
    %432 = arith.divf %431, %430 : vector<44x1xf32>
    %433 = arith.truncf %425 : vector<44x40xf32> to vector<44x40xbf16>
    %c2 = arith.constant 2 : index
    %c0_182 = arith.constant 0 : index
    %c0_183 = arith.constant 0 : index
    %434 = vector.load %arg12[%c2, %c0_182, %c0_183] : memref<4x72x40xbf16, #tpu.memory_space<vmem>>, vector<1x72x40xbf16>
    %435 = vector.shape_cast %434 : vector<1x72x40xbf16> to vector<72x40xbf16>
    %c2_184 = arith.constant 2 : index
    %c0_185 = arith.constant 0 : index
    %c0_186 = arith.constant 0 : index
    %436 = vector.load %arg13[%c2_184, %c0_185, %c0_186] : memref<4x5x8xf32, #tpu.memory_space<vmem>>, vector<1x5x8xf32>
    %437 = vector.shape_cast %436 : vector<1x5x8xf32> to vector<5x8xf32>
    %cst_187 = arith.constant dense<0.000000e+00> : vector<44x40xf32>
    %438 = tpu.matmul %427, %433, %cst_187 {dimension_numbers = #tpu.dot_dimension_numbers<[1], [0], [0], [1], [0, 0, 1, 1], [], []>} : vector<44x44xbf16>, vector<44x40xbf16>, vector<44x40xf32> -> vector<44x40xf32>
    %439 = arith.addf %438, %425 : vector<44x40xf32>
    %440 = arith.truncf %439 : vector<44x40xf32> to vector<44x40xbf16>
    %441 = vector.extract_strided_slice %435 {offsets = [0, 0], sizes = [40, 8], strides = [1, 1]} : vector<72x40xbf16> to vector<40x8xbf16>
    %cst_188 = arith.constant dense<0.000000e+00> : vector<44x8xf32>
    %442 = tpu.matmul %440, %441, %cst_188 {dimension_numbers = #tpu.dot_dimension_numbers<[1], [0], [0], [1], [0, 0, 1, 1], [], []>} : vector<44x40xbf16>, vector<40x8xbf16>, vector<44x8xf32> -> vector<44x8xf32>
    %443 = vector.extract_strided_slice %437 {offsets = [0, 0], sizes = [1, 8], strides = [1, 1]} : vector<5x8xf32> to vector<1x8xf32>
    %cst_189 = arith.constant 2.000000e+00 : f32
    %444 = vector.broadcast %cst_189 : f32 to vector<1x8xf32>
    %445 = arith.mulf %444, %443 : vector<1x8xf32>
    %446 = vector.broadcast %445 : vector<1x8xf32> to vector<44x8xf32>
    %447 = arith.addf %442, %446 : vector<44x8xf32>
    %448 = vector.broadcast %432 : vector<44x1xf32> to vector<44x8xf32>
    %449 = arith.mulf %447, %448 : vector<44x8xf32>
    %cst_190 = arith.constant 0.000000e+00 : f32
    %450 = vector.broadcast %cst_190 : f32 to vector<44x8xf32>
    %451 = arith.maximumf %449, %450 : vector<44x8xf32>
    %452 = arith.truncf %451 : vector<44x8xf32> to vector<44x8xbf16>
    %cst_191 = arith.constant dense<0.000000e+00> : vector<44x8xf32>
    %453 = tpu.matmul %427, %452, %cst_191 {dimension_numbers = #tpu.dot_dimension_numbers<[1], [0], [0], [1], [0, 0, 1, 1], [], []>} : vector<44x44xbf16>, vector<44x8xbf16>, vector<44x8xf32> -> vector<44x8xf32>
    %454 = arith.addf %453, %451 : vector<44x8xf32>
    %455 = arith.truncf %454 : vector<44x8xf32> to vector<44x8xbf16>
    %456 = tpu.concatenate %440, %455 in 1 : vector<44x40xbf16>, vector<44x8xbf16> -> vector<44x48xbf16>
    %457 = vector.extract_strided_slice %435 {offsets = [0, 8], sizes = [48, 8], strides = [1, 1]} : vector<72x40xbf16> to vector<48x8xbf16>
    %cst_192 = arith.constant dense<0.000000e+00> : vector<44x8xf32>
    %458 = tpu.matmul %456, %457, %cst_192 {dimension_numbers = #tpu.dot_dimension_numbers<[1], [0], [0], [1], [0, 0, 1, 1], [], []>} : vector<44x48xbf16>, vector<48x8xbf16>, vector<44x8xf32> -> vector<44x8xf32>
    %459 = vector.extract_strided_slice %437 {offsets = [1, 0], sizes = [1, 8], strides = [1, 1]} : vector<5x8xf32> to vector<1x8xf32>
    %cst_193 = arith.constant 2.000000e+00 : f32
    %460 = vector.broadcast %cst_193 : f32 to vector<1x8xf32>
    %461 = arith.mulf %460, %459 : vector<1x8xf32>
    %462 = vector.broadcast %461 : vector<1x8xf32> to vector<44x8xf32>
    %463 = arith.addf %458, %462 : vector<44x8xf32>
    %464 = vector.broadcast %432 : vector<44x1xf32> to vector<44x8xf32>
    %465 = arith.mulf %463, %464 : vector<44x8xf32>
    %cst_194 = arith.constant 0.000000e+00 : f32
    %466 = vector.broadcast %cst_194 : f32 to vector<44x8xf32>
    %467 = arith.maximumf %465, %466 : vector<44x8xf32>
    %468 = arith.truncf %467 : vector<44x8xf32> to vector<44x8xbf16>
    %cst_195 = arith.constant dense<0.000000e+00> : vector<44x8xf32>
    %469 = tpu.matmul %427, %468, %cst_195 {dimension_numbers = #tpu.dot_dimension_numbers<[1], [0], [0], [1], [0, 0, 1, 1], [], []>} : vector<44x44xbf16>, vector<44x8xbf16>, vector<44x8xf32> -> vector<44x8xf32>
    %470 = arith.addf %469, %467 : vector<44x8xf32>
    %471 = arith.truncf %470 : vector<44x8xf32> to vector<44x8xbf16>
    %472 = tpu.concatenate %456, %471 in 1 : vector<44x48xbf16>, vector<44x8xbf16> -> vector<44x56xbf16>
    %473 = vector.extract_strided_slice %435 {offsets = [0, 16], sizes = [56, 8], strides = [1, 1]} : vector<72x40xbf16> to vector<56x8xbf16>
    %cst_196 = arith.constant dense<0.000000e+00> : vector<44x8xf32>
    %474 = tpu.matmul %472, %473, %cst_196 {dimension_numbers = #tpu.dot_dimension_numbers<[1], [0], [0], [1], [0, 0, 1, 1], [], []>} : vector<44x56xbf16>, vector<56x8xbf16>, vector<44x8xf32> -> vector<44x8xf32>
    %475 = vector.extract_strided_slice %437 {offsets = [2, 0], sizes = [1, 8], strides = [1, 1]} : vector<5x8xf32> to vector<1x8xf32>
    %cst_197 = arith.constant 2.000000e+00 : f32
    %476 = vector.broadcast %cst_197 : f32 to vector<1x8xf32>
    %477 = arith.mulf %476, %475 : vector<1x8xf32>
    %478 = vector.broadcast %477 : vector<1x8xf32> to vector<44x8xf32>
    %479 = arith.addf %474, %478 : vector<44x8xf32>
    %480 = vector.broadcast %432 : vector<44x1xf32> to vector<44x8xf32>
    %481 = arith.mulf %479, %480 : vector<44x8xf32>
    %cst_198 = arith.constant 0.000000e+00 : f32
    %482 = vector.broadcast %cst_198 : f32 to vector<44x8xf32>
    %483 = arith.maximumf %481, %482 : vector<44x8xf32>
    %484 = arith.truncf %483 : vector<44x8xf32> to vector<44x8xbf16>
    %cst_199 = arith.constant dense<0.000000e+00> : vector<44x8xf32>
    %485 = tpu.matmul %427, %484, %cst_199 {dimension_numbers = #tpu.dot_dimension_numbers<[1], [0], [0], [1], [0, 0, 1, 1], [], []>} : vector<44x44xbf16>, vector<44x8xbf16>, vector<44x8xf32> -> vector<44x8xf32>
    %486 = arith.addf %485, %483 : vector<44x8xf32>
    %487 = arith.truncf %486 : vector<44x8xf32> to vector<44x8xbf16>
    %488 = tpu.concatenate %472, %487 in 1 : vector<44x56xbf16>, vector<44x8xbf16> -> vector<44x64xbf16>
    %489 = vector.extract_strided_slice %435 {offsets = [0, 24], sizes = [64, 8], strides = [1, 1]} : vector<72x40xbf16> to vector<64x8xbf16>
    %cst_200 = arith.constant dense<0.000000e+00> : vector<44x8xf32>
    %490 = tpu.matmul %488, %489, %cst_200 {dimension_numbers = #tpu.dot_dimension_numbers<[1], [0], [0], [1], [0, 0, 1, 1], [], []>} : vector<44x64xbf16>, vector<64x8xbf16>, vector<44x8xf32> -> vector<44x8xf32>
    %491 = vector.extract_strided_slice %437 {offsets = [3, 0], sizes = [1, 8], strides = [1, 1]} : vector<5x8xf32> to vector<1x8xf32>
    %cst_201 = arith.constant 2.000000e+00 : f32
    %492 = vector.broadcast %cst_201 : f32 to vector<1x8xf32>
    %493 = arith.mulf %492, %491 : vector<1x8xf32>
    %494 = vector.broadcast %493 : vector<1x8xf32> to vector<44x8xf32>
    %495 = arith.addf %490, %494 : vector<44x8xf32>
    %496 = vector.broadcast %432 : vector<44x1xf32> to vector<44x8xf32>
    %497 = arith.mulf %495, %496 : vector<44x8xf32>
    %cst_202 = arith.constant 0.000000e+00 : f32
    %498 = vector.broadcast %cst_202 : f32 to vector<44x8xf32>
    %499 = arith.maximumf %497, %498 : vector<44x8xf32>
    %500 = arith.truncf %499 : vector<44x8xf32> to vector<44x8xbf16>
    %cst_203 = arith.constant dense<0.000000e+00> : vector<44x8xf32>
    %501 = tpu.matmul %427, %500, %cst_203 {dimension_numbers = #tpu.dot_dimension_numbers<[1], [0], [0], [1], [0, 0, 1, 1], [], []>} : vector<44x44xbf16>, vector<44x8xbf16>, vector<44x8xf32> -> vector<44x8xf32>
    %502 = arith.addf %501, %499 : vector<44x8xf32>
    %503 = arith.truncf %502 : vector<44x8xf32> to vector<44x8xbf16>
    %504 = tpu.concatenate %488, %503 in 1 : vector<44x64xbf16>, vector<44x8xbf16> -> vector<44x72xbf16>
    %505 = vector.extract_strided_slice %435 {offsets = [0, 32], sizes = [72, 8], strides = [1, 1]} : vector<72x40xbf16> to vector<72x8xbf16>
    %cst_204 = arith.constant dense<0.000000e+00> : vector<44x8xf32>
    %506 = tpu.matmul %504, %505, %cst_204 {dimension_numbers = #tpu.dot_dimension_numbers<[1], [0], [0], [1], [0, 0, 1, 1], [], []>} : vector<44x72xbf16>, vector<72x8xbf16>, vector<44x8xf32> -> vector<44x8xf32>
    %507 = vector.extract_strided_slice %437 {offsets = [4, 0], sizes = [1, 8], strides = [1, 1]} : vector<5x8xf32> to vector<1x8xf32>
    %cst_205 = arith.constant 2.000000e+00 : f32
    %508 = vector.broadcast %cst_205 : f32 to vector<1x8xf32>
    %509 = arith.mulf %508, %507 : vector<1x8xf32>
    %510 = vector.broadcast %509 : vector<1x8xf32> to vector<44x8xf32>
    %511 = arith.addf %506, %510 : vector<44x8xf32>
    %512 = vector.broadcast %432 : vector<44x1xf32> to vector<44x8xf32>
    %513 = arith.mulf %511, %512 : vector<44x8xf32>
    %cst_206 = arith.constant 0.000000e+00 : f32
    %514 = vector.broadcast %cst_206 : f32 to vector<44x8xf32>
    %515 = arith.maximumf %513, %514 : vector<44x8xf32>
    %516 = tpu.concatenate %451, %467, %483, %499, %515 in 1 : vector<44x8xf32>, vector<44x8xf32>, vector<44x8xf32>, vector<44x8xf32>, vector<44x8xf32> -> vector<44x40xf32>
    %517 = arith.addf %516, %425 : vector<44x40xf32>
    %518 = arith.truncf %517 : vector<44x40xf32> to vector<44x40xbf16>
    %c2_207 = arith.constant 2 : index
    %c0_208 = arith.constant 0 : index
    %c0_209 = arith.constant 0 : index
    %519 = vector.load %arg14[%c2_207, %c0_208, %c0_209] : memref<4x40x40xbf16, #tpu.memory_space<vmem>>, vector<1x40x40xbf16>
    %520 = vector.shape_cast %519 : vector<1x40x40xbf16> to vector<40x40xbf16>
    %cst_210 = arith.constant dense<0.000000e+00> : vector<44x40xf32>
    %521 = tpu.matmul %518, %520, %cst_210 {dimension_numbers = #tpu.dot_dimension_numbers<[1], [0], [0], [1], [0, 0, 1, 1], [], []>} : vector<44x40xbf16>, vector<40x40xbf16>, vector<44x40xf32> -> vector<44x40xf32>
    %c2_211 = arith.constant 2 : index
    %c0_212 = arith.constant 0 : index
    %c0_213 = arith.constant 0 : index
    %522 = vector.load %arg15[%c2_211, %c0_212, %c0_213] : memref<4x1x40xf32, #tpu.memory_space<vmem>>, vector<1x1x40xf32>
    %523 = vector.shape_cast %522 : vector<1x1x40xf32> to vector<1x40xf32>
    %524 = vector.broadcast %523 : vector<1x40xf32> to vector<44x40xf32>
    %525 = arith.addf %521, %524 : vector<44x40xf32>
    %c0_214 = arith.constant 0 : index
    %c0_215 = arith.constant 0 : index
    %c0_216 = arith.constant 0 : index
    %526 = vector.load %arg11[%c0_214, %c0_215, %c0_216] : memref<1x44x1xf32, #tpu.memory_space<vmem>>, vector<1x44x1xf32>
    %527 = vector.shape_cast %526 : vector<1x44x1xf32> to vector<44x1xf32>
    %528 = arith.truncf %525 : vector<44x40xf32> to vector<44x40xbf16>
    %c2_217 = arith.constant 2 : index
    %c0_218 = arith.constant 0 : index
    %c0_219 = arith.constant 0 : index
    %529 = vector.load %arg16[%c2_217, %c0_218, %c0_219] : memref<3x40x16xbf16, #tpu.memory_space<vmem>>, vector<1x40x16xbf16>
    %530 = vector.shape_cast %529 : vector<1x40x16xbf16> to vector<40x16xbf16>
    %cst_220 = arith.constant dense<0.000000e+00> : vector<44x16xf32>
    %531 = tpu.matmul %528, %530, %cst_220 {dimension_numbers = #tpu.dot_dimension_numbers<[1], [0], [0], [1], [0, 0, 1, 1], [], []>} : vector<44x40xbf16>, vector<40x16xbf16>, vector<44x16xf32> -> vector<44x16xf32>
    %c2_221 = arith.constant 2 : index
    %c0_222 = arith.constant 0 : index
    %c0_223 = arith.constant 0 : index
    %532 = vector.load %arg17[%c2_221, %c0_222, %c0_223] : memref<3x1x16xf32, #tpu.memory_space<vmem>>, vector<1x1x16xf32>
    %533 = vector.shape_cast %532 : vector<1x1x16xf32> to vector<1x16xf32>
    %534 = vector.broadcast %533 : vector<1x16xf32> to vector<44x16xf32>
    %535 = arith.addf %531, %534 : vector<44x16xf32>
    %cst_224 = arith.constant 0.000000e+00 : f32
    %536 = vector.broadcast %cst_224 : f32 to vector<44x16xf32>
    %537 = arith.maximumf %535, %536 : vector<44x16xf32>
    %c2_225 = arith.constant 2 : index
    %c0_226 = arith.constant 0 : index
    %c0_227 = arith.constant 0 : index
    %538 = vector.load %arg18[%c2_225, %c0_226, %c0_227] : memref<3x1x16xf32, #tpu.memory_space<vmem>>, vector<1x1x16xf32>
    %539 = vector.shape_cast %538 : vector<1x1x16xf32> to vector<1x16xf32>
    %540 = vector.broadcast %539 : vector<1x16xf32> to vector<44x16xf32>
    %541 = arith.mulf %537, %540 : vector<44x16xf32>
    %cst_228 = arith.constant dense<0.000000e+00> : vector<44xf32>
    %542 = vector.multi_reduction <add>, %541, %cst_228 [1] : vector<44x16xf32> to vector<44xf32>
    %543 = vector.shape_cast %542 : vector<44xf32> to vector<44x1xf32>
    %c2_229 = arith.constant 2 : index
    %c0_230 = arith.constant 0 : index
    %c0_231 = arith.constant 0 : index
    %544 = vector.load %arg19[%c2_229, %c0_230, %c0_231] : memref<3x1x1xf32, #tpu.memory_space<vmem>>, vector<1x1x1xf32>
    %545 = vector.shape_cast %544 : vector<1x1x1xf32> to vector<1x1xf32>
    %546 = vector.broadcast %545 : vector<1x1xf32> to vector<44x1xf32>
    %547 = arith.addf %543, %546 : vector<44x1xf32>
    %cst_232 = arith.constant 5.000000e-01 : f32
    %548 = vector.broadcast %cst_232 : f32 to vector<44x1xf32>
    %549 = arith.cmpf ogt, %527, %548 : vector<44x1xf32>
    %cst_233 = arith.constant -1.000000e+09 : f32
    %550 = vector.broadcast %cst_233 : f32 to vector<44x1xf32>
    %551 = arith.select %549, %550, %547 : vector<44x1xi1>, vector<44x1xf32>
    %552 = tpu.iota {dimensions = array<i32: 0>} : vector<44x1xi32>
    %c0_i32_234 = arith.constant 0 : i32
    %553 = vector.broadcast %c0_i32_234 : i32 to vector<44x1xi32>
    %554 = arith.cmpi sge, %552, %553 : vector<44x1xi32>
    %c22_i32 = arith.constant 22 : i32
    %555 = vector.broadcast %c22_i32 : i32 to vector<44x1xi32>
    %556 = arith.cmpi slt, %552, %555 : vector<44x1xi32>
    %557 = arith.andi %554, %556 : vector<44x1xi1>
    %cst_235 = arith.constant -1.000000e+09 : f32
    %558 = vector.broadcast %cst_235 : f32 to vector<44x1xf32>
    %559 = arith.select %557, %551, %558 : vector<44x1xi1>, vector<44x1xf32>
    %cst_236 = arith.constant dense<0xFF800000> : vector<1xf32>
    %560 = vector.multi_reduction <maximumf>, %559, %cst_236 [0] : vector<44x1xf32> to vector<1xf32>
    %561 = vector.shape_cast %560 : vector<1xf32> to vector<1x1xf32>
    %562 = vector.broadcast %561 : vector<1x1xf32> to vector<44x1xf32>
    %563 = arith.subf %551, %562 : vector<44x1xf32>
    %564 = math.exp %563 : vector<44x1xf32>
    %cst_237 = arith.constant 0.000000e+00 : f32
    %565 = vector.broadcast %cst_237 : f32 to vector<44x1xf32>
    %566 = arith.select %557, %564, %565 : vector<44x1xi1>, vector<44x1xf32>
    %cst_238 = arith.constant dense<0.000000e+00> : vector<1xf32>
    %567 = vector.multi_reduction <add>, %566, %cst_238 [0] : vector<44x1xf32> to vector<1xf32>
    %568 = vector.shape_cast %567 : vector<1xf32> to vector<1x1xf32>
    %569 = vector.broadcast %568 : vector<1x1xf32> to vector<44x1xf32>
    %570 = arith.divf %566, %569 : vector<44x1xf32>
    %571 = vector.broadcast %570 : vector<44x1xf32> to vector<44x40xf32>
    %572 = arith.mulf %571, %525 : vector<44x40xf32>
    %cst_239 = arith.constant dense<0.000000e+00> : vector<40xf32>
    %573 = vector.multi_reduction <add>, %572, %cst_239 [0] : vector<44x40xf32> to vector<40xf32>
    %574 = vector.shape_cast %573 : vector<40xf32> to vector<1x40xf32>
    %575 = arith.truncf %574 : vector<1x40xf32> to vector<1x40xbf16>
    %c2_240 = arith.constant 2 : index
    %c0_241 = arith.constant 0 : index
    %c0_242 = arith.constant 0 : index
    %576 = vector.load %arg20[%c2_240, %c0_241, %c0_242] : memref<3x40x40xbf16, #tpu.memory_space<vmem>>, vector<1x40x40xbf16>
    %577 = vector.shape_cast %576 : vector<1x40x40xbf16> to vector<40x40xbf16>
    %cst_243 = arith.constant dense<0.000000e+00> : vector<1x40xf32>
    %578 = tpu.matmul %575, %577, %cst_243 {dimension_numbers = #tpu.dot_dimension_numbers<[1], [0], [0], [1], [0, 0, 1, 1], [], []>} : vector<1x40xbf16>, vector<40x40xbf16>, vector<1x40xf32> -> vector<1x40xf32>
    %c2_244 = arith.constant 2 : index
    %c0_245 = arith.constant 0 : index
    %c0_246 = arith.constant 0 : index
    %579 = vector.load %arg21[%c2_244, %c0_245, %c0_246] : memref<3x1x40xf32, #tpu.memory_space<vmem>>, vector<1x1x40xf32>
    %580 = vector.shape_cast %579 : vector<1x1x40xf32> to vector<1x40xf32>
    %581 = arith.addf %578, %580 : vector<1x40xf32>
    %c22_i32_247 = arith.constant 22 : i32
    %582 = vector.broadcast %c22_i32_247 : i32 to vector<44x1xi32>
    %583 = arith.cmpi sge, %552, %582 : vector<44x1xi32>
    %c44_i32 = arith.constant 44 : i32
    %584 = vector.broadcast %c44_i32 : i32 to vector<44x1xi32>
    %585 = arith.cmpi slt, %552, %584 : vector<44x1xi32>
    %586 = arith.andi %583, %585 : vector<44x1xi1>
    %cst_248 = arith.constant -1.000000e+09 : f32
    %587 = vector.broadcast %cst_248 : f32 to vector<44x1xf32>
    %588 = arith.select %586, %551, %587 : vector<44x1xi1>, vector<44x1xf32>
    %cst_249 = arith.constant dense<0xFF800000> : vector<1xf32>
    %589 = vector.multi_reduction <maximumf>, %588, %cst_249 [0] : vector<44x1xf32> to vector<1xf32>
    %590 = vector.shape_cast %589 : vector<1xf32> to vector<1x1xf32>
    %591 = vector.broadcast %590 : vector<1x1xf32> to vector<44x1xf32>
    %592 = arith.subf %551, %591 : vector<44x1xf32>
    %593 = math.exp %592 : vector<44x1xf32>
    %cst_250 = arith.constant 0.000000e+00 : f32
    %594 = vector.broadcast %cst_250 : f32 to vector<44x1xf32>
    %595 = arith.select %586, %593, %594 : vector<44x1xi1>, vector<44x1xf32>
    %cst_251 = arith.constant dense<0.000000e+00> : vector<1xf32>
    %596 = vector.multi_reduction <add>, %595, %cst_251 [0] : vector<44x1xf32> to vector<1xf32>
    %597 = vector.shape_cast %596 : vector<1xf32> to vector<1x1xf32>
    %598 = vector.broadcast %597 : vector<1x1xf32> to vector<44x1xf32>
    %599 = arith.divf %595, %598 : vector<44x1xf32>
    %600 = vector.broadcast %599 : vector<44x1xf32> to vector<44x40xf32>
    %601 = arith.mulf %600, %525 : vector<44x40xf32>
    %cst_252 = arith.constant dense<0.000000e+00> : vector<40xf32>
    %602 = vector.multi_reduction <add>, %601, %cst_252 [0] : vector<44x40xf32> to vector<40xf32>
    %603 = vector.shape_cast %602 : vector<40xf32> to vector<1x40xf32>
    %604 = arith.truncf %603 : vector<1x40xf32> to vector<1x40xbf16>
    %c2_253 = arith.constant 2 : index
    %c0_254 = arith.constant 0 : index
    %c0_255 = arith.constant 0 : index
    %605 = vector.load %arg20[%c2_253, %c0_254, %c0_255] : memref<3x40x40xbf16, #tpu.memory_space<vmem>>, vector<1x40x40xbf16>
    %606 = vector.shape_cast %605 : vector<1x40x40xbf16> to vector<40x40xbf16>
    %cst_256 = arith.constant dense<0.000000e+00> : vector<1x40xf32>
    %607 = tpu.matmul %604, %606, %cst_256 {dimension_numbers = #tpu.dot_dimension_numbers<[1], [0], [0], [1], [0, 0, 1, 1], [], []>} : vector<1x40xbf16>, vector<40x40xbf16>, vector<1x40xf32> -> vector<1x40xf32>
    %c2_257 = arith.constant 2 : index
    %c0_258 = arith.constant 0 : index
    %c0_259 = arith.constant 0 : index
    %608 = vector.load %arg21[%c2_257, %c0_258, %c0_259] : memref<3x1x40xf32, #tpu.memory_space<vmem>>, vector<1x1x40xf32>
    %609 = vector.shape_cast %608 : vector<1x1x40xf32> to vector<1x40xf32>
    %610 = arith.addf %607, %609 : vector<1x40xf32>
    %c0_260 = arith.constant 0 : index
    %c0_261 = arith.constant 0 : index
    %c0_262 = arith.constant 0 : index
    %611 = vector.load %arg4[%c0_260, %c0_261, %c0_262] : memref<1x46x40xf32, #tpu.memory_space<vmem>>, vector<1x46x40xf32>
    %612 = vector.shape_cast %611 : vector<1x46x40xf32> to vector<46x40xf32>
    %613 = tpu.iota {dimensions = array<i32: 0>} : vector<46x1xi32>
    %c20_i32_263 = arith.constant 20 : i32
    %614 = vector.broadcast %c20_i32_263 : i32 to vector<46x1xi32>
    %615 = arith.cmpi eq, %613, %614 : vector<46x1xi32>
    %616 = arith.extui %615 : vector<46x1xi1> to vector<46x1xi32>
    %617 = arith.sitofp %616 : vector<46x1xi32> to vector<46x1xf32>
    %618 = vector.broadcast %617 : vector<46x1xf32> to vector<46x40xf32>
    %619 = vector.broadcast %157 : vector<1x40xf32> to vector<46x40xf32>
    %620 = arith.mulf %618, %619 : vector<46x40xf32>
    %621 = arith.addf %612, %620 : vector<46x40xf32>
    %c43_i32_264 = arith.constant 43 : i32
    %622 = vector.broadcast %c43_i32_264 : i32 to vector<46x1xi32>
    %623 = arith.cmpi eq, %613, %622 : vector<46x1xi32>
    %624 = arith.extui %623 : vector<46x1xi1> to vector<46x1xi32>
    %625 = arith.sitofp %624 : vector<46x1xi32> to vector<46x1xf32>
    %626 = vector.broadcast %625 : vector<46x1xf32> to vector<46x40xf32>
    %627 = vector.broadcast %186 : vector<1x40xf32> to vector<46x40xf32>
    %628 = arith.mulf %626, %627 : vector<46x40xf32>
    %629 = arith.addf %621, %628 : vector<46x40xf32>
    %c21_i32_265 = arith.constant 21 : i32
    %630 = vector.broadcast %c21_i32_265 : i32 to vector<46x1xi32>
    %631 = arith.cmpi eq, %613, %630 : vector<46x1xi32>
    %632 = arith.extui %631 : vector<46x1xi1> to vector<46x1xi32>
    %633 = arith.sitofp %632 : vector<46x1xi32> to vector<46x1xf32>
    %634 = vector.broadcast %633 : vector<46x1xf32> to vector<46x40xf32>
    %635 = vector.broadcast %361 : vector<1x40xf32> to vector<46x40xf32>
    %636 = arith.mulf %634, %635 : vector<46x40xf32>
    %637 = arith.addf %629, %636 : vector<46x40xf32>
    %c44_i32_266 = arith.constant 44 : i32
    %638 = vector.broadcast %c44_i32_266 : i32 to vector<46x1xi32>
    %639 = arith.cmpi eq, %613, %638 : vector<46x1xi32>
    %640 = arith.extui %639 : vector<46x1xi1> to vector<46x1xi32>
    %641 = arith.sitofp %640 : vector<46x1xi32> to vector<46x1xf32>
    %642 = vector.broadcast %641 : vector<46x1xf32> to vector<46x40xf32>
    %643 = vector.broadcast %390 : vector<1x40xf32> to vector<46x40xf32>
    %644 = arith.mulf %642, %643 : vector<46x40xf32>
    %645 = arith.addf %637, %644 : vector<46x40xf32>
    %c22_i32_267 = arith.constant 22 : i32
    %646 = vector.broadcast %c22_i32_267 : i32 to vector<46x1xi32>
    %647 = arith.cmpi eq, %613, %646 : vector<46x1xi32>
    %648 = arith.extui %647 : vector<46x1xi1> to vector<46x1xi32>
    %649 = arith.sitofp %648 : vector<46x1xi32> to vector<46x1xf32>
    %650 = vector.broadcast %649 : vector<46x1xf32> to vector<46x40xf32>
    %651 = vector.broadcast %581 : vector<1x40xf32> to vector<46x40xf32>
    %652 = arith.mulf %650, %651 : vector<46x40xf32>
    %653 = arith.addf %645, %652 : vector<46x40xf32>
    %c45_i32 = arith.constant 45 : i32
    %654 = vector.broadcast %c45_i32 : i32 to vector<46x1xi32>
    %655 = arith.cmpi eq, %613, %654 : vector<46x1xi32>
    %656 = arith.extui %655 : vector<46x1xi1> to vector<46x1xi32>
    %657 = arith.sitofp %656 : vector<46x1xi32> to vector<46x1xf32>
    %658 = vector.broadcast %657 : vector<46x1xf32> to vector<46x40xf32>
    %659 = vector.broadcast %610 : vector<1x40xf32> to vector<46x40xf32>
    %660 = arith.mulf %658, %659 : vector<46x40xf32>
    %661 = arith.addf %653, %660 : vector<46x40xf32>
    %c0_268 = arith.constant 0 : index
    %c0_269 = arith.constant 0 : index
    %c0_270 = arith.constant 0 : index
    %662 = vector.load %arg8[%c0_268, %c0_269, %c0_270] : memref<1x46x46xbf16, #tpu.memory_space<vmem>>, vector<1x46x46xbf16>
    %663 = vector.shape_cast %662 : vector<1x46x46xbf16> to vector<46x46xbf16>
    %664 = arith.extf %663 : vector<46x46xbf16> to vector<46x46xf32>
    %cst_271 = arith.constant dense<0.000000e+00> : vector<46xf32>
    %665 = vector.multi_reduction <add>, %664, %cst_271 [1] : vector<46x46xf32> to vector<46xf32>
    %666 = vector.shape_cast %665 : vector<46xf32> to vector<46x1xf32>
    %cst_272 = arith.constant 1.000000e+00 : f32
    %667 = vector.broadcast %cst_272 : f32 to vector<46x1xf32>
    %668 = arith.divf %667, %666 : vector<46x1xf32>
    %669 = arith.truncf %661 : vector<46x40xf32> to vector<46x40xbf16>
    %c3 = arith.constant 3 : index
    %c0_273 = arith.constant 0 : index
    %c0_274 = arith.constant 0 : index
    %670 = vector.load %arg12[%c3, %c0_273, %c0_274] : memref<4x72x40xbf16, #tpu.memory_space<vmem>>, vector<1x72x40xbf16>
    %671 = vector.shape_cast %670 : vector<1x72x40xbf16> to vector<72x40xbf16>
    %c3_275 = arith.constant 3 : index
    %c0_276 = arith.constant 0 : index
    %c0_277 = arith.constant 0 : index
    %672 = vector.load %arg13[%c3_275, %c0_276, %c0_277] : memref<4x5x8xf32, #tpu.memory_space<vmem>>, vector<1x5x8xf32>
    %673 = vector.shape_cast %672 : vector<1x5x8xf32> to vector<5x8xf32>
    %cst_278 = arith.constant dense<0.000000e+00> : vector<46x40xf32>
    %674 = tpu.matmul %663, %669, %cst_278 {dimension_numbers = #tpu.dot_dimension_numbers<[1], [0], [0], [1], [0, 0, 1, 1], [], []>} : vector<46x46xbf16>, vector<46x40xbf16>, vector<46x40xf32> -> vector<46x40xf32>
    %675 = arith.addf %674, %661 : vector<46x40xf32>
    %676 = arith.truncf %675 : vector<46x40xf32> to vector<46x40xbf16>
    %677 = vector.extract_strided_slice %671 {offsets = [0, 0], sizes = [40, 8], strides = [1, 1]} : vector<72x40xbf16> to vector<40x8xbf16>
    %cst_279 = arith.constant dense<0.000000e+00> : vector<46x8xf32>
    %678 = tpu.matmul %676, %677, %cst_279 {dimension_numbers = #tpu.dot_dimension_numbers<[1], [0], [0], [1], [0, 0, 1, 1], [], []>} : vector<46x40xbf16>, vector<40x8xbf16>, vector<46x8xf32> -> vector<46x8xf32>
    %679 = vector.extract_strided_slice %673 {offsets = [0, 0], sizes = [1, 8], strides = [1, 1]} : vector<5x8xf32> to vector<1x8xf32>
    %cst_280 = arith.constant 2.000000e+00 : f32
    %680 = vector.broadcast %cst_280 : f32 to vector<1x8xf32>
    %681 = arith.mulf %680, %679 : vector<1x8xf32>
    %682 = vector.broadcast %681 : vector<1x8xf32> to vector<46x8xf32>
    %683 = arith.addf %678, %682 : vector<46x8xf32>
    %684 = vector.broadcast %668 : vector<46x1xf32> to vector<46x8xf32>
    %685 = arith.mulf %683, %684 : vector<46x8xf32>
    %cst_281 = arith.constant 0.000000e+00 : f32
    %686 = vector.broadcast %cst_281 : f32 to vector<46x8xf32>
    %687 = arith.maximumf %685, %686 : vector<46x8xf32>
    %688 = arith.truncf %687 : vector<46x8xf32> to vector<46x8xbf16>
    %cst_282 = arith.constant dense<0.000000e+00> : vector<46x8xf32>
    %689 = tpu.matmul %663, %688, %cst_282 {dimension_numbers = #tpu.dot_dimension_numbers<[1], [0], [0], [1], [0, 0, 1, 1], [], []>} : vector<46x46xbf16>, vector<46x8xbf16>, vector<46x8xf32> -> vector<46x8xf32>
    %690 = arith.addf %689, %687 : vector<46x8xf32>
    %691 = arith.truncf %690 : vector<46x8xf32> to vector<46x8xbf16>
    %692 = tpu.concatenate %676, %691 in 1 : vector<46x40xbf16>, vector<46x8xbf16> -> vector<46x48xbf16>
    %693 = vector.extract_strided_slice %671 {offsets = [0, 8], sizes = [48, 8], strides = [1, 1]} : vector<72x40xbf16> to vector<48x8xbf16>
    %cst_283 = arith.constant dense<0.000000e+00> : vector<46x8xf32>
    %694 = tpu.matmul %692, %693, %cst_283 {dimension_numbers = #tpu.dot_dimension_numbers<[1], [0], [0], [1], [0, 0, 1, 1], [], []>} : vector<46x48xbf16>, vector<48x8xbf16>, vector<46x8xf32> -> vector<46x8xf32>
    %695 = vector.extract_strided_slice %673 {offsets = [1, 0], sizes = [1, 8], strides = [1, 1]} : vector<5x8xf32> to vector<1x8xf32>
    %cst_284 = arith.constant 2.000000e+00 : f32
    %696 = vector.broadcast %cst_284 : f32 to vector<1x8xf32>
    %697 = arith.mulf %696, %695 : vector<1x8xf32>
    %698 = vector.broadcast %697 : vector<1x8xf32> to vector<46x8xf32>
    %699 = arith.addf %694, %698 : vector<46x8xf32>
    %700 = vector.broadcast %668 : vector<46x1xf32> to vector<46x8xf32>
    %701 = arith.mulf %699, %700 : vector<46x8xf32>
    %cst_285 = arith.constant 0.000000e+00 : f32
    %702 = vector.broadcast %cst_285 : f32 to vector<46x8xf32>
    %703 = arith.maximumf %701, %702 : vector<46x8xf32>
    %704 = arith.truncf %703 : vector<46x8xf32> to vector<46x8xbf16>
    %cst_286 = arith.constant dense<0.000000e+00> : vector<46x8xf32>
    %705 = tpu.matmul %663, %704, %cst_286 {dimension_numbers = #tpu.dot_dimension_numbers<[1], [0], [0], [1], [0, 0, 1, 1], [], []>} : vector<46x46xbf16>, vector<46x8xbf16>, vector<46x8xf32> -> vector<46x8xf32>
    %706 = arith.addf %705, %703 : vector<46x8xf32>
    %707 = arith.truncf %706 : vector<46x8xf32> to vector<46x8xbf16>
    %708 = tpu.concatenate %692, %707 in 1 : vector<46x48xbf16>, vector<46x8xbf16> -> vector<46x56xbf16>
    %709 = vector.extract_strided_slice %671 {offsets = [0, 16], sizes = [56, 8], strides = [1, 1]} : vector<72x40xbf16> to vector<56x8xbf16>
    %cst_287 = arith.constant dense<0.000000e+00> : vector<46x8xf32>
    %710 = tpu.matmul %708, %709, %cst_287 {dimension_numbers = #tpu.dot_dimension_numbers<[1], [0], [0], [1], [0, 0, 1, 1], [], []>} : vector<46x56xbf16>, vector<56x8xbf16>, vector<46x8xf32> -> vector<46x8xf32>
    %711 = vector.extract_strided_slice %673 {offsets = [2, 0], sizes = [1, 8], strides = [1, 1]} : vector<5x8xf32> to vector<1x8xf32>
    %cst_288 = arith.constant 2.000000e+00 : f32
    %712 = vector.broadcast %cst_288 : f32 to vector<1x8xf32>
    %713 = arith.mulf %712, %711 : vector<1x8xf32>
    %714 = vector.broadcast %713 : vector<1x8xf32> to vector<46x8xf32>
    %715 = arith.addf %710, %714 : vector<46x8xf32>
    %716 = vector.broadcast %668 : vector<46x1xf32> to vector<46x8xf32>
    %717 = arith.mulf %715, %716 : vector<46x8xf32>
    %cst_289 = arith.constant 0.000000e+00 : f32
    %718 = vector.broadcast %cst_289 : f32 to vector<46x8xf32>
    %719 = arith.maximumf %717, %718 : vector<46x8xf32>
    %720 = arith.truncf %719 : vector<46x8xf32> to vector<46x8xbf16>
    %cst_290 = arith.constant dense<0.000000e+00> : vector<46x8xf32>
    %721 = tpu.matmul %663, %720, %cst_290 {dimension_numbers = #tpu.dot_dimension_numbers<[1], [0], [0], [1], [0, 0, 1, 1], [], []>} : vector<46x46xbf16>, vector<46x8xbf16>, vector<46x8xf32> -> vector<46x8xf32>
    %722 = arith.addf %721, %719 : vector<46x8xf32>
    %723 = arith.truncf %722 : vector<46x8xf32> to vector<46x8xbf16>
    %724 = tpu.concatenate %708, %723 in 1 : vector<46x56xbf16>, vector<46x8xbf16> -> vector<46x64xbf16>
    %725 = vector.extract_strided_slice %671 {offsets = [0, 24], sizes = [64, 8], strides = [1, 1]} : vector<72x40xbf16> to vector<64x8xbf16>
    %cst_291 = arith.constant dense<0.000000e+00> : vector<46x8xf32>
    %726 = tpu.matmul %724, %725, %cst_291 {dimension_numbers = #tpu.dot_dimension_numbers<[1], [0], [0], [1], [0, 0, 1, 1], [], []>} : vector<46x64xbf16>, vector<64x8xbf16>, vector<46x8xf32> -> vector<46x8xf32>
    %727 = vector.extract_strided_slice %673 {offsets = [3, 0], sizes = [1, 8], strides = [1, 1]} : vector<5x8xf32> to vector<1x8xf32>
    %cst_292 = arith.constant 2.000000e+00 : f32
    %728 = vector.broadcast %cst_292 : f32 to vector<1x8xf32>
    %729 = arith.mulf %728, %727 : vector<1x8xf32>
    %730 = vector.broadcast %729 : vector<1x8xf32> to vector<46x8xf32>
    %731 = arith.addf %726, %730 : vector<46x8xf32>
    %732 = vector.broadcast %668 : vector<46x1xf32> to vector<46x8xf32>
    %733 = arith.mulf %731, %732 : vector<46x8xf32>
    %cst_293 = arith.constant 0.000000e+00 : f32
    %734 = vector.broadcast %cst_293 : f32 to vector<46x8xf32>
    %735 = arith.maximumf %733, %734 : vector<46x8xf32>
    %736 = arith.truncf %735 : vector<46x8xf32> to vector<46x8xbf16>
    %cst_294 = arith.constant dense<0.000000e+00> : vector<46x8xf32>
    %737 = tpu.matmul %663, %736, %cst_294 {dimension_numbers = #tpu.dot_dimension_numbers<[1], [0], [0], [1], [0, 0, 1, 1], [], []>} : vector<46x46xbf16>, vector<46x8xbf16>, vector<46x8xf32> -> vector<46x8xf32>
    %738 = arith.addf %737, %735 : vector<46x8xf32>
    %739 = arith.truncf %738 : vector<46x8xf32> to vector<46x8xbf16>
    %740 = tpu.concatenate %724, %739 in 1 : vector<46x64xbf16>, vector<46x8xbf16> -> vector<46x72xbf16>
    %741 = vector.extract_strided_slice %671 {offsets = [0, 32], sizes = [72, 8], strides = [1, 1]} : vector<72x40xbf16> to vector<72x8xbf16>
    %cst_295 = arith.constant dense<0.000000e+00> : vector<46x8xf32>
    %742 = tpu.matmul %740, %741, %cst_295 {dimension_numbers = #tpu.dot_dimension_numbers<[1], [0], [0], [1], [0, 0, 1, 1], [], []>} : vector<46x72xbf16>, vector<72x8xbf16>, vector<46x8xf32> -> vector<46x8xf32>
    %743 = vector.extract_strided_slice %673 {offsets = [4, 0], sizes = [1, 8], strides = [1, 1]} : vector<5x8xf32> to vector<1x8xf32>
    %cst_296 = arith.constant 2.000000e+00 : f32
    %744 = vector.broadcast %cst_296 : f32 to vector<1x8xf32>
    %745 = arith.mulf %744, %743 : vector<1x8xf32>
    %746 = vector.broadcast %745 : vector<1x8xf32> to vector<46x8xf32>
    %747 = arith.addf %742, %746 : vector<46x8xf32>
    %748 = vector.broadcast %668 : vector<46x1xf32> to vector<46x8xf32>
    %749 = arith.mulf %747, %748 : vector<46x8xf32>
    %cst_297 = arith.constant 0.000000e+00 : f32
    %750 = vector.broadcast %cst_297 : f32 to vector<46x8xf32>
    %751 = arith.maximumf %749, %750 : vector<46x8xf32>
    %752 = tpu.concatenate %687, %703, %719, %735, %751 in 1 : vector<46x8xf32>, vector<46x8xf32>, vector<46x8xf32>, vector<46x8xf32>, vector<46x8xf32> -> vector<46x40xf32>
    %753 = arith.addf %752, %661 : vector<46x40xf32>
    %754 = arith.truncf %753 : vector<46x40xf32> to vector<46x40xbf16>
    %c3_298 = arith.constant 3 : index
    %c0_299 = arith.constant 0 : index
    %c0_300 = arith.constant 0 : index
    %755 = vector.load %arg14[%c3_298, %c0_299, %c0_300] : memref<4x40x40xbf16, #tpu.memory_space<vmem>>, vector<1x40x40xbf16>
    %756 = vector.shape_cast %755 : vector<1x40x40xbf16> to vector<40x40xbf16>
    %cst_301 = arith.constant dense<0.000000e+00> : vector<46x40xf32>
    %757 = tpu.matmul %754, %756, %cst_301 {dimension_numbers = #tpu.dot_dimension_numbers<[1], [0], [0], [1], [0, 0, 1, 1], [], []>} : vector<46x40xbf16>, vector<40x40xbf16>, vector<46x40xf32> -> vector<46x40xf32>
    %c3_302 = arith.constant 3 : index
    %c0_303 = arith.constant 0 : index
    %c0_304 = arith.constant 0 : index
    %758 = vector.load %arg15[%c3_302, %c0_303, %c0_304] : memref<4x1x40xf32, #tpu.memory_space<vmem>>, vector<1x1x40xf32>
    %759 = vector.shape_cast %758 : vector<1x1x40xf32> to vector<1x40xf32>
    %760 = vector.broadcast %759 : vector<1x40xf32> to vector<46x40xf32>
    %761 = arith.addf %757, %760 : vector<46x40xf32>
    %c0_305 = arith.constant 0 : index
    %c0_306 = arith.constant 0 : index
    %c0_307 = arith.constant 0 : index
    %762 = vector.load %arg22[%c0_305, %c0_306, %c0_307] : memref<1x46x40xf32, #tpu.memory_space<vmem>>, vector<1x46x40xf32>
    %763 = vector.shape_cast %762 : vector<1x46x40xf32> to vector<46x40xf32>
    %764 = vector.shape_cast %761 : vector<46x40xf32> to vector<1x46x40xf32>
    tpu.vector_store %arg22[%c0_305, %c0_306, %c0_307], %764 {strides = array<i32>} : memref<1x46x40xf32, #tpu.memory_space<vmem>>, vector<1x46x40xf32>,
    return
  }
  func.func @transform_0(%arg0: i32) -> (i32, i32, i32) {
    %c0_i32 = arith.constant 0 : i32
    %c0_i32_0 = arith.constant 0 : i32
    %c0_i32_1 = arith.constant 0 : i32
    return %arg0, %c0_i32, %c0_i32_0 : i32, i32, i32
  }
  func.func @transform_1(%arg0: i32) -> (i32, i32, i32) {
    %c0_i32 = arith.constant 0 : i32
    %c0_i32_0 = arith.constant 0 : i32
    %c0_i32_1 = arith.constant 0 : i32
    return %arg0, %c0_i32, %c0_i32_0 : i32, i32, i32
  }
  func.func @transform_2(%arg0: i32) -> (i32, i32, i32) {
    %c0_i32 = arith.constant 0 : i32
    %c0_i32_0 = arith.constant 0 : i32
    %c0_i32_1 = arith.constant 0 : i32
    return %arg0, %c0_i32, %c0_i32_0 : i32, i32, i32
  }
  func.func @transform_3(%arg0: i32) -> (i32, i32, i32) {
    %c0_i32 = arith.constant 0 : i32
    %c0_i32_0 = arith.constant 0 : i32
    %c0_i32_1 = arith.constant 0 : i32
    return %arg0, %c0_i32, %c0_i32_0 : i32, i32, i32
  }
  func.func @transform_4(%arg0: i32) -> (i32, i32, i32) {
    %c0_i32 = arith.constant 0 : i32
    %c0_i32_0 = arith.constant 0 : i32
    %c0_i32_1 = arith.constant 0 : i32
    return %arg0, %c0_i32, %c0_i32_0 : i32, i32, i32
  }
  func.func @transform_5(%arg0: i32) -> (i32, i32, i32) {
    %c0_i32 = arith.constant 0 : i32
    %c0_i32_0 = arith.constant 0 : i32
    %c0_i32_1 = arith.constant 0 : i32
    return %arg0, %c0_i32, %c0_i32_0 : i32, i32, i32
  }
  func.func @transform_6(%arg0: i32) -> (i32, i32, i32) {
    %c0_i32 = arith.constant 0 : i32
    %c0_i32_0 = arith.constant 0 : i32
    %c0_i32_1 = arith.constant 0 : i32
    return %arg0, %c0_i32, %c0_i32_0 : i32, i32, i32
  }
  func.func @transform_7(%arg0: i32) -> (i32, i32, i32) {
    %c0_i32 = arith.constant 0 : i32
    %c0_i32_0 = arith.constant 0 : i32
    %c0_i32_1 = arith.constant 0 : i32
    return %arg0, %c0_i32, %c0_i32_0 : i32, i32, i32
  }
  func.func @transform_8(%arg0: i32) -> (i32, i32, i32) {
    %c0_i32 = arith.constant 0 : i32
    %c0_i32_0 = arith.constant 0 : i32
    %c0_i32_1 = arith.constant 0 : i32
    return %arg0, %c0_i32, %c0_i32_0 : i32, i32, i32
  }
  func.func @transform_9(%arg0: i32) -> (i32, i32, i32) {
    %c0_i32 = arith.constant 0 : i32
    %c0_i32_0 = arith.constant 0 : i32
    %c0_i32_1 = arith.constant 0 : i32
    return %arg0, %c0_i32, %c0_i32_0 : i32, i32, i32
  }
  func.func @transform_10(%arg0: i32) -> (i32, i32, i32) {
    %c0_i32 = arith.constant 0 : i32
    %c0_i32_0 = arith.constant 0 : i32
    %c0_i32_1 = arith.constant 0 : i32
    return %arg0, %c0_i32, %c0_i32_0 : i32, i32, i32
  }
  func.func @transform_11(%arg0: i32) -> (i32, i32, i32) {
    %c0_i32 = arith.constant 0 : i32
    %c0_i32_0 = arith.constant 0 : i32
    %c0_i32_1 = arith.constant 0 : i32
    %c0_i32_2 = arith.constant 0 : i32
    return %c0_i32, %c0_i32_0, %c0_i32_1 : i32, i32, i32
  }
  func.func @transform_12(%arg0: i32) -> (i32, i32, i32) {
    %c0_i32 = arith.constant 0 : i32
    %c0_i32_0 = arith.constant 0 : i32
    %c0_i32_1 = arith.constant 0 : i32
    %c0_i32_2 = arith.constant 0 : i32
    return %c0_i32, %c0_i32_0, %c0_i32_1 : i32, i32, i32
  }
  func.func @transform_13(%arg0: i32) -> (i32, i32, i32) {
    %c0_i32 = arith.constant 0 : i32
    %c0_i32_0 = arith.constant 0 : i32
    %c0_i32_1 = arith.constant 0 : i32
    %c0_i32_2 = arith.constant 0 : i32
    return %c0_i32, %c0_i32_0, %c0_i32_1 : i32, i32, i32
  }
  func.func @transform_14(%arg0: i32) -> (i32, i32, i32) {
    %c0_i32 = arith.constant 0 : i32
    %c0_i32_0 = arith.constant 0 : i32
    %c0_i32_1 = arith.constant 0 : i32
    %c0_i32_2 = arith.constant 0 : i32
    return %c0_i32, %c0_i32_0, %c0_i32_1 : i32, i32, i32
  }
  func.func @transform_15(%arg0: i32) -> (i32, i32, i32) {
    %c0_i32 = arith.constant 0 : i32
    %c0_i32_0 = arith.constant 0 : i32
    %c0_i32_1 = arith.constant 0 : i32
    %c0_i32_2 = arith.constant 0 : i32
    return %c0_i32, %c0_i32_0, %c0_i32_1 : i32, i32, i32
  }
  func.func @transform_16(%arg0: i32) -> (i32, i32, i32) {
    %c0_i32 = arith.constant 0 : i32
    %c0_i32_0 = arith.constant 0 : i32
    %c0_i32_1 = arith.constant 0 : i32
    %c0_i32_2 = arith.constant 0 : i32
    return %c0_i32, %c0_i32_0, %c0_i32_1 : i32, i32, i32
  }
  func.func @transform_17(%arg0: i32) -> (i32, i32, i32) {
    %c0_i32 = arith.constant 0 : i32
    %c0_i32_0 = arith.constant 0 : i32
    %c0_i32_1 = arith.constant 0 : i32
    %c0_i32_2 = arith.constant 0 : i32
    return %c0_i32, %c0_i32_0, %c0_i32_1 : i32, i32, i32
  }
  func.func @transform_18(%arg0: i32) -> (i32, i32, i32) {
    %c0_i32 = arith.constant 0 : i32
    %c0_i32_0 = arith.constant 0 : i32
    %c0_i32_1 = arith.constant 0 : i32
    %c0_i32_2 = arith.constant 0 : i32
    return %c0_i32, %c0_i32_0, %c0_i32_1 : i32, i32, i32
  }
  func.func @transform_19(%arg0: i32) -> (i32, i32, i32) {
    %c0_i32 = arith.constant 0 : i32
    %c0_i32_0 = arith.constant 0 : i32
    %c0_i32_1 = arith.constant 0 : i32
    %c0_i32_2 = arith.constant 0 : i32
    return %c0_i32, %c0_i32_0, %c0_i32_1 : i32, i32, i32
  }
  func.func @transform_20(%arg0: i32) -> (i32, i32, i32) {
    %c0_i32 = arith.constant 0 : i32
    %c0_i32_0 = arith.constant 0 : i32
    %c0_i32_1 = arith.constant 0 : i32
    %c0_i32_2 = arith.constant 0 : i32
    return %c0_i32, %c0_i32_0, %c0_i32_1 : i32, i32, i32
  }
  func.func @transform_21(%arg0: i32) -> (i32, i32, i32) {
    %c0_i32 = arith.constant 0 : i32
    %c0_i32_0 = arith.constant 0 : i32
    %c0_i32_1 = arith.constant 0 : i32
    return %arg0, %c0_i32, %c0_i32_0 : i32, i32, i32
  }
}

</mosaic_0001>

<llo_original>
// kernel: gcn_module_forward.1
$region0: #{gcn_module_forward.1}
  #allocation0 [shape = 'u32[]', space=smem, size = 0x4, offset = 0x4, fixed_abs, tag = 'smem constant byte address 0x4 - core index']
  #allocation1 [shape = 'u32[144,128]{1,0:T(1,128)}', space=vmem, size = 0x12000, scoped, tag = 'internal scratch']
  %s0 = inlined_call_operand.vmem [shape: f32[1,40,40], index: 0, kind: input, shape index: {}]
  %s1 = inlined_call_operand.vmem [shape: f32[1,42,40], index: 1, kind: input, shape index: {}]
  %s2 = inlined_call_operand.vmem [shape: f32[1,44,40], index: 2, kind: input, shape index: {}]
  %s3 = inlined_call_operand.vmem [shape: f32[1,46,40], index: 3, kind: input, shape index: {}]
  %s4 = inlined_call_operand.vmem [shape: bf16[1,40,40], index: 4, kind: input, shape index: {}]
  %s5 = inlined_call_operand.vmem [shape: bf16[1,42,42], index: 5, kind: input, shape index: {}]
  %s6 = inlined_call_operand.vmem [shape: bf16[1,44,44], index: 6, kind: input, shape index: {}]
  %s7 = inlined_call_operand.vmem [shape: bf16[1,46,46], index: 7, kind: input, shape index: {}]
  %s8 = inlined_call_operand.vmem [shape: f32[1,40,1], index: 8, kind: input, shape index: {}]
  %s9 = inlined_call_operand.vmem [shape: f32[1,42,1], index: 9, kind: input, shape index: {}]
  %s10 = inlined_call_operand.vmem [shape: f32[1,44,1], index: 10, kind: input, shape index: {}]
  %s11 = inlined_call_operand.vmem [shape: bf16[4,72,40], index: 11, kind: input, shape index: {}]
  %s12 = inlined_call_operand.vmem [shape: f32[4,5,8], index: 12, kind: input, shape index: {}]
  %s13 = inlined_call_operand.vmem [shape: bf16[4,40,40], index: 13, kind: input, shape index: {}]
  %s14 = inlined_call_operand.vmem [shape: f32[4,1,40], index: 14, kind: input, shape index: {}]
  %s15 = inlined_call_operand.vmem [shape: bf16[3,40,16], index: 15, kind: input, shape index: {}]
  %s16 = inlined_call_operand.vmem [shape: f32[3,1,16], index: 16, kind: input, shape index: {}]
  %s17 = inlined_call_operand.vmem [shape: f32[3,1,16], index: 17, kind: input, shape index: {}]
  %s18 = inlined_call_operand.vmem [shape: f32[3,1,1], index: 18, kind: input, shape index: {}]
  %s19 = inlined_call_operand.vmem [shape: bf16[3,40,40], index: 19, kind: input, shape index: {}]
  %s20 = inlined_call_operand.vmem [shape: f32[3,1,40], index: 20, kind: input, shape index: {}]
  %s21 = inlined_call_operand.vmem [shape: f32[1,46,40], index: 21, kind: output, shape index: {}]
  %s22 = sld [smem:[#allocation0]]
  $region94: #{gcn_module_forward.1} parent=0
    _
  %s24 = ssub.s32 1, %s22
  %s25 = scalar_select 0, %s24, %s22
  // Predicated region
  $region2: #{gcn_module_forward.1} parent=0 // pred_check
    _
  $region3: #{gcn_module_forward.1} parent=0 // pred_check_branch
    %27 = sbr.rel (0) target = $region5
  $region4: #{gcn_module_forward.1} parent=0 // pred_region
    _
  $region5: #{gcn_module_forward.1} parent=0 // pred_fallthru
    _
  // Predicated region
  $region6: #{gcn_module_forward.1} parent=0 // pred_check
    _
  $region7: #{gcn_module_forward.1} parent=0 // pred_check_branch
    %29 = sbr.rel (0) target = $region9
  $region8: #{gcn_module_forward.1} parent=0 // pred_region
    _
  $region9: #{gcn_module_forward.1} parent=0 // pred_fallthru
    _
  // Predicated region
  $region10: #{gcn_module_forward.1} parent=0 // pred_check
    _
  $region11: #{gcn_module_forward.1} parent=0 // pred_check_branch
    %31 = sbr.rel (0) target = $region13
  $region12: #{gcn_module_forward.1} parent=0 // pred_region
    _
  $region13: #{gcn_module_forward.1} parent=0 // pred_fallthru
    _
  // Predicated region
  $region14: #{gcn_module_forward.1} parent=0 // pred_check
    _
  $region15: #{gcn_module_forward.1} parent=0 // pred_check_branch
    %33 = sbr.rel (0) target = $region17
  $region16: #{gcn_module_forward.1} parent=0 // pred_region
    _
  $region17: #{gcn_module_forward.1} parent=0 // pred_fallthru
    _
  // Predicated region
  $region18: #{gcn_module_forward.1} parent=0 // pred_check
    _
  $region19: #{gcn_module_forward.1} parent=0 // pred_check_branch
    %35 = sbr.rel (0) target = $region21
  $region20: #{gcn_module_forward.1} parent=0 // pred_region
    _
  $region21: #{gcn_module_forward.1} parent=0 // pred_fallthru
    _
  // Predicated region
  $region22: #{gcn_module_forward.1} parent=0 // pred_check
    _
  $region23: #{gcn_module_forward.1} parent=0 // pred_check_branch
    %37 = sbr.rel (0) target = $region25
  $region24: #{gcn_module_forward.1} parent=0 // pred_region
    _
  $region25: #{gcn_module_forward.1} parent=0 // pred_fallthru
    _
  // Predicated region
  $region26: #{gcn_module_forward.1} parent=0 // pred_check
    _
  $region27: #{gcn_module_forward.1} parent=0 // pred_check_branch
    %39 = sbr.rel (0) target = $region29
  $region28: #{gcn_module_forward.1} parent=0 // pred_region
    _
  $region29: #{gcn_module_forward.1} parent=0 // pred_fallthru
    _
  // Predicated region
  $region30: #{gcn_module_forward.1} parent=0 // pred_check
    _
  $region31: #{gcn_module_forward.1} parent=0 // pred_check_branch
    %41 = sbr.rel (0) target = $region33
  $region32: #{gcn_module_forward.1} parent=0 // pred_region
    _
  $region33: #{gcn_module_forward.1} parent=0 // pred_fallthru
    _
  // Predicated region
  $region34: #{gcn_module_forward.1} parent=0 // pred_check
    _
  $region35: #{gcn_module_forward.1} parent=0 // pred_check_branch
    %43 = sbr.rel (0) target = $region37
  $region36: #{gcn_module_forward.1} parent=0 // pred_region
    _
  $region37: #{gcn_module_forward.1} parent=0 // pred_fallthru
    _
  // Predicated region
  $region38: #{gcn_module_forward.1} parent=0 // pred_check
    _
  $region39: #{gcn_module_forward.1} parent=0 // pred_check_branch
    %45 = sbr.rel (0) target = $region41
  $region40: #{gcn_module_forward.1} parent=0 // pred_region
    _
  $region41: #{gcn_module_forward.1} parent=0 // pred_fallthru
    _
  // Predicated region
  $region42: #{gcn_module_forward.1} parent=0 // pred_check
    _
  $region43: #{gcn_module_forward.1} parent=0 // pred_check_branch
    %47 = sbr.rel (0) target = $region45
  $region44: #{gcn_module_forward.1} parent=0 // pred_region
    _
  $region45: #{gcn_module_forward.1} parent=0 // pred_fallthru
    _
  // Predicated region
  $region46: #{gcn_module_forward.1} parent=0 // pred_check
    _
  $region47: #{gcn_module_forward.1} parent=0 // pred_check_branch
    %49 = sbr.rel (0) target = $region49
  $region48: #{gcn_module_forward.1} parent=0 // pred_region
    _
  $region49: #{gcn_module_forward.1} parent=0 // pred_fallthru
    _
  // Predicated region
  $region50: #{gcn_module_forward.1} parent=0 // pred_check
    _
  $region51: #{gcn_module_forward.1} parent=0 // pred_check_branch
    %51 = sbr.rel (0) target = $region53
  $region52: #{gcn_module_forward.1} parent=0 // pred_region
    _
  $region53: #{gcn_module_forward.1} parent=0 // pred_fallthru
    _
  // Predicated region
  $region54: #{gcn_module_forward.1} parent=0 // pred_check
    _
  $region55: #{gcn_module_forward.1} parent=0 // pred_check_branch
    %53 = sbr.rel (0) target = $region57
  $region56: #{gcn_module_forward.1} parent=0 // pred_region
    _
  $region57: #{gcn_module_forward.1} parent=0 // pred_fallthru
    _
  // Predicated region
  $region58: #{gcn_module_forward.1} parent=0 // pred_check
    _
  $region59: #{gcn_module_forward.1} parent=0 // pred_check_branch
    %55 = sbr.rel (0) target = $region61
  $region60: #{gcn_module_forward.1} parent=0 // pred_region
    _
  $region61: #{gcn_module_forward.1} parent=0 // pred_fallthru
    _
  // Predicated region
  $region62: #{gcn_module_forward.1} parent=0 // pred_check
    _
  $region63: #{gcn_module_forward.1} parent=0 // pred_check_branch
    %57 = sbr.rel (0) target = $region65
  $region64: #{gcn_module_forward.1} parent=0 // pred_region
    _
  $region65: #{gcn_module_forward.1} parent=0 // pred_fallthru
    _
  // Predicated region
  $region66: #{gcn_module_forward.1} parent=0 // pred_check
    _
  $region67: #{gcn_module_forward.1} parent=0 // pred_check_branch
    %59 = sbr.rel (0) target = $region69
  $region68: #{gcn_module_forward.1} parent=0 // pred_region
    _
  $region69: #{gcn_module_forward.1} parent=0 // pred_fallthru
    _
  // Predicated region
  $region70: #{gcn_module_forward.1} parent=0 // pred_check
    _
  $region71: #{gcn_module_forward.1} parent=0 // pred_check_branch
    %61 = sbr.rel (0) target = $region73
  $region72: #{gcn_module_forward.1} parent=0 // pred_region
    _
  $region73: #{gcn_module_forward.1} parent=0 // pred_fallthru
    _
  // Predicated region
  $region74: #{gcn_module_forward.1} parent=0 // pred_check
    _
  $region75: #{gcn_module_forward.1} parent=0 // pred_check_branch
    %63 = sbr.rel (0) target = $region77
  $region76: #{gcn_module_forward.1} parent=0 // pred_region
    _
  $region77: #{gcn_module_forward.1} parent=0 // pred_fallthru
    _
  // Predicated region
  $region78: #{gcn_module_forward.1} parent=0 // pred_check
    _
  $region79: #{gcn_module_forward.1} parent=0 // pred_check_branch
    %65 = sbr.rel (0) target = $region81
  $region80: #{gcn_module_forward.1} parent=0 // pred_region
    _
  $region81: #{gcn_module_forward.1} parent=0 // pred_fallthru
    _
  // Predicated region
  $region82: #{gcn_module_forward.1} parent=0 // pred_check
    _
  $region83: #{gcn_module_forward.1} parent=0 // pred_check_branch
    %67 = sbr.rel (0) target = $region85
  $region84: #{gcn_module_forward.1} parent=0 // pred_region
    _
  $region85: #{gcn_module_forward.1} parent=0 // pred_fallthru
    _
  %v69 = vld [vmem:[%s0] sm:$0xff]
  %v70 = vld [vmem:[%s0 + $0x8] sm:$0xff]
  %v71 = vld [vmem:[%s0 + $0x10] sm:$0xff]
  %v72 = vld [vmem:[%s0 + $0x18] sm:$0xff]
  %v73 = vld [vmem:[%s0 + $0x20] sm:$0xff]
  %v74 = vld [vmem:[%s4] sm:$0xf]
  %v75 = vld [vmem:[%s4 + $0x4] sm:$0xf]
  %v76 = vld [vmem:[%s4 + $0x8] sm:$0xf]
  %v77 = vld [vmem:[%s4 + $0xc] sm:$0xf]
  %v78 = vld [vmem:[%s4 + $0x10] sm:$0xf]
  %v79 = vunpack.c.l.bf16 %v74
  %v80 = vunpack.c.l.bf16 %v75
  %v81 = vunpack.c.l.bf16 %v76
  %v82 = vunpack.c.l.bf16 %v77
  %v83 = vunpack.c.l.bf16 %v78
  %vm84 = vcmask 326656
  %v85 = vsel %vm84, %v79, 0.0
  %86 = vadd.xlane.f32.xlu0 %v85
  %v87 = vpop.xlane.xlu0 %86
  %v88 = vsel %vm84, %v80, 0.0
  %89 = vadd.xlane.f32.xlu0 %v88
  %v90 = vpop.xlane.xlu0 %89
  %v91 = vsel %vm84, %v81, 0.0
  %92 = vadd.xlane.f32.xlu0 %v91
  %v93 = vpop.xlane.xlu0 %92
  %v94 = vsel %vm84, %v82, 0.0
  %95 = vadd.xlane.f32.xlu0 %v94
  %v96 = vpop.xlane.xlu0 %95
  %v97 = vsel %vm84, %v83, 0.0
  %98 = vadd.xlane.f32.xlu0 %v97
  %v99 = vpop.xlane.xlu0 %98
  %v100 = vrcp.pop %v87
  %v101 = vmul.f32 1.0, %v100
  %v102 = vrcp.pop %v90
  %v103 = vmul.f32 1.0, %v102
  %v104 = vrcp.pop %v93
  %v105 = vmul.f32 1.0, %v104
  %v106 = vrcp.pop %v96
  %v107 = vmul.f32 1.0, %v106
  %v108 = vrcp.pop %v99
  %v109 = vmul.f32 1.0, %v108
  %v110 = vpack.c.bf16 %v70, %v69
  %v111 = vpack.c.bf16 %v72, %v71
  %v112 = vpack.c.bf16 %v73, %v73
  %v113 = vld [vmem:[%s11] sm:$0xf]
  %v114 = vld [vmem:[%s11 + $0x4] sm:$0xf]
  %v115 = vld [vmem:[%s11 + $0x8] sm:$0xf]
  %v116 = vld [vmem:[%s11 + $0xc] sm:$0xf]
  %v117 = vld [vmem:[%s11 + $0x10] sm:$0xf]
  %v118 = vld [vmem:[%s11 + $0x14] sm:$0xf]
  %v119 = vld [vmem:[%s11 + $0x18] sm:$0xf]
  %v120 = vld [vmem:[%s11 + $0x1c] sm:$0xf]
  %v121 = vld [vmem:[%s11 + $0x20] sm:$0xf]
  %v122 = vld [vmem:[%s12] sm:$0x1f]
  %v128 = vunpack.c.l.b16 %v74
  %v129 = vunpack.c.l.b16 %v75
  %v130 = vunpack.c.l.b16 %v76
  %v131 = vunpack.c.l.b16 %v77
  %v132 = vunpack.c.l.b16 %v78
  %v133 = vpack.c.b16 %v129, %v128
  %v134 = vpack.c.b16 %v131, %v130
  %v135 = vpack.c.b16 %v132, %v132
  %v137 = vsel %vm84, %v133, 0
  %v140 = vsel %vm84, %v134, 0
  %v143 = vsel %vm84, %v135, 0
  %vm145 = vcmask 1043456
  %v147 = vsel %vm145, %v112, 0
  %149 = vmatprep.subr.bf16.mxu0 0
  %150 = vmatpush1.bf16.msra.mxu0 %v110
  %151 = vmatprep.subr.bf16.mxu0 0
  %152 = vmatpush1.bf16.msra.mxu0 %v111
  %153 = vmatprep.subr.bf16.mxu0 0
  %154 = vmatpush1.bf16.msra.mxu0 %v147
  %155 = vmatprep.subr.bf16.mxu0 0
  %156 = vmatpush1.bf16.msra.mxu0 0
  %157 = vmatprep.subr.bf16.mxu0 0
  %158 = vmatpush1.bf16.msra.mxu0 0
  %159 = vmatprep.subr.bf16.mxu0 0
  %160 = vmatpush1.bf16.msra.mxu0 0
  %161 = vmatprep.subr.bf16.mxu0 0
  %162 = vmatpush1.bf16.msra.mxu0 0
  %163 = vmatprep.subr.bf16.mxu0 0
  %164 = vmatpush1.bf16.msra.mxu0 0
  %165 = vmatprep.subr.bf16.mxu0 0
  %166 = vmatpush1.bf16.msra.mxu0 0
  %167 = vmatprep.subr.bf16.mxu0 0
  %168 = vmatpush1.bf16.msra.mxu0 0
  %169 = vmatprep.subr.bf16.mxu0 0
  %170 = vmatpush1.bf16.msra.mxu0 0
  %171 = vmatprep.subr.bf16.mxu0 0
  %172 = vmatpush1.bf16.msra.mxu0 0
  %173 = vmatprep.subr.bf16.mxu0 0
  %174 = vmatpush1.bf16.msra.mxu0 0
  %175 = vmatprep.subr.bf16.mxu0 0
  %176 = vmatpush1.bf16.msra.mxu0 0
  %177 = vmatprep.subr.bf16.mxu0 0
  %178 = vmatpush1.bf16.msra.mxu0 0
  %179 = vmatprep.subr.bf16.mxu0 0
  %180 = vmatpush1.bf16.msra.mxu0 0
  %181 = vmatprep.mubr.bf16.mxu0 0
  %182 = vmatmul.mubr.bf16.gmra.mrb[0].mxu0 %v137
  %v183 = vpop.f32.mrb[0].mxu0
  %v184 = vadd.f32 %v69, %v183
  %v185 = vpop.f32.mrb[0].mxu0
  %v186 = vpop.f32.mrb[0].mxu0
  %v187 = vadd.f32 %v70, %v186
  %v188 = vpop.f32.mrb[0].mxu0
  %189 = vmatprep.mubr.bf16.mxu0 0
  %190 = vmatmul.mubr.bf16.gmra.mrb[0].mxu0 %v140
  %v191 = vpop.f32.mrb[0].mxu0
  %v192 = vadd.f32 %v71, %v191
  %v193 = vpop.f32.mrb[0].mxu0
  %v194 = vpop.f32.mrb[0].mxu0
  %v195 = vadd.f32 %v72, %v194
  %v196 = vpop.f32.mrb[0].mxu0
  %197 = vmatprep.mubr.bf16.mxu0 0
  %198 = vmatmul.mubr.bf16.gmra.mrb[0].mxu0 %v143
  %v199 = vpop.f32.mrb[0].mxu0
  %v200 = vadd.f32 %v73, %v199
  %v201 = vpop.f32.mrb[0].mxu0
  %v202 = vpop.f32.mrb[0].mxu0
  %v203 = vpop.f32.mrb[0].mxu0
  %204 = vdwg.mxu0
  %v205 = vpack.c.bf16 %v187, %v184
  %v206 = vpack.c.bf16 %v195, %v192
  %v207 = vpack.c.bf16 %v200, %v200
  %v208 = vmul.f32 %v122, 2.0
  %v209 = vlaneseq
  %v210 = vshrl.u32 %v209, 7
  %v211 = vsub.s32 0, %v210
  %v212 = vrot.slane %v208, %v211
  %v218 = vunpack.c.l.b16 %v113
  %v219 = vunpack.c.l.b16 %v114
  %v220 = vunpack.c.l.b16 %v115
  %v221 = vunpack.c.l.b16 %v116
  %v222 = vunpack.c.l.b16 %v117
  %v223 = vpack.c.b16 %v219, %v218
  %v224 = vpack.c.b16 %v221, %v220
  %v225 = vpack.c.b16 %v222, %v222
  %v229 = vsel %vm84, %v205, 0
  %v232 = vsel %vm84, %v206, 0
  %v235 = vsel %vm84, %v207, 0
  %v238 = vsel %vm145, %v225, 0
  %240 = vmatprep.subr.bf16.mxu0 0
  %241 = vmatpush1.bf16.msra.mxu0 %v223
  %242 = vmatprep.subr.bf16.mxu0 0
  %243 = vmatpush1.bf16.msra.mxu0 %v224
  %244 = vmatprep.subr.bf16.mxu0 0
  %245 = vmatpush1.bf16.msra.mxu0 %v238
  %246 = vmatprep.subr.bf16.mxu0 0
  %247 = vmatpush1.bf16.msra.mxu0 0
  %248 = vmatprep.subr.bf16.mxu0 0
  %249 = vmatpush1.bf16.msra.mxu0 0
  %250 = vmatprep.subr.bf16.mxu0 0
  %251 = vmatpush1.bf16.msra.mxu0 0
  %252 = vmatprep.subr.bf16.mxu0 0
  %253 = vmatpush1.bf16.msra.mxu0 0
  %254 = vmatprep.subr.bf16.mxu0 0
  %255 = vmatpush1.bf16.msra.mxu0 0
  %256 = vmatprep.subr.bf16.mxu0 0
  %257 = vmatpush1.bf16.msra.mxu0 0
  %258 = vmatprep.subr.bf16.mxu0 0
  %259 = vmatpush1.bf16.msra.mxu0 0
  %260 = vmatprep.subr.bf16.mxu0 0
  %261 = vmatpush1.bf16.msra.mxu0 0
  %262 = vmatprep.subr.bf16.mxu0 0
  %263 = vmatpush1.bf16.msra.mxu0 0
  %264 = vmatprep.subr.bf16.mxu0 0
  %265 = vmatpush1.bf16.msra.mxu0 0
  %266 = vmatprep.subr.bf16.mxu0 0
  %267 = vmatpush1.bf16.msra.mxu0 0
  %268 = vmatprep.subr.bf16.mxu0 0
  %269 = vmatpush1.bf16.msra.mxu0 0
  %270 = vmatprep.subr.bf16.mxu0 0
  %271 = vmatpush1.bf16.msra.mxu0 0
  %272 = vmatprep.mubr.bf16.mxu0 0
  %273 = vmatmul.mubr.bf16.gmra.mrb[0].mxu0 %v229
  %v274 = vpop.f32.mrb[0].mxu0
  %v275 = vadd.f32 %v212, %v274
  %v276 = vpop.f32.mrb[0].mxu0
  %v277 = vpop.f32.mrb[0].mxu0
  %v278 = vadd.f32 %v212, %v277
  %v279 = vpop.f32.mrb[0].mxu0
  %280 = vmatprep.mubr.bf16.mxu0 0
  %281 = vmatmul.mubr.bf16.gmra.mrb[0].mxu0 %v232
  %v282 = vpop.f32.mrb[0].mxu0
  %v283 = vadd.f32 %v212, %v282
  %v284 = vpop.f32.mrb[0].mxu0
  %v285 = vpop.f32.mrb[0].mxu0
  %v286 = vadd.f32 %v212, %v285
  %v287 = vpop.f32.mrb[0].mxu0
  %288 = vmatprep.mubr.bf16.mxu0 0
  %289 = vmatmul.mubr.bf16.gmra.mrb[0].mxu0 %v235
  %v290 = vpop.f32.mrb[0].mxu0
  %v291 = vadd.f32 %v212, %v290
  %v292 = vpop.f32.mrb[0].mxu0
  %v293 = vpop.f32.mrb[0].mxu0
  %v294 = vpop.f32.mrb[0].mxu0
  %295 = vdwg.mxu0
  %v296 = vmul.f32 %v275, %v101
  %v297 = vmul.f32 %v278, %v103
  %v298 = vmul.f32 %v283, %v105
  %v299 = vmul.f32 %v286, %v107
  %v300 = vmul.f32 %v291, %v109
  %v301 = vmax.f32 %v296, 0.0
  %v302 = vmax.f32 %v297, 0.0
  %v303 = vmax.f32 %v298, 0.0
  %v304 = vmax.f32 %v299, 0.0
  %v305 = vmax.f32 %v300, 0.0
  %v306 = vpack.c.bf16 %v302, %v301
  %v307 = vpack.c.bf16 %v304, %v303
  %v308 = vpack.c.bf16 %v305, %v305
  %v310 = vsel %vm145, %v308, 0
  %312 = vmatprep.subr.bf16.mxu0 0
  %313 = vmatpush1.bf16.msra.mxu0 %v306
  %314 = vmatprep.subr.bf16.mxu0 0
  %315 = vmatpush1.bf16.msra.mxu0 %v307
  %316 = vmatprep.subr.bf16.mxu0 0
  %317 = vmatpush1.bf16.msra.mxu0 %v310
  %318 = vmatprep.subr.bf16.mxu0 0
  %319 = vmatpush1.bf16.msra.mxu0 0
  %320 = vmatprep.subr.bf16.mxu0 0
  %321 = vmatpush1.bf16.msra.mxu0 0
  %322 = vmatprep.subr.bf16.mxu0 0
  %323 = vmatpush1.bf16.msra.mxu0 0
  %324 = vmatprep.subr.bf16.mxu0 0
  %325 = vmatpush1.bf16.msra.mxu0 0
  %326 = vmatprep.subr.bf16.mxu0 0
  %327 = vmatpush1.bf16.msra.mxu0 0
  %328 = vmatprep.subr.bf16.mxu0 0
  %329 = vmatpush1.bf16.msra.mxu0 0
  %330 = vmatprep.subr.bf16.mxu0 0
  %331 = vmatpush1.bf16.msra.mxu0 0
  %332 = vmatprep.subr.bf16.mxu0 0
  %333 = vmatpush1.bf16.msra.mxu0 0
  %334 = vmatprep.subr.bf16.mxu0 0
  %335 = vmatpush1.bf16.msra.mxu0 0
  %336 = vmatprep.subr.bf16.mxu0 0
  %337 = vmatpush1.bf16.msra.mxu0 0
  %338 = vmatprep.subr.bf16.mxu0 0
  %339 = vmatpush1.bf16.msra.mxu0 0
  %340 = vmatprep.subr.bf16.mxu0 0
  %341 = vmatpush1.bf16.msra.mxu0 0
  %342 = vmatprep.subr.bf16.mxu0 0
  %343 = vmatpush1.bf16.msra.mxu0 0
  %344 = vmatprep.mubr.bf16.mxu0 0
  %345 = vmatmul.mubr.bf16.gmra.mrb[0].mxu0 %v137
  %v346 = vpop.f32.mrb[0].mxu0
  %v347 = vadd.f32 %v301, %v346
  %v348 = vpop.f32.mrb[0].mxu0
  %v349 = vpop.f32.mrb[0].mxu0
  %v350 = vadd.f32 %v302, %v349
  %v351 = vpop.f32.mrb[0].mxu0
  %352 = vmatprep.mubr.bf16.mxu0 0
  %353 = vmatmul.mubr.bf16.gmra.mrb[0].mxu0 %v140
  %v354 = vpop.f32.mrb[0].mxu0
  %v355 = vadd.f32 %v303, %v354
  %v356 = vpop.f32.mrb[0].mxu0
  %v357 = vpop.f32.mrb[0].mxu0
  %v358 = vadd.f32 %v304, %v357
  %v359 = vpop.f32.mrb[0].mxu0
  %360 = vmatprep.mubr.bf16.mxu0 0
  %361 = vmatmul.mubr.bf16.gmra.mrb[0].mxu0 %v143
  %v362 = vpop.f32.mrb[0].mxu0
  %v363 = vadd.f32 %v305, %v362
  %v364 = vpop.f32.mrb[0].mxu0
  %v365 = vpop.f32.mrb[0].mxu0
  %v366 = vpop.f32.mrb[0].mxu0
  %367 = vdwg.mxu0
  %v368 = vpack.c.bf16 %v350, %v347
  %v369 = vpack.c.bf16 %v358, %v355
  %v370 = vpack.c.bf16 %v363, %v363
  %374 = vrot.lane.b32.xlu0 %v368, 40
  %v375 = vpop.permute.xlu0 %374
  %376 = vrot.lane.b32.xlu0 %v369, 40
  %v377 = vpop.permute.xlu0 %376
  %378 = vrot.lane.b32.xlu0 %v370, 40
  %v379 = vpop.permute.xlu0 %378
  %v381 = vsel %vm84, %v205, %v375
  %v383 = vsel %vm84, %v206, %v377
  %v385 = vsel %vm84, %v207, %v379
  %v386 = vlaneseq
  %v387 = vshrl.u32 %v386, 7
  %v388 = vsub.s32 1, %v387
  %v389 = vrot.slane %v208, %v388
  %v391 = vunpack.c.l.b16 %v118
  %v392 = vpack.c.b16 %v391, %v222
  %393 = vrot.lane.b32.xlu0 %v223, 120
  %v394 = vpop.permute.xlu0 %393
  %395 = vrot.lane.b32.xlu0 %v224, 120
  %v396 = vpop.permute.xlu0 %395
  %397 = vrot.lane.b32.xlu0 %v392, 120
  %v398 = vpop.permute.xlu0 %397
  %vm402 = vcmask 392192
  %v403 = vsel %vm402, %v381, 0
  %v405 = vsel %vm402, %v383, 0
  %v407 = vsel %vm402, %v385, 0
  %409 = vmatprep.subr.bf16.mxu0 0
  %410 = vmatpush1.bf16.msra.mxu0 %v394
  %411 = vmatprep.subr.bf16.mxu0 0
  %412 = vmatpush1.bf16.msra.mxu0 %v396
  %413 = vmatprep.subr.bf16.mxu0 0
  %414 = vmatpush1.bf16.msra.mxu0 %v398
  %415 = vmatprep.subr.bf16.mxu0 0
  %416 = vmatpush1.bf16.msra.mxu0 0
  %417 = vmatprep.subr.bf16.mxu0 0
  %418 = vmatpush1.bf16.msra.mxu0 0
  %419 = vmatprep.subr.bf16.mxu0 0
  %420 = vmatpush1.bf16.msra.mxu0 0
  %421 = vmatprep.subr.bf16.mxu0 0
  %422 = vmatpush1.bf16.msra.mxu0 0
  %423 = vmatprep.subr.bf16.mxu0 0
  %424 = vmatpush1.bf16.msra.mxu0 0
  %425 = vmatprep.subr.bf16.mxu0 0
  %426 = vmatpush1.bf16.msra.mxu0 0
  %427 = vmatprep.subr.bf16.mxu0 0
  %428 = vmatpush1.bf16.msra.mxu0 0
  %429 = vmatprep.subr.bf16.mxu0 0
  %430 = vmatpush1.bf16.msra.mxu0 0
  %431 = vmatprep.subr.bf16.mxu0 0
  %432 = vmatpush1.bf16.msra.mxu0 0
  %433 = vmatprep.subr.bf16.mxu0 0
  %434 = vmatpush1.bf16.msra.mxu0 0
  %435 = vmatprep.subr.bf16.mxu0 0
  %436 = vmatpush1.bf16.msra.mxu0 0
  %437 = vmatprep.subr.bf16.mxu0 0
  %438 = vmatpush1.bf16.msra.mxu0 0
  %439 = vmatprep.subr.bf16.mxu0 0
  %440 = vmatpush1.bf16.msra.mxu0 0
  %441 = vmatprep.mubr.bf16.mxu0 0
  %442 = vmatmul.mubr.bf16.gmra.mrb[0].mxu0 %v403
  %v443 = vpop.f32.mrb[0].mxu0
  %v444 = vadd.f32 %v389, %v443
  %v445 = vpop.f32.mrb[0].mxu0
  %v446 = vpop.f32.mrb[0].mxu0
  %v447 = vadd.f32 %v389, %v446
  %v448 = vpop.f32.mrb[0].mxu0
  %449 = vmatprep.mubr.bf16.mxu0 0
  %450 = vmatmul.mubr.bf16.gmra.mrb[0].mxu0 %v405
  %v451 = vpop.f32.mrb[0].mxu0
  %v452 = vadd.f32 %v389, %v451
  %v453 = vpop.f32.mrb[0].mxu0
  %v454 = vpop.f32.mrb[0].mxu0
  %v455 = vadd.f32 %v389, %v454
  %v456 = vpop.f32.mrb[0].mxu0
  %457 = vmatprep.mubr.bf16.mxu0 0
  %458 = vmatmul.mubr.bf16.gmra.mrb[0].mxu0 %v407
  %v459 = vpop.f32.mrb[0].mxu0
  %v460 = vadd.f32 %v389, %v459
  %v461 = vpop.f32.mrb[0].mxu0
  %v462 = vpop.f32.mrb[0].mxu0
  %v463 = vpop.f32.mrb[0].mxu0
  %464 = vdwg.mxu0
  %v465 = vmul.f32 %v444, %v101
  %v466 = vmul.f32 %v447, %v103
  %v467 = vmul.f32 %v452, %v105
  %v468 = vmul.f32 %v455, %v107
  %v469 = vmul.f32 %v460, %v109
  %v470 = vmax.f32 %v465, 0.0
  %v471 = vmax.f32 %v466, 0.0
  %v472 = vmax.f32 %v467, 0.0
  %v473 = vmax.f32 %v468, 0.0
  %v474 = vmax.f32 %v469, 0.0
  %v475 = vpack.c.bf16 %v471, %v470
  %v476 = vpack.c.bf16 %v473, %v472
  %v477 = vpack.c.bf16 %v474, %v474
  %v479 = vsel %vm145, %v477, 0
  %481 = vmatprep.subr.bf16.mxu0 0
  %482 = vmatpush1.bf16.msra.mxu0 %v475
  %483 = vmatprep.subr.bf16.mxu0 0
  %484 = vmatpush1.bf16.msra.mxu0 %v476
  %485 = vmatprep.subr.bf16.mxu0 0
  %486 = vmatpush1.bf16.msra.mxu0 %v479
  %487 = vmatprep.subr.bf16.mxu0 0
  %488 = vmatpush1.bf16.msra.mxu0 0
  %489 = vmatprep.subr.bf16.mxu0 0
  %490 = vmatpush1.bf16.msra.mxu0 0
  %491 = vmatprep.subr.bf16.mxu0 0
  %492 = vmatpush1.bf16.msra.mxu0 0
  %493 = vmatprep.subr.bf16.mxu0 0
  %494 = vmatpush1.bf16.msra.mxu0 0
  %495 = vmatprep.subr.bf16.mxu0 0
  %496 = vmatpush1.bf16.msra.mxu0 0
  %497 = vmatprep.subr.bf16.mxu0 0
  %498 = vmatpush1.bf16.msra.mxu0 0
  %499 = vmatprep.subr.bf16.mxu0 0
  %500 = vmatpush1.bf16.msra.mxu0 0
  %501 = vmatprep.subr.bf16.mxu0 0
  %502 = vmatpush1.bf16.msra.mxu0 0
  %503 = vmatprep.subr.bf16.mxu0 0
  %504 = vmatpush1.bf16.msra.mxu0 0
  %505 = vmatprep.subr.bf16.mxu0 0
  %506 = vmatpush1.bf16.msra.mxu0 0
  %507 = vmatprep.subr.bf16.mxu0 0
  %508 = vmatpush1.bf16.msra.mxu0 0
  %509 = vmatprep.subr.bf16.mxu0 0
  %510 = vmatpush1.bf16.msra.mxu0 0
  %511 = vmatprep.subr.bf16.mxu0 0
  %512 = vmatpush1.bf16.msra.mxu0 0
  %513 = vmatprep.mubr.bf16.mxu0 0
  %514 = vmatmul.mubr.bf16.gmra.mrb[0].mxu0 %v137
  %v515 = vpop.f32.mrb[0].mxu0
  %v516 = vadd.f32 %v470, %v515
  %v517 = vpop.f32.mrb[0].mxu0
  %v518 = vpop.f32.mrb[0].mxu0
  %v519 = vadd.f32 %v471, %v518
  %v520 = vpop.f32.mrb[0].mxu0
  %521 = vmatprep.mubr.bf16.mxu0 0
  %522 = vmatmul.mubr.bf16.gmra.mrb[0].mxu0 %v140
  %v523 = vpop.f32.mrb[0].mxu0
  %v524 = vadd.f32 %v472, %v523
  %v525 = vpop.f32.mrb[0].mxu0
  %v526 = vpop.f32.mrb[0].mxu0
  %v527 = vadd.f32 %v473, %v526
  %v528 = vpop.f32.mrb[0].mxu0
  %529 = vmatprep.mubr.bf16.mxu0 0
  %530 = vmatmul.mubr.bf16.gmra.mrb[0].mxu0 %v143
  %v531 = vpop.f32.mrb[0].mxu0
  %v532 = vadd.f32 %v474, %v531
  %v533 = vpop.f32.mrb[0].mxu0
  %v534 = vpop.f32.mrb[0].mxu0
  %v535 = vpop.f32.mrb[0].mxu0
  %536 = vdwg.mxu0
  %v537 = vpack.c.bf16 %v519, %v516
  %v538 = vpack.c.bf16 %v527, %v524
  %v539 = vpack.c.bf16 %v532, %v532
  %543 = vrot.lane.b32.xlu0 %v537, 48
  %v544 = vpop.permute.xlu0 %543
  %545 = vrot.lane.b32.xlu0 %v538, 48
  %v546 = vpop.permute.xlu0 %545
  %547 = vrot.lane.b32.xlu0 %v539, 48
  %v548 = vpop.permute.xlu0 %547
  %v550 = vsel %vm402, %v381, %v544
  %v552 = vsel %vm402, %v383, %v546
  %v554 = vsel %vm402, %v385, %v548
  %v555 = vlaneseq
  %v556 = vshrl.u32 %v555, 7
  %v557 = vsub.s32 2, %v556
  %v558 = vrot.slane %v208, %v557
  %v560 = vunpack.c.l.b16 %v119
  %v561 = vpack.c.b16 %v560, %v560
  %562 = vrot.lane.b32.xlu0 %v223, 112
  %v563 = vpop.permute.xlu0 %562
  %564 = vrot.lane.b32.xlu0 %v224, 112
  %v565 = vpop.permute.xlu0 %564
  %566 = vrot.lane.b32.xlu0 %v392, 112
  %v567 = vpop.permute.xlu0 %566
  %568 = vrot.lane.b32.xlu0 %v561, 112
  %v569 = vpop.permute.xlu0 %568
  %vm573 = vcmask 457728
  %v574 = vsel %vm573, %v550, 0
  %v576 = vsel %vm573, %v552, 0
  %v578 = vsel %vm573, %v554, 0
  %v581 = vsel %vm145, %v569, 0
  %583 = vmatprep.subr.bf16.mxu0 0
  %584 = vmatpush1.bf16.msra.mxu0 %v563
  %585 = vmatprep.subr.bf16.mxu0 0
  %586 = vmatpush1.bf16.msra.mxu0 %v565
  %587 = vmatprep.subr.bf16.mxu0 0
  %588 = vmatpush1.bf16.msra.mxu0 %v567
  %589 = vmatprep.subr.bf16.mxu0 0
  %590 = vmatpush1.bf16.msra.mxu0 %v581
  %591 = vmatprep.subr.bf16.mxu0 0
  %592 = vmatpush1.bf16.msra.mxu0 0
  %593 = vmatprep.subr.bf16.mxu0 0
  %594 = vmatpush1.bf16.msra.mxu0 0
  %595 = vmatprep.subr.bf16.mxu0 0
  %596 = vmatpush1.bf16.msra.mxu0 0
  %597 = vmatprep.subr.bf16.mxu0 0
  %598 = vmatpush1.bf16.msra.mxu0 0
  %599 = vmatprep.subr.bf16.mxu0 0
  %600 = vmatpush1.bf16.msra.mxu0 0
  %601 = vmatprep.subr.bf16.mxu0 0
  %602 = vmatpush1.bf16.msra.mxu0 0
  %603 = vmatprep.subr.bf16.mxu0 0
  %604 = vmatpush1.bf16.msra.mxu0 0
  %605 = vmatprep.subr.bf16.mxu0 0
  %606 = vmatpush1.bf16.msra.mxu0 0
  %607 = vmatprep.subr.bf16.mxu0 0
  %608 = vmatpush1.bf16.msra.mxu0 0
  %609 = vmatprep.subr.bf16.mxu0 0
  %610 = vmatpush1.bf16.msra.mxu0 0
  %611 = vmatprep.subr.bf16.mxu0 0
  %612 = vmatpush1.bf16.msra.mxu0 0
  %613 = vmatprep.subr.bf16.mxu0 0
  %614 = vmatpush1.bf16.msra.mxu0 0
  %615 = vmatprep.mubr.bf16.mxu0 0
  %616 = vmatmul.mubr.bf16.gmra.mrb[0].mxu0 %v574
  %v617 = vpop.f32.mrb[0].mxu0
  %v618 = vadd.f32 %v558, %v617
  %v619 = vpop.f32.mrb[0].mxu0
  %v620 = vpop.f32.mrb[0].mxu0
  %v621 = vadd.f32 %v558, %v620
  %v622 = vpop.f32.mrb[0].mxu0
  %623 = vmatprep.mubr.bf16.mxu0 0
  %624 = vmatmul.mubr.bf16.gmra.mrb[0].mxu0 %v576
  %v625 = vpop.f32.mrb[0].mxu0
  %v626 = vadd.f32 %v558, %v625
  %v627 = vpop.f32.mrb[0].mxu0
  %v628 = vpop.f32.mrb[0].mxu0
  %v629 = vadd.f32 %v558, %v628
  %v630 = vpop.f32.mrb[0].mxu0
  %631 = vmatprep.mubr.bf16.mxu0 0
  %632 = vmatmul.mubr.bf16.gmra.mrb[0].mxu0 %v578
  %v633 = vpop.f32.mrb[0].mxu0
  %v634 = vadd.f32 %v558, %v633
  %v635 = vpop.f32.mrb[0].mxu0
  %v636 = vpop.f32.mrb[0].mxu0
  %v637 = vpop.f32.mrb[0].mxu0
  %638 = vdwg.mxu0
  %v639 = vmul.f32 %v618, %v101
  %v640 = vmul.f32 %v621, %v103
  %v641 = vmul.f32 %v626, %v105
  %v642 = vmul.f32 %v629, %v107
  %v643 = vmul.f32 %v634, %v109
  %v644 = vmax.f32 %v639, 0.0
  %v645 = vmax.f32 %v640, 0.0
  %v646 = vmax.f32 %v641, 0.0
  %v647 = vmax.f32 %v642, 0.0
  %v648 = vmax.f32 %v643, 0.0
  %v649 = vpack.c.bf16 %v645, %v644
  %v650 = vpack.c.bf16 %v647, %v646
  %v651 = vpack.c.bf16 %v648, %v648
  %v653 = vsel %vm145, %v651, 0
  %655 = vmatprep.subr.bf16.mxu0 0
  %656 = vmatpush1.bf16.msra.mxu0 %v649
  %657 = vmatprep.subr.bf16.mxu0 0
  %658 = vmatpush1.bf16.msra.mxu0 %v650
  %659 = vmatprep.subr.bf16.mxu0 0
  %660 = vmatpush1.bf16.msra.mxu0 %v653
  %661 = vmatprep.subr.bf16.mxu0 0
  %662 = vmatpush1.bf16.msra.mxu0 0
  %663 = vmatprep.subr.bf16.mxu0 0
  %664 = vmatpush1.bf16.msra.mxu0 0
  %665 = vmatprep.subr.bf16.mxu0 0
  %666 = vmatpush1.bf16.msra.mxu0 0
  %667 = vmatprep.subr.bf16.mxu0 0
  %668 = vmatpush1.bf16.msra.mxu0 0
  %669 = vmatprep.subr.bf16.mxu0 0
  %670 = vmatpush1.bf16.msra.mxu0 0
  %671 = vmatprep.subr.bf16.mxu0 0
  %672 = vmatpush1.bf16.msra.mxu0 0
  %673 = vmatprep.subr.bf16.mxu0 0
  %674 = vmatpush1.bf16.msra.mxu0 0
  %675 = vmatprep.subr.bf16.mxu0 0
  %676 = vmatpush1.bf16.msra.mxu0 0
  %677 = vmatprep.subr.bf16.mxu0 0
  %678 = vmatpush1.bf16.msra.mxu0 0
  %679 = vmatprep.subr.bf16.mxu0 0
  %680 = vmatpush1.bf16.msra.mxu0 0
  %681 = vmatprep.subr.bf16.mxu0 0
  %682 = vmatpush1.bf16.msra.mxu0 0
  %683 = vmatprep.subr.bf16.mxu0 0
  %684 = vmatpush1.bf16.msra.mxu0 0
  %685 = vmatprep.subr.bf16.mxu0 0
  %686 = vmatpush1.bf16.msra.mxu0 0
  %687 = vmatprep.mubr.bf16.mxu0 0
  %688 = vmatmul.mubr.bf16.gmra.mrb[0].mxu0 %v137
  %v689 = vpop.f32.mrb[0].mxu0
  %v690 = vadd.f32 %v644, %v689
  %v691 = vpop.f32.mrb[0].mxu0
  %v692 = vpop.f32.mrb[0].mxu0
  %v693 = vadd.f32 %v645, %v692
  %v694 = vpop.f32.mrb[0].mxu0
  %695 = vmatprep.mubr.bf16.mxu0 0
  %696 = vmatmul.mubr.bf16.gmra.mrb[0].mxu0 %v140
  %v697 = vpop.f32.mrb[0].mxu0
  %v698 = vadd.f32 %v646, %v697
  %v699 = vpop.f32.mrb[0].mxu0
  %v700 = vpop.f32.mrb[0].mxu0
  %v701 = vadd.f32 %v647, %v700
  %v702 = vpop.f32.mrb[0].mxu0
  %703 = vmatprep.mubr.bf16.mxu0 0
  %704 = vmatmul.mubr.bf16.gmra.mrb[0].mxu0 %v143
  %v705 = vpop.f32.mrb[0].mxu0
  %v706 = vadd.f32 %v648, %v705
  %v707 = vpop.f32.mrb[0].mxu0
  %v708 = vpop.f32.mrb[0].mxu0
  %v709 = vpop.f32.mrb[0].mxu0
  %710 = vdwg.mxu0
  %v711 = vpack.c.bf16 %v693, %v690
  %v712 = vpack.c.bf16 %v701, %v698
  %v713 = vpack.c.bf16 %v706, %v706
  %717 = vrot.lane.b32.xlu0 %v711, 56
  %v718 = vpop.permute.xlu0 %717
  %719 = vrot.lane.b32.xlu0 %v712, 56
  %v720 = vpop.permute.xlu0 %719
  %721 = vrot.lane.b32.xlu0 %v713, 56
  %v722 = vpop.permute.xlu0 %721
  %v724 = vsel %vm573, %v550, %v718
  %v726 = vsel %vm573, %v552, %v720
  %v728 = vsel %vm573, %v554, %v722
  %v729 = vlaneseq
  %v730 = vshrl.u32 %v729, 7
  %v731 = vsub.s32 3, %v730
  %v732 = vrot.slane %v208, %v731
  %v734 = vunpack.c.l.b16 %v120
  %v735 = vpack.c.b16 %v734, %v560
  %736 = vrot.lane.b32.xlu0 %v223, 104
  %v737 = vpop.permute.xlu0 %736
  %738 = vrot.lane.b32.xlu0 %v224, 104
  %v739 = vpop.permute.xlu0 %738
  %740 = vrot.lane.b32.xlu0 %v392, 104
  %v741 = vpop.permute.xlu0 %740
  %742 = vrot.lane.b32.xlu0 %v735, 104
  %v743 = vpop.permute.xlu0 %742
  %vm748 = vcmask 523264
  %v749 = vsel %vm748, %v724, 0
  %v751 = vsel %vm748, %v726, 0
  %v753 = vsel %vm748, %v728, 0
  %755 = vmatprep.subr.bf16.mxu0 0
  %756 = vmatpush1.bf16.msra.mxu0 %v737
  %757 = vmatprep.subr.bf16.mxu0 0
  %758 = vmatpush1.bf16.msra.mxu0 %v739
  %759 = vmatprep.subr.bf16.mxu0 0
  %760 = vmatpush1.bf16.msra.mxu0 %v741
  %761 = vmatprep.subr.bf16.mxu0 0
  %762 = vmatpush1.bf16.msra.mxu0 %v743
  %763 = vmatprep.subr.bf16.mxu0 0
  %764 = vmatpush1.bf16.msra.mxu0 0
  %765 = vmatprep.subr.bf16.mxu0 0
  %766 = vmatpush1.bf16.msra.mxu0 0
  %767 = vmatprep.subr.bf16.mxu0 0
  %768 = vmatpush1.bf16.msra.mxu0 0
  %769 = vmatprep.subr.bf16.mxu0 0
  %770 = vmatpush1.bf16.msra.mxu0 0
  %771 = vmatprep.subr.bf16.mxu0 0
  %772 = vmatpush1.bf16.msra.mxu0 0
  %773 = vmatprep.subr.bf16.mxu0 0
  %774 = vmatpush1.bf16.msra.mxu0 0
  %775 = vmatprep.subr.bf16.mxu0 0
  %776 = vmatpush1.bf16.msra.mxu0 0
  %777 = vmatprep.subr.bf16.mxu0 0
  %778 = vmatpush1.bf16.msra.mxu0 0
  %779 = vmatprep.subr.bf16.mxu0 0
  %780 = vmatpush1.bf16.msra.mxu0 0
  %781 = vmatprep.subr.bf16.mxu0 0
  %782 = vmatpush1.bf16.msra.mxu0 0
  %783 = vmatprep.subr.bf16.mxu0 0
  %784 = vmatpush1.bf16.msra.mxu0 0
  %785 = vmatprep.subr.bf16.mxu0 0
  %786 = vmatpush1.bf16.msra.mxu0 0
  %787 = vmatprep.mubr.bf16.mxu0 0
  %788 = vmatmul.mubr.bf16.gmra.mrb[0].mxu0 %v749
  %v789 = vpop.f32.mrb[0].mxu0
  %v790 = vadd.f32 %v732, %v789
  %v791 = vpop.f32.mrb[0].mxu0
  %v792 = vpop.f32.mrb[0].mxu0
  %v793 = vadd.f32 %v732, %v792
  %v794 = vpop.f32.mrb[0].mxu0
  %795 = vmatprep.mubr.bf16.mxu0 0
  %796 = vmatmul.mubr.bf16.gmra.mrb[0].mxu0 %v751
  %v797 = vpop.f32.mrb[0].mxu0
  %v798 = vadd.f32 %v732, %v797
  %v799 = vpop.f32.mrb[0].mxu0
  %v800 = vpop.f32.mrb[0].mxu0
  %v801 = vadd.f32 %v732, %v800
  %v802 = vpop.f32.mrb[0].mxu0
  %803 = vmatprep.mubr.bf16.mxu0 0
  %804 = vmatmul.mubr.bf16.gmra.mrb[0].mxu0 %v753
  %v805 = vpop.f32.mrb[0].mxu0
  %v806 = vadd.f32 %v732, %v805
  %v807 = vpop.f32.mrb[0].mxu0
  %v808 = vpop.f32.mrb[0].mxu0
  %v809 = vpop.f32.mrb[0].mxu0
  %810 = vdwg.mxu0
  %v811 = vmul.f32 %v790, %v101
  %v812 = vmul.f32 %v793, %v103
  %v813 = vmul.f32 %v798, %v105
  %v814 = vmul.f32 %v801, %v107
  %v815 = vmul.f32 %v806, %v109
  %v816 = vmax.f32 %v811, 0.0
  %v817 = vmax.f32 %v812, 0.0
  %v818 = vmax.f32 %v813, 0.0
  %v819 = vmax.f32 %v814, 0.0
  %v820 = vmax.f32 %v815, 0.0
  %v821 = vpack.c.bf16 %v817, %v816
  %v822 = vpack.c.bf16 %v819, %v818
  %v823 = vpack.c.bf16 %v820, %v820
  %v825 = vsel %vm145, %v823, 0
  %827 = vmatprep.subr.bf16.mxu0 0
  %828 = vmatpush1.bf16.msra.mxu0 %v821
  %829 = vmatprep.subr.bf16.mxu0 0
  %830 = vmatpush1.bf16.msra.mxu0 %v822
  %831 = vmatprep.subr.bf16.mxu0 0
  %832 = vmatpush1.bf16.msra.mxu0 %v825
  %833 = vmatprep.subr.bf16.mxu0 0
  %834 = vmatpush1.bf16.msra.mxu0 0
  %835 = vmatprep.subr.bf16.mxu0 0
  %836 = vmatpush1.bf16.msra.mxu0 0
  %837 = vmatprep.subr.bf16.mxu0 0
  %838 = vmatpush1.bf16.msra.mxu0 0
  %839 = vmatprep.subr.bf16.mxu0 0
  %840 = vmatpush1.bf16.msra.mxu0 0
  %841 = vmatprep.subr.bf16.mxu0 0
  %842 = vmatpush1.bf16.msra.mxu0 0
  %843 = vmatprep.subr.bf16.mxu0 0
  %844 = vmatpush1.bf16.msra.mxu0 0
  %845 = vmatprep.subr.bf16.mxu0 0
  %846 = vmatpush1.bf16.msra.mxu0 0
  %847 = vmatprep.subr.bf16.mxu0 0
  %848 = vmatpush1.bf16.msra.mxu0 0
  %849 = vmatprep.subr.bf16.mxu0 0
  %850 = vmatpush1.bf16.msra.mxu0 0
  %851 = vmatprep.subr.bf16.mxu0 0
  %852 = vmatpush1.bf16.msra.mxu0 0
  %853 = vmatprep.subr.bf16.mxu0 0
  %854 = vmatpush1.bf16.msra.mxu0 0
  %855 = vmatprep.subr.bf16.mxu0 0
  %856 = vmatpush1.bf16.msra.mxu0 0
  %857 = vmatprep.subr.bf16.mxu0 0
  %858 = vmatpush1.bf16.msra.mxu0 0
  %859 = vmatprep.mubr.bf16.mxu0 0
  %860 = vmatmul.mubr.bf16.gmra.mrb[0].mxu0 %v137
  %v861 = vpop.f32.mrb[0].mxu0
  %v862 = vadd.f32 %v816, %v861
  %v863 = vpop.f32.mrb[0].mxu0
  %v864 = vpop.f32.mrb[0].mxu0
  %v865 = vadd.f32 %v817, %v864
  %v866 = vpop.f32.mrb[0].mxu0
  %867 = vmatprep.mubr.bf16.mxu0 0
  %868 = vmatmul.mubr.bf16.gmra.mrb[0].mxu0 %v140
  %v869 = vpop.f32.mrb[0].mxu0
  %v870 = vadd.f32 %v818, %v869
  %v871 = vpop.f32.mrb[0].mxu0
  %v872 = vpop.f32.mrb[0].mxu0
  %v873 = vadd.f32 %v819, %v872
  %v874 = vpop.f32.mrb[0].mxu0
  %875 = vmatprep.mubr.bf16.mxu0 0
  %876 = vmatmul.mubr.bf16.gmra.mrb[0].mxu0 %v143
  %v877 = vpop.f32.mrb[0].mxu0
  %v878 = vadd.f32 %v820, %v877
  %v879 = vpop.f32.mrb[0].mxu0
  %v880 = vpop.f32.mrb[0].mxu0
  %v881 = vpop.f32.mrb[0].mxu0
  %882 = vdwg.mxu0
  %v883 = vpack.c.bf16 %v865, %v862
  %v884 = vpack.c.bf16 %v873, %v870
  %v885 = vpack.c.bf16 %v878, %v878
  %889 = vrot.lane.b32.xlu0 %v883, 64
  %v890 = vpop.permute.xlu0 %889
  %891 = vrot.lane.b32.xlu0 %v884, 64
  %v892 = vpop.permute.xlu0 %891
  %893 = vrot.lane.b32.xlu0 %v885, 64
  %v894 = vpop.permute.xlu0 %893
  %v896 = vsel %vm748, %v724, %v890
  %v898 = vsel %vm748, %v726, %v892
  %v900 = vsel %vm748, %v728, %v894
  %v901 = vlaneseq
  %v902 = vshrl.u32 %v901, 7
  %v903 = vsub.s32 4, %v902
  %v904 = vrot.slane %v208, %v903
  %v906 = vunpack.c.l.b16 %v121
  %v907 = vpack.c.b16 %v906, %v906
  %908 = vrot.lane.b32.xlu0 %v223, 96
  %v909 = vpop.permute.xlu0 %908
  %910 = vrot.lane.b32.xlu0 %v224, 96
  %v911 = vpop.permute.xlu0 %910
  %912 = vrot.lane.b32.xlu0 %v392, 96
  %v913 = vpop.permute.xlu0 %912
  %914 = vrot.lane.b32.xlu0 %v735, 96
  %v915 = vpop.permute.xlu0 %914
  %916 = vrot.lane.b32.xlu0 %v907, 96
  %v917 = vpop.permute.xlu0 %916
  %vm922 = vcmask 588800
  %v923 = vsel %vm922, %v896, 0
  %v925 = vsel %vm922, %v898, 0
  %v927 = vsel %vm922, %v900, 0
  %v930 = vsel %vm145, %v917, 0
  %932 = vmatprep.subr.bf16.mxu0 0
  %933 = vmatpush1.bf16.msra.mxu0 %v909
  %934 = vmatprep.subr.bf16.mxu0 0
  %935 = vmatpush1.bf16.msra.mxu0 %v911
  %936 = vmatprep.subr.bf16.mxu0 0
  %937 = vmatpush1.bf16.msra.mxu0 %v913
  %938 = vmatprep.subr.bf16.mxu0 0
  %939 = vmatpush1.bf16.msra.mxu0 %v915
  %940 = vmatprep.subr.bf16.mxu0 0
  %941 = vmatpush1.bf16.msra.mxu0 %v930
  %942 = vmatprep.subr.bf16.mxu0 0
  %943 = vmatpush1.bf16.msra.mxu0 0
  %944 = vmatprep.subr.bf16.mxu0 0
  %945 = vmatpush1.bf16.msra.mxu0 0
  %946 = vmatprep.subr.bf16.mxu0 0
  %947 = vmatpush1.bf16.msra.mxu0 0
  %948 = vmatprep.subr.bf16.mxu0 0
  %949 = vmatpush1.bf16.msra.mxu0 0
  %950 = vmatprep.subr.bf16.mxu0 0
  %951 = vmatpush1.bf16.msra.mxu0 0
  %952 = vmatprep.subr.bf16.mxu0 0
  %953 = vmatpush1.bf16.msra.mxu0 0
  %954 = vmatprep.subr.bf16.mxu0 0
  %955 = vmatpush1.bf16.msra.mxu0 0
  %956 = vmatprep.subr.bf16.mxu0 0
  %957 = vmatpush1.bf16.msra.mxu0 0
  %958 = vmatprep.subr.bf16.mxu0 0
  %959 = vmatpush1.bf16.msra.mxu0 0
  %960 = vmatprep.subr.bf16.mxu0 0
  %961 = vmatpush1.bf16.msra.mxu0 0
  %962 = vmatprep.subr.bf16.mxu0 0
  %963 = vmatpush1.bf16.msra.mxu0 0
  %964 = vmatprep.mubr.bf16.mxu0 0
  %965 = vmatmul.mubr.bf16.gmra.mrb[0].mxu0 %v923
  %v966 = vpop.f32.mrb[0].mxu0
  %v967 = vadd.f32 %v904, %v966
  %v968 = vpop.f32.mrb[0].mxu0
  %v969 = vpop.f32.mrb[0].mxu0
  %v970 = vadd.f32 %v904, %v969
  %v971 = vpop.f32.mrb[0].mxu0
  %972 = vmatprep.mubr.bf16.mxu0 0
  %973 = vmatmul.mubr.bf16.gmra.mrb[0].mxu0 %v925
  %v974 = vpop.f32.mrb[0].mxu0
  %v975 = vadd.f32 %v904, %v974
  %v976 = vpop.f32.mrb[0].mxu0
  %v977 = vpop.f32.mrb[0].mxu0
  %v978 = vadd.f32 %v904, %v977
  %v979 = vpop.f32.mrb[0].mxu0
  %980 = vmatprep.mubr.bf16.mxu0 0
  %981 = vmatmul.mubr.bf16.gmra.mrb[0].mxu0 %v927
  %v982 = vpop.f32.mrb[0].mxu0
  %v983 = vadd.f32 %v904, %v982
  %v984 = vpop.f32.mrb[0].mxu0
  %v985 = vpop.f32.mrb[0].mxu0
  %v986 = vpop.f32.mrb[0].mxu0
  %987 = vdwg.mxu0
  %v988 = vmul.f32 %v967, %v101
  %v989 = vmul.f32 %v970, %v103
  %v990 = vmul.f32 %v975, %v105
  %v991 = vmul.f32 %v978, %v107
  %v992 = vmul.f32 %v983, %v109
  %v993 = vmax.f32 %v988, 0.0
  %v994 = vmax.f32 %v989, 0.0
  %v995 = vmax.f32 %v990, 0.0
  %v996 = vmax.f32 %v991, 0.0
  %v997 = vmax.f32 %v992, 0.0
  %1003 = vrot.lane.b32.xlu0 %v470, 8
  %v1004 = vpop.permute.xlu0 %1003
  %1005 = vrot.lane.b32.xlu0 %v471, 8
  %v1006 = vpop.permute.xlu0 %1005
  %1007 = vrot.lane.b32.xlu0 %v472, 8
  %v1008 = vpop.permute.xlu0 %1007
  %1009 = vrot.lane.b32.xlu0 %v473, 8
  %v1010 = vpop.permute.xlu0 %1009
  %1011 = vrot.lane.b32.xlu0 %v474, 8
  %v1012 = vpop.permute.xlu0 %1011
  %1023 = vrot.lane.b32.xlu0 %v644, 16
  %v1024 = vpop.permute.xlu0 %1023
  %1025 = vrot.lane.b32.xlu0 %v645, 16
  %v1026 = vpop.permute.xlu0 %1025
  %1027 = vrot.lane.b32.xlu0 %v646, 16
  %v1028 = vpop.permute.xlu0 %1027
  %1029 = vrot.lane.b32.xlu0 %v647, 16
  %v1030 = vpop.permute.xlu0 %1029
  %1031 = vrot.lane.b32.xlu0 %v648, 16
  %v1032 = vpop.permute.xlu0 %1031
  %1043 = vrot.lane.b32.xlu0 %v816, 24
  %v1044 = vpop.permute.xlu0 %1043
  %1045 = vrot.lane.b32.xlu0 %v817, 24
  %v1046 = vpop.permute.xlu0 %1045
  %1047 = vrot.lane.b32.xlu0 %v818, 24
  %v1048 = vpop.permute.xlu0 %1047
  %1049 = vrot.lane.b32.xlu0 %v819, 24
  %v1050 = vpop.permute.xlu0 %1049
  %1051 = vrot.lane.b32.xlu0 %v820, 24
  %v1052 = vpop.permute.xlu0 %1051
  %1063 = vrot.lane.b32.xlu0 %v993, 32
  %v1064 = vpop.permute.xlu0 %1063
  %1065 = vrot.lane.b32.xlu0 %v994, 32
  %v1066 = vpop.permute.xlu0 %1065
  %1067 = vrot.lane.b32.xlu0 %v995, 32
  %v1068 = vpop.permute.xlu0 %1067
  %1069 = vrot.lane.b32.xlu0 %v996, 32
  %v1070 = vpop.permute.xlu0 %1069
  %1071 = vrot.lane.b32.xlu0 %v997, 32
  %v1072 = vpop.permute.xlu0 %1071
  %vm1078 = vcmask 64512
  %v1079 = vsel %vm1078, %v301, %v1004
  %v1080 = vsel %vm1078, %v302, %v1006
  %v1081 = vsel %vm1078, %v303, %v1008
  %v1082 = vsel %vm1078, %v304, %v1010
  %v1083 = vsel %vm1078, %v305, %v1012
  %vm1084 = vcmask 130048
  %v1085 = vsel %vm1084, %v1079, %v1024
  %v1086 = vsel %vm1084, %v1080, %v1026
  %v1087 = vsel %vm1084, %v1081, %v1028
  %v1088 = vsel %vm1084, %v1082, %v1030
  %v1089 = vsel %vm1084, %v1083, %v1032
  %vm1090 = vcmask 195584
  %v1091 = vsel %vm1090, %v1085, %v1044
  %v1092 = vsel %vm1090, %v1086, %v1046
  %v1093 = vsel %vm1090, %v1087, %v1048
  %v1094 = vsel %vm1090, %v1088, %v1050
  %v1095 = vsel %vm1090, %v1089, %v1052
  %vm1096 = vcmask 261120
  %v1097 = vsel %vm1096, %v1091, %v1064
  %v1098 = vsel %vm1096, %v1092, %v1066
  %v1099 = vsel %vm1096, %v1093, %v1068
  %v1100 = vsel %vm1096, %v1094, %v1070
  %v1101 = vsel %vm1096, %v1095, %v1072
  %v1102 = vadd.f32 %v1097, %v69
  %v1103 = vadd.f32 %v1098, %v70
  %v1104 = vadd.f32 %v1099, %v71
  %v1105 = vadd.f32 %v1100, %v72
  %v1106 = vadd.f32 %v1101, %v73
  %v1107 = vpack.c.bf16 %v1103, %v1102
  %v1108 = vpack.c.bf16 %v1105, %v1104
  %v1109 = vpack.c.bf16 %v1106, %v1106
  %v1110 = vld [vmem:[%s13] sm:$0xf]
  %v1111 = vld [vmem:[%s13 + $0x4] sm:$0xf]
  %v1112 = vld [vmem:[%s13 + $0x8] sm:$0xf]
  %v1113 = vld [vmem:[%s13 + $0xc] sm:$0xf]
  %v1114 = vld [vmem:[%s13 + $0x10] sm:$0xf]
  %v1115 = vld [vmem:[%s14] sm:$0x1]
  %v1117 = vlaneseq
  %v1118 = vshrl.u32 %v1117, 7
  %v1119 = vsub.s32 0, %v1118
  %v1120 = vrot.slane %v1115, %v1119
  %v1127 = vunpack.c.l.b16 %v1110
  %v1128 = vunpack.c.l.b16 %v1111
  %v1129 = vunpack.c.l.b16 %v1112
  %v1130 = vunpack.c.l.b16 %v1113
  %v1131 = vunpack.c.l.b16 %v1114
  %v1132 = vpack.c.b16 %v1128, %v1127
  %v1133 = vpack.c.b16 %v1130, %v1129
  %v1134 = vpack.c.b16 %v1131, %v1131
  %v1138 = vsel %vm84, %v1107, 0
  %v1141 = vsel %vm84, %v1108, 0
  %v1144 = vsel %vm84, %v1109, 0
  %v1147 = vsel %vm145, %v1134, 0
  %1149 = vmatprep.subr.bf16.mxu0 0
  %1150 = vmatpush1.bf16.msra.mxu0 %v1132
  %1151 = vmatprep.subr.bf16.mxu0 0
  %1152 = vmatpush1.bf16.msra.mxu0 %v1133
  %1153 = vmatprep.subr.bf16.mxu0 0
  %1154 = vmatpush1.bf16.msra.mxu0 %v1147
  %1155 = vmatprep.subr.bf16.mxu0 0
  %1156 = vmatpush1.bf16.msra.mxu0 0
  %1157 = vmatprep.subr.bf16.mxu0 0
  %1158 = vmatpush1.bf16.msra.mxu0 0
  %1159 = vmatprep.subr.bf16.mxu0 0
  %1160 = vmatpush1.bf16.msra.mxu0 0
  %1161 = vmatprep.subr.bf16.mxu0 0
  %1162 = vmatpush1.bf16.msra.mxu0 0
  %1163 = vmatprep.subr.bf16.mxu0 0
  %1164 = vmatpush1.bf16.msra.mxu0 0
  %1165 = vmatprep.subr.bf16.mxu0 0
  %1166 = vmatpush1.bf16.msra.mxu0 0
  %1167 = vmatprep.subr.bf16.mxu0 0
  %1168 = vmatpush1.bf16.msra.mxu0 0
  %1169 = vmatprep.subr.bf16.mxu0 0
  %1170 = vmatpush1.bf16.msra.mxu0 0
  %1171 = vmatprep.subr.bf16.mxu0 0
  %1172 = vmatpush1.bf16.msra.mxu0 0
  %1173 = vmatprep.subr.bf16.mxu0 0
  %1174 = vmatpush1.bf16.msra.mxu0 0
  %1175 = vmatprep.subr.bf16.mxu0 0
  %1176 = vmatpush1.bf16.msra.mxu0 0
  %1177 = vmatprep.subr.bf16.mxu0 0
  %1178 = vmatpush1.bf16.msra.mxu0 0
  %1179 = vmatprep.subr.bf16.mxu0 0
  %1180 = vmatpush1.bf16.msra.mxu0 0
  %1181 = vmatprep.mubr.bf16.mxu0 0
  %1182 = vmatmul.mubr.bf16.gmra.mrb[0].mxu0 %v1138
  %v1183 = vpop.f32.mrb[0].mxu0
  %v1184 = vadd.f32 %v1120, %v1183
  %v1185 = vpop.f32.mrb[0].mxu0
  %v1186 = vpop.f32.mrb[0].mxu0
  %v1187 = vadd.f32 %v1120, %v1186
  %v1188 = vpop.f32.mrb[0].mxu0
  %1189 = vmatprep.mubr.bf16.mxu0 0
  %1190 = vmatmul.mubr.bf16.gmra.mrb[0].mxu0 %v1141
  %v1191 = vpop.f32.mrb[0].mxu0
  %v1192 = vadd.f32 %v1120, %v1191
  %v1193 = vpop.f32.mrb[0].mxu0
  %v1194 = vpop.f32.mrb[0].mxu0
  %v1195 = vadd.f32 %v1120, %v1194
  %v1196 = vpop.f32.mrb[0].mxu0
  %1197 = vmatprep.mubr.bf16.mxu0 0
  %1198 = vmatmul.mubr.bf16.gmra.mrb[0].mxu0 %v1144
  %v1199 = vpop.f32.mrb[0].mxu0
  %v1200 = vadd.f32 %v1120, %v1199
  %v1201 = vpop.f32.mrb[0].mxu0
  %v1202 = vpop.f32.mrb[0].mxu0
  %v1203 = vpop.f32.mrb[0].mxu0
  %1204 = vdwg.mxu0
  %v1205 = vld [vmem:[%s8] sm:$0xff]
  %v1206 = vld [vmem:[%s8 + $0x8] sm:$0xff]
  %v1207 = vld [vmem:[%s8 + $0x10] sm:$0xff]
  %v1208 = vld [vmem:[%s8 + $0x18] sm:$0xff]
  %v1209 = vld [vmem:[%s8 + $0x20] sm:$0xff]
  %v1210 = vpack.c.bf16 %v1187, %v1184
  %v1211 = vpack.c.bf16 %v1195, %v1192
  %v1212 = vpack.c.bf16 %v1200, %v1200
  %v1213 = vld [vmem:[%s15] sm:$0xf]
  %v1214 = vld [vmem:[%s15 + $0x4] sm:$0xf]
  %v1215 = vld [vmem:[%s15 + $0x8] sm:$0xf]
  %v1216 = vld [vmem:[%s15 + $0xc] sm:$0xf]
  %v1217 = vld [vmem:[%s15 + $0x10] sm:$0xf]
  %v1218 = vld [vmem:[%s16] sm:$0x1]
  %v1220 = vlaneseq
  %v1221 = vshrl.u32 %v1220, 7
  %v1222 = vsub.s32 0, %v1221
  %v1223 = vrot.slane %v1218, %v1222
  %v1230 = vunpack.c.l.b16 %v1213
  %v1231 = vunpack.c.l.b16 %v1214
  %v1232 = vunpack.c.l.b16 %v1215
  %v1233 = vunpack.c.l.b16 %v1216
  %v1234 = vunpack.c.l.b16 %v1217
  %v1235 = vpack.c.b16 %v1231, %v1230
  %v1236 = vpack.c.b16 %v1233, %v1232
  %v1237 = vpack.c.b16 %v1234, %v1234
  %v1241 = vsel %vm84, %v1210, 0
  %v1244 = vsel %vm84, %v1211, 0
  %v1247 = vsel %vm84, %v1212, 0
  %v1250 = vsel %vm145, %v1237, 0
  %1252 = vmatprep.subr.bf16.mxu0 0
  %1253 = vmatpush1.bf16.msra.mxu0 %v1235
  %1254 = vmatprep.subr.bf16.mxu0 0
  %1255 = vmatpush1.bf16.msra.mxu0 %v1236
  %1256 = vmatprep.subr.bf16.mxu0 0
  %1257 = vmatpush1.bf16.msra.mxu0 %v1250
  %1258 = vmatprep.subr.bf16.mxu0 0
  %1259 = vmatpush1.bf16.msra.mxu0 0
  %1260 = vmatprep.subr.bf16.mxu0 0
  %1261 = vmatpush1.bf16.msra.mxu0 0
  %1262 = vmatprep.subr.bf16.mxu0 0
  %1263 = vmatpush1.bf16.msra.mxu0 0
  %1264 = vmatprep.subr.bf16.mxu0 0
  %1265 = vmatpush1.bf16.msra.mxu0 0
  %1266 = vmatprep.subr.bf16.mxu0 0
  %1267 = vmatpush1.bf16.msra.mxu0 0
  %1268 = vmatprep.subr.bf16.mxu0 0
  %1269 = vmatpush1.bf16.msra.mxu0 0
  %1270 = vmatprep.subr.bf16.mxu0 0
  %1271 = vmatpush1.bf16.msra.mxu0 0
  %1272 = vmatprep.subr.bf16.mxu0 0
  %1273 = vmatpush1.bf16.msra.mxu0 0
  %1274 = vmatprep.subr.bf16.mxu0 0
  %1275 = vmatpush1.bf16.msra.mxu0 0
  %1276 = vmatprep.subr.bf16.mxu0 0
  %1277 = vmatpush1.bf16.msra.mxu0 0
  %1278 = vmatprep.subr.bf16.mxu0 0
  %1279 = vmatpush1.bf16.msra.mxu0 0
  %1280 = vmatprep.subr.bf16.mxu0 0
  %1281 = vmatpush1.bf16.msra.mxu0 0
  %1282 = vmatprep.subr.bf16.mxu0 0
  %1283 = vmatpush1.bf16.msra.mxu0 0
  %1284 = vmatprep.mubr.bf16.mxu0 0
  %1285 = vmatmul.mubr.bf16.gmra.mrb[0].mxu0 %v1241
  %v1286 = vpop.f32.mrb[0].mxu0
  %v1287 = vadd.f32 %v1223, %v1286
  %v1288 = vpop.f32.mrb[0].mxu0
  %v1289 = vpop.f32.mrb[0].mxu0
  %v1290 = vadd.f32 %v1223, %v1289
  %v1291 = vpop.f32.mrb[0].mxu0
  %1292 = vmatprep.mubr.bf16.mxu0 0
  %1293 = vmatmul.mubr.bf16.gmra.mrb[0].mxu0 %v1244
  %v1294 = vpop.f32.mrb[0].mxu0
  %v1295 = vadd.f32 %v1223, %v1294
  %v1296 = vpop.f32.mrb[0].mxu0
  %v1297 = vpop.f32.mrb[0].mxu0
  %v1298 = vadd.f32 %v1223, %v1297
  %v1299 = vpop.f32.mrb[0].mxu0
  %1300 = vmatprep.mubr.bf16.mxu0 0
  %1301 = vmatmul.mubr.bf16.gmra.mrb[0].mxu0 %v1247
  %v1302 = vpop.f32.mrb[0].mxu0
  %v1303 = vadd.f32 %v1223, %v1302
  %v1304 = vpop.f32.mrb[0].mxu0
  %v1305 = vpop.f32.mrb[0].mxu0
  %v1306 = vpop.f32.mrb[0].mxu0
  %1307 = vdwg.mxu0
  %v1308 = vmax.f32 %v1287, 0.0
  %v1309 = vmax.f32 %v1290, 0.0
  %v1310 = vmax.f32 %v1295, 0.0
  %v1311 = vmax.f32 %v1298, 0.0
  %v1312 = vmax.f32 %v1303, 0.0
  %v1313 = vld [vmem:[%s17] sm:$0x1]
  %v1315 = vlaneseq
  %v1316 = vshrl.u32 %v1315, 7
  %v1317 = vsub.s32 0, %v1316
  %v1318 = vrot.slane %v1313, %v1317
  %v1320 = vmul.f32 %v1308, %v1318
  %v1321 = vmul.f32 %v1309, %v1318
  %v1322 = vmul.f32 %v1310, %v1318
  %v1323 = vmul.f32 %v1311, %v1318
  %v1324 = vmul.f32 %v1312, %v1318
  %v1325 = vsel %vm1084, %v1320, 0.0
  %1326 = vadd.xlane.f32.xlu0 %v1325
  %v1327 = vpop.xlane.xlu0 %1326
  %v1328 = vsel %vm1084, %v1321, 0.0
  %1329 = vadd.xlane.f32.xlu0 %v1328
  %v1330 = vpop.xlane.xlu0 %1329
  %v1331 = vsel %vm1084, %v1322, 0.0
  %1332 = vadd.xlane.f32.xlu0 %v1331
  %v1333 = vpop.xlane.xlu0 %1332
  %v1334 = vsel %vm1084, %v1323, 0.0
  %1335 = vadd.xlane.f32.xlu0 %v1334
  %v1336 = vpop.xlane.xlu0 %1335
  %v1337 = vsel %vm1084, %v1324, 0.0
  %1338 = vadd.xlane.f32.xlu0 %v1337
  %v1339 = vpop.xlane.xlu0 %1338
  %v1340 = vld [vmem:[%s18] sm:$0x1]
  %v1342 = vlaneseq
  %v1343 = vshrl.u32 %v1342, 7
  %v1344 = vsub.s32 0, %v1343
  %v1345 = vrot.slane %v1340, %v1344
  %v1347 = vadd.f32 %v1327, %v1345
  %v1348 = vadd.f32 %v1330, %v1345
  %v1349 = vadd.f32 %v1333, %v1345
  %v1350 = vadd.f32 %v1336, %v1345
  %v1351 = vadd.f32 %v1339, %v1345
  %vm1352 = vcmp.gt.f32.partialorder %v1205, 0.5
  %vm1353 = vcmp.gt.f32.partialorder %v1206, 0.5
  %vm1354 = vcmp.gt.f32.partialorder %v1207, 0.5
  %vm1355 = vcmp.gt.f32.partialorder %v1208, 0.5
  %vm1356 = vcmp.gt.f32.partialorder %v1209, 0.5
  %v1357 = vsel %vm1352, -1e+09, %v1347
  %v1358 = vsel %vm1353, -1e+09, %v1348
  %v1359 = vsel %vm1354, -1e+09, %v1349
  %v1360 = vsel %vm1355, -1e+09, %v1350
  %v1361 = vsel %vm1356, -1e+09, %v1351
  %v1362 = vlaneseq
  %v1363 = vshrl.u32 %v1362, 7
  %v1364 = vadd.s32 %v1363, 8
  %v1365 = vadd.s32 %v1363, 16
  %v1366 = vadd.s32 %v1363, 24
  %v1367 = vadd.s32 %v1363, 32
  %vm1368 = vcmp.ge.s32.totalorder %v1363, 0
  %vm1369 = vcmp.ge.s32.totalorder %v1364, 0
  %vm1370 = vcmp.ge.s32.totalorder %v1365, 0
  %vm1371 = vcmp.ge.s32.totalorder %v1366, 0
  %vm1372 = vcmp.ge.s32.totalorder %v1367, 0
  %vm1373 = vcmp.lt.s32.totalorder %v1363, 20
  %vm1374 = vcmp.lt.s32.totalorder %v1364, 20
  %vm1375 = vcmp.lt.s32.totalorder %v1365, 20
  %vm1376 = vcmp.lt.s32.totalorder %v1366, 20
  %vm1377 = vcmp.lt.s32.totalorder %v1367, 20
  %vm1378 = vmand %vm1368, %vm1373
  %vm1379 = vmand %vm1369, %vm1374
  %vm1380 = vmand %vm1370, %vm1375
  %vm1381 = vmand %vm1371, %vm1376
  %vm1382 = vmand %vm1372, %vm1377
  %v1383 = vsel %vm1378, %v1357, -1e+09
  %v1384 = vsel %vm1379, %v1358, -1e+09
  %v1385 = vsel %vm1380, %v1359, -1e+09
  %v1386 = vsel %vm1381, %v1360, -1e+09
  %v1387 = vsel %vm1382, %v1361, -1e+09
  %vm1388 = vcmask 7168
  %v1389 = vsel %vm1388, %v1383, -inf
  %v1390 = vsel %vm1388, %v1384, -inf
  %v1391 = vsel %vm1388, %v1385, -inf
  %v1392 = vsel %vm1388, %v1386, -inf
  %v1393 = vsel %vm1388, %v1387, -inf
  %v1394 = vmax.f32 %v1389, %v1393
  %v1395 = vmax.f32 %v1394, %v1390
  %v1396 = vmax.f32 %v1391, %v1392
  %v1397 = vmax.f32 %v1395, %v1396
  %v1398 = vrot.slane %v1397, 4
  %v1399 = vmax.f32 %v1397, %v1398
  %v1400 = vrot.slane %v1399, 2
  %v1401 = vmax.f32 %v1399, %v1400
  %v1402 = vrot.slane %v1401, 1
  %v1403 = vmax.f32 %v1401, %v1402
  %v1404 = vsub.f32 %v1357, %v1403
  %v1405 = vsub.f32 %v1358, %v1403
  %v1406 = vsub.f32 %v1359, %v1403
  %v1407 = vsub.f32 %v1360, %v1403
  %v1408 = vsub.f32 %v1361, %v1403
  %v1409 = vmul.f32 %v1404, 1.442695
  %v1410 = vpow.pop %v1409
  %v1411 = vmul.f32 %v1405, 1.442695
  %v1412 = vpow.pop %v1411
  %v1413 = vmul.f32 %v1406, 1.442695
  %v1414 = vpow.pop %v1413
  %v1415 = vmul.f32 %v1407, 1.442695
  %v1416 = vpow.pop %v1415
  %v1417 = vmul.f32 %v1408, 1.442695
  %v1418 = vpow.pop %v1417
  %v1419 = vsel %vm1378, %v1410, 0.0
  %v1420 = vsel %vm1379, %v1412, 0.0
  %v1421 = vsel %vm1380, %v1414, 0.0
  %v1422 = vsel %vm1381, %v1416, 0.0
  %v1423 = vsel %vm1382, %v1418, 0.0
  %v1424 = vsel %vm1388, %v1419, 0.0
  %v1425 = vsel %vm1388, %v1420, 0.0
  %v1426 = vadd.f32 %v1424, %v1425
  %v1427 = vsel %vm1388, %v1421, 0.0
  %v1428 = vadd.f32 %v1426, %v1427
  %v1429 = vsel %vm1388, %v1422, 0.0
  %v1430 = vadd.f32 %v1428, %v1429
  %v1431 = vsel %vm1388, %v1423, 0.0
  %v1432 = vadd.f32 %v1430, %v1431
  %v1433 = vrot.slane %v1432, 4
  %v1434 = vadd.f32 %v1432, %v1433
  %v1435 = vrot.slane %v1434, 2
  %v1436 = vadd.f32 %v1434, %v1435
  %v1437 = vrot.slane %v1436, 1
  %v1438 = vadd.f32 %v1436, %v1437
  %v1439 = vrcp.pop %v1438
  %v1440 = vmul.f32 %v1419, %v1439
  %v1441 = vmul.f32 %v1420, %v1439
  %v1442 = vmul.f32 %v1421, %v1439
  %v1443 = vmul.f32 %v1422, %v1439
  %v1444 = vmul.f32 %v1423, %v1439
  %1446 = vset.pattern.permute.xlu0 0
  %1447 = vperm.xlu0 %1446, %v1440
  %v1448 = vpop.permute.xlu0 %1447
  %1451 = vset.pattern.permute.xlu0 0
  %1452 = vperm.xlu0 %1451, %v1441
  %v1453 = vpop.permute.xlu0 %1452
  %1456 = vset.pattern.permute.xlu0 0
  %1457 = vperm.xlu0 %1456, %v1442
  %v1458 = vpop.permute.xlu0 %1457
  %1461 = vset.pattern.permute.xlu0 0
  %1462 = vperm.xlu0 %1461, %v1443
  %v1463 = vpop.permute.xlu0 %1462
  %1466 = vset.pattern.permute.xlu0 0
  %1467 = vperm.xlu0 %1466, %v1444
  %v1468 = vpop.permute.xlu0 %1467
  %v1470 = vmul.f32 %v1448, %v1184
  %v1471 = vmul.f32 %v1453, %v1187
  %v1472 = vmul.f32 %v1458, %v1192
  %v1473 = vmul.f32 %v1463, %v1195
  %v1474 = vmul.f32 %v1468, %v1200
  %v1475 = vsel %vm84, %v1470, 0.0
  %v1476 = vsel %vm84, %v1471, 0.0
  %v1477 = vadd.f32 %v1475, %v1476
  %v1478 = vsel %vm84, %v1472, 0.0
  %v1479 = vadd.f32 %v1477, %v1478
  %v1480 = vsel %vm84, %v1473, 0.0
  %v1481 = vadd.f32 %v1479, %v1480
  %v1482 = vsel %vm84, %v1474, 0.0
  %v1483 = vadd.f32 %v1481, %v1482
  %v1484 = vrot.slane %v1483, 4
  %v1485 = vadd.f32 %v1483, %v1484
  %v1486 = vrot.slane %v1485, 2
  %v1487 = vadd.f32 %v1485, %v1486
  %v1488 = vrot.slane %v1487, 1
  %v1489 = vadd.f32 %v1487, %v1488
  %v1490 = vpack.c.bf16 %v1489, %v1489
  %v1491 = vld [vmem:[%s19] sm:$0xf]
  %v1492 = vld [vmem:[%s19 + $0x4] sm:$0xf]
  %v1493 = vld [vmem:[%s19 + $0x8] sm:$0xf]
  %v1494 = vld [vmem:[%s19 + $0xc] sm:$0xf]
  %v1495 = vld [vmem:[%s19 + $0x10] sm:$0xf]
  %v1496 = vld [vmem:[%s20] sm:$0x1]
  %v1502 = vunpack.c.l.b16 %v1491
  %v1503 = vunpack.c.l.b16 %v1492
  %v1504 = vunpack.c.l.b16 %v1493
  %v1505 = vunpack.c.l.b16 %v1494
  %v1506 = vunpack.c.l.b16 %v1495
  %v1507 = vpack.c.b16 %v1503, %v1502
  %v1508 = vpack.c.b16 %v1505, %v1504
  %v1509 = vpack.c.b16 %v1506, %v1506
  %v1513 = vsel %vm84, %v1490, 0
  %v1516 = vsel %vm145, %v1509, 0
  %1518 = vmatprep.subr.bf16.mxu0 0
  %1519 = vmatpush1.bf16.msra.mxu0 %v1507
  %1520 = vmatprep.subr.bf16.mxu0 0
  %1521 = vmatpush1.bf16.msra.mxu0 %v1508
  %1522 = vmatprep.subr.bf16.mxu0 0
  %1523 = vmatpush1.bf16.msra.mxu0 %v1516
  %1524 = vmatprep.subr.bf16.mxu0 0
  %1525 = vmatpush1.bf16.msra.mxu0 0
  %1526 = vmatprep.subr.bf16.mxu0 0
  %1527 = vmatpush1.bf16.msra.mxu0 0
  %1528 = vmatprep.subr.bf16.mxu0 0
  %1529 = vmatpush1.bf16.msra.mxu0 0
  %1530 = vmatprep.subr.bf16.mxu0 0
  %1531 = vmatpush1.bf16.msra.mxu0 0
  %1532 = vmatprep.subr.bf16.mxu0 0
  %1533 = vmatpush1.bf16.msra.mxu0 0
  %1534 = vmatprep.subr.bf16.mxu0 0
  %1535 = vmatpush1.bf16.msra.mxu0 0
  %1536 = vmatprep.subr.bf16.mxu0 0
  %1537 = vmatpush1.bf16.msra.mxu0 0
  %1538 = vmatprep.subr.bf16.mxu0 0
  %1539 = vmatpush1.bf16.msra.mxu0 0
  %1540 = vmatprep.subr.bf16.mxu0 0
  %1541 = vmatpush1.bf16.msra.mxu0 0
  %1542 = vmatprep.subr.bf16.mxu0 0
  %1543 = vmatpush1.bf16.msra.mxu0 0
  %1544 = vmatprep.subr.bf16.mxu0 0
  %1545 = vmatpush1.bf16.msra.mxu0 0
  %1546 = vmatprep.subr.bf16.mxu0 0
  %1547 = vmatpush1.bf16.msra.mxu0 0
  %1548 = vmatprep.subr.bf16.mxu0 0
  %1549 = vmatpush1.bf16.msra.mxu0 0
  %1550 = vmatprep.mubr.bf16.mxu0 0
  %1551 = vmatmul.mubr.bf16.gmra.mrb[0].mxu0 %v1513
  %v1552 = vpop.f32.mrb[0].mxu0
  %v1553 = vadd.f32 %v1496, %v1552
  %v1554 = vpop.f32.mrb[0].mxu0
  %v1555 = vpop.f32.mrb[0].mxu0
  %v1556 = vpop.f32.mrb[0].mxu0
  %1557 = vdwg.mxu0
  %vm1558 = vcmp.ge.s32.totalorder %v1363, 20
  %vm1559 = vcmp.ge.s32.totalorder %v1364, 20
  %vm1560 = vcmp.ge.s32.totalorder %v1365, 20
  %vm1561 = vcmp.ge.s32.totalorder %v1366, 20
  %vm1562 = vcmp.ge.s32.totalorder %v1367, 20
  %vm1563 = vcmp.lt.s32.totalorder %v1363, 40
  %vm1564 = vcmp.lt.s32.totalorder %v1364, 40
  %vm1565 = vcmp.lt.s32.totalorder %v1365, 40
  %vm1566 = vcmp.lt.s32.totalorder %v1366, 40
  %vm1567 = vcmp.lt.s32.totalorder %v1367, 40
  %vm1568 = vmand %vm1558, %vm1563
  %vm1569 = vmand %vm1559, %vm1564
  %vm1570 = vmand %vm1560, %vm1565
  %vm1571 = vmand %vm1561, %vm1566
  %vm1572 = vmand %vm1562, %vm1567
  %v1573 = vsel %vm1568, %v1357, -1e+09
  %v1574 = vsel %vm1569, %v1358, -1e+09
  %v1575 = vsel %vm1570, %v1359, -1e+09
  %v1576 = vsel %vm1571, %v1360, -1e+09
  %v1577 = vsel %vm1572, %v1361, -1e+09
  %v1578 = vsel %vm1388, %v1573, -inf
  %v1579 = vsel %vm1388, %v1574, -inf
  %v1580 = vsel %vm1388, %v1575, -inf
  %v1581 = vsel %vm1388, %v1576, -inf
  %v1582 = vsel %vm1388, %v1577, -inf
  %v1583 = vmax.f32 %v1578, %v1582
  %v1584 = vmax.f32 %v1583, %v1579
  %v1585 = vmax.f32 %v1580, %v1581
  %v1586 = vmax.f32 %v1584, %v1585
  %v1587 = vrot.slane %v1586, 4
  %v1588 = vmax.f32 %v1586, %v1587
  %v1589 = vrot.slane %v1588, 2
  %v1590 = vmax.f32 %v1588, %v1589
  %v1591 = vrot.slane %v1590, 1
  %v1592 = vmax.f32 %v1590, %v1591
  %v1593 = vsub.f32 %v1357, %v1592
  %v1594 = vsub.f32 %v1358, %v1592
  %v1595 = vsub.f32 %v1359, %v1592
  %v1596 = vsub.f32 %v1360, %v1592
  %v1597 = vsub.f32 %v1361, %v1592
  %v1598 = vmul.f32 %v1593, 1.442695
  %v1599 = vpow.pop %v1598
  %v1600 = vmul.f32 %v1594, 1.442695
  %v1601 = vpow.pop %v1600
  %v1602 = vmul.f32 %v1595, 1.442695
  %v1603 = vpow.pop %v1602
  %v1604 = vmul.f32 %v1596, 1.442695
  %v1605 = vpow.pop %v1604
  %v1606 = vmul.f32 %v1597, 1.442695
  %v1607 = vpow.pop %v1606
  %v1608 = vsel %vm1568, %v1599, 0.0
  %v1609 = vsel %vm1569, %v1601, 0.0
  %v1610 = vsel %vm1570, %v1603, 0.0
  %v1611 = vsel %vm1571, %v1605, 0.0
  %v1612 = vsel %vm1572, %v1607, 0.0
  %v1613 = vsel %vm1388, %v1608, 0.0
  %v1614 = vsel %vm1388, %v1609, 0.0
  %v1615 = vadd.f32 %v1613, %v1614
  %v1616 = vsel %vm1388, %v1610, 0.0
  %v1617 = vadd.f32 %v1615, %v1616
  %v1618 = vsel %vm1388, %v1611, 0.0
  %v1619 = vadd.f32 %v1617, %v1618
  %v1620 = vsel %vm1388, %v1612, 0.0
  %v1621 = vadd.f32 %v1619, %v1620
  %v1622 = vrot.slane %v1621, 4
  %v1623 = vadd.f32 %v1621, %v1622
  %v1624 = vrot.slane %v1623, 2
  %v1625 = vadd.f32 %v1623, %v1624
  %v1626 = vrot.slane %v1625, 1
  %v1627 = vadd.f32 %v1625, %v1626
  %v1628 = vrcp.pop %v1627
  %v1629 = vmul.f32 %v1608, %v1628
  %v1630 = vmul.f32 %v1609, %v1628
  %v1631 = vmul.f32 %v1610, %v1628
  %v1632 = vmul.f32 %v1611, %v1628
  %v1633 = vmul.f32 %v1612, %v1628
  %1635 = vset.pattern.permute.xlu0 0
  %1636 = vperm.xlu0 %1635, %v1629
  %v1637 = vpop.permute.xlu0 %1636
  %1640 = vset.pattern.permute.xlu0 0
  %1641 = vperm.xlu0 %1640, %v1630
  %v1642 = vpop.permute.xlu0 %1641
  %1645 = vset.pattern.permute.xlu0 0
  %1646 = vperm.xlu0 %1645, %v1631
  %v1647 = vpop.permute.xlu0 %1646
  %1650 = vset.pattern.permute.xlu0 0
  %1651 = vperm.xlu0 %1650, %v1632
  %v1652 = vpop.permute.xlu0 %1651
  %1655 = vset.pattern.permute.xlu0 0
  %1656 = vperm.xlu0 %1655, %v1633
  %v1657 = vpop.permute.xlu0 %1656
  %v1659 = vmul.f32 %v1637, %v1184
  %v1660 = vmul.f32 %v1642, %v1187
  %v1661 = vmul.f32 %v1647, %v1192
  %v1662 = vmul.f32 %v1652, %v1195
  %v1663 = vmul.f32 %v1657, %v1200
  %v1664 = vsel %vm84, %v1659, 0.0
  %v1665 = vsel %vm84, %v1660, 0.0
  %v1666 = vadd.f32 %v1664, %v1665
  %v1667 = vsel %vm84, %v1661, 0.0
  %v1668 = vadd.f32 %v1666, %v1667
  %v1669 = vsel %vm84, %v1662, 0.0
  %v1670 = vadd.f32 %v1668, %v1669
  %v1671 = vsel %vm84, %v1663, 0.0
  %v1672 = vadd.f32 %v1670, %v1671
  %v1673 = vrot.slane %v1672, 4
  %v1674 = vadd.f32 %v1672, %v1673
  %v1675 = vrot.slane %v1674, 2
  %v1676 = vadd.f32 %v1674, %v1675
  %v1677 = vrot.slane %v1676, 1
  %v1678 = vadd.f32 %v1676, %v1677
  %v1679 = vpack.c.bf16 %v1678, %v1678
  %v1681 = vsel %vm84, %v1679, 0
  %1683 = vmatprep.subr.bf16.mxu0 0
  %1684 = vmatpush1.bf16.msra.mxu0 %v1507
  %1685 = vmatprep.subr.bf16.mxu0 0
  %1686 = vmatpush1.bf16.msra.mxu0 %v1508
  %1687 = vmatprep.subr.bf16.mxu0 0
  %1688 = vmatpush1.bf16.msra.mxu0 %v1516
  %1689 = vmatprep.subr.bf16.mxu0 0
  %1690 = vmatpush1.bf16.msra.mxu0 0
  %1691 = vmatprep.subr.bf16.mxu0 0
  %1692 = vmatpush1.bf16.msra.mxu0 0
  %1693 = vmatprep.subr.bf16.mxu0 0
  %1694 = vmatpush1.bf16.msra.mxu0 0
  %1695 = vmatprep.subr.bf16.mxu0 0
  %1696 = vmatpush1.bf16.msra.mxu0 0
  %1697 = vmatprep.subr.bf16.mxu0 0
  %1698 = vmatpush1.bf16.msra.mxu0 0
  %1699 = vmatprep.subr.bf16.mxu0 0
  %1700 = vmatpush1.bf16.msra.mxu0 0
  %1701 = vmatprep.subr.bf16.mxu0 0
  %1702 = vmatpush1.bf16.msra.mxu0 0
  %1703 = vmatprep.subr.bf16.mxu0 0
  %1704 = vmatpush1.bf16.msra.mxu0 0
  %1705 = vmatprep.subr.bf16.mxu0 0
  %1706 = vmatpush1.bf16.msra.mxu0 0
  %1707 = vmatprep.subr.bf16.mxu0 0
  %1708 = vmatpush1.bf16.msra.mxu0 0
  %1709 = vmatprep.subr.bf16.mxu0 0
  %1710 = vmatpush1.bf16.msra.mxu0 0
  %1711 = vmatprep.subr.bf16.mxu0 0
  %1712 = vmatpush1.bf16.msra.mxu0 0
  %1713 = vmatprep.subr.bf16.mxu0 0
  %1714 = vmatpush1.bf16.msra.mxu0 0
  %1715 = vmatprep.mubr.bf16.mxu0 0
  %1716 = vmatmul.mubr.bf16.gmra.mrb[0].mxu0 %v1681
  %v1717 = vpop.f32.mrb[0].mxu0
  %v1718 = vadd.f32 %v1496, %v1717
  %v1719 = vpop.f32.mrb[0].mxu0
  %v1720 = vpop.f32.mrb[0].mxu0
  %v1721 = vpop.f32.mrb[0].mxu0
  %1722 = vdwg.mxu0
  %v1723 = vld [vmem:[%s1] sm:$0xff]
  %v1724 = vld [vmem:[%s1 + $0x8] sm:$0xff]
  %v1725 = vld [vmem:[%s1 + $0x10] sm:$0xff]
  %v1726 = vld [vmem:[%s1 + $0x18] sm:$0xff]
  %v1727 = vld [vmem:[%s1 + $0x20] sm:$0xff]
  %v1728 = vld [vmem:[%s1 + $0x28] sm:$0x3]
  %v1729 = vadd.s32 %v1363, 40
  %vm1730 = vcmp.eq.s32.totalorder %v1363, 20
  %vm1731 = vcmp.eq.s32.totalorder %v1364, 20
  %vm1732 = vcmp.eq.s32.totalorder %v1365, 20
  %vm1733 = vcmp.eq.s32.totalorder %v1366, 20
  %vm1734 = vcmp.eq.s32.totalorder %v1367, 20
  %vm1735 = vcmp.eq.s32.totalorder %v1729, 20
  %v1736 = vsel %vm1730, 1, 0
  %v1737 = vsel %vm1731, 1, 0
  %v1738 = vsel %vm1732, 1, 0
  %v1739 = vsel %vm1733, 1, 0
  %v1740 = vsel %vm1734, 1, 0
  %v1741 = vsel %vm1735, 1, 0
  %v1742 = vcvt.s32.f32 %v1736
  %v1743 = vcvt.s32.f32 %v1737
  %v1744 = vcvt.s32.f32 %v1738
  %v1745 = vcvt.s32.f32 %v1739
  %v1746 = vcvt.s32.f32 %v1740
  %v1747 = vcvt.s32.f32 %v1741
  %v1748 = vlaneseq
  %v1749 = vshrl.u32 %v1748, 7
  %v1750 = vsub.s32 0, %v1749
  %v1751 = vrot.slane %v1553, %v1750
  %v1752 = vmul.f32 %v1742, %v1751
  %v1753 = vmul.f32 %v1743, %v1751
  %v1754 = vmul.f32 %v1744, %v1751
  %v1755 = vmul.f32 %v1745, %v1751
  %v1756 = vmul.f32 %v1746, %v1751
  %v1757 = vmul.f32 %v1747, %v1751
  %v1758 = vadd.f32 %v1723, %v1752
  %v1759 = vadd.f32 %v1724, %v1753
  %v1760 = vadd.f32 %v1725, %v1754
  %v1761 = vadd.f32 %v1726, %v1755
  %v1762 = vadd.f32 %v1727, %v1756
  %v1763 = vadd.f32 %v1728, %v1757
  %vm1764 = vcmp.eq.s32.totalorder %v1363, 41
  %vm1765 = vcmp.eq.s32.totalorder %v1364, 41
  %vm1766 = vcmp.eq.s32.totalorder %v1365, 41
  %vm1767 = vcmp.eq.s32.totalorder %v1366, 41
  %vm1768 = vcmp.eq.s32.totalorder %v1367, 41
  %vm1769 = vcmp.eq.s32.totalorder %v1729, 41
  %v1770 = vsel %vm1764, 1, 0
  %v1771 = vsel %vm1765, 1, 0
  %v1772 = vsel %vm1766, 1, 0
  %v1773 = vsel %vm1767, 1, 0
  %v1774 = vsel %vm1768, 1, 0
  %v1775 = vsel %vm1769, 1, 0
  %v1776 = vcvt.s32.f32 %v1770
  %v1777 = vcvt.s32.f32 %v1771
  %v1778 = vcvt.s32.f32 %v1772
  %v1779 = vcvt.s32.f32 %v1773
  %v1780 = vcvt.s32.f32 %v1774
  %v1781 = vcvt.s32.f32 %v1775
  %v1782 = vlaneseq
  %v1783 = vshrl.u32 %v1782, 7
  %v1784 = vsub.s32 0, %v1783
  %v1785 = vrot.slane %v1718, %v1784
  %v1786 = vmul.f32 %v1776, %v1785
  %v1787 = vmul.f32 %v1777, %v1785
  %v1788 = vmul.f32 %v1778, %v1785
  %v1789 = vmul.f32 %v1779, %v1785
  %v1790 = vmul.f32 %v1780, %v1785
  %v1791 = vmul.f32 %v1781, %v1785
  %v1792 = vadd.f32 %v1758, %v1786
  %v1793 = vadd.f32 %v1759, %v1787
  %v1794 = vadd.f32 %v1760, %v1788
  %v1795 = vadd.f32 %v1761, %v1789
  %v1796 = vadd.f32 %v1762, %v1790
  %v1797 = vadd.f32 %v1763, %v1791
  %v1798 = vld [vmem:[%s5] sm:$0xf]
  %v1799 = vld [vmem:[%s5 + $0x4] sm:$0xf]
  %v1800 = vld [vmem:[%s5 + $0x8] sm:$0xf]
  %v1801 = vld [vmem:[%s5 + $0xc] sm:$0xf]
  %v1802 = vld [vmem:[%s5 + $0x10] sm:$0xf]
  %v1803 = vld [vmem:[%s5 + $0x14] sm:$0x1]
  %v1804 = vunpack.c.l.bf16 %v1798
  %v1805 = vunpack.c.l.bf16 %v1799
  %v1806 = vunpack.c.l.bf16 %v1800
  %v1807 = vunpack.c.l.bf16 %v1801
  %v1808 = vunpack.c.l.bf16 %v1802
  %v1809 = vunpack.c.l.bf16 %v1803
  %vm1810 = vcmask 343040
  %v1811 = vsel %vm1810, %v1804, 0.0
  %1812 = vadd.xlane.f32.xlu0 %v1811
  %v1813 = vpop.xlane.xlu0 %1812
  %v1814 = vsel %vm1810, %v1805, 0.0
  %1815 = vadd.xlane.f32.xlu0 %v1814
  %v1816 = vpop.xlane.xlu0 %1815
  %v1817 = vsel %vm1810, %v1806, 0.0
  %1818 = vadd.xlane.f32.xlu0 %v1817
  %v1819 = vpop.xlane.xlu0 %1818
  %v1820 = vsel %vm1810, %v1807, 0.0
  %1821 = vadd.xlane.f32.xlu0 %v1820
  %v1822 = vpop.xlane.xlu0 %1821
  %v1823 = vsel %vm1810, %v1808, 0.0
  %1824 = vadd.xlane.f32.xlu0 %v1823
  %v1825 = vpop.xlane.xlu0 %1824
  %vm1826 = vcmask 336896
  %v1827 = vsel %vm1826, %v1809, 0.0
  %1828 = vadd.xlane.f32.xlu0 %v1827
  %v1829 = vpop.xlane.xlu0 %1828
  %v1830 = vrcp.pop %v1813
  %v1831 = vmul.f32 1.0, %v1830
  %v1832 = vrcp.pop %v1816
  %v1833 = vmul.f32 1.0, %v1832
  %v1834 = vrcp.pop %v1819
  %v1835 = vmul.f32 1.0, %v1834
  %v1836 = vrcp.pop %v1822
  %v1837 = vmul.f32 1.0, %v1836
  %v1838 = vrcp.pop %v1825
  %v1839 = vmul.f32 1.0, %v1838
  %v1840 = vrcp.pop %v1829
  %v1841 = vmul.f32 1.0, %v1840
  %v1842 = vpack.c.bf16 %v1793, %v1792
  %v1843 = vpack.c.bf16 %v1795, %v1794
  %v1844 = vpack.c.bf16 %v1797, %v1796
  %s1845 = scalar_lea.vmem %s11, 36
  %v1846 = vld [vmem:[%s1845] sm:$0xf]
  %v1847 = vld [vmem:[%s1845 + $0x4] sm:$0xf]
  %v1848 = vld [vmem:[%s1845 + $0x8] sm:$0xf]
  %v1849 = vld [vmem:[%s1845 + $0xc] sm:$0xf]
  %v1850 = vld [vmem:[%s1845 + $0x10] sm:$0xf]
  %v1851 = vld [vmem:[%s1845 + $0x14] sm:$0xf]
  %v1852 = vld [vmem:[%s1845 + $0x18] sm:$0xf]
  %v1853 = vld [vmem:[%s1845 + $0x1c] sm:$0xf]
  %v1854 = vld [vmem:[%s1845 + $0x20] sm:$0xf]
  %s1855 = scalar_lea.vmem %s12, 8
  %v1856 = vld [vmem:[%s1855] sm:$0x1f]
  %v1863 = vunpack.c.l.b16 %v1798
  %v1864 = vunpack.c.l.b16 %v1799
  %v1865 = vunpack.c.l.b16 %v1800
  %v1866 = vunpack.c.l.b16 %v1801
  %v1867 = vunpack.c.l.b16 %v1802
  %v1868 = vunpack.c.l.b16 %v1803
  %v1869 = vpack.c.b16 %v1864, %v1863
  %v1870 = vpack.c.b16 %v1866, %v1865
  %v1871 = vpack.c.b16 %v1868, %v1867
  %v1873 = vsel %vm1810, %v1869, 0
  %v1876 = vsel %vm1810, %v1870, 0
  %v1879 = vsel %vm1810, %v1871, 0
  %vm1881 = vcmask 1044480
  %v1883 = vsel %vm1881, %v1844, 0
  %1885 = vmatprep.subr.bf16.mxu0 0
  %1886 = vmatpush1.bf16.msra.mxu0 %v1842
  %1887 = vmatprep.subr.bf16.mxu0 0
  %1888 = vmatpush1.bf16.msra.mxu0 %v1843
  %1889 = vmatprep.subr.bf16.mxu0 0
  %1890 = vmatpush1.bf16.msra.mxu0 %v1883
  %1891 = vmatprep.subr.bf16.mxu0 0
  %1892 = vmatpush1.bf16.msra.mxu0 0
  %1893 = vmatprep.subr.bf16.mxu0 0
  %1894 = vmatpush1.bf16.msra.mxu0 0
  %1895 = vmatprep.subr.bf16.mxu0 0
  %1896 = vmatpush1.bf16.msra.mxu0 0
  %1897 = vmatprep.subr.bf16.mxu0 0
  %1898 = vmatpush1.bf16.msra.mxu0 0
  %1899 = vmatprep.subr.bf16.mxu0 0
  %1900 = vmatpush1.bf16.msra.mxu0 0
  %1901 = vmatprep.subr.bf16.mxu0 0
  %1902 = vmatpush1.bf16.msra.mxu0 0
  %1903 = vmatprep.subr.bf16.mxu0 0
  %1904 = vmatpush1.bf16.msra.mxu0 0
  %1905 = vmatprep.subr.bf16.mxu0 0
  %1906 = vmatpush1.bf16.msra.mxu0 0
  %1907 = vmatprep.subr.bf16.mxu0 0
  %1908 = vmatpush1.bf16.msra.mxu0 0
  %1909 = vmatprep.subr.bf16.mxu0 0
  %1910 = vmatpush1.bf16.msra.mxu0 0
  %1911 = vmatprep.subr.bf16.mxu0 0
  %1912 = vmatpush1.bf16.msra.mxu0 0
  %1913 = vmatprep.subr.bf16.mxu0 0
  %1914 = vmatpush1.bf16.msra.mxu0 0
  %1915 = vmatprep.subr.bf16.mxu0 0
  %1916 = vmatpush1.bf16.msra.mxu0 0
  %1917 = vmatprep.mubr.bf16.mxu0 0
  %1918 = vmatmul.mubr.bf16.gmra.mrb[0].mxu0 %v1873
  %v1919 = vpop.f32.mrb[0].mxu0
  %v1920 = vadd.f32 %v1792, %v1919
  %v1921 = vpop.f32.mrb[0].mxu0
  %v1922 = vpop.f32.mrb[0].mxu0
  %v1923 = vadd.f32 %v1793, %v1922
  %v1924 = vpop.f32.mrb[0].mxu0
  %1925 = vmatprep.mubr.bf16.mxu0 0
  %1926 = vmatmul.mubr.bf16.gmra.mrb[0].mxu0 %v1876
  %v1927 = vpop.f32.mrb[0].mxu0
  %v1928 = vadd.f32 %v1794, %v1927
  %v1929 = vpop.f32.mrb[0].mxu0
  %v1930 = vpop.f32.mrb[0].mxu0
  %v1931 = vadd.f32 %v1795, %v1930
  %v1932 = vpop.f32.mrb[0].mxu0
  %1933 = vmatprep.mubr.bf16.mxu0 0
  %1934 = vmatmul.mubr.bf16.gmra.mrb[0].mxu0 %v1879
  %v1935 = vpop.f32.mrb[0].mxu0
  %v1936 = vadd.f32 %v1796, %v1935
  %v1937 = vpop.f32.mrb[0].mxu0
  %v1938 = vpop.f32.mrb[0].mxu0
  %v1939 = vadd.f32 %v1797, %v1938
  %v1940 = vpop.f32.mrb[0].mxu0
  %1941 = vdwg.mxu0
  %v1942 = vpack.c.bf16 %v1923, %v1920
  %v1943 = vpack.c.bf16 %v1931, %v1928
  %v1944 = vpack.c.bf16 %v1939, %v1936
  %v1945 = vmul.f32 %v1856, 2.0
  %v1946 = vlaneseq
  %v1947 = vshrl.u32 %v1946, 7
  %v1948 = vsub.s32 0, %v1947
  %v1949 = vrot.slane %v1945, %v1948
  %v1955 = vunpack.c.l.b16 %v1846
  %v1956 = vunpack.c.l.b16 %v1847
  %v1957 = vunpack.c.l.b16 %v1848
  %v1958 = vunpack.c.l.b16 %v1849
  %v1959 = vunpack.c.l.b16 %v1850
  %v1960 = vpack.c.b16 %v1956, %v1955
  %v1961 = vpack.c.b16 %v1958, %v1957
  %v1962 = vpack.c.b16 %v1959, %v1959
  %v1966 = vsel %vm84, %v1942, 0
  %v1969 = vsel %vm84, %v1943, 0
  %v1972 = vsel %vm84, %v1944, 0
  %v1975 = vsel %vm145, %v1962, 0
  %1977 = vmatprep.subr.bf16.mxu0 0
  %1978 = vmatpush1.bf16.msra.mxu0 %v1960
  %1979 = vmatprep.subr.bf16.mxu0 0
  %1980 = vmatpush1.bf16.msra.mxu0 %v1961
  %1981 = vmatprep.subr.bf16.mxu0 0
  %1982 = vmatpush1.bf16.msra.mxu0 %v1975
  %1983 = vmatprep.subr.bf16.mxu0 0
  %1984 = vmatpush1.bf16.msra.mxu0 0
  %1985 = vmatprep.subr.bf16.mxu0 0
  %1986 = vmatpush1.bf16.msra.mxu0 0
  %1987 = vmatprep.subr.bf16.mxu0 0
  %1988 = vmatpush1.bf16.msra.mxu0 0
  %1989 = vmatprep.subr.bf16.mxu0 0
  %1990 = vmatpush1.bf16.msra.mxu0 0
  %1991 = vmatprep.subr.bf16.mxu0 0
  %1992 = vmatpush1.bf16.msra.mxu0 0
  %1993 = vmatprep.subr.bf16.mxu0 0
  %1994 = vmatpush1.bf16.msra.mxu0 0
  %1995 = vmatprep.subr.bf16.mxu0 0
  %1996 = vmatpush1.bf16.msra.mxu0 0
  %1997 = vmatprep.subr.bf16.mxu0 0
  %1998 = vmatpush1.bf16.msra.mxu0 0
  %1999 = vmatprep.subr.bf16.mxu0 0
  %2000 = vmatpush1.bf16.msra.mxu0 0
  %2001 = vmatprep.subr.bf16.mxu0 0
  %2002 = vmatpush1.bf16.msra.mxu0 0
  %2003 = vmatprep.subr.bf16.mxu0 0
  %2004 = vmatpush1.bf16.msra.mxu0 0
  %2005 = vmatprep.subr.bf16.mxu0 0
  %2006 = vmatpush1.bf16.msra.mxu0 0
  %2007 = vmatprep.subr.bf16.mxu0 0
  %2008 = vmatpush1.bf16.msra.mxu0 0
  %2009 = vmatprep.mubr.bf16.mxu0 0
  %2010 = vmatmul.mubr.bf16.gmra.mrb[0].mxu0 %v1966
  %v2011 = vpop.f32.mrb[0].mxu0
  %v2012 = vadd.f32 %v1949, %v2011
  %v2013 = vpop.f32.mrb[0].mxu0
  %v2014 = vpop.f32.mrb[0].mxu0
  %v2015 = vadd.f32 %v1949, %v2014
  %v2016 = vpop.f32.mrb[0].mxu0
  %2017 = vmatprep.mubr.bf16.mxu0 0
  %2018 = vmatmul.mubr.bf16.gmra.mrb[0].mxu0 %v1969
  %v2019 = vpop.f32.mrb[0].mxu0
  %v2020 = vadd.f32 %v1949, %v2019
  %v2021 = vpop.f32.mrb[0].mxu0
  %v2022 = vpop.f32.mrb[0].mxu0
  %v2023 = vadd.f32 %v1949, %v2022
  %v2024 = vpop.f32.mrb[0].mxu0
  %2025 = vmatprep.mubr.bf16.mxu0 0
  %2026 = vmatmul.mubr.bf16.gmra.mrb[0].mxu0 %v1972
  %v2027 = vpop.f32.mrb[0].mxu0
  %v2028 = vadd.f32 %v1949, %v2027
  %v2029 = vpop.f32.mrb[0].mxu0
  %v2030 = vpop.f32.mrb[0].mxu0
  %v2031 = vadd.f32 %v1949, %v2030
  %v2032 = vpop.f32.mrb[0].mxu0
  %2033 = vdwg.mxu0
  %v2034 = vmul.f32 %v2012, %v1831
  %v2035 = vmul.f32 %v2015, %v1833
  %v2036 = vmul.f32 %v2020, %v1835
  %v2037 = vmul.f32 %v2023, %v1837
  %v2038 = vmul.f32 %v2028, %v1839
  %v2039 = vmul.f32 %v2031, %v1841
  %v2040 = vmax.f32 %v2034, 0.0
  %v2041 = vmax.f32 %v2035, 0.0
  %v2042 = vmax.f32 %v2036, 0.0
  %v2043 = vmax.f32 %v2037, 0.0
  %v2044 = vmax.f32 %v2038, 0.0
  %v2045 = vmax.f32 %v2039, 0.0
  %v2046 = vpack.c.bf16 %v2041, %v2040
  %v2047 = vpack.c.bf16 %v2043, %v2042
  %v2048 = vpack.c.bf16 %v2045, %v2044
  %v2050 = vsel %vm1881, %v2048, 0
  %2052 = vmatprep.subr.bf16.mxu0 0
  %2053 = vmatpush1.bf16.msra.mxu0 %v2046
  %2054 = vmatprep.subr.bf16.mxu0 0
  %2055 = vmatpush1.bf16.msra.mxu0 %v2047
  %2056 = vmatprep.subr.bf16.mxu0 0
  %2057 = vmatpush1.bf16.msra.mxu0 %v2050
  %2058 = vmatprep.subr.bf16.mxu0 0
  %2059 = vmatpush1.bf16.msra.mxu0 0
  %2060 = vmatprep.subr.bf16.mxu0 0
  %2061 = vmatpush1.bf16.msra.mxu0 0
  %2062 = vmatprep.subr.bf16.mxu0 0
  %2063 = vmatpush1.bf16.msra.mxu0 0
  %2064 = vmatprep.subr.bf16.mxu0 0
  %2065 = vmatpush1.bf16.msra.mxu0 0
  %2066 = vmatprep.subr.bf16.mxu0 0
  %2067 = vmatpush1.bf16.msra.mxu0 0
  %2068 = vmatprep.subr.bf16.mxu0 0
  %2069 = vmatpush1.bf16.msra.mxu0 0
  %2070 = vmatprep.subr.bf16.mxu0 0
  %2071 = vmatpush1.bf16.msra.mxu0 0
  %2072 = vmatprep.subr.bf16.mxu0 0
  %2073 = vmatpush1.bf16.msra.mxu0 0
  %2074 = vmatprep.subr.bf16.mxu0 0
  %2075 = vmatpush1.bf16.msra.mxu0 0
  %2076 = vmatprep.subr.bf16.mxu0 0
  %2077 = vmatpush1.bf16.msra.mxu0 0
  %2078 = vmatprep.subr.bf16.mxu0 0
  %2079 = vmatpush1.bf16.msra.mxu0 0
  %2080 = vmatprep.subr.bf16.mxu0 0
  %2081 = vmatpush1.bf16.msra.mxu0 0
  %2082 = vmatprep.subr.bf16.mxu0 0
  %2083 = vmatpush1.bf16.msra.mxu0 0
  %2084 = vmatprep.mubr.bf16.mxu0 0
  %2085 = vmatmul.mubr.bf16.gmra.mrb[0].mxu0 %v1873
  %v2086 = vpop.f32.mrb[0].mxu0
  %v2087 = vadd.f32 %v2040, %v2086
  %v2088 = vpop.f32.mrb[0].mxu0
  %v2089 = vpop.f32.mrb[0].mxu0
  %v2090 = vadd.f32 %v2041, %v2089
  %v2091 = vpop.f32.mrb[0].mxu0
  %2092 = vmatprep.mubr.bf16.mxu0 0
  %2093 = vmatmul.mubr.bf16.gmra.mrb[0].mxu0 %v1876
  %v2094 = vpop.f32.mrb[0].mxu0
  %v2095 = vadd.f32 %v2042, %v2094
  %v2096 = vpop.f32.mrb[0].mxu0
  %v2097 = vpop.f32.mrb[0].mxu0
  %v2098 = vadd.f32 %v2043, %v2097
  %v2099 = vpop.f32.mrb[0].mxu0
  %2100 = vmatprep.mubr.bf16.mxu0 0
  %2101 = vmatmul.mubr.bf16.gmra.mrb[0].mxu0 %v1879
  %v2102 = vpop.f32.mrb[0].mxu0
  %v2103 = vadd.f32 %v2044, %v2102
  %v2104 = vpop.f32.mrb[0].mxu0
  %v2105 = vpop.f32.mrb[0].mxu0
  %v2106 = vadd.f32 %v2045, %v2105
  %v2107 = vpop.f32.mrb[0].mxu0
  %2108 = vdwg.mxu0
  %v2109 = vpack.c.bf16 %v2090, %v2087
  %v2110 = vpack.c.bf16 %v2098, %v2095
  %v2111 = vpack.c.bf16 %v2106, %v2103
  %2115 = vrot.lane.b32.xlu0 %v2109, 40
  %v2116 = vpop.permute.xlu0 %2115
  %2117 = vrot.lane.b32.xlu0 %v2110, 40
  %v2118 = vpop.permute.xlu0 %2117
  %2119 = vrot.lane.b32.xlu0 %v2111, 40
  %v2120 = vpop.permute.xlu0 %2119
  %v2122 = vsel %vm84, %v1942, %v2116
  %v2124 = vsel %vm84, %v1943, %v2118
  %v2126 = vsel %vm84, %v1944, %v2120
  %v2127 = vlaneseq
  %v2128 = vshrl.u32 %v2127, 7
  %v2129 = vsub.s32 1, %v2128
  %v2130 = vrot.slane %v1945, %v2129
  %v2132 = vunpack.c.l.b16 %v1851
  %v2133 = vpack.c.b16 %v2132, %v1959
  %2134 = vrot.lane.b32.xlu0 %v1960, 120
  %v2135 = vpop.permute.xlu0 %2134
  %2136 = vrot.lane.b32.xlu0 %v1961, 120
  %v2137 = vpop.permute.xlu0 %2136
  %2138 = vrot.lane.b32.xlu0 %v2133, 120
  %v2139 = vpop.permute.xlu0 %2138
  %v2143 = vsel %vm402, %v2122, 0
  %v2145 = vsel %vm402, %v2124, 0
  %v2147 = vsel %vm402, %v2126, 0
  %2149 = vmatprep.subr.bf16.mxu0 0
  %2150 = vmatpush1.bf16.msra.mxu0 %v2135
  %2151 = vmatprep.subr.bf16.mxu0 0
  %2152 = vmatpush1.bf16.msra.mxu0 %v2137
  %2153 = vmatprep.subr.bf16.mxu0 0
  %2154 = vmatpush1.bf16.msra.mxu0 %v2139
  %2155 = vmatprep.subr.bf16.mxu0 0
  %2156 = vmatpush1.bf16.msra.mxu0 0
  %2157 = vmatprep.subr.bf16.mxu0 0
  %2158 = vmatpush1.bf16.msra.mxu0 0
  %2159 = vmatprep.subr.bf16.mxu0 0
  %2160 = vmatpush1.bf16.msra.mxu0 0
  %2161 = vmatprep.subr.bf16.mxu0 0
  %2162 = vmatpush1.bf16.msra.mxu0 0
  %2163 = vmatprep.subr.bf16.mxu0 0
  %2164 = vmatpush1.bf16.msra.mxu0 0
  %2165 = vmatprep.subr.bf16.mxu0 0
  %2166 = vmatpush1.bf16.msra.mxu0 0
  %2167 = vmatprep.subr.bf16.mxu0 0
  %2168 = vmatpush1.bf16.msra.mxu0 0
  %2169 = vmatprep.subr.bf16.mxu0 0
  %2170 = vmatpush1.bf16.msra.mxu0 0
  %2171 = vmatprep.subr.bf16.mxu0 0
  %2172 = vmatpush1.bf16.msra.mxu0 0
  %2173 = vmatprep.subr.bf16.mxu0 0
  %2174 = vmatpush1.bf16.msra.mxu0 0
  %2175 = vmatprep.subr.bf16.mxu0 0
  %2176 = vmatpush1.bf16.msra.mxu0 0
  %2177 = vmatprep.subr.bf16.mxu0 0
  %2178 = vmatpush1.bf16.msra.mxu0 0
  %2179 = vmatprep.subr.bf16.mxu0 0
  %2180 = vmatpush1.bf16.msra.mxu0 0
  %2181 = vmatprep.mubr.bf16.mxu0 0
  %2182 = vmatmul.mubr.bf16.gmra.mrb[0].mxu0 %v2143
  %v2183 = vpop.f32.mrb[0].mxu0
  %v2184 = vadd.f32 %v2130, %v2183
  %v2185 = vpop.f32.mrb[0].mxu0
  %v2186 = vpop.f32.mrb[0].mxu0
  %v2187 = vadd.f32 %v2130, %v2186
  %v2188 = vpop.f32.mrb[0].mxu0
  %2189 = vmatprep.mubr.bf16.mxu0 0
  %2190 = vmatmul.mubr.bf16.gmra.mrb[0].mxu0 %v2145
  %v2191 = vpop.f32.mrb[0].mxu0
  %v2192 = vadd.f32 %v2130, %v2191
  %v2193 = vpop.f32.mrb[0].mxu0
  %v2194 = vpop.f32.mrb[0].mxu0
  %v2195 = vadd.f32 %v2130, %v2194
  %v2196 = vpop.f32.mrb[0].mxu0
  %2197 = vmatprep.mubr.bf16.mxu0 0
  %2198 = vmatmul.mubr.bf16.gmra.mrb[0].mxu0 %v2147
  %v2199 = vpop.f32.mrb[0].mxu0
  %v2200 = vadd.f32 %v2130, %v2199
  %v2201 = vpop.f32.mrb[0].mxu0
  %v2202 = vpop.f32.mrb[0].mxu0
  %v2203 = vadd.f32 %v2130, %v2202
  %v2204 = vpop.f32.mrb[0].mxu0
  %2205 = vdwg.mxu0
  %v2206 = vmul.f32 %v2184, %v1831
  %v2207 = vmul.f32 %v2187, %v1833
  %v2208 = vmul.f32 %v2192, %v1835
  %v2209 = vmul.f32 %v2195, %v1837
  %v2210 = vmul.f32 %v2200, %v1839
  %v2211 = vmul.f32 %v2203, %v1841
  %v2212 = vmax.f32 %v2206, 0.0
  %v2213 = vmax.f32 %v2207, 0.0
  %v2214 = vmax.f32 %v2208, 0.0
  %v2215 = vmax.f32 %v2209, 0.0
  %v2216 = vmax.f32 %v2210, 0.0
  %v2217 = vmax.f32 %v2211, 0.0
  %v2218 = vpack.c.bf16 %v2213, %v2212
  %v2219 = vpack.c.bf16 %v2215, %v2214
  %v2220 = vpack.c.bf16 %v2217, %v2216
  %v2222 = vsel %vm1881, %v2220, 0
  %2224 = vmatprep.subr.bf16.mxu0 0
  %2225 = vmatpush1.bf16.msra.mxu0 %v2218
  %2226 = vmatprep.subr.bf16.mxu0 0
  %2227 = vmatpush1.bf16.msra.mxu0 %v2219
  %2228 = vmatprep.subr.bf16.mxu0 0
  %2229 = vmatpush1.bf16.msra.mxu0 %v2222
  %2230 = vmatprep.subr.bf16.mxu0 0
  %2231 = vmatpush1.bf16.msra.mxu0 0
  %2232 = vmatprep.subr.bf16.mxu0 0
  %2233 = vmatpush1.bf16.msra.mxu0 0
  %2234 = vmatprep.subr.bf16.mxu0 0
  %2235 = vmatpush1.bf16.msra.mxu0 0
  %2236 = vmatprep.subr.bf16.mxu0 0
  %2237 = vmatpush1.bf16.msra.mxu0 0
  %2238 = vmatprep.subr.bf16.mxu0 0
  %2239 = vmatpush1.bf16.msra.mxu0 0
  %2240 = vmatprep.subr.bf16.mxu0 0
  %2241 = vmatpush1.bf16.msra.mxu0 0
  %2242 = vmatprep.subr.bf16.mxu0 0
  %2243 = vmatpush1.bf16.msra.mxu0 0
  %2244 = vmatprep.subr.bf16.mxu0 0
  %2245 = vmatpush1.bf16.msra.mxu0 0
  %2246 = vmatprep.subr.bf16.mxu0 0
  %2247 = vmatpush1.bf16.msra.mxu0 0
  %2248 = vmatprep.subr.bf16.mxu0 0
  %2249 = vmatpush1.bf16.msra.mxu0 0
  %2250 = vmatprep.subr.bf16.mxu0 0
  %2251 = vmatpush1.bf16.msra.mxu0 0
  %2252 = vmatprep.subr.bf16.mxu0 0
  %2253 = vmatpush1.bf16.msra.mxu0 0
  %2254 = vmatprep.subr.bf16.mxu0 0
  %2255 = vmatpush1.bf16.msra.mxu0 0
  %2256 = vmatprep.mubr.bf16.mxu0 0
  %2257 = vmatmul.mubr.bf16.gmra.mrb[0].mxu0 %v1873
  %v2258 = vpop.f32.mrb[0].mxu0
  %v2259 = vadd.f32 %v2212, %v2258
  %v2260 = vpop.f32.mrb[0].mxu0
  %v2261 = vpop.f32.mrb[0].mxu0
  %v2262 = vadd.f32 %v2213, %v2261
  %v2263 = vpop.f32.mrb[0].mxu0
  %2264 = vmatprep.mubr.bf16.mxu0 0
  %2265 = vmatmul.mubr.bf16.gmra.mrb[0].mxu0 %v1876
  %v2266 = vpop.f32.mrb[0].mxu0
  %v2267 = vadd.f32 %v2214, %v2266
  %v2268 = vpop.f32.mrb[0].mxu0
  %v2269 = vpop.f32.mrb[0].mxu0
  %v2270 = vadd.f32 %v2215, %v2269
  %v2271 = vpop.f32.mrb[0].mxu0
  %2272 = vmatprep.mubr.bf16.mxu0 0
  %2273 = vmatmul.mubr.bf16.gmra.mrb[0].mxu0 %v1879
  %v2274 = vpop.f32.mrb[0].mxu0
  %v2275 = vadd.f32 %v2216, %v2274
  %v2276 = vpop.f32.mrb[0].mxu0
  %v2277 = vpop.f32.mrb[0].mxu0
  %v2278 = vadd.f32 %v2217, %v2277
  %v2279 = vpop.f32.mrb[0].mxu0
  %2280 = vdwg.mxu0
  %v2281 = vpack.c.bf16 %v2262, %v2259
  %v2282 = vpack.c.bf16 %v2270, %v2267
  %v2283 = vpack.c.bf16 %v2278, %v2275
  %2287 = vrot.lane.b32.xlu0 %v2281, 48
  %v2288 = vpop.permute.xlu0 %2287
  %2289 = vrot.lane.b32.xlu0 %v2282, 48
  %v2290 = vpop.permute.xlu0 %2289
  %2291 = vrot.lane.b32.xlu0 %v2283, 48
  %v2292 = vpop.permute.xlu0 %2291
  %v2294 = vsel %vm402, %v2122, %v2288
  %v2296 = vsel %vm402, %v2124, %v2290
  %v2298 = vsel %vm402, %v2126, %v2292
  %v2299 = vlaneseq
  %v2300 = vshrl.u32 %v2299, 7
  %v2301 = vsub.s32 2, %v2300
  %v2302 = vrot.slane %v1945, %v2301
  %v2304 = vunpack.c.l.b16 %v1852
  %v2305 = vpack.c.b16 %v2304, %v2304
  %2306 = vrot.lane.b32.xlu0 %v1960, 112
  %v2307 = vpop.permute.xlu0 %2306
  %2308 = vrot.lane.b32.xlu0 %v1961, 112
  %v2309 = vpop.permute.xlu0 %2308
  %2310 = vrot.lane.b32.xlu0 %v2133, 112
  %v2311 = vpop.permute.xlu0 %2310
  %2312 = vrot.lane.b32.xlu0 %v2305, 112
  %v2313 = vpop.permute.xlu0 %2312
  %v2317 = vsel %vm573, %v2294, 0
  %v2319 = vsel %vm573, %v2296, 0
  %v2321 = vsel %vm573, %v2298, 0
  %v2324 = vsel %vm145, %v2313, 0
  %2326 = vmatprep.subr.bf16.mxu0 0
  %2327 = vmatpush1.bf16.msra.mxu0 %v2307
  %2328 = vmatprep.subr.bf16.mxu0 0
  %2329 = vmatpush1.bf16.msra.mxu0 %v2309
  %2330 = vmatprep.subr.bf16.mxu0 0
  %2331 = vmatpush1.bf16.msra.mxu0 %v2311
  %2332 = vmatprep.subr.bf16.mxu0 0
  %2333 = vmatpush1.bf16.msra.mxu0 %v2324
  %2334 = vmatprep.subr.bf16.mxu0 0
  %2335 = vmatpush1.bf16.msra.mxu0 0
  %2336 = vmatprep.subr.bf16.mxu0 0
  %2337 = vmatpush1.bf16.msra.mxu0 0
  %2338 = vmatprep.subr.bf16.mxu0 0
  %2339 = vmatpush1.bf16.msra.mxu0 0
  %2340 = vmatprep.subr.bf16.mxu0 0
  %2341 = vmatpush1.bf16.msra.mxu0 0
  %2342 = vmatprep.subr.bf16.mxu0 0
  %2343 = vmatpush1.bf16.msra.mxu0 0
  %2344 = vmatprep.subr.bf16.mxu0 0
  %2345 = vmatpush1.bf16.msra.mxu0 0
  %2346 = vmatprep.subr.bf16.mxu0 0
  %2347 = vmatpush1.bf16.msra.mxu0 0
  %2348 = vmatprep.subr.bf16.mxu0 0
  %2349 = vmatpush1.bf16.msra.mxu0 0
  %2350 = vmatprep.subr.bf16.mxu0 0
  %2351 = vmatpush1.bf16.msra.mxu0 0
  %2352 = vmatprep.subr.bf16.mxu0 0
  %2353 = vmatpush1.bf16.msra.mxu0 0
  %2354 = vmatprep.subr.bf16.mxu0 0
  %2355 = vmatpush1.bf16.msra.mxu0 0
  %2356 = vmatprep.subr.bf16.mxu0 0
  %2357 = vmatpush1.bf16.msra.mxu0 0
  %2358 = vmatprep.mubr.bf16.mxu0 0
  %2359 = vmatmul.mubr.bf16.gmra.mrb[0].mxu0 %v2317
  %v2360 = vpop.f32.mrb[0].mxu0
  %v2361 = vadd.f32 %v2302, %v2360
  %v2362 = vpop.f32.mrb[0].mxu0
  %v2363 = vpop.f32.mrb[0].mxu0
  %v2364 = vadd.f32 %v2302, %v2363
  %v2365 = vpop.f32.mrb[0].mxu0
  %2366 = vmatprep.mubr.bf16.mxu0 0
  %2367 = vmatmul.mubr.bf16.gmra.mrb[0].mxu0 %v2319
  %v2368 = vpop.f32.mrb[0].mxu0
  %v2369 = vadd.f32 %v2302, %v2368
  %v2370 = vpop.f32.mrb[0].mxu0
  %v2371 = vpop.f32.mrb[0].mxu0
  %v2372 = vadd.f32 %v2302, %v2371
  %v2373 = vpop.f32.mrb[0].mxu0
  %2374 = vmatprep.mubr.bf16.mxu0 0
  %2375 = vmatmul.mubr.bf16.gmra.mrb[0].mxu0 %v2321
  %v2376 = vpop.f32.mrb[0].mxu0
  %v2377 = vadd.f32 %v2302, %v2376
  %v2378 = vpop.f32.mrb[0].mxu0
  %v2379 = vpop.f32.mrb[0].mxu0
  %v2380 = vadd.f32 %v2302, %v2379
  %v2381 = vpop.f32.mrb[0].mxu0
  %2382 = vdwg.mxu0
  %v2383 = vmul.f32 %v2361, %v1831
  %v2384 = vmul.f32 %v2364, %v1833
  %v2385 = vmul.f32 %v2369, %v1835
  %v2386 = vmul.f32 %v2372, %v1837
  %v2387 = vmul.f32 %v2377, %v1839
  %v2388 = vmul.f32 %v2380, %v1841
  %v2389 = vmax.f32 %v2383, 0.0
  %v2390 = vmax.f32 %v2384, 0.0
  %v2391 = vmax.f32 %v2385, 0.0
  %v2392 = vmax.f32 %v2386, 0.0
  %v2393 = vmax.f32 %v2387, 0.0
  %v2394 = vmax.f32 %v2388, 0.0
  %v2395 = vpack.c.bf16 %v2390, %v2389
  %v2396 = vpack.c.bf16 %v2392, %v2391
  %v2397 = vpack.c.bf16 %v2394, %v2393
  %v2399 = vsel %vm1881, %v2397, 0
  %2401 = vmatprep.subr.bf16.mxu0 0
  %2402 = vmatpush1.bf16.msra.mxu0 %v2395
  %2403 = vmatprep.subr.bf16.mxu0 0
  %2404 = vmatpush1.bf16.msra.mxu0 %v2396
  %2405 = vmatprep.subr.bf16.mxu0 0
  %2406 = vmatpush1.bf16.msra.mxu0 %v2399
  %2407 = vmatprep.subr.bf16.mxu0 0
  %2408 = vmatpush1.bf16.msra.mxu0 0
  %2409 = vmatprep.subr.bf16.mxu0 0
  %2410 = vmatpush1.bf16.msra.mxu0 0
  %2411 = vmatprep.subr.bf16.mxu0 0
  %2412 = vmatpush1.bf16.msra.mxu0 0
  %2413 = vmatprep.subr.bf16.mxu0 0
  %2414 = vmatpush1.bf16.msra.mxu0 0
  %2415 = vmatprep.subr.bf16.mxu0 0
  %2416 = vmatpush1.bf16.msra.mxu0 0
  %2417 = vmatprep.subr.bf16.mxu0 0
  %2418 = vmatpush1.bf16.msra.mxu0 0
  %2419 = vmatprep.subr.bf16.mxu0 0
  %2420 = vmatpush1.bf16.msra.mxu0 0
  %2421 = vmatprep.subr.bf16.mxu0 0
  %2422 = vmatpush1.bf16.msra.mxu0 0
  %2423 = vmatprep.subr.bf16.mxu0 0
  %2424 = vmatpush1.bf16.msra.mxu0 0
  %2425 = vmatprep.subr.bf16.mxu0 0
  %2426 = vmatpush1.bf16.msra.mxu0 0
  %2427 = vmatprep.subr.bf16.mxu0 0
  %2428 = vmatpush1.bf16.msra.mxu0 0
  %2429 = vmatprep.subr.bf16.mxu0 0
  %2430 = vmatpush1.bf16.msra.mxu0 0
  %2431 = vmatprep.subr.bf16.mxu0 0
  %2432 = vmatpush1.bf16.msra.mxu0 0
  %2433 = vmatprep.mubr.bf16.mxu0 0
  %2434 = vmatmul.mubr.bf16.gmra.mrb[0].mxu0 %v1873
  %v2435 = vpop.f32.mrb[0].mxu0
  %v2436 = vadd.f32 %v2389, %v2435
  %v2437 = vpop.f32.mrb[0].mxu0
  %v2438 = vpop.f32.mrb[0].mxu0
  %v2439 = vadd.f32 %v2390, %v2438
  %v2440 = vpop.f32.mrb[0].mxu0
  %2441 = vmatprep.mubr.bf16.mxu0 0
  %2442 = vmatmul.mubr.bf16.gmra.mrb[0].mxu0 %v1876
  %v2443 = vpop.f32.mrb[0].mxu0
  %v2444 = vadd.f32 %v2391, %v2443
  %v2445 = vpop.f32.mrb[0].mxu0
  %v2446 = vpop.f32.mrb[0].mxu0
  %v2447 = vadd.f32 %v2392, %v2446
  %v2448 = vpop.f32.mrb[0].mxu0
  %2449 = vmatprep.mubr.bf16.mxu0 0
  %2450 = vmatmul.mubr.bf16.gmra.mrb[0].mxu0 %v1879
  %v2451 = vpop.f32.mrb[0].mxu0
  %v2452 = vadd.f32 %v2393, %v2451
  %v2453 = vpop.f32.mrb[0].mxu0
  %v2454 = vpop.f32.mrb[0].mxu0
  %v2455 = vadd.f32 %v2394, %v2454
  %v2456 = vpop.f32.mrb[0].mxu0
  %2457 = vdwg.mxu0
  %v2458 = vpack.c.bf16 %v2439, %v2436
  %v2459 = vpack.c.bf16 %v2447, %v2444
  %v2460 = vpack.c.bf16 %v2455, %v2452
  %2464 = vrot.lane.b32.xlu0 %v2458, 56
  %v2465 = vpop.permute.xlu0 %2464
  %2466 = vrot.lane.b32.xlu0 %v2459, 56
  %v2467 = vpop.permute.xlu0 %2466
  %2468 = vrot.lane.b32.xlu0 %v2460, 56
  %v2469 = vpop.permute.xlu0 %2468
  %v2471 = vsel %vm573, %v2294, %v2465
  %v2473 = vsel %vm573, %v2296, %v2467
  %v2475 = vsel %vm573, %v2298, %v2469
  %v2476 = vlaneseq
  %v2477 = vshrl.u32 %v2476, 7
  %v2478 = vsub.s32 3, %v2477
  %v2479 = vrot.slane %v1945, %v2478
  %v2481 = vunpack.c.l.b16 %v1853
  %v2482 = vpack.c.b16 %v2481, %v2304
  %2483 = vrot.lane.b32.xlu0 %v1960, 104
  %v2484 = vpop.permute.xlu0 %2483
  %2485 = vrot.lane.b32.xlu0 %v1961, 104
  %v2486 = vpop.permute.xlu0 %2485
  %2487 = vrot.lane.b32.xlu0 %v2133, 104
  %v2488 = vpop.permute.xlu0 %2487
  %2489 = vrot.lane.b32.xlu0 %v2482, 104
  %v2490 = vpop.permute.xlu0 %2489
  %v2495 = vsel %vm748, %v2471, 0
  %v2497 = vsel %vm748, %v2473, 0
  %v2499 = vsel %vm748, %v2475, 0
  %2501 = vmatprep.subr.bf16.mxu0 0
  %2502 = vmatpush1.bf16.msra.mxu0 %v2484
  %2503 = vmatprep.subr.bf16.mxu0 0
  %2504 = vmatpush1.bf16.msra.mxu0 %v2486
  %2505 = vmatprep.subr.bf16.mxu0 0
  %2506 = vmatpush1.bf16.msra.mxu0 %v2488
  %2507 = vmatprep.subr.bf16.mxu0 0
  %2508 = vmatpush1.bf16.msra.mxu0 %v2490
  %2509 = vmatprep.subr.bf16.mxu0 0
  %2510 = vmatpush1.bf16.msra.mxu0 0
  %2511 = vmatprep.subr.bf16.mxu0 0
  %2512 = vmatpush1.bf16.msra.mxu0 0
  %2513 = vmatprep.subr.bf16.mxu0 0
  %2514 = vmatpush1.bf16.msra.mxu0 0
  %2515 = vmatprep.subr.bf16.mxu0 0
  %2516 = vmatpush1.bf16.msra.mxu0 0
  %2517 = vmatprep.subr.bf16.mxu0 0
  %2518 = vmatpush1.bf16.msra.mxu0 0
  %2519 = vmatprep.subr.bf16.mxu0 0
  %2520 = vmatpush1.bf16.msra.mxu0 0
  %2521 = vmatprep.subr.bf16.mxu0 0
  %2522 = vmatpush1.bf16.msra.mxu0 0
  %2523 = vmatprep.subr.bf16.mxu0 0
  %2524 = vmatpush1.bf16.msra.mxu0 0
  %2525 = vmatprep.subr.bf16.mxu0 0
  %2526 = vmatpush1.bf16.msra.mxu0 0
  %2527 = vmatprep.subr.bf16.mxu0 0
  %2528 = vmatpush1.bf16.msra.mxu0 0
  %2529 = vmatprep.subr.bf16.mxu0 0
  %2530 = vmatpush1.bf16.msra.mxu0 0
  %2531 = vmatprep.subr.bf16.mxu0 0
  %2532 = vmatpush1.bf16.msra.mxu0 0
  %2533 = vmatprep.mubr.bf16.mxu0 0
  %2534 = vmatmul.mubr.bf16.gmra.mrb[0].mxu0 %v2495
  %v2535 = vpop.f32.mrb[0].mxu0
  %v2536 = vadd.f32 %v2479, %v2535
  %v2537 = vpop.f32.mrb[0].mxu0
  %v2538 = vpop.f32.mrb[0].mxu0
  %v2539 = vadd.f32 %v2479, %v2538
  %v2540 = vpop.f32.mrb[0].mxu0
  %2541 = vmatprep.mubr.bf16.mxu0 0
  %2542 = vmatmul.mubr.bf16.gmra.mrb[0].mxu0 %v2497
  %v2543 = vpop.f32.mrb[0].mxu0
  %v2544 = vadd.f32 %v2479, %v2543
  %v2545 = vpop.f32.mrb[0].mxu0
  %v2546 = vpop.f32.mrb[0].mxu0
  %v2547 = vadd.f32 %v2479, %v2546
  %v2548 = vpop.f32.mrb[0].mxu0
  %2549 = vmatprep.mubr.bf16.mxu0 0
  %2550 = vmatmul.mubr.bf16.gmra.mrb[0].mxu0 %v2499
  %v2551 = vpop.f32.mrb[0].mxu0
  %v2552 = vadd.f32 %v2479, %v2551
  %v2553 = vpop.f32.mrb[0].mxu0
  %v2554 = vpop.f32.mrb[0].mxu0
  %v2555 = vadd.f32 %v2479, %v2554
  %v2556 = vpop.f32.mrb[0].mxu0
  %2557 = vdwg.mxu0
  %v2558 = vmul.f32 %v2536, %v1831
  %v2559 = vmul.f32 %v2539, %v1833
  %v2560 = vmul.f32 %v2544, %v1835
  %v2561 = vmul.f32 %v2547, %v1837
  %v2562 = vmul.f32 %v2552, %v1839
  %v2563 = vmul.f32 %v2555, %v1841
  %v2564 = vmax.f32 %v2558, 0.0
  %v2565 = vmax.f32 %v2559, 0.0
  %v2566 = vmax.f32 %v2560, 0.0
  %v2567 = vmax.f32 %v2561, 0.0
  %v2568 = vmax.f32 %v2562, 0.0
  %v2569 = vmax.f32 %v2563, 0.0
  %v2570 = vpack.c.bf16 %v2565, %v2564
  %v2571 = vpack.c.bf16 %v2567, %v2566
  %v2572 = vpack.c.bf16 %v2569, %v2568
  %v2574 = vsel %vm1881, %v2572, 0
  %2576 = vmatprep.subr.bf16.mxu0 0
  %2577 = vmatpush1.bf16.msra.mxu0 %v2570
  %2578 = vmatprep.subr.bf16.mxu0 0
  %2579 = vmatpush1.bf16.msra.mxu0 %v2571
  %2580 = vmatprep.subr.bf16.mxu0 0
  %2581 = vmatpush1.bf16.msra.mxu0 %v2574
  %2582 = vmatprep.subr.bf16.mxu0 0
  %2583 = vmatpush1.bf16.msra.mxu0 0
  %2584 = vmatprep.subr.bf16.mxu0 0
  %2585 = vmatpush1.bf16.msra.mxu0 0
  %2586 = vmatprep.subr.bf16.mxu0 0
  %2587 = vmatpush1.bf16.msra.mxu0 0
  %2588 = vmatprep.subr.bf16.mxu0 0
  %2589 = vmatpush1.bf16.msra.mxu0 0
  %2590 = vmatprep.subr.bf16.mxu0 0
  %2591 = vmatpush1.bf16.msra.mxu0 0
  %2592 = vmatprep.subr.bf16.mxu0 0
  %2593 = vmatpush1.bf16.msra.mxu0 0
  %2594 = vmatprep.subr.bf16.mxu0 0
  %2595 = vmatpush1.bf16.msra.mxu0 0
  %2596 = vmatprep.subr.bf16.mxu0 0
  %2597 = vmatpush1.bf16.msra.mxu0 0
  %2598 = vmatprep.subr.bf16.mxu0 0
  %2599 = vmatpush1.bf16.msra.mxu0 0
  %2600 = vmatprep.subr.bf16.mxu0 0
  %2601 = vmatpush1.bf16.msra.mxu0 0
  %2602 = vmatprep.subr.bf16.mxu0 0
  %2603 = vmatpush1.bf16.msra.mxu0 0
  %2604 = vmatprep.subr.bf16.mxu0 0
  %2605 = vmatpush1.bf16.msra.mxu0 0
  %2606 = vmatprep.subr.bf16.mxu0 0
  %2607 = vmatpush1.bf16.msra.mxu0 0
  %2608 = vmatprep.mubr.bf16.mxu0 0
  %2609 = vmatmul.mubr.bf16.gmra.mrb[0].mxu0 %v1873
  %v2610 = vpop.f32.mrb[0].mxu0
  %v2611 = vadd.f32 %v2564, %v2610
  %v2612 = vpop.f32.mrb[0].mxu0
  %v2613 = vpop.f32.mrb[0].mxu0
  %v2614 = vadd.f32 %v2565, %v2613
  %v2615 = vpop.f32.mrb[0].mxu0
  %2616 = vmatprep.mubr.bf16.mxu0 0
  %2617 = vmatmul.mubr.bf16.gmra.mrb[0].mxu0 %v1876
  %v2618 = vpop.f32.mrb[0].mxu0
  %v2619 = vadd.f32 %v2566, %v2618
  %v2620 = vpop.f32.mrb[0].mxu0
  %v2621 = vpop.f32.mrb[0].mxu0
  %v2622 = vadd.f32 %v2567, %v2621
  %v2623 = vpop.f32.mrb[0].mxu0
  %2624 = vmatprep.mubr.bf16.mxu0 0
  %2625 = vmatmul.mubr.bf16.gmra.mrb[0].mxu0 %v1879
  %v2626 = vpop.f32.mrb[0].mxu0
  %v2627 = vadd.f32 %v2568, %v2626
  %v2628 = vpop.f32.mrb[0].mxu0
  %v2629 = vpop.f32.mrb[0].mxu0
  %v2630 = vadd.f32 %v2569, %v2629
  %v2631 = vpop.f32.mrb[0].mxu0
  %2632 = vdwg.mxu0
  %v2633 = vpack.c.bf16 %v2614, %v2611
  %v2634 = vpack.c.bf16 %v2622, %v2619
  %v2635 = vpack.c.bf16 %v2630, %v2627
  %2639 = vrot.lane.b32.xlu0 %v2633, 64
  %v2640 = vpop.permute.xlu0 %2639
  %2641 = vrot.lane.b32.xlu0 %v2634, 64
  %v2642 = vpop.permute.xlu0 %2641
  %2643 = vrot.lane.b32.xlu0 %v2635, 64
  %v2644 = vpop.permute.xlu0 %2643
  %v2646 = vsel %vm748, %v2471, %v2640
  %v2648 = vsel %vm748, %v2473, %v2642
  %v2650 = vsel %vm748, %v2475, %v2644
  %v2651 = vlaneseq
  %v2652 = vshrl.u32 %v2651, 7
  %v2653 = vsub.s32 4, %v2652
  %v2654 = vrot.slane %v1945, %v2653
  %v2656 = vunpack.c.l.b16 %v1854
  %v2657 = vpack.c.b16 %v2656, %v2656
  %2658 = vrot.lane.b32.xlu0 %v1960, 96
  %v2659 = vpop.permute.xlu0 %2658
  %2660 = vrot.lane.b32.xlu0 %v1961, 96
  %v2661 = vpop.permute.xlu0 %2660
  %2662 = vrot.lane.b32.xlu0 %v2133, 96
  %v2663 = vpop.permute.xlu0 %2662
  %2664 = vrot.lane.b32.xlu0 %v2482, 96
  %v2665 = vpop.permute.xlu0 %2664
  %2666 = vrot.lane.b32.xlu0 %v2657, 96
  %v2667 = vpop.permute.xlu0 %2666
  %v2672 = vsel %vm922, %v2646, 0
  %v2674 = vsel %vm922, %v2648, 0
  %v2676 = vsel %vm922, %v2650, 0
  %v2679 = vsel %vm145, %v2667, 0
  %2681 = vmatprep.subr.bf16.mxu0 0
  %2682 = vmatpush1.bf16.msra.mxu0 %v2659
  %2683 = vmatprep.subr.bf16.mxu0 0
  %2684 = vmatpush1.bf16.msra.mxu0 %v2661
  %2685 = vmatprep.subr.bf16.mxu0 0
  %2686 = vmatpush1.bf16.msra.mxu0 %v2663
  %2687 = vmatprep.subr.bf16.mxu0 0
  %2688 = vmatpush1.bf16.msra.mxu0 %v2665
  %2689 = vmatprep.subr.bf16.mxu0 0
  %2690 = vmatpush1.bf16.msra.mxu0 %v2679
  %2691 = vmatprep.subr.bf16.mxu0 0
  %2692 = vmatpush1.bf16.msra.mxu0 0
  %2693 = vmatprep.subr.bf16.mxu0 0
  %2694 = vmatpush1.bf16.msra.mxu0 0
  %2695 = vmatprep.subr.bf16.mxu0 0
  %2696 = vmatpush1.bf16.msra.mxu0 0
  %2697 = vmatprep.subr.bf16.mxu0 0
  %2698 = vmatpush1.bf16.msra.mxu0 0
  %2699 = vmatprep.subr.bf16.mxu0 0
  %2700 = vmatpush1.bf16.msra.mxu0 0
  %2701 = vmatprep.subr.bf16.mxu0 0
  %2702 = vmatpush1.bf16.msra.mxu0 0
  %2703 = vmatprep.subr.bf16.mxu0 0
  %2704 = vmatpush1.bf16.msra.mxu0 0
  %2705 = vmatprep.subr.bf16.mxu0 0
  %2706 = vmatpush1.bf16.msra.mxu0 0
  %2707 = vmatprep.subr.bf16.mxu0 0
  %2708 = vmatpush1.bf16.msra.mxu0 0
  %2709 = vmatprep.subr.bf16.mxu0 0
  %2710 = vmatpush1.bf16.msra.mxu0 0
  %2711 = vmatprep.subr.bf16.mxu0 0
  %2712 = vmatpush1.bf16.msra.mxu0 0
  %2713 = vmatprep.mubr.bf16.mxu0 0
  %2714 = vmatmul.mubr.bf16.gmra.mrb[0].mxu0 %v2672
  %v2715 = vpop.f32.mrb[0].mxu0
  %v2716 = vadd.f32 %v2654, %v2715
  %v2717 = vpop.f32.mrb[0].mxu0
  %v2718 = vpop.f32.mrb[0].mxu0
  %v2719 = vadd.f32 %v2654, %v2718
  %v2720 = vpop.f32.mrb[0].mxu0
  %2721 = vmatprep.mubr.bf16.mxu0 0
  %2722 = vmatmul.mubr.bf16.gmra.mrb[0].mxu0 %v2674
  %v2723 = vpop.f32.mrb[0].mxu0
  %v2724 = vadd.f32 %v2654, %v2723
  %v2725 = vpop.f32.mrb[0].mxu0
  %v2726 = vpop.f32.mrb[0].mxu0
  %v2727 = vadd.f32 %v2654, %v2726
  %v2728 = vpop.f32.mrb[0].mxu0
  %2729 = vmatprep.mubr.bf16.mxu0 0
  %2730 = vmatmul.mubr.bf16.gmra.mrb[0].mxu0 %v2676
  %v2731 = vpop.f32.mrb[0].mxu0
  %v2732 = vadd.f32 %v2654, %v2731
  %v2733 = vpop.f32.mrb[0].mxu0
  %v2734 = vpop.f32.mrb[0].mxu0
  %v2735 = vadd.f32 %v2654, %v2734
  %v2736 = vpop.f32.mrb[0].mxu0
  %2737 = vdwg.mxu0
  %v2738 = vmul.f32 %v2716, %v1831
  %v2739 = vmul.f32 %v2719, %v1833
  %v2740 = vmul.f32 %v2724, %v1835
  %v2741 = vmul.f32 %v2727, %v1837
  %v2742 = vmul.f32 %v2732, %v1839
  %v2743 = vmul.f32 %v2735, %v1841
  %v2744 = vmax.f32 %v2738, 0.0
  %v2745 = vmax.f32 %v2739, 0.0
  %v2746 = vmax.f32 %v2740, 0.0
  %v2747 = vmax.f32 %v2741, 0.0
  %v2748 = vmax.f32 %v2742, 0.0
  %v2749 = vmax.f32 %v2743, 0.0
  %2756 = vrot.lane.b32.xlu0 %v2212, 8
  %v2757 = vpop.permute.xlu0 %2756
  %2758 = vrot.lane.b32.xlu0 %v2213, 8
  %v2759 = vpop.permute.xlu0 %2758
  %2760 = vrot.lane.b32.xlu0 %v2214, 8
  %v2761 = vpop.permute.xlu0 %2760
  %2762 = vrot.lane.b32.xlu0 %v2215, 8
  %v2763 = vpop.permute.xlu0 %2762
  %2764 = vrot.lane.b32.xlu0 %v2216, 8
  %v2765 = vpop.permute.xlu0 %2764
  %2766 = vrot.lane.b32.xlu0 %v2217, 8
  %v2767 = vpop.permute.xlu0 %2766
  %2780 = vrot.lane.b32.xlu0 %v2389, 16
  %v2781 = vpop.permute.xlu0 %2780
  %2782 = vrot.lane.b32.xlu0 %v2390, 16
  %v2783 = vpop.permute.xlu0 %2782
  %2784 = vrot.lane.b32.xlu0 %v2391, 16
  %v2785 = vpop.permute.xlu0 %2784
  %2786 = vrot.lane.b32.xlu0 %v2392, 16
  %v2787 = vpop.permute.xlu0 %2786
  %2788 = vrot.lane.b32.xlu0 %v2393, 16
  %v2789 = vpop.permute.xlu0 %2788
  %2790 = vrot.lane.b32.xlu0 %v2394, 16
  %v2791 = vpop.permute.xlu0 %2790
  %2804 = vrot.lane.b32.xlu0 %v2564, 24
  %v2805 = vpop.permute.xlu0 %2804
  %2806 = vrot.lane.b32.xlu0 %v2565, 24
  %v2807 = vpop.permute.xlu0 %2806
  %2808 = vrot.lane.b32.xlu0 %v2566, 24
  %v2809 = vpop.permute.xlu0 %2808
  %2810 = vrot.lane.b32.xlu0 %v2567, 24
  %v2811 = vpop.permute.xlu0 %2810
  %2812 = vrot.lane.b32.xlu0 %v2568, 24
  %v2813 = vpop.permute.xlu0 %2812
  %2814 = vrot.lane.b32.xlu0 %v2569, 24
  %v2815 = vpop.permute.xlu0 %2814
  %2828 = vrot.lane.b32.xlu0 %v2744, 32
  %v2829 = vpop.permute.xlu0 %2828
  %2830 = vrot.lane.b32.xlu0 %v2745, 32
  %v2831 = vpop.permute.xlu0 %2830
  %2832 = vrot.lane.b32.xlu0 %v2746, 32
  %v2833 = vpop.permute.xlu0 %2832
  %2834 = vrot.lane.b32.xlu0 %v2747, 32
  %v2835 = vpop.permute.xlu0 %2834
  %2836 = vrot.lane.b32.xlu0 %v2748, 32
  %v2837 = vpop.permute.xlu0 %2836
  %2838 = vrot.lane.b32.xlu0 %v2749, 32
  %v2839 = vpop.permute.xlu0 %2838
  %v2846 = vsel %vm1078, %v2040, %v2757
  %v2847 = vsel %vm1078, %v2041, %v2759
  %v2848 = vsel %vm1078, %v2042, %v2761
  %v2849 = vsel %vm1078, %v2043, %v2763
  %v2850 = vsel %vm1078, %v2044, %v2765
  %v2851 = vsel %vm1078, %v2045, %v2767
  %v2852 = vsel %vm1084, %v2846, %v2781
  %v2853 = vsel %vm1084, %v2847, %v2783
  %v2854 = vsel %vm1084, %v2848, %v2785
  %v2855 = vsel %vm1084, %v2849, %v2787
  %v2856 = vsel %vm1084, %v2850, %v2789
  %v2857 = vsel %vm1084, %v2851, %v2791
  %v2858 = vsel %vm1090, %v2852, %v2805
  %v2859 = vsel %vm1090, %v2853, %v2807
  %v2860 = vsel %vm1090, %v2854, %v2809
  %v2861 = vsel %vm1090, %v2855, %v2811
  %v2862 = vsel %vm1090, %v2856, %v2813
  %v2863 = vsel %vm1090, %v2857, %v2815
  %v2864 = vsel %vm1096, %v2858, %v2829
  %v2865 = vsel %vm1096, %v2859, %v2831
  %v2866 = vsel %vm1096, %v2860, %v2833
  %v2867 = vsel %vm1096, %v2861, %v2835
  %v2868 = vsel %vm1096, %v2862, %v2837
  %v2869 = vsel %vm1096, %v2863, %v2839
  %v2870 = vadd.f32 %v2864, %v1792
  %v2871 = vadd.f32 %v2865, %v1793
  %v2872 = vadd.f32 %v2866, %v1794
  %v2873 = vadd.f32 %v2867, %v1795
  %v2874 = vadd.f32 %v2868, %v1796
  %v2875 = vadd.f32 %v2869, %v1797
  %v2876 = vpack.c.bf16 %v2871, %v2870
  %v2877 = vpack.c.bf16 %v2873, %v2872
  %v2878 = vpack.c.bf16 %v2875, %v2874
  %s2879 = scalar_lea.vmem %s13, 20
  %v2880 = vld [vmem:[%s2879] sm:$0xf]
  %v2881 = vld [vmem:[%s2879 + $0x4] sm:$0xf]
  %v2882 = vld [vmem:[%s2879 + $0x8] sm:$0xf]
  %v2883 = vld [vmem:[%s2879 + $0xc] sm:$0xf]
  %v2884 = vld [vmem:[%s2879 + $0x10] sm:$0xf]
  %s2885 = scalar_lea.vmem %s14, 1
  %v2886 = vld [vmem:[%s2885] sm:$0x1]
  %v2888 = vlaneseq
  %v2889 = vshrl.u32 %v2888, 7
  %v2890 = vsub.s32 0, %v2889
  %v2891 = vrot.slane %v2886, %v2890
  %v2898 = vunpack.c.l.b16 %v2880
  %v2899 = vunpack.c.l.b16 %v2881
  %v2900 = vunpack.c.l.b16 %v2882
  %v2901 = vunpack.c.l.b16 %v2883
  %v2902 = vunpack.c.l.b16 %v2884
  %v2903 = vpack.c.b16 %v2899, %v2898
  %v2904 = vpack.c.b16 %v2901, %v2900
  %v2905 = vpack.c.b16 %v2902, %v2902
  %v2909 = vsel %vm84, %v2876, 0
  %v2912 = vsel %vm84, %v2877, 0
  %v2915 = vsel %vm84, %v2878, 0
  %v2918 = vsel %vm145, %v2905, 0
  %2920 = vmatprep.subr.bf16.mxu0 0
  %2921 = vmatpush1.bf16.msra.mxu0 %v2903
  %2922 = vmatprep.subr.bf16.mxu0 0
  %2923 = vmatpush1.bf16.msra.mxu0 %v2904
  %2924 = vmatprep.subr.bf16.mxu0 0
  %2925 = vmatpush1.bf16.msra.mxu0 %v2918
  %2926 = vmatprep.subr.bf16.mxu0 0
  %2927 = vmatpush1.bf16.msra.mxu0 0
  %2928 = vmatprep.subr.bf16.mxu0 0
  %2929 = vmatpush1.bf16.msra.mxu0 0
  %2930 = vmatprep.subr.bf16.mxu0 0
  %2931 = vmatpush1.bf16.msra.mxu0 0
  %2932 = vmatprep.subr.bf16.mxu0 0
  %2933 = vmatpush1.bf16.msra.mxu0 0
  %2934 = vmatprep.subr.bf16.mxu0 0
  %2935 = vmatpush1.bf16.msra.mxu0 0
  %2936 = vmatprep.subr.bf16.mxu0 0
  %2937 = vmatpush1.bf16.msra.mxu0 0
  %2938 = vmatprep.subr.bf16.mxu0 0
  %2939 = vmatpush1.bf16.msra.mxu0 0
  %2940 = vmatprep.subr.bf16.mxu0 0
  %2941 = vmatpush1.bf16.msra.mxu0 0
  %2942 = vmatprep.subr.bf16.mxu0 0
  %2943 = vmatpush1.bf16.msra.mxu0 0
  %2944 = vmatprep.subr.bf16.mxu0 0
  %2945 = vmatpush1.bf16.msra.mxu0 0
  %2946 = vmatprep.subr.bf16.mxu0 0
  %2947 = vmatpush1.bf16.msra.mxu0 0
  %2948 = vmatprep.subr.bf16.mxu0 0
  %2949 = vmatpush1.bf16.msra.mxu0 0
  %2950 = vmatprep.subr.bf16.mxu0 0
  %2951 = vmatpush1.bf16.msra.mxu0 0
  %2952 = vmatprep.mubr.bf16.mxu0 0
  %2953 = vmatmul.mubr.bf16.gmra.mrb[0].mxu0 %v2909
  %v2954 = vpop.f32.mrb[0].mxu0
  %v2955 = vadd.f32 %v2891, %v2954
  %v2956 = vpop.f32.mrb[0].mxu0
  %v2957 = vpop.f32.mrb[0].mxu0
  %v2958 = vadd.f32 %v2891, %v2957
  %v2959 = vpop.f32.mrb[0].mxu0
  %2960 = vmatprep.mubr.bf16.mxu0 0
  %2961 = vmatmul.mubr.bf16.gmra.mrb[0].mxu0 %v2912
  %v2962 = vpop.f32.mrb[0].mxu0
  %v2963 = vadd.f32 %v2891, %v2962
  %v2964 = vpop.f32.mrb[0].mxu0
  %v2965 = vpop.f32.mrb[0].mxu0
  %v2966 = vadd.f32 %v2891, %v2965
  %v2967 = vpop.f32.mrb[0].mxu0
  %2968 = vmatprep.mubr.bf16.mxu0 0
  %2969 = vmatmul.mubr.bf16.gmra.mrb[0].mxu0 %v2915
  %v2970 = vpop.f32.mrb[0].mxu0
  %v2971 = vadd.f32 %v2891, %v2970
  %v2972 = vpop.f32.mrb[0].mxu0
  %v2973 = vpop.f32.mrb[0].mxu0
  %v2974 = vadd.f32 %v2891, %v2973
  %v2975 = vpop.f32.mrb[0].mxu0
  %2976 = vdwg.mxu0
  %v2977 = vld [vmem:[%s9] sm:$0xff]
  %v2978 = vld [vmem:[%s9 + $0x8] sm:$0xff]
  %v2979 = vld [vmem:[%s9 + $0x10] sm:$0xff]
  %v2980 = vld [vmem:[%s9 + $0x18] sm:$0xff]
  %v2981 = vld [vmem:[%s9 + $0x20] sm:$0xff]
  %v2982 = vld [vmem:[%s9 + $0x28] sm:$0x3]
  %v2983 = vpack.c.bf16 %v2958, %v2955
  %v2984 = vpack.c.bf16 %v2966, %v2963
  %v2985 = vpack.c.bf16 %v2974, %v2971
  %s2986 = scalar_lea.vmem %s15, 20
  %v2987 = vld [vmem:[%s2986] sm:$0xf]
  %v2988 = vld [vmem:[%s2986 + $0x4] sm:$0xf]
  %v2989 = vld [vmem:[%s2986 + $0x8] sm:$0xf]
  %v2990 = vld [vmem:[%s2986 + $0xc] sm:$0xf]
  %v2991 = vld [vmem:[%s2986 + $0x10] sm:$0xf]
  %s2992 = scalar_lea.vmem %s16, 1
  %v2993 = vld [vmem:[%s2992] sm:$0x1]
  %v2995 = vlaneseq
  %v2996 = vshrl.u32 %v2995, 7
  %v2997 = vsub.s32 0, %v2996
  %v2998 = vrot.slane %v2993, %v2997
  %v3005 = vunpack.c.l.b16 %v2987
  %v3006 = vunpack.c.l.b16 %v2988
  %v3007 = vunpack.c.l.b16 %v2989
  %v3008 = vunpack.c.l.b16 %v2990
  %v3009 = vunpack.c.l.b16 %v2991
  %v3010 = vpack.c.b16 %v3006, %v3005
  %v3011 = vpack.c.b16 %v3008, %v3007
  %v3012 = vpack.c.b16 %v3009, %v3009
  %v3016 = vsel %vm84, %v2983, 0
  %v3019 = vsel %vm84, %v2984, 0
  %v3022 = vsel %vm84, %v2985, 0
  %v3025 = vsel %vm145, %v3012, 0
  %3027 = vmatprep.subr.bf16.mxu0 0
  %3028 = vmatpush1.bf16.msra.mxu0 %v3010
  %3029 = vmatprep.subr.bf16.mxu0 0
  %3030 = vmatpush1.bf16.msra.mxu0 %v3011
  %3031 = vmatprep.subr.bf16.mxu0 0
  %3032 = vmatpush1.bf16.msra.mxu0 %v3025
  %3033 = vmatprep.subr.bf16.mxu0 0
  %3034 = vmatpush1.bf16.msra.mxu0 0
  %3035 = vmatprep.subr.bf16.mxu0 0
  %3036 = vmatpush1.bf16.msra.mxu0 0
  %3037 = vmatprep.subr.bf16.mxu0 0
  %3038 = vmatpush1.bf16.msra.mxu0 0
  %3039 = vmatprep.subr.bf16.mxu0 0
  %3040 = vmatpush1.bf16.msra.mxu0 0
  %3041 = vmatprep.subr.bf16.mxu0 0
  %3042 = vmatpush1.bf16.msra.mxu0 0
  %3043 = vmatprep.subr.bf16.mxu0 0
  %3044 = vmatpush1.bf16.msra.mxu0 0
  %3045 = vmatprep.subr.bf16.mxu0 0
  %3046 = vmatpush1.bf16.msra.mxu0 0
  %3047 = vmatprep.subr.bf16.mxu0 0
  %3048 = vmatpush1.bf16.msra.mxu0 0
  %3049 = vmatprep.subr.bf16.mxu0 0
  %3050 = vmatpush1.bf16.msra.mxu0 0
  %3051 = vmatprep.subr.bf16.mxu0 0
  %3052 = vmatpush1.bf16.msra.mxu0 0
  %3053 = vmatprep.subr.bf16.mxu0 0
  %3054 = vmatpush1.bf16.msra.mxu0 0
  %3055 = vmatprep.subr.bf16.mxu0 0
  %3056 = vmatpush1.bf16.msra.mxu0 0
  %3057 = vmatprep.subr.bf16.mxu0 0
  %3058 = vmatpush1.bf16.msra.mxu0 0
  %3059 = vmatprep.mubr.bf16.mxu0 0
  %3060 = vmatmul.mubr.bf16.gmra.mrb[0].mxu0 %v3016
  %v3061 = vpop.f32.mrb[0].mxu0
  %v3062 = vadd.f32 %v2998, %v3061
  %v3063 = vpop.f32.mrb[0].mxu0
  %v3064 = vpop.f32.mrb[0].mxu0
  %v3065 = vadd.f32 %v2998, %v3064
  %v3066 = vpop.f32.mrb[0].mxu0
  %3067 = vmatprep.mubr.bf16.mxu0 0
  %3068 = vmatmul.mubr.bf16.gmra.mrb[0].mxu0 %v3019
  %v3069 = vpop.f32.mrb[0].mxu0
  %v3070 = vadd.f32 %v2998, %v3069
  %v3071 = vpop.f32.mrb[0].mxu0
  %v3072 = vpop.f32.mrb[0].mxu0
  %v3073 = vadd.f32 %v2998, %v3072
  %v3074 = vpop.f32.mrb[0].mxu0
  %3075 = vmatprep.mubr.bf16.mxu0 0
  %3076 = vmatmul.mubr.bf16.gmra.mrb[0].mxu0 %v3022
  %v3077 = vpop.f32.mrb[0].mxu0
  %v3078 = vadd.f32 %v2998, %v3077
  %v3079 = vpop.f32.mrb[0].mxu0
  %v3080 = vpop.f32.mrb[0].mxu0
  %v3081 = vadd.f32 %v2998, %v3080
  %v3082 = vpop.f32.mrb[0].mxu0
  %3083 = vdwg.mxu0
  %v3084 = vmax.f32 %v3062, 0.0
  %v3085 = vmax.f32 %v3065, 0.0
  %v3086 = vmax.f32 %v3070, 0.0
  %v3087 = vmax.f32 %v3073, 0.0
  %v3088 = vmax.f32 %v3078, 0.0
  %v3089 = vmax.f32 %v3081, 0.0
  %s3090 = scalar_lea.vmem %s17, 1
  %v3091 = vld [vmem:[%s3090] sm:$0x1]
  %v3093 = vlaneseq
  %v3094 = vshrl.u32 %v3093, 7
  %v3095 = vsub.s32 0, %v3094
  %v3096 = vrot.slane %v3091, %v3095
  %v3098 = vmul.f32 %v3084, %v3096
  %v3099 = vmul.f32 %v3085, %v3096
  %v3100 = vmul.f32 %v3086, %v3096
  %v3101 = vmul.f32 %v3087, %v3096
  %v3102 = vmul.f32 %v3088, %v3096
  %v3103 = vmul.f32 %v3089, %v3096
  %v3104 = vsel %vm1084, %v3098, 0.0
  %3105 = vadd.xlane.f32.xlu0 %v3104
  %v3106 = vpop.xlane.xlu0 %3105
  %v3107 = vsel %vm1084, %v3099, 0.0
  %3108 = vadd.xlane.f32.xlu0 %v3107
  %v3109 = vpop.xlane.xlu0 %3108
  %v3110 = vsel %vm1084, %v3100, 0.0
  %3111 = vadd.xlane.f32.xlu0 %v3110
  %v3112 = vpop.xlane.xlu0 %3111
  %v3113 = vsel %vm1084, %v3101, 0.0
  %3114 = vadd.xlane.f32.xlu0 %v3113
  %v3115 = vpop.xlane.xlu0 %3114
  %v3116 = vsel %vm1084, %v3102, 0.0
  %3117 = vadd.xlane.f32.xlu0 %v3116
  %v3118 = vpop.xlane.xlu0 %3117
  %vm3119 = vcmask 123904
  %v3120 = vsel %vm3119, %v3103, 0.0
  %3121 = vadd.xlane.f32.xlu0 %v3120
  %v3122 = vpop.xlane.xlu0 %3121
  %s3123 = scalar_lea.vmem %s18, 1
  %v3124 = vld [vmem:[%s3123] sm:$0x1]
  %v3126 = vlaneseq
  %v3127 = vshrl.u32 %v3126, 7
  %v3128 = vsub.s32 0, %v3127
  %v3129 = vrot.slane %v3124, %v3128
  %v3131 = vadd.f32 %v3106, %v3129
  %v3132 = vadd.f32 %v3109, %v3129
  %v3133 = vadd.f32 %v3112, %v3129
  %v3134 = vadd.f32 %v3115, %v3129
  %v3135 = vadd.f32 %v3118, %v3129
  %v3136 = vadd.f32 %v3122, %v3129
  %vm3137 = vcmp.gt.f32.partialorder %v2977, 0.5
  %vm3138 = vcmp.gt.f32.partialorder %v2978, 0.5
  %vm3139 = vcmp.gt.f32.partialorder %v2979, 0.5
  %vm3140 = vcmp.gt.f32.partialorder %v2980, 0.5
  %vm3141 = vcmp.gt.f32.partialorder %v2981, 0.5
  %vm3142 = vcmp.gt.f32.partialorder %v2982, 0.5
  %v3143 = vsel %vm3137, -1e+09, %v3131
  %v3144 = vsel %vm3138, -1e+09, %v3132
  %v3145 = vsel %vm3139, -1e+09, %v3133
  %v3146 = vsel %vm3140, -1e+09, %v3134
  %v3147 = vsel %vm3141, -1e+09, %v3135
  %v3148 = vsel %vm3142, -1e+09, %v3136
  %vm3149 = vcmp.ge.s32.totalorder %v1729, 0
  %vm3150 = vcmp.lt.s32.totalorder %v1363, 21
  %vm3151 = vcmp.lt.s32.totalorder %v1364, 21
  %vm3152 = vcmp.lt.s32.totalorder %v1365, 21
  %vm3153 = vcmp.lt.s32.totalorder %v1366, 21
  %vm3154 = vcmp.lt.s32.totalorder %v1367, 21
  %vm3155 = vcmp.lt.s32.totalorder %v1729, 21
  %vm3156 = vmand %vm1368, %vm3150
  %vm3157 = vmand %vm1369, %vm3151
  %vm3158 = vmand %vm1370, %vm3152
  %vm3159 = vmand %vm1371, %vm3153
  %vm3160 = vmand %vm1372, %vm3154
  %vm3161 = vmand %vm3149, %vm3155
  %v3162 = vsel %vm3156, %v3143, -1e+09
  %v3163 = vsel %vm3157, %v3144, -1e+09
  %v3164 = vsel %vm3158, %v3145, -1e+09
  %v3165 = vsel %vm3159, %v3146, -1e+09
  %v3166 = vsel %vm3160, %v3147, -1e+09
  %v3167 = vsel %vm3161, %v3148, -1e+09
  %v3168 = vsel %vm1388, %v3162, -inf
  %v3169 = vsel %vm1388, %v3163, -inf
  %v3170 = vsel %vm1388, %v3164, -inf
  %v3171 = vsel %vm1388, %v3165, -inf
  %v3172 = vsel %vm1388, %v3166, -inf
  %v3173 = vmax.f32 %v3168, %v3172
  %vm3174 = vcmask 1024
  %v3175 = vsel %vm3174, %v3167, -inf
  %v3176 = vmax.f32 %v3169, %v3175
  %v3177 = vmax.f32 %v3173, %v3176
  %v3178 = vmax.f32 %v3170, %v3171
  %v3179 = vmax.f32 %v3177, %v3178
  %v3180 = vrot.slane %v3179, 4
  %v3181 = vmax.f32 %v3179, %v3180
  %v3182 = vrot.slane %v3181, 2
  %v3183 = vmax.f32 %v3181, %v3182
  %v3184 = vrot.slane %v3183, 1
  %v3185 = vmax.f32 %v3183, %v3184
  %v3186 = vsub.f32 %v3143, %v3185
  %v3187 = vsub.f32 %v3144, %v3185
  %v3188 = vsub.f32 %v3145, %v3185
  %v3189 = vsub.f32 %v3146, %v3185
  %v3190 = vsub.f32 %v3147, %v3185
  %v3191 = vsub.f32 %v3148, %v3185
  %v3192 = vmul.f32 %v3186, 1.442695
  %v3193 = vpow.pop %v3192
  %v3194 = vmul.f32 %v3187, 1.442695
  %v3195 = vpow.pop %v3194
  %v3196 = vmul.f32 %v3188, 1.442695
  %v3197 = vpow.pop %v3196
  %v3198 = vmul.f32 %v3189, 1.442695
  %v3199 = vpow.pop %v3198
  %v3200 = vmul.f32 %v3190, 1.442695
  %v3201 = vpow.pop %v3200
  %v3202 = vmul.f32 %v3191, 1.442695
  %v3203 = vpow.pop %v3202
  %v3204 = vsel %vm3156, %v3193, 0.0
  %v3205 = vsel %vm3157, %v3195, 0.0
  %v3206 = vsel %vm3158, %v3197, 0.0
  %v3207 = vsel %vm3159, %v3199, 0.0
  %v3208 = vsel %vm3160, %v3201, 0.0
  %v3209 = vsel %vm3161, %v3203, 0.0
  %v3210 = vsel %vm1388, %v3204, 0.0
  %v3211 = vsel %vm1388, %v3205, 0.0
  %v3212 = vadd.f32 %v3210, %v3211
  %v3213 = vsel %vm1388, %v3206, 0.0
  %v3214 = vadd.f32 %v3212, %v3213
  %v3215 = vsel %vm1388, %v3207, 0.0
  %v3216 = vadd.f32 %v3214, %v3215
  %v3217 = vsel %vm1388, %v3208, 0.0
  %v3218 = vadd.f32 %v3216, %v3217
  %v3219 = vsel %vm3174, %v3209, 0.0
  %v3220 = vadd.f32 %v3218, %v3219
  %v3221 = vrot.slane %v3220, 4
  %v3222 = vadd.f32 %v3220, %v3221
  %v3223 = vrot.slane %v3222, 2
  %v3224 = vadd.f32 %v3222, %v3223
  %v3225 = vrot.slane %v3224, 1
  %v3226 = vadd.f32 %v3224, %v3225
  %v3227 = vrcp.pop %v3226
  %v3228 = vmul.f32 %v3204, %v3227
  %v3229 = vmul.f32 %v3205, %v3227
  %v3230 = vmul.f32 %v3206, %v3227
  %v3231 = vmul.f32 %v3207, %v3227
  %v3232 = vmul.f32 %v3208, %v3227
  %v3233 = vmul.f32 %v3209, %v3227
  %3235 = vset.pattern.permute.xlu0 0
  %3236 = vperm.xlu0 %3235, %v3228
  %v3237 = vpop.permute.xlu0 %3236
  %3240 = vset.pattern.permute.xlu0 0
  %3241 = vperm.xlu0 %3240, %v3229
  %v3242 = vpop.permute.xlu0 %3241
  %3245 = vset.pattern.permute.xlu0 0
  %3246 = vperm.xlu0 %3245, %v3230
  %v3247 = vpop.permute.xlu0 %3246
  %3250 = vset.pattern.permute.xlu0 0
  %3251 = vperm.xlu0 %3250, %v3231
  %v3252 = vpop.permute.xlu0 %3251
  %3255 = vset.pattern.permute.xlu0 0
  %3256 = vperm.xlu0 %3255, %v3232
  %v3257 = vpop.permute.xlu0 %3256
  %3260 = vset.pattern.permute.xlu0 0
  %3261 = vperm.xlu0 %3260, %v3233
  %v3262 = vpop.permute.xlu0 %3261
  %v3264 = vmul.f32 %v3237, %v2955
  %v3265 = vmul.f32 %v3242, %v2958
  %v3266 = vmul.f32 %v3247, %v2963
  %v3267 = vmul.f32 %v3252, %v2966
  %v3268 = vmul.f32 %v3257, %v2971
  %v3269 = vmul.f32 %v3262, %v2974
  %v3270 = vsel %vm84, %v3264, 0.0
  %v3271 = vsel %vm84, %v3265, 0.0
  %v3272 = vadd.f32 %v3270, %v3271
  %v3273 = vsel %vm84, %v3266, 0.0
  %v3274 = vadd.f32 %v3272, %v3273
  %v3275 = vsel %vm84, %v3267, 0.0
  %v3276 = vadd.f32 %v3274, %v3275
  %v3277 = vsel %vm84, %v3268, 0.0
  %v3278 = vadd.f32 %v3276, %v3277
  %vm3279 = vcmask 320512
  %v3280 = vsel %vm3279, %v3269, 0.0
  %v3281 = vadd.f32 %v3278, %v3280
  %v3282 = vrot.slane %v3281, 4
  %v3283 = vadd.f32 %v3281, %v3282
  %v3284 = vrot.slane %v3283, 2
  %v3285 = vadd.f32 %v3283, %v3284
  %v3286 = vrot.slane %v3285, 1
  %v3287 = vadd.f32 %v3285, %v3286
  %v3288 = vpack.c.bf16 %v3287, %v3287
  %s3289 = scalar_lea.vmem %s19, 20
  %v3290 = vld [vmem:[%s3289] sm:$0xf]
  %v3291 = vld [vmem:[%s3289 + $0x4] sm:$0xf]
  %v3292 = vld [vmem:[%s3289 + $0x8] sm:$0xf]
  %v3293 = vld [vmem:[%s3289 + $0xc] sm:$0xf]
  %v3294 = vld [vmem:[%s3289 + $0x10] sm:$0xf]
  %s3295 = scalar_lea.vmem %s20, 1
  %v3296 = vld [vmem:[%s3295] sm:$0x1]
  %v3302 = vunpack.c.l.b16 %v3290
  %v3303 = vunpack.c.l.b16 %v3291
  %v3304 = vunpack.c.l.b16 %v3292
  %v3305 = vunpack.c.l.b16 %v3293
  %v3306 = vunpack.c.l.b16 %v3294
  %v3307 = vpack.c.b16 %v3303, %v3302
  %v3308 = vpack.c.b16 %v3305, %v3304
  %v3309 = vpack.c.b16 %v3306, %v3306
  %v3313 = vsel %vm84, %v3288, 0
  %v3316 = vsel %vm145, %v3309, 0
  %3318 = vmatprep.subr.bf16.mxu0 0
  %3319 = vmatpush1.bf16.msra.mxu0 %v3307
  %3320 = vmatprep.subr.bf16.mxu0 0
  %3321 = vmatpush1.bf16.msra.mxu0 %v3308
  %3322 = vmatprep.subr.bf16.mxu0 0
  %3323 = vmatpush1.bf16.msra.mxu0 %v3316
  %3324 = vmatprep.subr.bf16.mxu0 0
  %3325 = vmatpush1.bf16.msra.mxu0 0
  %3326 = vmatprep.subr.bf16.mxu0 0
  %3327 = vmatpush1.bf16.msra.mxu0 0
  %3328 = vmatprep.subr.bf16.mxu0 0
  %3329 = vmatpush1.bf16.msra.mxu0 0
  %3330 = vmatprep.subr.bf16.mxu0 0
  %3331 = vmatpush1.bf16.msra.mxu0 0
  %3332 = vmatprep.subr.bf16.mxu0 0
  %3333 = vmatpush1.bf16.msra.mxu0 0
  %3334 = vmatprep.subr.bf16.mxu0 0
  %3335 = vmatpush1.bf16.msra.mxu0 0
  %3336 = vmatprep.subr.bf16.mxu0 0
  %3337 = vmatpush1.bf16.msra.mxu0 0
  %3338 = vmatprep.subr.bf16.mxu0 0
  %3339 = vmatpush1.bf16.msra.mxu0 0
  %3340 = vmatprep.subr.bf16.mxu0 0
  %3341 = vmatpush1.bf16.msra.mxu0 0
  %3342 = vmatprep.subr.bf16.mxu0 0
  %3343 = vmatpush1.bf16.msra.mxu0 0
  %3344 = vmatprep.subr.bf16.mxu0 0
  %3345 = vmatpush1.bf16.msra.mxu0 0
  %3346 = vmatprep.subr.bf16.mxu0 0
  %3347 = vmatpush1.bf16.msra.mxu0 0
  %3348 = vmatprep.subr.bf16.mxu0 0
  %3349 = vmatpush1.bf16.msra.mxu0 0
  %3350 = vmatprep.mubr.bf16.mxu0 0
  %3351 = vmatmul.mubr.bf16.gmra.mrb[0].mxu0 %v3313
  %v3352 = vpop.f32.mrb[0].mxu0
  %v3353 = vadd.f32 %v3296, %v3352
  %v3354 = vpop.f32.mrb[0].mxu0
  %v3355 = vpop.f32.mrb[0].mxu0
  %v3356 = vpop.f32.mrb[0].mxu0
  %3357 = vdwg.mxu0
  %vm3358 = vcmp.ge.s32.totalorder %v1363, 21
  %vm3359 = vcmp.ge.s32.totalorder %v1364, 21
  %vm3360 = vcmp.ge.s32.totalorder %v1365, 21
  %vm3361 = vcmp.ge.s32.totalorder %v1366, 21
  %vm3362 = vcmp.ge.s32.totalorder %v1367, 21
  %vm3363 = vcmp.ge.s32.totalorder %v1729, 21
  %vm3364 = vcmp.lt.s32.totalorder %v1363, 42
  %vm3365 = vcmp.lt.s32.totalorder %v1364, 42
  %vm3366 = vcmp.lt.s32.totalorder %v1365, 42
  %vm3367 = vcmp.lt.s32.totalorder %v1366, 42
  %vm3368 = vcmp.lt.s32.totalorder %v1367, 42
  %vm3369 = vcmp.lt.s32.totalorder %v1729, 42
  %vm3370 = vmand %vm3358, %vm3364
  %vm3371 = vmand %vm3359, %vm3365
  %vm3372 = vmand %vm3360, %vm3366
  %vm3373 = vmand %vm3361, %vm3367
  %vm3374 = vmand %vm3362, %vm3368
  %vm3375 = vmand %vm3363, %vm3369
  %v3376 = vsel %vm3370, %v3143, -1e+09
  %v3377 = vsel %vm3371, %v3144, -1e+09
  %v3378 = vsel %vm3372, %v3145, -1e+09
  %v3379 = vsel %vm3373, %v3146, -1e+09
  %v3380 = vsel %vm3374, %v3147, -1e+09
  %v3381 = vsel %vm3375, %v3148, -1e+09
  %v3382 = vsel %vm1388, %v3376, -inf
  %v3383 = vsel %vm1388, %v3377, -inf
  %v3384 = vsel %vm1388, %v3378, -inf
  %v3385 = vsel %vm1388, %v3379, -inf
  %v3386 = vsel %vm1388, %v3380, -inf
  %v3387 = vmax.f32 %v3382, %v3386
  %v3388 = vsel %vm3174, %v3381, -inf
  %v3389 = vmax.f32 %v3383, %v3388
  %v3390 = vmax.f32 %v3387, %v3389
  %v3391 = vmax.f32 %v3384, %v3385
  %v3392 = vmax.f32 %v3390, %v3391
  %v3393 = vrot.slane %v3392, 4
  %v3394 = vmax.f32 %v3392, %v3393
  %v3395 = vrot.slane %v3394, 2
  %v3396 = vmax.f32 %v3394, %v3395
  %v3397 = vrot.slane %v3396, 1
  %v3398 = vmax.f32 %v3396, %v3397
  %v3399 = vsub.f32 %v3143, %v3398
  %v3400 = vsub.f32 %v3144, %v3398
  %v3401 = vsub.f32 %v3145, %v3398
  %v3402 = vsub.f32 %v3146, %v3398
  %v3403 = vsub.f32 %v3147, %v3398
  %v3404 = vsub.f32 %v3148, %v3398
  %v3405 = vmul.f32 %v3399, 1.442695
  %v3406 = vpow.pop %v3405
  %v3407 = vmul.f32 %v3400, 1.442695
  %v3408 = vpow.pop %v3407
  %v3409 = vmul.f32 %v3401, 1.442695
  %v3410 = vpow.pop %v3409
  %v3411 = vmul.f32 %v3402, 1.442695
  %v3412 = vpow.pop %v3411
  %v3413 = vmul.f32 %v3403, 1.442695
  %v3414 = vpow.pop %v3413
  %v3415 = vmul.f32 %v3404, 1.442695
  %v3416 = vpow.pop %v3415
  %v3417 = vsel %vm3370, %v3406, 0.0
  %v3418 = vsel %vm3371, %v3408, 0.0
  %v3419 = vsel %vm3372, %v3410, 0.0
  %v3420 = vsel %vm3373, %v3412, 0.0
  %v3421 = vsel %vm3374, %v3414, 0.0
  %v3422 = vsel %vm3375, %v3416, 0.0
  %v3423 = vsel %vm1388, %v3417, 0.0
  %v3424 = vsel %vm1388, %v3418, 0.0
  %v3425 = vadd.f32 %v3423, %v3424
  %v3426 = vsel %vm1388, %v3419, 0.0
  %v3427 = vadd.f32 %v3425, %v3426
  %v3428 = vsel %vm1388, %v3420, 0.0
  %v3429 = vadd.f32 %v3427, %v3428
  %v3430 = vsel %vm1388, %v3421, 0.0
  %v3431 = vadd.f32 %v3429, %v3430
  %v3432 = vsel %vm3174, %v3422, 0.0
  %v3433 = vadd.f32 %v3431, %v3432
  %v3434 = vrot.slane %v3433, 4
  %v3435 = vadd.f32 %v3433, %v3434
  %v3436 = vrot.slane %v3435, 2
  %v3437 = vadd.f32 %v3435, %v3436
  %v3438 = vrot.slane %v3437, 1
  %v3439 = vadd.f32 %v3437, %v3438
  %v3440 = vrcp.pop %v3439
  %v3441 = vmul.f32 %v3417, %v3440
  %v3442 = vmul.f32 %v3418, %v3440
  %v3443 = vmul.f32 %v3419, %v3440
  %v3444 = vmul.f32 %v3420, %v3440
  %v3445 = vmul.f32 %v3421, %v3440
  %v3446 = vmul.f32 %v3422, %v3440
  %3448 = vset.pattern.permute.xlu0 0
  %3449 = vperm.xlu0 %3448, %v3441
  %v3450 = vpop.permute.xlu0 %3449
  %3453 = vset.pattern.permute.xlu0 0
  %3454 = vperm.xlu0 %3453, %v3442
  %v3455 = vpop.permute.xlu0 %3454
  %3458 = vset.pattern.permute.xlu0 0
  %3459 = vperm.xlu0 %3458, %v3443
  %v3460 = vpop.permute.xlu0 %3459
  %3463 = vset.pattern.permute.xlu0 0
  %3464 = vperm.xlu0 %3463, %v3444
  %v3465 = vpop.permute.xlu0 %3464
  %3468 = vset.pattern.permute.xlu0 0
  %3469 = vperm.xlu0 %3468, %v3445
  %v3470 = vpop.permute.xlu0 %3469
  %3473 = vset.pattern.permute.xlu0 0
  %3474 = vperm.xlu0 %3473, %v3446
  %v3475 = vpop.permute.xlu0 %3474
  %v3477 = vmul.f32 %v3450, %v2955
  %v3478 = vmul.f32 %v3455, %v2958
  %v3479 = vmul.f32 %v3460, %v2963
  %v3480 = vmul.f32 %v3465, %v2966
  %v3481 = vmul.f32 %v3470, %v2971
  %v3482 = vmul.f32 %v3475, %v2974
  %v3483 = vsel %vm84, %v3477, 0.0
  %v3484 = vsel %vm84, %v3478, 0.0
  %v3485 = vadd.f32 %v3483, %v3484
  %v3486 = vsel %vm84, %v3479, 0.0
  %v3487 = vadd.f32 %v3485, %v3486
  %v3488 = vsel %vm84, %v3480, 0.0
  %v3489 = vadd.f32 %v3487, %v3488
  %v3490 = vsel %vm84, %v3481, 0.0
  %v3491 = vadd.f32 %v3489, %v3490
  %v3492 = vsel %vm3279, %v3482, 0.0
  %v3493 = vadd.f32 %v3491, %v3492
  %v3494 = vrot.slane %v3493, 4
  %v3495 = vadd.f32 %v3493, %v3494
  %v3496 = vrot.slane %v3495, 2
  %v3497 = vadd.f32 %v3495, %v3496
  %v3498 = vrot.slane %v3497, 1
  %v3499 = vadd.f32 %v3497, %v3498
  %v3500 = vpack.c.bf16 %v3499, %v3499
  %v3502 = vsel %vm84, %v3500, 0
  %3504 = vmatprep.subr.bf16.mxu0 0
  %3505 = vmatpush1.bf16.msra.mxu0 %v3307
  %3506 = vmatprep.subr.bf16.mxu0 0
  %3507 = vmatpush1.bf16.msra.mxu0 %v3308
  %3508 = vmatprep.subr.bf16.mxu0 0
  %3509 = vmatpush1.bf16.msra.mxu0 %v3316
  %3510 = vmatprep.subr.bf16.mxu0 0
  %3511 = vmatpush1.bf16.msra.mxu0 0
  %3512 = vmatprep.subr.bf16.mxu0 0
  %3513 = vmatpush1.bf16.msra.mxu0 0
  %3514 = vmatprep.subr.bf16.mxu0 0
  %3515 = vmatpush1.bf16.msra.mxu0 0
  %3516 = vmatprep.subr.bf16.mxu0 0
  %3517 = vmatpush1.bf16.msra.mxu0 0
  %3518 = vmatprep.subr.bf16.mxu0 0
  %3519 = vmatpush1.bf16.msra.mxu0 0
  %3520 = vmatprep.subr.bf16.mxu0 0
  %3521 = vmatpush1.bf16.msra.mxu0 0
  %3522 = vmatprep.subr.bf16.mxu0 0
  %3523 = vmatpush1.bf16.msra.mxu0 0
  %3524 = vmatprep.subr.bf16.mxu0 0
  %3525 = vmatpush1.bf16.msra.mxu0 0
  %3526 = vmatprep.subr.bf16.mxu0 0
  %3527 = vmatpush1.bf16.msra.mxu0 0
  %3528 = vmatprep.subr.bf16.mxu0 0
  %3529 = vmatpush1.bf16.msra.mxu0 0
  %3530 = vmatprep.subr.bf16.mxu0 0
  %3531 = vmatpush1.bf16.msra.mxu0 0
  %3532 = vmatprep.subr.bf16.mxu0 0
  %3533 = vmatpush1.bf16.msra.mxu0 0
  %3534 = vmatprep.subr.bf16.mxu0 0
  %3535 = vmatpush1.bf16.msra.mxu0 0
  %3536 = vmatprep.mubr.bf16.mxu0 0
  %3537 = vmatmul.mubr.bf16.gmra.mrb[0].mxu0 %v3502
  %v3538 = vpop.f32.mrb[0].mxu0
  %v3539 = vadd.f32 %v3296, %v3538
  %v3540 = vpop.f32.mrb[0].mxu0
  %v3541 = vpop.f32.mrb[0].mxu0
  %v3542 = vpop.f32.mrb[0].mxu0
  %3543 = vdwg.mxu0
  %v3544 = vld [vmem:[%s2] sm:$0xff]
  %v3545 = vld [vmem:[%s2 + $0x8] sm:$0xff]
  %v3546 = vld [vmem:[%s2 + $0x10] sm:$0xff]
  %v3547 = vld [vmem:[%s2 + $0x18] sm:$0xff]
  %v3548 = vld [vmem:[%s2 + $0x20] sm:$0xff]
  %v3549 = vld [vmem:[%s2 + $0x28] sm:$0xf]
  %v3550 = vadd.f32 %v3544, %v1752
  %v3551 = vadd.f32 %v3545, %v1753
  %v3552 = vadd.f32 %v3546, %v1754
  %v3553 = vadd.f32 %v3547, %v1755
  %v3554 = vadd.f32 %v3548, %v1756
  %v3555 = vadd.f32 %v3549, %v1757
  %vm3556 = vcmp.eq.s32.totalorder %v1363, 42
  %vm3557 = vcmp.eq.s32.totalorder %v1364, 42
  %vm3558 = vcmp.eq.s32.totalorder %v1365, 42
  %vm3559 = vcmp.eq.s32.totalorder %v1366, 42
  %vm3560 = vcmp.eq.s32.totalorder %v1367, 42
  %vm3561 = vcmp.eq.s32.totalorder %v1729, 42
  %v3562 = vsel %vm3556, 1, 0
  %v3563 = vsel %vm3557, 1, 0
  %v3564 = vsel %vm3558, 1, 0
  %v3565 = vsel %vm3559, 1, 0
  %v3566 = vsel %vm3560, 1, 0
  %v3567 = vsel %vm3561, 1, 0
  %v3568 = vcvt.s32.f32 %v3562
  %v3569 = vcvt.s32.f32 %v3563
  %v3570 = vcvt.s32.f32 %v3564
  %v3571 = vcvt.s32.f32 %v3565
  %v3572 = vcvt.s32.f32 %v3566
  %v3573 = vcvt.s32.f32 %v3567
  %v3574 = vmul.f32 %v3568, %v1785
  %v3575 = vmul.f32 %v3569, %v1785
  %v3576 = vmul.f32 %v3570, %v1785
  %v3577 = vmul.f32 %v3571, %v1785
  %v3578 = vmul.f32 %v3572, %v1785
  %v3579 = vmul.f32 %v3573, %v1785
  %v3580 = vadd.f32 %v3550, %v3574
  %v3581 = vadd.f32 %v3551, %v3575
  %v3582 = vadd.f32 %v3552, %v3576
  %v3583 = vadd.f32 %v3553, %v3577
  %v3584 = vadd.f32 %v3554, %v3578
  %v3585 = vadd.f32 %v3555, %v3579
  %vm3586 = vcmp.eq.s32.totalorder %v1363, 21
  %vm3587 = vcmp.eq.s32.totalorder %v1364, 21
  %vm3588 = vcmp.eq.s32.totalorder %v1365, 21
  %vm3589 = vcmp.eq.s32.totalorder %v1366, 21
  %vm3590 = vcmp.eq.s32.totalorder %v1367, 21
  %vm3591 = vcmp.eq.s32.totalorder %v1729, 21
  %v3592 = vsel %vm3586, 1, 0
  %v3593 = vsel %vm3587, 1, 0
  %v3594 = vsel %vm3588, 1, 0
  %v3595 = vsel %vm3589, 1, 0
  %v3596 = vsel %vm3590, 1, 0
  %v3597 = vsel %vm3591, 1, 0
  %v3598 = vcvt.s32.f32 %v3592
  %v3599 = vcvt.s32.f32 %v3593
  %v3600 = vcvt.s32.f32 %v3594
  %v3601 = vcvt.s32.f32 %v3595
  %v3602 = vcvt.s32.f32 %v3596
  %v3603 = vcvt.s32.f32 %v3597
  %v3604 = vlaneseq
  %v3605 = vshrl.u32 %v3604, 7
  %v3606 = vsub.s32 0, %v3605
  %v3607 = vrot.slane %v3353, %v3606
  %v3608 = vmul.f32 %v3598, %v3607
  %v3609 = vmul.f32 %v3599, %v3607
  %v3610 = vmul.f32 %v3600, %v3607
  %v3611 = vmul.f32 %v3601, %v3607
  %v3612 = vmul.f32 %v3602, %v3607
  %v3613 = vmul.f32 %v3603, %v3607
  %v3614 = vadd.f32 %v3580, %v3608
  %v3615 = vadd.f32 %v3581, %v3609
  %v3616 = vadd.f32 %v3582, %v3610
  %v3617 = vadd.f32 %v3583, %v3611
  %v3618 = vadd.f32 %v3584, %v3612
  %v3619 = vadd.f32 %v3585, %v3613
  %vm3620 = vcmp.eq.s32.totalorder %v1363, 43
  %vm3621 = vcmp.eq.s32.totalorder %v1364, 43
  %vm3622 = vcmp.eq.s32.totalorder %v1365, 43
  %vm3623 = vcmp.eq.s32.totalorder %v1366, 43
  %vm3624 = vcmp.eq.s32.totalorder %v1367, 43
  %vm3625 = vcmp.eq.s32.totalorder %v1729, 43
  %v3626 = vsel %vm3620, 1, 0
  %v3627 = vsel %vm3621, 1, 0
  %v3628 = vsel %vm3622, 1, 0
  %v3629 = vsel %vm3623, 1, 0
  %v3630 = vsel %vm3624, 1, 0
  %v3631 = vsel %vm3625, 1, 0
  %v3632 = vcvt.s32.f32 %v3626
  %v3633 = vcvt.s32.f32 %v3627
  %v3634 = vcvt.s32.f32 %v3628
  %v3635 = vcvt.s32.f32 %v3629
  %v3636 = vcvt.s32.f32 %v3630
  %v3637 = vcvt.s32.f32 %v3631
  %v3638 = vlaneseq
  %v3639 = vshrl.u32 %v3638, 7
  %v3640 = vsub.s32 0, %v3639
  %v3641 = vrot.slane %v3539, %v3640
  %v3642 = vmul.f32 %v3632, %v3641
  %v3643 = vmul.f32 %v3633, %v3641
  %v3644 = vmul.f32 %v3634, %v3641
  %v3645 = vmul.f32 %v3635, %v3641
  %v3646 = vmul.f32 %v3636, %v3641
  %v3647 = vmul.f32 %v3637, %v3641
  %v3648 = vadd.f32 %v3614, %v3642
  %v3649 = vadd.f32 %v3615, %v3643
  %v3650 = vadd.f32 %v3616, %v3644
  %v3651 = vadd.f32 %v3617, %v3645
  %v3652 = vadd.f32 %v3618, %v3646
  %v3653 = vadd.f32 %v3619, %v3647
  %v3654 = vld [vmem:[%s6] sm:$0xf]
  %v3655 = vld [vmem:[%s6 + $0x4] sm:$0xf]
  %v3656 = vld [vmem:[%s6 + $0x8] sm:$0xf]
  %v3657 = vld [vmem:[%s6 + $0xc] sm:$0xf]
  %v3658 = vld [vmem:[%s6 + $0x10] sm:$0xf]
  %v3659 = vld [vmem:[%s6 + $0x14] sm:$0x3]
  %v3660 = vunpack.c.l.bf16 %v3654
  %v3661 = vunpack.c.l.bf16 %v3655
  %v3662 = vunpack.c.l.bf16 %v3656
  %v3663 = vunpack.c.l.bf16 %v3657
  %v3664 = vunpack.c.l.bf16 %v3658
  %v3665 = vunpack.c.l.bf16 %v3659
  %vm3666 = vcmask 359424
  %v3667 = vsel %vm3666, %v3660, 0.0
  %3668 = vadd.xlane.f32.xlu0 %v3667
  %v3669 = vpop.xlane.xlu0 %3668
  %v3670 = vsel %vm3666, %v3661, 0.0
  %3671 = vadd.xlane.f32.xlu0 %v3670
  %v3672 = vpop.xlane.xlu0 %3671
  %v3673 = vsel %vm3666, %v3662, 0.0
  %3674 = vadd.xlane.f32.xlu0 %v3673
  %v3675 = vpop.xlane.xlu0 %3674
  %v3676 = vsel %vm3666, %v3663, 0.0
  %3677 = vadd.xlane.f32.xlu0 %v3676
  %v3678 = vpop.xlane.xlu0 %3677
  %v3679 = vsel %vm3666, %v3664, 0.0
  %3680 = vadd.xlane.f32.xlu0 %v3679
  %v3681 = vpop.xlane.xlu0 %3680
  %vm3682 = vcmask 355328
  %v3683 = vsel %vm3682, %v3665, 0.0
  %3684 = vadd.xlane.f32.xlu0 %v3683
  %v3685 = vpop.xlane.xlu0 %3684
  %v3686 = vrcp.pop %v3669
  %v3687 = vmul.f32 1.0, %v3686
  %v3688 = vrcp.pop %v3672
  %v3689 = vmul.f32 1.0, %v3688
  %v3690 = vrcp.pop %v3675
  %v3691 = vmul.f32 1.0, %v3690
  %v3692 = vrcp.pop %v3678
  %v3693 = vmul.f32 1.0, %v3692
  %v3694 = vrcp.pop %v3681
  %v3695 = vmul.f32 1.0, %v3694
  %v3696 = vrcp.pop %v3685
  %v3697 = vmul.f32 1.0, %v3696
  %v3698 = vpack.c.bf16 %v3649, %v3648
  %v3699 = vpack.c.bf16 %v3651, %v3650
  %v3700 = vpack.c.bf16 %v3653, %v3652
  %s3701 = scalar_lea.vmem %s11, 72
  %v3702 = vld [vmem:[%s3701] sm:$0xf]
  %v3703 = vld [vmem:[%s3701 + $0x4] sm:$0xf]
  %v3704 = vld [vmem:[%s3701 + $0x8] sm:$0xf]
  %v3705 = vld [vmem:[%s3701 + $0xc] sm:$0xf]
  %v3706 = vld [vmem:[%s3701 + $0x10] sm:$0xf]
  %v3707 = vld [vmem:[%s3701 + $0x14] sm:$0xf]
  %v3708 = vld [vmem:[%s3701 + $0x18] sm:$0xf]
  %v3709 = vld [vmem:[%s3701 + $0x1c] sm:$0xf]
  %v3710 = vld [vmem:[%s3701 + $0x20] sm:$0xf]
  %s3711 = scalar_lea.vmem %s12, 16
  %v3712 = vld [vmem:[%s3711] sm:$0x1f]
  %v3719 = vunpack.c.l.b16 %v3654
  %v3720 = vunpack.c.l.b16 %v3655
  %v3721 = vunpack.c.l.b16 %v3656
  %v3722 = vunpack.c.l.b16 %v3657
  %v3723 = vunpack.c.l.b16 %v3658
  %v3724 = vunpack.c.l.b16 %v3659
  %v3725 = vpack.c.b16 %v3720, %v3719
  %v3726 = vpack.c.b16 %v3722, %v3721
  %v3727 = vpack.c.b16 %v3724, %v3723
  %v3729 = vsel %vm3666, %v3725, 0
  %v3732 = vsel %vm3666, %v3726, 0
  %v3735 = vsel %vm3666, %v3727, 0
  %vm3737 = vcmask 1045504
  %v3739 = vsel %vm3737, %v3700, 0
  %3741 = vmatprep.subr.bf16.mxu0 0
  %3742 = vmatpush1.bf16.msra.mxu0 %v3698
  %3743 = vmatprep.subr.bf16.mxu0 0
  %3744 = vmatpush1.bf16.msra.mxu0 %v3699
  %3745 = vmatprep.subr.bf16.mxu0 0
  %3746 = vmatpush1.bf16.msra.mxu0 %v3739
  %3747 = vmatprep.subr.bf16.mxu0 0
  %3748 = vmatpush1.bf16.msra.mxu0 0
  %3749 = vmatprep.subr.bf16.mxu0 0
  %3750 = vmatpush1.bf16.msra.mxu0 0
  %3751 = vmatprep.subr.bf16.mxu0 0
  %3752 = vmatpush1.bf16.msra.mxu0 0
  %3753 = vmatprep.subr.bf16.mxu0 0
  %3754 = vmatpush1.bf16.msra.mxu0 0
  %3755 = vmatprep.subr.bf16.mxu0 0
  %3756 = vmatpush1.bf16.msra.mxu0 0
  %3757 = vmatprep.subr.bf16.mxu0 0
  %3758 = vmatpush1.bf16.msra.mxu0 0
  %3759 = vmatprep.subr.bf16.mxu0 0
  %3760 = vmatpush1.bf16.msra.mxu0 0
  %3761 = vmatprep.subr.bf16.mxu0 0
  %3762 = vmatpush1.bf16.msra.mxu0 0
  %3763 = vmatprep.subr.bf16.mxu0 0
  %3764 = vmatpush1.bf16.msra.mxu0 0
  %3765 = vmatprep.subr.bf16.mxu0 0
  %3766 = vmatpush1.bf16.msra.mxu0 0
  %3767 = vmatprep.subr.bf16.mxu0 0
  %3768 = vmatpush1.bf16.msra.mxu0 0
  %3769 = vmatprep.subr.bf16.mxu0 0
  %3770 = vmatpush1.bf16.msra.mxu0 0
  %3771 = vmatprep.subr.bf16.mxu0 0
  %3772 = vmatpush1.bf16.msra.mxu0 0
  %3773 = vmatprep.mubr.bf16.mxu0 0
  %3774 = vmatmul.mubr.bf16.gmra.mrb[0].mxu0 %v3729
  %v3775 = vpop.f32.mrb[0].mxu0
  %v3776 = vadd.f32 %v3648, %v3775
  %v3777 = vpop.f32.mrb[0].mxu0
  %v3778 = vpop.f32.mrb[0].mxu0
  %v3779 = vadd.f32 %v3649, %v3778
  %v3780 = vpop.f32.mrb[0].mxu0
  %3781 = vmatprep.mubr.bf16.mxu0 0
  %3782 = vmatmul.mubr.bf16.gmra.mrb[0].mxu0 %v3732
  %v3783 = vpop.f32.mrb[0].mxu0
  %v3784 = vadd.f32 %v3650, %v3783
  %v3785 = vpop.f32.mrb[0].mxu0
  %v3786 = vpop.f32.mrb[0].mxu0
  %v3787 = vadd.f32 %v3651, %v3786
  %v3788 = vpop.f32.mrb[0].mxu0
  %3789 = vmatprep.mubr.bf16.mxu0 0
  %3790 = vmatmul.mubr.bf16.gmra.mrb[0].mxu0 %v3735
  %v3791 = vpop.f32.mrb[0].mxu0
  %v3792 = vadd.f32 %v3652, %v3791
  %v3793 = vpop.f32.mrb[0].mxu0
  %v3794 = vpop.f32.mrb[0].mxu0
  %v3795 = vadd.f32 %v3653, %v3794
  %v3796 = vpop.f32.mrb[0].mxu0
  %3797 = vdwg.mxu0
  %v3798 = vpack.c.bf16 %v3779, %v3776
  %v3799 = vpack.c.bf16 %v3787, %v3784
  %v3800 = vpack.c.bf16 %v3795, %v3792
  %v3801 = vmul.f32 %v3712, 2.0
  %v3802 = vlaneseq
  %v3803 = vshrl.u32 %v3802, 7
  %v3804 = vsub.s32 0, %v3803
  %v3805 = vrot.slane %v3801, %v3804
  %v3811 = vunpack.c.l.b16 %v3702
  %v3812 = vunpack.c.l.b16 %v3703
  %v3813 = vunpack.c.l.b16 %v3704
  %v3814 = vunpack.c.l.b16 %v3705
  %v3815 = vunpack.c.l.b16 %v3706
  %v3816 = vpack.c.b16 %v3812, %v3811
  %v3817 = vpack.c.b16 %v3814, %v3813
  %v3818 = vpack.c.b16 %v3815, %v3815
  %v3822 = vsel %vm84, %v3798, 0
  %v3825 = vsel %vm84, %v3799, 0
  %v3828 = vsel %vm84, %v3800, 0
  %v3831 = vsel %vm145, %v3818, 0
  %3833 = vmatprep.subr.bf16.mxu0 0
  %3834 = vmatpush1.bf16.msra.mxu0 %v3816
  %3835 = vmatprep.subr.bf16.mxu0 0
  %3836 = vmatpush1.bf16.msra.mxu0 %v3817
  %3837 = vmatprep.subr.bf16.mxu0 0
  %3838 = vmatpush1.bf16.msra.mxu0 %v3831
  %3839 = vmatprep.subr.bf16.mxu0 0
  %3840 = vmatpush1.bf16.msra.mxu0 0
  %3841 = vmatprep.subr.bf16.mxu0 0
  %3842 = vmatpush1.bf16.msra.mxu0 0
  %3843 = vmatprep.subr.bf16.mxu0 0
  %3844 = vmatpush1.bf16.msra.mxu0 0
  %3845 = vmatprep.subr.bf16.mxu0 0
  %3846 = vmatpush1.bf16.msra.mxu0 0
  %3847 = vmatprep.subr.bf16.mxu0 0
  %3848 = vmatpush1.bf16.msra.mxu0 0
  %3849 = vmatprep.subr.bf16.mxu0 0
  %3850 = vmatpush1.bf16.msra.mxu0 0
  %3851 = vmatprep.subr.bf16.mxu0 0
  %3852 = vmatpush1.bf16.msra.mxu0 0
  %3853 = vmatprep.subr.bf16.mxu0 0
  %3854 = vmatpush1.bf16.msra.mxu0 0
  %3855 = vmatprep.subr.bf16.mxu0 0
  %3856 = vmatpush1.bf16.msra.mxu0 0
  %3857 = vmatprep.subr.bf16.mxu0 0
  %3858 = vmatpush1.bf16.msra.mxu0 0
  %3859 = vmatprep.subr.bf16.mxu0 0
  %3860 = vmatpush1.bf16.msra.mxu0 0
  %3861 = vmatprep.subr.bf16.mxu0 0
  %3862 = vmatpush1.bf16.msra.mxu0 0
  %3863 = vmatprep.subr.bf16.mxu0 0
  %3864 = vmatpush1.bf16.msra.mxu0 0
  %3865 = vmatprep.mubr.bf16.mxu0 0
  %3866 = vmatmul.mubr.bf16.gmra.mrb[0].mxu0 %v3822
  %v3867 = vpop.f32.mrb[0].mxu0
  %v3868 = vadd.f32 %v3805, %v3867
  %v3869 = vpop.f32.mrb[0].mxu0
  %v3870 = vpop.f32.mrb[0].mxu0
  %v3871 = vadd.f32 %v3805, %v3870
  %v3872 = vpop.f32.mrb[0].mxu0
  %3873 = vmatprep.mubr.bf16.mxu0 0
  %3874 = vmatmul.mubr.bf16.gmra.mrb[0].mxu0 %v3825
  %v3875 = vpop.f32.mrb[0].mxu0
  %v3876 = vadd.f32 %v3805, %v3875
  %v3877 = vpop.f32.mrb[0].mxu0
  %v3878 = vpop.f32.mrb[0].mxu0
  %v3879 = vadd.f32 %v3805, %v3878
  %v3880 = vpop.f32.mrb[0].mxu0
  %3881 = vmatprep.mubr.bf16.mxu0 0
  %3882 = vmatmul.mubr.bf16.gmra.mrb[0].mxu0 %v3828
  %v3883 = vpop.f32.mrb[0].mxu0
  %v3884 = vadd.f32 %v3805, %v3883
  %v3885 = vpop.f32.mrb[0].mxu0
  %v3886 = vpop.f32.mrb[0].mxu0
  %v3887 = vadd.f32 %v3805, %v3886
  %v3888 = vpop.f32.mrb[0].mxu0
  %3889 = vdwg.mxu0
  %v3890 = vmul.f32 %v3868, %v3687
  %v3891 = vmul.f32 %v3871, %v3689
  %v3892 = vmul.f32 %v3876, %v3691
  %v3893 = vmul.f32 %v3879, %v3693
  %v3894 = vmul.f32 %v3884, %v3695
  %v3895 = vmul.f32 %v3887, %v3697
  %v3896 = vmax.f32 %v3890, 0.0
  %v3897 = vmax.f32 %v3891, 0.0
  %v3898 = vmax.f32 %v3892, 0.0
  %v3899 = vmax.f32 %v3893, 0.0
  %v3900 = vmax.f32 %v3894, 0.0
  %v3901 = vmax.f32 %v3895, 0.0
  %v3902 = vpack.c.bf16 %v3897, %v3896
  %v3903 = vpack.c.bf16 %v3899, %v3898
  %v3904 = vpack.c.bf16 %v3901, %v3900
  %v3906 = vsel %vm3737, %v3904, 0
  %3908 = vmatprep.subr.bf16.mxu0 0
  %3909 = vmatpush1.bf16.msra.mxu0 %v3902
  %3910 = vmatprep.subr.bf16.mxu0 0
  %3911 = vmatpush1.bf16.msra.mxu0 %v3903
  %3912 = vmatprep.subr.bf16.mxu0 0
  %3913 = vmatpush1.bf16.msra.mxu0 %v3906
  %3914 = vmatprep.subr.bf16.mxu0 0
  %3915 = vmatpush1.bf16.msra.mxu0 0
  %3916 = vmatprep.subr.bf16.mxu0 0
  %3917 = vmatpush1.bf16.msra.mxu0 0
  %3918 = vmatprep.subr.bf16.mxu0 0
  %3919 = vmatpush1.bf16.msra.mxu0 0
  %3920 = vmatprep.subr.bf16.mxu0 0
  %3921 = vmatpush1.bf16.msra.mxu0 0
  %3922 = vmatprep.subr.bf16.mxu0 0
  %3923 = vmatpush1.bf16.msra.mxu0 0
  %3924 = vmatprep.subr.bf16.mxu0 0
  %3925 = vmatpush1.bf16.msra.mxu0 0
  %3926 = vmatprep.subr.bf16.mxu0 0
  %3927 = vmatpush1.bf16.msra.mxu0 0
  %3928 = vmatprep.subr.bf16.mxu0 0
  %3929 = vmatpush1.bf16.msra.mxu0 0
  %3930 = vmatprep.subr.bf16.mxu0 0
  %3931 = vmatpush1.bf16.msra.mxu0 0
  %3932 = vmatprep.subr.bf16.mxu0 0
  %3933 = vmatpush1.bf16.msra.mxu0 0
  %3934 = vmatprep.subr.bf16.mxu0 0
  %3935 = vmatpush1.bf16.msra.mxu0 0
  %3936 = vmatprep.subr.bf16.mxu0 0
  %3937 = vmatpush1.bf16.msra.mxu0 0
  %3938 = vmatprep.subr.bf16.mxu0 0
  %3939 = vmatpush1.bf16.msra.mxu0 0
  %3940 = vmatprep.mubr.bf16.mxu0 0
  %3941 = vmatmul.mubr.bf16.gmra.mrb[0].mxu0 %v3729
  %v3942 = vpop.f32.mrb[0].mxu0
  %v3943 = vadd.f32 %v3896, %v3942
  %v3944 = vpop.f32.mrb[0].mxu0
  %v3945 = vpop.f32.mrb[0].mxu0
  %v3946 = vadd.f32 %v3897, %v3945
  %v3947 = vpop.f32.mrb[0].mxu0
  %3948 = vmatprep.mubr.bf16.mxu0 0
  %3949 = vmatmul.mubr.bf16.gmra.mrb[0].mxu0 %v3732
  %v3950 = vpop.f32.mrb[0].mxu0
  %v3951 = vadd.f32 %v3898, %v3950
  %v3952 = vpop.f32.mrb[0].mxu0
  %v3953 = vpop.f32.mrb[0].mxu0
  %v3954 = vadd.f32 %v3899, %v3953
  %v3955 = vpop.f32.mrb[0].mxu0
  %3956 = vmatprep.mubr.bf16.mxu0 0
  %3957 = vmatmul.mubr.bf16.gmra.mrb[0].mxu0 %v3735
  %v3958 = vpop.f32.mrb[0].mxu0
  %v3959 = vadd.f32 %v3900, %v3958
  %v3960 = vpop.f32.mrb[0].mxu0
  %v3961 = vpop.f32.mrb[0].mxu0
  %v3962 = vadd.f32 %v3901, %v3961
  %v3963 = vpop.f32.mrb[0].mxu0
  %3964 = vdwg.mxu0
  %v3965 = vpack.c.bf16 %v3946, %v3943
  %v3966 = vpack.c.bf16 %v3954, %v3951
  %v3967 = vpack.c.bf16 %v3962, %v3959
  %3971 = vrot.lane.b32.xlu0 %v3965, 40
  %v3972 = vpop.permute.xlu0 %3971
  %3973 = vrot.lane.b32.xlu0 %v3966, 40
  %v3974 = vpop.permute.xlu0 %3973
  %3975 = vrot.lane.b32.xlu0 %v3967, 40
  %v3976 = vpop.permute.xlu0 %3975
  %v3978 = vsel %vm84, %v3798, %v3972
  %v3980 = vsel %vm84, %v3799, %v3974
  %v3982 = vsel %vm84, %v3800, %v3976
  %v3983 = vlaneseq
  %v3984 = vshrl.u32 %v3983, 7
  %v3985 = vsub.s32 1, %v3984
  %v3986 = vrot.slane %v3801, %v3985
  %v3988 = vunpack.c.l.b16 %v3707
  %v3989 = vpack.c.b16 %v3988, %v3815
  %3990 = vrot.lane.b32.xlu0 %v3816, 120
  %v3991 = vpop.permute.xlu0 %3990
  %3992 = vrot.lane.b32.xlu0 %v3817, 120
  %v3993 = vpop.permute.xlu0 %3992
  %3994 = vrot.lane.b32.xlu0 %v3989, 120
  %v3995 = vpop.permute.xlu0 %3994
  %v3999 = vsel %vm402, %v3978, 0
  %v4001 = vsel %vm402, %v3980, 0
  %v4003 = vsel %vm402, %v3982, 0
  %4005 = vmatprep.subr.bf16.mxu0 0
  %4006 = vmatpush1.bf16.msra.mxu0 %v3991
  %4007 = vmatprep.subr.bf16.mxu0 0
  %4008 = vmatpush1.bf16.msra.mxu0 %v3993
  %4009 = vmatprep.subr.bf16.mxu0 0
  %4010 = vmatpush1.bf16.msra.mxu0 %v3995
  %4011 = vmatprep.subr.bf16.mxu0 0
  %4012 = vmatpush1.bf16.msra.mxu0 0
  %4013 = vmatprep.subr.bf16.mxu0 0
  %4014 = vmatpush1.bf16.msra.mxu0 0
  %4015 = vmatprep.subr.bf16.mxu0 0
  %4016 = vmatpush1.bf16.msra.mxu0 0
  %4017 = vmatprep.subr.bf16.mxu0 0
  %4018 = vmatpush1.bf16.msra.mxu0 0
  %4019 = vmatprep.subr.bf16.mxu0 0
  %4020 = vmatpush1.bf16.msra.mxu0 0
  %4021 = vmatprep.subr.bf16.mxu0 0
  %4022 = vmatpush1.bf16.msra.mxu0 0
  %4023 = vmatprep.subr.bf16.mxu0 0
  %4024 = vmatpush1.bf16.msra.mxu0 0
  %4025 = vmatprep.subr.bf16.mxu0 0
  %4026 = vmatpush1.bf16.msra.mxu0 0
  %4027 = vmatprep.subr.bf16.mxu0 0
  %4028 = vmatpush1.bf16.msra.mxu0 0
  %4029 = vmatprep.subr.bf16.mxu0 0
  %4030 = vmatpush1.bf16.msra.mxu0 0
  %4031 = vmatprep.subr.bf16.mxu0 0
  %4032 = vmatpush1.bf16.msra.mxu0 0
  %4033 = vmatprep.subr.bf16.mxu0 0
  %4034 = vmatpush1.bf16.msra.mxu0 0
  %4035 = vmatprep.subr.bf16.mxu0 0
  %4036 = vmatpush1.bf16.msra.mxu0 0
  %4037 = vmatprep.mubr.bf16.mxu0 0
  %4038 = vmatmul.mubr.bf16.gmra.mrb[0].mxu0 %v3999
  %v4039 = vpop.f32.mrb[0].mxu0
  %v4040 = vadd.f32 %v3986, %v4039
  %v4041 = vpop.f32.mrb[0].mxu0
  %v4042 = vpop.f32.mrb[0].mxu0
  %v4043 = vadd.f32 %v3986, %v4042
  %v4044 = vpop.f32.mrb[0].mxu0
  %4045 = vmatprep.mubr.bf16.mxu0 0
  %4046 = vmatmul.mubr.bf16.gmra.mrb[0].mxu0 %v4001
  %v4047 = vpop.f32.mrb[0].mxu0
  %v4048 = vadd.f32 %v3986, %v4047
  %v4049 = vpop.f32.mrb[0].mxu0
  %v4050 = vpop.f32.mrb[0].mxu0
  %v4051 = vadd.f32 %v3986, %v4050
  %v4052 = vpop.f32.mrb[0].mxu0
  %4053 = vmatprep.mubr.bf16.mxu0 0
  %4054 = vmatmul.mubr.bf16.gmra.mrb[0].mxu0 %v4003
  %v4055 = vpop.f32.mrb[0].mxu0
  %v4056 = vadd.f32 %v3986, %v4055
  %v4057 = vpop.f32.mrb[0].mxu0
  %v4058 = vpop.f32.mrb[0].mxu0
  %v4059 = vadd.f32 %v3986, %v4058
  %v4060 = vpop.f32.mrb[0].mxu0
  %4061 = vdwg.mxu0
  %v4062 = vmul.f32 %v4040, %v3687
  %v4063 = vmul.f32 %v4043, %v3689
  %v4064 = vmul.f32 %v4048, %v3691
  %v4065 = vmul.f32 %v4051, %v3693
  %v4066 = vmul.f32 %v4056, %v3695
  %v4067 = vmul.f32 %v4059, %v3697
  %v4068 = vmax.f32 %v4062, 0.0
  %v4069 = vmax.f32 %v4063, 0.0
  %v4070 = vmax.f32 %v4064, 0.0
  %v4071 = vmax.f32 %v4065, 0.0
  %v4072 = vmax.f32 %v4066, 0.0
  %v4073 = vmax.f32 %v4067, 0.0
  %v4074 = vpack.c.bf16 %v4069, %v4068
  %v4075 = vpack.c.bf16 %v4071, %v4070
  %v4076 = vpack.c.bf16 %v4073, %v4072
  %v4078 = vsel %vm3737, %v4076, 0
  %4080 = vmatprep.subr.bf16.mxu0 0
  %4081 = vmatpush1.bf16.msra.mxu0 %v4074
  %4082 = vmatprep.subr.bf16.mxu0 0
  %4083 = vmatpush1.bf16.msra.mxu0 %v4075
  %4084 = vmatprep.subr.bf16.mxu0 0
  %4085 = vmatpush1.bf16.msra.mxu0 %v4078
  %4086 = vmatprep.subr.bf16.mxu0 0
  %4087 = vmatpush1.bf16.msra.mxu0 0
  %4088 = vmatprep.subr.bf16.mxu0 0
  %4089 = vmatpush1.bf16.msra.mxu0 0
  %4090 = vmatprep.subr.bf16.mxu0 0
  %4091 = vmatpush1.bf16.msra.mxu0 0
  %4092 = vmatprep.subr.bf16.mxu0 0
  %4093 = vmatpush1.bf16.msra.mxu0 0
  %4094 = vmatprep.subr.bf16.mxu0 0
  %4095 = vmatpush1.bf16.msra.mxu0 0
  %4096 = vmatprep.subr.bf16.mxu0 0
  %4097 = vmatpush1.bf16.msra.mxu0 0
  %4098 = vmatprep.subr.bf16.mxu0 0
  %4099 = vmatpush1.bf16.msra.mxu0 0
  %4100 = vmatprep.subr.bf16.mxu0 0
  %4101 = vmatpush1.bf16.msra.mxu0 0
  %4102 = vmatprep.subr.bf16.mxu0 0
  %4103 = vmatpush1.bf16.msra.mxu0 0
  %4104 = vmatprep.subr.bf16.mxu0 0
  %4105 = vmatpush1.bf16.msra.mxu0 0
  %4106 = vmatprep.subr.bf16.mxu0 0
  %4107 = vmatpush1.bf16.msra.mxu0 0
  %4108 = vmatprep.subr.bf16.mxu0 0
  %4109 = vmatpush1.bf16.msra.mxu0 0
  %4110 = vmatprep.subr.bf16.mxu0 0
  %4111 = vmatpush1.bf16.msra.mxu0 0
  %4112 = vmatprep.mubr.bf16.mxu0 0
  %4113 = vmatmul.mubr.bf16.gmra.mrb[0].mxu0 %v3729
  %v4114 = vpop.f32.mrb[0].mxu0
  %v4115 = vadd.f32 %v4068, %v4114
  %v4116 = vpop.f32.mrb[0].mxu0
  %v4117 = vpop.f32.mrb[0].mxu0
  %v4118 = vadd.f32 %v4069, %v4117
  %v4119 = vpop.f32.mrb[0].mxu0
  %4120 = vmatprep.mubr.bf16.mxu0 0
  %4121 = vmatmul.mubr.bf16.gmra.mrb[0].mxu0 %v3732
  %v4122 = vpop.f32.mrb[0].mxu0
  %v4123 = vadd.f32 %v4070, %v4122
  %v4124 = vpop.f32.mrb[0].mxu0
  %v4125 = vpop.f32.mrb[0].mxu0
  %v4126 = vadd.f32 %v4071, %v4125
  %v4127 = vpop.f32.mrb[0].mxu0
  %4128 = vmatprep.mubr.bf16.mxu0 0
  %4129 = vmatmul.mubr.bf16.gmra.mrb[0].mxu0 %v3735
  %v4130 = vpop.f32.mrb[0].mxu0
  %v4131 = vadd.f32 %v4072, %v4130
  %v4132 = vpop.f32.mrb[0].mxu0
  %v4133 = vpop.f32.mrb[0].mxu0
  %v4134 = vadd.f32 %v4073, %v4133
  %v4135 = vpop.f32.mrb[0].mxu0
  %4136 = vdwg.mxu0
  %v4137 = vpack.c.bf16 %v4118, %v4115
  %v4138 = vpack.c.bf16 %v4126, %v4123
  %v4139 = vpack.c.bf16 %v4134, %v4131
  %4143 = vrot.lane.b32.xlu0 %v4137, 48
  %v4144 = vpop.permute.xlu0 %4143
  %4145 = vrot.lane.b32.xlu0 %v4138, 48
  %v4146 = vpop.permute.xlu0 %4145
  %4147 = vrot.lane.b32.xlu0 %v4139, 48
  %v4148 = vpop.permute.xlu0 %4147
  %v4150 = vsel %vm402, %v3978, %v4144
  %v4152 = vsel %vm402, %v3980, %v4146
  %v4154 = vsel %vm402, %v3982, %v4148
  %v4155 = vlaneseq
  %v4156 = vshrl.u32 %v4155, 7
  %v4157 = vsub.s32 2, %v4156
  %v4158 = vrot.slane %v3801, %v4157
  %v4160 = vunpack.c.l.b16 %v3708
  %v4161 = vpack.c.b16 %v4160, %v4160
  %4162 = vrot.lane.b32.xlu0 %v3816, 112
  %v4163 = vpop.permute.xlu0 %4162
  %4164 = vrot.lane.b32.xlu0 %v3817, 112
  %v4165 = vpop.permute.xlu0 %4164
  %4166 = vrot.lane.b32.xlu0 %v3989, 112
  %v4167 = vpop.permute.xlu0 %4166
  %4168 = vrot.lane.b32.xlu0 %v4161, 112
  %v4169 = vpop.permute.xlu0 %4168
  %v4173 = vsel %vm573, %v4150, 0
  %v4175 = vsel %vm573, %v4152, 0
  %v4177 = vsel %vm573, %v4154, 0
  %v4180 = vsel %vm145, %v4169, 0
  %4182 = vmatprep.subr.bf16.mxu0 0
  %4183 = vmatpush1.bf16.msra.mxu0 %v4163
  %4184 = vmatprep.subr.bf16.mxu0 0
  %4185 = vmatpush1.bf16.msra.mxu0 %v4165
  %4186 = vmatprep.subr.bf16.mxu0 0
  %4187 = vmatpush1.bf16.msra.mxu0 %v4167
  %4188 = vmatprep.subr.bf16.mxu0 0
  %4189 = vmatpush1.bf16.msra.mxu0 %v4180
  %4190 = vmatprep.subr.bf16.mxu0 0
  %4191 = vmatpush1.bf16.msra.mxu0 0
  %4192 = vmatprep.subr.bf16.mxu0 0
  %4193 = vmatpush1.bf16.msra.mxu0 0
  %4194 = vmatprep.subr.bf16.mxu0 0
  %4195 = vmatpush1.bf16.msra.mxu0 0
  %4196 = vmatprep.subr.bf16.mxu0 0
  %4197 = vmatpush1.bf16.msra.mxu0 0
  %4198 = vmatprep.subr.bf16.mxu0 0
  %4199 = vmatpush1.bf16.msra.mxu0 0
  %4200 = vmatprep.subr.bf16.mxu0 0
  %4201 = vmatpush1.bf16.msra.mxu0 0
  %4202 = vmatprep.subr.bf16.mxu0 0
  %4203 = vmatpush1.bf16.msra.mxu0 0
  %4204 = vmatprep.subr.bf16.mxu0 0
  %4205 = vmatpush1.bf16.msra.mxu0 0
  %4206 = vmatprep.subr.bf16.mxu0 0
  %4207 = vmatpush1.bf16.msra.mxu0 0
  %4208 = vmatprep.subr.bf16.mxu0 0
  %4209 = vmatpush1.bf16.msra.mxu0 0
  %4210 = vmatprep.subr.bf16.mxu0 0
  %4211 = vmatpush1.bf16.msra.mxu0 0
  %4212 = vmatprep.subr.bf16.mxu0 0
  %4213 = vmatpush1.bf16.msra.mxu0 0
  %4214 = vmatprep.mubr.bf16.mxu0 0
  %4215 = vmatmul.mubr.bf16.gmra.mrb[0].mxu0 %v4173
  %v4216 = vpop.f32.mrb[0].mxu0
  %v4217 = vadd.f32 %v4158, %v4216
  %v4218 = vpop.f32.mrb[0].mxu0
  %v4219 = vpop.f32.mrb[0].mxu0
  %v4220 = vadd.f32 %v4158, %v4219
  %v4221 = vpop.f32.mrb[0].mxu0
  %4222 = vmatprep.mubr.bf16.mxu0 0
  %4223 = vmatmul.mubr.bf16.gmra.mrb[0].mxu0 %v4175
  %v4224 = vpop.f32.mrb[0].mxu0
  %v4225 = vadd.f32 %v4158, %v4224
  %v4226 = vpop.f32.mrb[0].mxu0
  %v4227 = vpop.f32.mrb[0].mxu0
  %v4228 = vadd.f32 %v4158, %v4227
  %v4229 = vpop.f32.mrb[0].mxu0
  %4230 = vmatprep.mubr.bf16.mxu0 0
  %4231 = vmatmul.mubr.bf16.gmra.mrb[0].mxu0 %v4177
  %v4232 = vpop.f32.mrb[0].mxu0
  %v4233 = vadd.f32 %v4158, %v4232
  %v4234 = vpop.f32.mrb[0].mxu0
  %v4235 = vpop.f32.mrb[0].mxu0
  %v4236 = vadd.f32 %v4158, %v4235
  %v4237 = vpop.f32.mrb[0].mxu0
  %4238 = vdwg.mxu0
  %v4239 = vmul.f32 %v4217, %v3687
  %v4240 = vmul.f32 %v4220, %v3689
  %v4241 = vmul.f32 %v4225, %v3691
  %v4242 = vmul.f32 %v4228, %v3693
  %v4243 = vmul.f32 %v4233, %v3695
  %v4244 = vmul.f32 %v4236, %v3697
  %v4245 = vmax.f32 %v4239, 0.0
  %v4246 = vmax.f32 %v4240, 0.0
  %v4247 = vmax.f32 %v4241, 0.0
  %v4248 = vmax.f32 %v4242, 0.0
  %v4249 = vmax.f32 %v4243, 0.0
  %v4250 = vmax.f32 %v4244, 0.0
  %v4251 = vpack.c.bf16 %v4246, %v4245
  %v4252 = vpack.c.bf16 %v4248, %v4247
  %v4253 = vpack.c.bf16 %v4250, %v4249
  %v4255 = vsel %vm3737, %v4253, 0
  %4257 = vmatprep.subr.bf16.mxu0 0
  %4258 = vmatpush1.bf16.msra.mxu0 %v4251
  %4259 = vmatprep.subr.bf16.mxu0 0
  %4260 = vmatpush1.bf16.msra.mxu0 %v4252
  %4261 = vmatprep.subr.bf16.mxu0 0
  %4262 = vmatpush1.bf16.msra.mxu0 %v4255
  %4263 = vmatprep.subr.bf16.mxu0 0
  %4264 = vmatpush1.bf16.msra.mxu0 0
  %4265 = vmatprep.subr.bf16.mxu0 0
  %4266 = vmatpush1.bf16.msra.mxu0 0
  %4267 = vmatprep.subr.bf16.mxu0 0
  %4268 = vmatpush1.bf16.msra.mxu0 0
  %4269 = vmatprep.subr.bf16.mxu0 0
  %4270 = vmatpush1.bf16.msra.mxu0 0
  %4271 = vmatprep.subr.bf16.mxu0 0
  %4272 = vmatpush1.bf16.msra.mxu0 0
  %4273 = vmatprep.subr.bf16.mxu0 0
  %4274 = vmatpush1.bf16.msra.mxu0 0
  %4275 = vmatprep.subr.bf16.mxu0 0
  %4276 = vmatpush1.bf16.msra.mxu0 0
  %4277 = vmatprep.subr.bf16.mxu0 0
  %4278 = vmatpush1.bf16.msra.mxu0 0
  %4279 = vmatprep.subr.bf16.mxu0 0
  %4280 = vmatpush1.bf16.msra.mxu0 0
  %4281 = vmatprep.subr.bf16.mxu0 0
  %4282 = vmatpush1.bf16.msra.mxu0 0
  %4283 = vmatprep.subr.bf16.mxu0 0
  %4284 = vmatpush1.bf16.msra.mxu0 0
  %4285 = vmatprep.subr.bf16.mxu0 0
  %4286 = vmatpush1.bf16.msra.mxu0 0
  %4287 = vmatprep.subr.bf16.mxu0 0
  %4288 = vmatpush1.bf16.msra.mxu0 0
  %4289 = vmatprep.mubr.bf16.mxu0 0
  %4290 = vmatmul.mubr.bf16.gmra.mrb[0].mxu0 %v3729
  %v4291 = vpop.f32.mrb[0].mxu0
  %v4292 = vadd.f32 %v4245, %v4291
  %v4293 = vpop.f32.mrb[0].mxu0
  %v4294 = vpop.f32.mrb[0].mxu0
  %v4295 = vadd.f32 %v4246, %v4294
  %v4296 = vpop.f32.mrb[0].mxu0
  %4297 = vmatprep.mubr.bf16.mxu0 0
  %4298 = vmatmul.mubr.bf16.gmra.mrb[0].mxu0 %v3732
  %v4299 = vpop.f32.mrb[0].mxu0
  %v4300 = vadd.f32 %v4247, %v4299
  %v4301 = vpop.f32.mrb[0].mxu0
  %v4302 = vpop.f32.mrb[0].mxu0
  %v4303 = vadd.f32 %v4248, %v4302
  %v4304 = vpop.f32.mrb[0].mxu0
  %4305 = vmatprep.mubr.bf16.mxu0 0
  %4306 = vmatmul.mubr.bf16.gmra.mrb[0].mxu0 %v3735
  %v4307 = vpop.f32.mrb[0].mxu0
  %v4308 = vadd.f32 %v4249, %v4307
  %v4309 = vpop.f32.mrb[0].mxu0
  %v4310 = vpop.f32.mrb[0].mxu0
  %v4311 = vadd.f32 %v4250, %v4310
  %v4312 = vpop.f32.mrb[0].mxu0
  %4313 = vdwg.mxu0
  %v4314 = vpack.c.bf16 %v4295, %v4292
  %v4315 = vpack.c.bf16 %v4303, %v4300
  %v4316 = vpack.c.bf16 %v4311, %v4308
  %4320 = vrot.lane.b32.xlu0 %v4314, 56
  %v4321 = vpop.permute.xlu0 %4320
  %4322 = vrot.lane.b32.xlu0 %v4315, 56
  %v4323 = vpop.permute.xlu0 %4322
  %4324 = vrot.lane.b32.xlu0 %v4316, 56
  %v4325 = vpop.permute.xlu0 %4324
  %v4327 = vsel %vm573, %v4150, %v4321
  %v4329 = vsel %vm573, %v4152, %v4323
  %v4331 = vsel %vm573, %v4154, %v4325
  %v4332 = vlaneseq
  %v4333 = vshrl.u32 %v4332, 7
  %v4334 = vsub.s32 3, %v4333
  %v4335 = vrot.slane %v3801, %v4334
  %v4337 = vunpack.c.l.b16 %v3709
  %v4338 = vpack.c.b16 %v4337, %v4160
  %4339 = vrot.lane.b32.xlu0 %v3816, 104
  %v4340 = vpop.permute.xlu0 %4339
  %4341 = vrot.lane.b32.xlu0 %v3817, 104
  %v4342 = vpop.permute.xlu0 %4341
  %4343 = vrot.lane.b32.xlu0 %v3989, 104
  %v4344 = vpop.permute.xlu0 %4343
  %4345 = vrot.lane.b32.xlu0 %v4338, 104
  %v4346 = vpop.permute.xlu0 %4345
  %v4351 = vsel %vm748, %v4327, 0
  %v4353 = vsel %vm748, %v4329, 0
  %v4355 = vsel %vm748, %v4331, 0
  %4357 = vmatprep.subr.bf16.mxu0 0
  %4358 = vmatpush1.bf16.msra.mxu0 %v4340
  %4359 = vmatprep.subr.bf16.mxu0 0
  %4360 = vmatpush1.bf16.msra.mxu0 %v4342
  %4361 = vmatprep.subr.bf16.mxu0 0
  %4362 = vmatpush1.bf16.msra.mxu0 %v4344
  %4363 = vmatprep.subr.bf16.mxu0 0
  %4364 = vmatpush1.bf16.msra.mxu0 %v4346
  %4365 = vmatprep.subr.bf16.mxu0 0
  %4366 = vmatpush1.bf16.msra.mxu0 0
  %4367 = vmatprep.subr.bf16.mxu0 0
  %4368 = vmatpush1.bf16.msra.mxu0 0
  %4369 = vmatprep.subr.bf16.mxu0 0
  %4370 = vmatpush1.bf16.msra.mxu0 0
  %4371 = vmatprep.subr.bf16.mxu0 0
  %4372 = vmatpush1.bf16.msra.mxu0 0
  %4373 = vmatprep.subr.bf16.mxu0 0
  %4374 = vmatpush1.bf16.msra.mxu0 0
  %4375 = vmatprep.subr.bf16.mxu0 0
  %4376 = vmatpush1.bf16.msra.mxu0 0
  %4377 = vmatprep.subr.bf16.mxu0 0
  %4378 = vmatpush1.bf16.msra.mxu0 0
  %4379 = vmatprep.subr.bf16.mxu0 0
  %4380 = vmatpush1.bf16.msra.mxu0 0
  %4381 = vmatprep.subr.bf16.mxu0 0
  %4382 = vmatpush1.bf16.msra.mxu0 0
  %4383 = vmatprep.subr.bf16.mxu0 0
  %4384 = vmatpush1.bf16.msra.mxu0 0
  %4385 = vmatprep.subr.bf16.mxu0 0
  %4386 = vmatpush1.bf16.msra.mxu0 0
  %4387 = vmatprep.subr.bf16.mxu0 0
  %4388 = vmatpush1.bf16.msra.mxu0 0
  %4389 = vmatprep.mubr.bf16.mxu0 0
  %4390 = vmatmul.mubr.bf16.gmra.mrb[0].mxu0 %v4351
  %v4391 = vpop.f32.mrb[0].mxu0
  %v4392 = vadd.f32 %v4335, %v4391
  %v4393 = vpop.f32.mrb[0].mxu0
  %v4394 = vpop.f32.mrb[0].mxu0
  %v4395 = vadd.f32 %v4335, %v4394
  %v4396 = vpop.f32.mrb[0].mxu0
  %4397 = vmatprep.mubr.bf16.mxu0 0
  %4398 = vmatmul.mubr.bf16.gmra.mrb[0].mxu0 %v4353
  %v4399 = vpop.f32.mrb[0].mxu0
  %v4400 = vadd.f32 %v4335, %v4399
  %v4401 = vpop.f32.mrb[0].mxu0
  %v4402 = vpop.f32.mrb[0].mxu0
  %v4403 = vadd.f32 %v4335, %v4402
  %v4404 = vpop.f32.mrb[0].mxu0
  %4405 = vmatprep.mubr.bf16.mxu0 0
  %4406 = vmatmul.mubr.bf16.gmra.mrb[0].mxu0 %v4355
  %v4407 = vpop.f32.mrb[0].mxu0
  %v4408 = vadd.f32 %v4335, %v4407
  %v4409 = vpop.f32.mrb[0].mxu0
  %v4410 = vpop.f32.mrb[0].mxu0
  %v4411 = vadd.f32 %v4335, %v4410
  %v4412 = vpop.f32.mrb[0].mxu0
  %4413 = vdwg.mxu0
  %v4414 = vmul.f32 %v4392, %v3687
  %v4415 = vmul.f32 %v4395, %v3689
  %v4416 = vmul.f32 %v4400, %v3691
  %v4417 = vmul.f32 %v4403, %v3693
  %v4418 = vmul.f32 %v4408, %v3695
  %v4419 = vmul.f32 %v4411, %v3697
  %v4420 = vmax.f32 %v4414, 0.0
  %v4421 = vmax.f32 %v4415, 0.0
  %v4422 = vmax.f32 %v4416, 0.0
  %v4423 = vmax.f32 %v4417, 0.0
  %v4424 = vmax.f32 %v4418, 0.0
  %v4425 = vmax.f32 %v4419, 0.0
  %v4426 = vpack.c.bf16 %v4421, %v4420
  %v4427 = vpack.c.bf16 %v4423, %v4422
  %v4428 = vpack.c.bf16 %v4425, %v4424
  %v4430 = vsel %vm3737, %v4428, 0
  %4432 = vmatprep.subr.bf16.mxu0 0
  %4433 = vmatpush1.bf16.msra.mxu0 %v4426
  %4434 = vmatprep.subr.bf16.mxu0 0
  %4435 = vmatpush1.bf16.msra.mxu0 %v4427
  %4436 = vmatprep.subr.bf16.mxu0 0
  %4437 = vmatpush1.bf16.msra.mxu0 %v4430
  %4438 = vmatprep.subr.bf16.mxu0 0
  %4439 = vmatpush1.bf16.msra.mxu0 0
  %4440 = vmatprep.subr.bf16.mxu0 0
  %4441 = vmatpush1.bf16.msra.mxu0 0
  %4442 = vmatprep.subr.bf16.mxu0 0
  %4443 = vmatpush1.bf16.msra.mxu0 0
  %4444 = vmatprep.subr.bf16.mxu0 0
  %4445 = vmatpush1.bf16.msra.mxu0 0
  %4446 = vmatprep.subr.bf16.mxu0 0
  %4447 = vmatpush1.bf16.msra.mxu0 0
  %4448 = vmatprep.subr.bf16.mxu0 0
  %4449 = vmatpush1.bf16.msra.mxu0 0
  %4450 = vmatprep.subr.bf16.mxu0 0
  %4451 = vmatpush1.bf16.msra.mxu0 0
  %4452 = vmatprep.subr.bf16.mxu0 0
  %4453 = vmatpush1.bf16.msra.mxu0 0
  %4454 = vmatprep.subr.bf16.mxu0 0
  %4455 = vmatpush1.bf16.msra.mxu0 0
  %4456 = vmatprep.subr.bf16.mxu0 0
  %4457 = vmatpush1.bf16.msra.mxu0 0
  %4458 = vmatprep.subr.bf16.mxu0 0
  %4459 = vmatpush1.bf16.msra.mxu0 0
  %4460 = vmatprep.subr.bf16.mxu0 0
  %4461 = vmatpush1.bf16.msra.mxu0 0
  %4462 = vmatprep.subr.bf16.mxu0 0
  %4463 = vmatpush1.bf16.msra.mxu0 0
  %4464 = vmatprep.mubr.bf16.mxu0 0
  %4465 = vmatmul.mubr.bf16.gmra.mrb[0].mxu0 %v3729
  %v4466 = vpop.f32.mrb[0].mxu0
  %v4467 = vadd.f32 %v4420, %v4466
  %v4468 = vpop.f32.mrb[0].mxu0
  %v4469 = vpop.f32.mrb[0].mxu0
  %v4470 = vadd.f32 %v4421, %v4469
  %v4471 = vpop.f32.mrb[0].mxu0
  %4472 = vmatprep.mubr.bf16.mxu0 0
  %4473 = vmatmul.mubr.bf16.gmra.mrb[0].mxu0 %v3732
  %v4474 = vpop.f32.mrb[0].mxu0
  %v4475 = vadd.f32 %v4422, %v4474
  %v4476 = vpop.f32.mrb[0].mxu0
  %v4477 = vpop.f32.mrb[0].mxu0
  %v4478 = vadd.f32 %v4423, %v4477
  %v4479 = vpop.f32.mrb[0].mxu0
  %4480 = vmatprep.mubr.bf16.mxu0 0
  %4481 = vmatmul.mubr.bf16.gmra.mrb[0].mxu0 %v3735
  %v4482 = vpop.f32.mrb[0].mxu0
  %v4483 = vadd.f32 %v4424, %v4482
  %v4484 = vpop.f32.mrb[0].mxu0
  %v4485 = vpop.f32.mrb[0].mxu0
  %v4486 = vadd.f32 %v4425, %v4485
  %v4487 = vpop.f32.mrb[0].mxu0
  %4488 = vdwg.mxu0
  %v4489 = vpack.c.bf16 %v4470, %v4467
  %v4490 = vpack.c.bf16 %v4478, %v4475
  %v4491 = vpack.c.bf16 %v4486, %v4483
  %4495 = vrot.lane.b32.xlu0 %v4489, 64
  %v4496 = vpop.permute.xlu0 %4495
  %4497 = vrot.lane.b32.xlu0 %v4490, 64
  %v4498 = vpop.permute.xlu0 %4497
  %4499 = vrot.lane.b32.xlu0 %v4491, 64
  %v4500 = vpop.permute.xlu0 %4499
  %v4502 = vsel %vm748, %v4327, %v4496
  %v4504 = vsel %vm748, %v4329, %v4498
  %v4506 = vsel %vm748, %v4331, %v4500
  %v4507 = vlaneseq
  %v4508 = vshrl.u32 %v4507, 7
  %v4509 = vsub.s32 4, %v4508
  %v4510 = vrot.slane %v3801, %v4509
  %v4512 = vunpack.c.l.b16 %v3710
  %v4513 = vpack.c.b16 %v4512, %v4512
  %4514 = vrot.lane.b32.xlu0 %v3816, 96
  %v4515 = vpop.permute.xlu0 %4514
  %4516 = vrot.lane.b32.xlu0 %v3817, 96
  %v4517 = vpop.permute.xlu0 %4516
  %4518 = vrot.lane.b32.xlu0 %v3989, 96
  %v4519 = vpop.permute.xlu0 %4518
  %4520 = vrot.lane.b32.xlu0 %v4338, 96
  %v4521 = vpop.permute.xlu0 %4520
  %4522 = vrot.lane.b32.xlu0 %v4513, 96
  %v4523 = vpop.permute.xlu0 %4522
  %v4528 = vsel %vm922, %v4502, 0
  %v4530 = vsel %vm922, %v4504, 0
  %v4532 = vsel %vm922, %v4506, 0
  %v4535 = vsel %vm145, %v4523, 0
  %4537 = vmatprep.subr.bf16.mxu0 0
  %4538 = vmatpush1.bf16.msra.mxu0 %v4515
  %4539 = vmatprep.subr.bf16.mxu0 0
  %4540 = vmatpush1.bf16.msra.mxu0 %v4517
  %4541 = vmatprep.subr.bf16.mxu0 0
  %4542 = vmatpush1.bf16.msra.mxu0 %v4519
  %4543 = vmatprep.subr.bf16.mxu0 0
  %4544 = vmatpush1.bf16.msra.mxu0 %v4521
  %4545 = vmatprep.subr.bf16.mxu0 0
  %4546 = vmatpush1.bf16.msra.mxu0 %v4535
  %4547 = vmatprep.subr.bf16.mxu0 0
  %4548 = vmatpush1.bf16.msra.mxu0 0
  %4549 = vmatprep.subr.bf16.mxu0 0
  %4550 = vmatpush1.bf16.msra.mxu0 0
  %4551 = vmatprep.subr.bf16.mxu0 0
  %4552 = vmatpush1.bf16.msra.mxu0 0
  %4553 = vmatprep.subr.bf16.mxu0 0
  %4554 = vmatpush1.bf16.msra.mxu0 0
  %4555 = vmatprep.subr.bf16.mxu0 0
  %4556 = vmatpush1.bf16.msra.mxu0 0
  %4557 = vmatprep.subr.bf16.mxu0 0
  %4558 = vmatpush1.bf16.msra.mxu0 0
  %4559 = vmatprep.subr.bf16.mxu0 0
  %4560 = vmatpush1.bf16.msra.mxu0 0
  %4561 = vmatprep.subr.bf16.mxu0 0
  %4562 = vmatpush1.bf16.msra.mxu0 0
  %4563 = vmatprep.subr.bf16.mxu0 0
  %4564 = vmatpush1.bf16.msra.mxu0 0
  %4565 = vmatprep.subr.bf16.mxu0 0
  %4566 = vmatpush1.bf16.msra.mxu0 0
  %4567 = vmatprep.subr.bf16.mxu0 0
  %4568 = vmatpush1.bf16.msra.mxu0 0
  %4569 = vmatprep.mubr.bf16.mxu0 0
  %4570 = vmatmul.mubr.bf16.gmra.mrb[0].mxu0 %v4528
  %v4571 = vpop.f32.mrb[0].mxu0
  %v4572 = vadd.f32 %v4510, %v4571
  %v4573 = vpop.f32.mrb[0].mxu0
  %v4574 = vpop.f32.mrb[0].mxu0
  %v4575 = vadd.f32 %v4510, %v4574
  %v4576 = vpop.f32.mrb[0].mxu0
  %4577 = vmatprep.mubr.bf16.mxu0 0
  %4578 = vmatmul.mubr.bf16.gmra.mrb[0].mxu0 %v4530
  %v4579 = vpop.f32.mrb[0].mxu0
  %v4580 = vadd.f32 %v4510, %v4579
  %v4581 = vpop.f32.mrb[0].mxu0
  %v4582 = vpop.f32.mrb[0].mxu0
  %v4583 = vadd.f32 %v4510, %v4582
  %v4584 = vpop.f32.mrb[0].mxu0
  %4585 = vmatprep.mubr.bf16.mxu0 0
  %4586 = vmatmul.mubr.bf16.gmra.mrb[0].mxu0 %v4532
  %v4587 = vpop.f32.mrb[0].mxu0
  %v4588 = vadd.f32 %v4510, %v4587
  %v4589 = vpop.f32.mrb[0].mxu0
  %v4590 = vpop.f32.mrb[0].mxu0
  %v4591 = vadd.f32 %v4510, %v4590
  %v4592 = vpop.f32.mrb[0].mxu0
  %4593 = vdwg.mxu0
  %v4594 = vmul.f32 %v4572, %v3687
  %v4595 = vmul.f32 %v4575, %v3689
  %v4596 = vmul.f32 %v4580, %v3691
  %v4597 = vmul.f32 %v4583, %v3693
  %v4598 = vmul.f32 %v4588, %v3695
  %v4599 = vmul.f32 %v4591, %v3697
  %v4600 = vmax.f32 %v4594, 0.0
  %v4601 = vmax.f32 %v4595, 0.0
  %v4602 = vmax.f32 %v4596, 0.0
  %v4603 = vmax.f32 %v4597, 0.0
  %v4604 = vmax.f32 %v4598, 0.0
  %v4605 = vmax.f32 %v4599, 0.0
  %4612 = vrot.lane.b32.xlu0 %v4068, 8
  %v4613 = vpop.permute.xlu0 %4612
  %4614 = vrot.lane.b32.xlu0 %v4069, 8
  %v4615 = vpop.permute.xlu0 %4614
  %4616 = vrot.lane.b32.xlu0 %v4070, 8
  %v4617 = vpop.permute.xlu0 %4616
  %4618 = vrot.lane.b32.xlu0 %v4071, 8
  %v4619 = vpop.permute.xlu0 %4618
  %4620 = vrot.lane.b32.xlu0 %v4072, 8
  %v4621 = vpop.permute.xlu0 %4620
  %4622 = vrot.lane.b32.xlu0 %v4073, 8
  %v4623 = vpop.permute.xlu0 %4622
  %4636 = vrot.lane.b32.xlu0 %v4245, 16
  %v4637 = vpop.permute.xlu0 %4636
  %4638 = vrot.lane.b32.xlu0 %v4246, 16
  %v4639 = vpop.permute.xlu0 %4638
  %4640 = vrot.lane.b32.xlu0 %v4247, 16
  %v4641 = vpop.permute.xlu0 %4640
  %4642 = vrot.lane.b32.xlu0 %v4248, 16
  %v4643 = vpop.permute.xlu0 %4642
  %4644 = vrot.lane.b32.xlu0 %v4249, 16
  %v4645 = vpop.permute.xlu0 %4644
  %4646 = vrot.lane.b32.xlu0 %v4250, 16
  %v4647 = vpop.permute.xlu0 %4646
  %4660 = vrot.lane.b32.xlu0 %v4420, 24
  %v4661 = vpop.permute.xlu0 %4660
  %4662 = vrot.lane.b32.xlu0 %v4421, 24
  %v4663 = vpop.permute.xlu0 %4662
  %4664 = vrot.lane.b32.xlu0 %v4422, 24
  %v4665 = vpop.permute.xlu0 %4664
  %4666 = vrot.lane.b32.xlu0 %v4423, 24
  %v4667 = vpop.permute.xlu0 %4666
  %4668 = vrot.lane.b32.xlu0 %v4424, 24
  %v4669 = vpop.permute.xlu0 %4668
  %4670 = vrot.lane.b32.xlu0 %v4425, 24
  %v4671 = vpop.permute.xlu0 %4670
  %4684 = vrot.lane.b32.xlu0 %v4600, 32
  %v4685 = vpop.permute.xlu0 %4684
  %4686 = vrot.lane.b32.xlu0 %v4601, 32
  %v4687 = vpop.permute.xlu0 %4686
  %4688 = vrot.lane.b32.xlu0 %v4602, 32
  %v4689 = vpop.permute.xlu0 %4688
  %4690 = vrot.lane.b32.xlu0 %v4603, 32
  %v4691 = vpop.permute.xlu0 %4690
  %4692 = vrot.lane.b32.xlu0 %v4604, 32
  %v4693 = vpop.permute.xlu0 %4692
  %4694 = vrot.lane.b32.xlu0 %v4605, 32
  %v4695 = vpop.permute.xlu0 %4694
  %v4702 = vsel %vm1078, %v3896, %v4613
  %v4703 = vsel %vm1078, %v3897, %v4615
  %v4704 = vsel %vm1078, %v3898, %v4617
  %v4705 = vsel %vm1078, %v3899, %v4619
  %v4706 = vsel %vm1078, %v3900, %v4621
  %v4707 = vsel %vm1078, %v3901, %v4623
  %v4708 = vsel %vm1084, %v4702, %v4637
  %v4709 = vsel %vm1084, %v4703, %v4639
  %v4710 = vsel %vm1084, %v4704, %v4641
  %v4711 = vsel %vm1084, %v4705, %v4643
  %v4712 = vsel %vm1084, %v4706, %v4645
  %v4713 = vsel %vm1084, %v4707, %v4647
  %v4714 = vsel %vm1090, %v4708, %v4661
  %v4715 = vsel %vm1090, %v4709, %v4663
  %v4716 = vsel %vm1090, %v4710, %v4665
  %v4717 = vsel %vm1090, %v4711, %v4667
  %v4718 = vsel %vm1090, %v4712, %v4669
  %v4719 = vsel %vm1090, %v4713, %v4671
  %v4720 = vsel %vm1096, %v4714, %v4685
  %v4721 = vsel %vm1096, %v4715, %v4687
  %v4722 = vsel %vm1096, %v4716, %v4689
  %v4723 = vsel %vm1096, %v4717, %v4691
  %v4724 = vsel %vm1096, %v4718, %v4693
  %v4725 = vsel %vm1096, %v4719, %v4695
  %v4726 = vadd.f32 %v4720, %v3648
  %v4727 = vadd.f32 %v4721, %v3649
  %v4728 = vadd.f32 %v4722, %v3650
  %v4729 = vadd.f32 %v4723, %v3651
  %v4730 = vadd.f32 %v4724, %v3652
  %v4731 = vadd.f32 %v4725, %v3653
  %v4732 = vpack.c.bf16 %v4727, %v4726
  %v4733 = vpack.c.bf16 %v4729, %v4728
  %v4734 = vpack.c.bf16 %v4731, %v4730
  %s4735 = scalar_lea.vmem %s13, 40
  %v4736 = vld [vmem:[%s4735] sm:$0xf]
  %v4737 = vld [vmem:[%s4735 + $0x4] sm:$0xf]
  %v4738 = vld [vmem:[%s4735 + $0x8] sm:$0xf]
  %v4739 = vld [vmem:[%s4735 + $0xc] sm:$0xf]
  %v4740 = vld [vmem:[%s4735 + $0x10] sm:$0xf]
  %s4741 = scalar_lea.vmem %s14, 2
  %v4742 = vld [vmem:[%s4741] sm:$0x1]
  %v4744 = vlaneseq
  %v4745 = vshrl.u32 %v4744, 7
  %v4746 = vsub.s32 0, %v4745
  %v4747 = vrot.slane %v4742, %v4746
  %v4754 = vunpack.c.l.b16 %v4736
  %v4755 = vunpack.c.l.b16 %v4737
  %v4756 = vunpack.c.l.b16 %v4738
  %v4757 = vunpack.c.l.b16 %v4739
  %v4758 = vunpack.c.l.b16 %v4740
  %v4759 = vpack.c.b16 %v4755, %v4754
  %v4760 = vpack.c.b16 %v4757, %v4756
  %v4761 = vpack.c.b16 %v4758, %v4758
  %v4765 = vsel %vm84, %v4732, 0
  %v4768 = vsel %vm84, %v4733, 0
  %v4771 = vsel %vm84, %v4734, 0
  %v4774 = vsel %vm145, %v4761, 0
  %4776 = vmatprep.subr.bf16.mxu0 0
  %4777 = vmatpush1.bf16.msra.mxu0 %v4759
  %4778 = vmatprep.subr.bf16.mxu0 0
  %4779 = vmatpush1.bf16.msra.mxu0 %v4760
  %4780 = vmatprep.subr.bf16.mxu0 0
  %4781 = vmatpush1.bf16.msra.mxu0 %v4774
  %4782 = vmatprep.subr.bf16.mxu0 0
  %4783 = vmatpush1.bf16.msra.mxu0 0
  %4784 = vmatprep.subr.bf16.mxu0 0
  %4785 = vmatpush1.bf16.msra.mxu0 0
  %4786 = vmatprep.subr.bf16.mxu0 0
  %4787 = vmatpush1.bf16.msra.mxu0 0
  %4788 = vmatprep.subr.bf16.mxu0 0
  %4789 = vmatpush1.bf16.msra.mxu0 0
  %4790 = vmatprep.subr.bf16.mxu0 0
  %4791 = vmatpush1.bf16.msra.mxu0 0
  %4792 = vmatprep.subr.bf16.mxu0 0
  %4793 = vmatpush1.bf16.msra.mxu0 0
  %4794 = vmatprep.subr.bf16.mxu0 0
  %4795 = vmatpush1.bf16.msra.mxu0 0
  %4796 = vmatprep.subr.bf16.mxu0 0
  %4797 = vmatpush1.bf16.msra.mxu0 0
  %4798 = vmatprep.subr.bf16.mxu0 0
  %4799 = vmatpush1.bf16.msra.mxu0 0
  %4800 = vmatprep.subr.bf16.mxu0 0
  %4801 = vmatpush1.bf16.msra.mxu0 0
  %4802 = vmatprep.subr.bf16.mxu0 0
  %4803 = vmatpush1.bf16.msra.mxu0 0
  %4804 = vmatprep.subr.bf16.mxu0 0
  %4805 = vmatpush1.bf16.msra.mxu0 0
  %4806 = vmatprep.subr.bf16.mxu0 0
  %4807 = vmatpush1.bf16.msra.mxu0 0
  %4808 = vmatprep.mubr.bf16.mxu0 0
  %4809 = vmatmul.mubr.bf16.gmra.mrb[0].mxu0 %v4765
  %v4810 = vpop.f32.mrb[0].mxu0
  %v4811 = vadd.f32 %v4747, %v4810
  %v4812 = vpop.f32.mrb[0].mxu0
  %v4813 = vpop.f32.mrb[0].mxu0
  %v4814 = vadd.f32 %v4747, %v4813
  %v4815 = vpop.f32.mrb[0].mxu0
  %4816 = vmatprep.mubr.bf16.mxu0 0
  %4817 = vmatmul.mubr.bf16.gmra.mrb[0].mxu0 %v4768
  %v4818 = vpop.f32.mrb[0].mxu0
  %v4819 = vadd.f32 %v4747, %v4818
  %v4820 = vpop.f32.mrb[0].mxu0
  %v4821 = vpop.f32.mrb[0].mxu0
  %v4822 = vadd.f32 %v4747, %v4821
  %v4823 = vpop.f32.mrb[0].mxu0
  %4824 = vmatprep.mubr.bf16.mxu0 0
  %4825 = vmatmul.mubr.bf16.gmra.mrb[0].mxu0 %v4771
  %v4826 = vpop.f32.mrb[0].mxu0
  %v4827 = vadd.f32 %v4747, %v4826
  %v4828 = vpop.f32.mrb[0].mxu0
  %v4829 = vpop.f32.mrb[0].mxu0
  %v4830 = vadd.f32 %v4747, %v4829
  %v4831 = vpop.f32.mrb[0].mxu0
  %4832 = vdwg.mxu0
  %v4833 = vld [vmem:[%s10] sm:$0xff]
  %v4834 = vld [vmem:[%s10 + $0x8] sm:$0xff]
  %v4835 = vld [vmem:[%s10 + $0x10] sm:$0xff]
  %v4836 = vld [vmem:[%s10 + $0x18] sm:$0xff]
  %v4837 = vld [vmem:[%s10 + $0x20] sm:$0xff]
  %v4838 = vld [vmem:[%s10 + $0x28] sm:$0xf]
  %v4839 = vpack.c.bf16 %v4814, %v4811
  %v4840 = vpack.c.bf16 %v4822, %v4819
  %v4841 = vpack.c.bf16 %v4830, %v4827
  %s4842 = scalar_lea.vmem %s15, 40
  %v4843 = vld [vmem:[%s4842] sm:$0xf]
  %v4844 = vld [vmem:[%s4842 + $0x4] sm:$0xf]
  %v4845 = vld [vmem:[%s4842 + $0x8] sm:$0xf]
  %v4846 = vld [vmem:[%s4842 + $0xc] sm:$0xf]
  %v4847 = vld [vmem:[%s4842 + $0x10] sm:$0xf]
  %s4848 = scalar_lea.vmem %s16, 2
  %v4849 = vld [vmem:[%s4848] sm:$0x1]
  %v4851 = vlaneseq
  %v4852 = vshrl.u32 %v4851, 7
  %v4853 = vsub.s32 0, %v4852
  %v4854 = vrot.slane %v4849, %v4853
  %v4861 = vunpack.c.l.b16 %v4843
  %v4862 = vunpack.c.l.b16 %v4844
  %v4863 = vunpack.c.l.b16 %v4845
  %v4864 = vunpack.c.l.b16 %v4846
  %v4865 = vunpack.c.l.b16 %v4847
  %v4866 = vpack.c.b16 %v4862, %v4861
  %v4867 = vpack.c.b16 %v4864, %v4863
  %v4868 = vpack.c.b16 %v4865, %v4865
  %v4872 = vsel %vm84, %v4839, 0
  %v4875 = vsel %vm84, %v4840, 0
  %v4878 = vsel %vm84, %v4841, 0
  %v4881 = vsel %vm145, %v4868, 0
  %4883 = vmatprep.subr.bf16.mxu0 0
  %4884 = vmatpush1.bf16.msra.mxu0 %v4866
  %4885 = vmatprep.subr.bf16.mxu0 0
  %4886 = vmatpush1.bf16.msra.mxu0 %v4867
  %4887 = vmatprep.subr.bf16.mxu0 0
  %4888 = vmatpush1.bf16.msra.mxu0 %v4881
  %4889 = vmatprep.subr.bf16.mxu0 0
  %4890 = vmatpush1.bf16.msra.mxu0 0
  %4891 = vmatprep.subr.bf16.mxu0 0
  %4892 = vmatpush1.bf16.msra.mxu0 0
  %4893 = vmatprep.subr.bf16.mxu0 0
  %4894 = vmatpush1.bf16.msra.mxu0 0
  %4895 = vmatprep.subr.bf16.mxu0 0
  %4896 = vmatpush1.bf16.msra.mxu0 0
  %4897 = vmatprep.subr.bf16.mxu0 0
  %4898 = vmatpush1.bf16.msra.mxu0 0
  %4899 = vmatprep.subr.bf16.mxu0 0
  %4900 = vmatpush1.bf16.msra.mxu0 0
  %4901 = vmatprep.subr.bf16.mxu0 0
  %4902 = vmatpush1.bf16.msra.mxu0 0
  %4903 = vmatprep.subr.bf16.mxu0 0
  %4904 = vmatpush1.bf16.msra.mxu0 0
  %4905 = vmatprep.subr.bf16.mxu0 0
  %4906 = vmatpush1.bf16.msra.mxu0 0
  %4907 = vmatprep.subr.bf16.mxu0 0
  %4908 = vmatpush1.bf16.msra.mxu0 0
  %4909 = vmatprep.subr.bf16.mxu0 0
  %4910 = vmatpush1.bf16.msra.mxu0 0
  %4911 = vmatprep.subr.bf16.mxu0 0
  %4912 = vmatpush1.bf16.msra.mxu0 0
  %4913 = vmatprep.subr.bf16.mxu0 0
  %4914 = vmatpush1.bf16.msra.mxu0 0
  %4915 = vmatprep.mubr.bf16.mxu0 0
  %4916 = vmatmul.mubr.bf16.gmra.mrb[0].mxu0 %v4872
  %v4917 = vpop.f32.mrb[0].mxu0
  %v4918 = vadd.f32 %v4854, %v4917
  %v4919 = vpop.f32.mrb[0].mxu0
  %v4920 = vpop.f32.mrb[0].mxu0
  %v4921 = vadd.f32 %v4854, %v4920
  %v4922 = vpop.f32.mrb[0].mxu0
  %4923 = vmatprep.mubr.bf16.mxu0 0
  %4924 = vmatmul.mubr.bf16.gmra.mrb[0].mxu0 %v4875
  %v4925 = vpop.f32.mrb[0].mxu0
  %v4926 = vadd.f32 %v4854, %v4925
  %v4927 = vpop.f32.mrb[0].mxu0
  %v4928 = vpop.f32.mrb[0].mxu0
  %v4929 = vadd.f32 %v4854, %v4928
  %v4930 = vpop.f32.mrb[0].mxu0
  %4931 = vmatprep.mubr.bf16.mxu0 0
  %4932 = vmatmul.mubr.bf16.gmra.mrb[0].mxu0 %v4878
  %v4933 = vpop.f32.mrb[0].mxu0
  %v4934 = vadd.f32 %v4854, %v4933
  %v4935 = vpop.f32.mrb[0].mxu0
  %v4936 = vpop.f32.mrb[0].mxu0
  %v4937 = vadd.f32 %v4854, %v4936
  %v4938 = vpop.f32.mrb[0].mxu0
  %4939 = vdwg.mxu0
  %v4940 = vmax.f32 %v4918, 0.0
  %v4941 = vmax.f32 %v4921, 0.0
  %v4942 = vmax.f32 %v4926, 0.0
  %v4943 = vmax.f32 %v4929, 0.0
  %v4944 = vmax.f32 %v4934, 0.0
  %v4945 = vmax.f32 %v4937, 0.0
  %s4946 = scalar_lea.vmem %s17, 2
  %v4947 = vld [vmem:[%s4946] sm:$0x1]
  %v4949 = vlaneseq
  %v4950 = vshrl.u32 %v4949, 7
  %v4951 = vsub.s32 0, %v4950
  %v4952 = vrot.slane %v4947, %v4951
  %v4954 = vmul.f32 %v4940, %v4952
  %v4955 = vmul.f32 %v4941, %v4952
  %v4956 = vmul.f32 %v4942, %v4952
  %v4957 = vmul.f32 %v4943, %v4952
  %v4958 = vmul.f32 %v4944, %v4952
  %v4959 = vmul.f32 %v4945, %v4952
  %v4960 = vsel %vm1084, %v4954, 0.0
  %4961 = vadd.xlane.f32.xlu0 %v4960
  %v4962 = vpop.xlane.xlu0 %4961
  %v4963 = vsel %vm1084, %v4955, 0.0
  %4964 = vadd.xlane.f32.xlu0 %v4963
  %v4965 = vpop.xlane.xlu0 %4964
  %v4966 = vsel %vm1084, %v4956, 0.0
  %4967 = vadd.xlane.f32.xlu0 %v4966
  %v4968 = vpop.xlane.xlu0 %4967
  %v4969 = vsel %vm1084, %v4957, 0.0
  %4970 = vadd.xlane.f32.xlu0 %v4969
  %v4971 = vpop.xlane.xlu0 %4970
  %v4972 = vsel %vm1084, %v4958, 0.0
  %4973 = vadd.xlane.f32.xlu0 %v4972
  %v4974 = vpop.xlane.xlu0 %4973
  %vm4975 = vcmask 125952
  %v4976 = vsel %vm4975, %v4959, 0.0
  %4977 = vadd.xlane.f32.xlu0 %v4976
  %v4978 = vpop.xlane.xlu0 %4977
  %s4979 = scalar_lea.vmem %s18, 2
  %v4980 = vld [vmem:[%s4979] sm:$0x1]
  %v4982 = vlaneseq
  %v4983 = vshrl.u32 %v4982, 7
  %v4984 = vsub.s32 0, %v4983
  %v4985 = vrot.slane %v4980, %v4984
  %v4987 = vadd.f32 %v4962, %v4985
  %v4988 = vadd.f32 %v4965, %v4985
  %v4989 = vadd.f32 %v4968, %v4985
  %v4990 = vadd.f32 %v4971, %v4985
  %v4991 = vadd.f32 %v4974, %v4985
  %v4992 = vadd.f32 %v4978, %v4985
  %vm4993 = vcmp.gt.f32.partialorder %v4833, 0.5
  %vm4994 = vcmp.gt.f32.partialorder %v4834, 0.5
  %vm4995 = vcmp.gt.f32.partialorder %v4835, 0.5
  %vm4996 = vcmp.gt.f32.partialorder %v4836, 0.5
  %vm4997 = vcmp.gt.f32.partialorder %v4837, 0.5
  %vm4998 = vcmp.gt.f32.partialorder %v4838, 0.5
  %v4999 = vsel %vm4993, -1e+09, %v4987
  %v5000 = vsel %vm4994, -1e+09, %v4988
  %v5001 = vsel %vm4995, -1e+09, %v4989
  %v5002 = vsel %vm4996, -1e+09, %v4990
  %v5003 = vsel %vm4997, -1e+09, %v4991
  %v5004 = vsel %vm4998, -1e+09, %v4992
  %vm5005 = vcmp.lt.s32.totalorder %v1363, 22
  %vm5006 = vcmp.lt.s32.totalorder %v1364, 22
  %vm5007 = vcmp.lt.s32.totalorder %v1365, 22
  %vm5008 = vcmp.lt.s32.totalorder %v1366, 22
  %vm5009 = vcmp.lt.s32.totalorder %v1367, 22
  %vm5010 = vcmp.lt.s32.totalorder %v1729, 22
  %vm5011 = vmand %vm1368, %vm5005
  %vm5012 = vmand %vm1369, %vm5006
  %vm5013 = vmand %vm1370, %vm5007
  %vm5014 = vmand %vm1371, %vm5008
  %vm5015 = vmand %vm1372, %vm5009
  %vm5016 = vmand %vm3149, %vm5010
  %v5017 = vsel %vm5011, %v4999, -1e+09
  %v5018 = vsel %vm5012, %v5000, -1e+09
  %v5019 = vsel %vm5013, %v5001, -1e+09
  %v5020 = vsel %vm5014, %v5002, -1e+09
  %v5021 = vsel %vm5015, %v5003, -1e+09
  %v5022 = vsel %vm5016, %v5004, -1e+09
  %v5023 = vsel %vm1388, %v5017, -inf
  %v5024 = vsel %vm1388, %v5018, -inf
  %v5025 = vsel %vm1388, %v5019, -inf
  %v5026 = vsel %vm1388, %v5020, -inf
  %v5027 = vsel %vm1388, %v5021, -inf
  %v5028 = vmax.f32 %v5023, %v5027
  %vm5029 = vcmask 3072
  %v5030 = vsel %vm5029, %v5022, -inf
  %v5031 = vmax.f32 %v5024, %v5030
  %v5032 = vmax.f32 %v5028, %v5031
  %v5033 = vmax.f32 %v5025, %v5026
  %v5034 = vmax.f32 %v5032, %v5033
  %v5035 = vrot.slane %v5034, 4
  %v5036 = vmax.f32 %v5034, %v5035
  %v5037 = vrot.slane %v5036, 2
  %v5038 = vmax.f32 %v5036, %v5037
  %v5039 = vrot.slane %v5038, 1
  %v5040 = vmax.f32 %v5038, %v5039
  %v5041 = vsub.f32 %v4999, %v5040
  %v5042 = vsub.f32 %v5000, %v5040
  %v5043 = vsub.f32 %v5001, %v5040
  %v5044 = vsub.f32 %v5002, %v5040
  %v5045 = vsub.f32 %v5003, %v5040
  %v5046 = vsub.f32 %v5004, %v5040
  %v5047 = vmul.f32 %v5041, 1.442695
  %v5048 = vpow.pop %v5047
  %v5049 = vmul.f32 %v5042, 1.442695
  %v5050 = vpow.pop %v5049
  %v5051 = vmul.f32 %v5043, 1.442695
  %v5052 = vpow.pop %v5051
  %v5053 = vmul.f32 %v5044, 1.442695
  %v5054 = vpow.pop %v5053
  %v5055 = vmul.f32 %v5045, 1.442695
  %v5056 = vpow.pop %v5055
  %v5057 = vmul.f32 %v5046, 1.442695
  %v5058 = vpow.pop %v5057
  %v5059 = vsel %vm5011, %v5048, 0.0
  %v5060 = vsel %vm5012, %v5050, 0.0
  %v5061 = vsel %vm5013, %v5052, 0.0
  %v5062 = vsel %vm5014, %v5054, 0.0
  %v5063 = vsel %vm5015, %v5056, 0.0
  %v5064 = vsel %vm5016, %v5058, 0.0
  %v5065 = vsel %vm1388, %v5059, 0.0
  %v5066 = vsel %vm1388, %v5060, 0.0
  %v5067 = vadd.f32 %v5065, %v5066
  %v5068 = vsel %vm1388, %v5061, 0.0
  %v5069 = vadd.f32 %v5067, %v5068
  %v5070 = vsel %vm1388, %v5062, 0.0
  %v5071 = vadd.f32 %v5069, %v5070
  %v5072 = vsel %vm1388, %v5063, 0.0
  %v5073 = vadd.f32 %v5071, %v5072
  %v5074 = vsel %vm5029, %v5064, 0.0
  %v5075 = vadd.f32 %v5073, %v5074
  %v5076 = vrot.slane %v5075, 4
  %v5077 = vadd.f32 %v5075, %v5076
  %v5078 = vrot.slane %v5077, 2
  %v5079 = vadd.f32 %v5077, %v5078
  %v5080 = vrot.slane %v5079, 1
  %v5081 = vadd.f32 %v5079, %v5080
  %v5082 = vrcp.pop %v5081
  %v5083 = vmul.f32 %v5059, %v5082
  %v5084 = vmul.f32 %v5060, %v5082
  %v5085 = vmul.f32 %v5061, %v5082
  %v5086 = vmul.f32 %v5062, %v5082
  %v5087 = vmul.f32 %v5063, %v5082
  %v5088 = vmul.f32 %v5064, %v5082
  %5090 = vset.pattern.permute.xlu0 0
  %5091 = vperm.xlu0 %5090, %v5083
  %v5092 = vpop.permute.xlu0 %5091
  %5095 = vset.pattern.permute.xlu0 0
  %5096 = vperm.xlu0 %5095, %v5084
  %v5097 = vpop.permute.xlu0 %5096
  %5100 = vset.pattern.permute.xlu0 0
  %5101 = vperm.xlu0 %5100, %v5085
  %v5102 = vpop.permute.xlu0 %5101
  %5105 = vset.pattern.permute.xlu0 0
  %5106 = vperm.xlu0 %5105, %v5086
  %v5107 = vpop.permute.xlu0 %5106
  %5110 = vset.pattern.permute.xlu0 0
  %5111 = vperm.xlu0 %5110, %v5087
  %v5112 = vpop.permute.xlu0 %5111
  %5115 = vset.pattern.permute.xlu0 0
  %5116 = vperm.xlu0 %5115, %v5088
  %v5117 = vpop.permute.xlu0 %5116
  %v5119 = vmul.f32 %v5092, %v4811
  %v5120 = vmul.f32 %v5097, %v4814
  %v5121 = vmul.f32 %v5102, %v4819
  %v5122 = vmul.f32 %v5107, %v4822
  %v5123 = vmul.f32 %v5112, %v4827
  %v5124 = vmul.f32 %v5117, %v4830
  %v5125 = vsel %vm84, %v5119, 0.0
  %v5126 = vsel %vm84, %v5120, 0.0
  %v5127 = vadd.f32 %v5125, %v5126
  %v5128 = vsel %vm84, %v5121, 0.0
  %v5129 = vadd.f32 %v5127, %v5128
  %v5130 = vsel %vm84, %v5122, 0.0
  %v5131 = vadd.f32 %v5129, %v5130
  %v5132 = vsel %vm84, %v5123, 0.0
  %v5133 = vadd.f32 %v5131, %v5132
  %vm5134 = vcmask 322560
  %v5135 = vsel %vm5134, %v5124, 0.0
  %v5136 = vadd.f32 %v5133, %v5135
  %v5137 = vrot.slane %v5136, 4
  %v5138 = vadd.f32 %v5136, %v5137
  %v5139 = vrot.slane %v5138, 2
  %v5140 = vadd.f32 %v5138, %v5139
  %v5141 = vrot.slane %v5140, 1
  %v5142 = vadd.f32 %v5140, %v5141
  %v5143 = vpack.c.bf16 %v5142, %v5142
  %s5144 = scalar_lea.vmem %s19, 40
  %v5145 = vld [vmem:[%s5144] sm:$0xf]
  %v5146 = vld [vmem:[%s5144 + $0x4] sm:$0xf]
  %v5147 = vld [vmem:[%s5144 + $0x8] sm:$0xf]
  %v5148 = vld [vmem:[%s5144 + $0xc] sm:$0xf]
  %v5149 = vld [vmem:[%s5144 + $0x10] sm:$0xf]
  %s5150 = scalar_lea.vmem %s20, 2
  %v5151 = vld [vmem:[%s5150] sm:$0x1]
  %v5157 = vunpack.c.l.b16 %v5145
  %v5158 = vunpack.c.l.b16 %v5146
  %v5159 = vunpack.c.l.b16 %v5147
  %v5160 = vunpack.c.l.b16 %v5148
  %v5161 = vunpack.c.l.b16 %v5149
  %v5162 = vpack.c.b16 %v5158, %v5157
  %v5163 = vpack.c.b16 %v5160, %v5159
  %v5164 = vpack.c.b16 %v5161, %v5161
  %v5168 = vsel %vm84, %v5143, 0
  %v5171 = vsel %vm145, %v5164, 0
  %5173 = vmatprep.subr.bf16.mxu0 0
  %5174 = vmatpush1.bf16.msra.mxu0 %v5162
  %5175 = vmatprep.subr.bf16.mxu0 0
  %5176 = vmatpush1.bf16.msra.mxu0 %v5163
  %5177 = vmatprep.subr.bf16.mxu0 0
  %5178 = vmatpush1.bf16.msra.mxu0 %v5171
  %5179 = vmatprep.subr.bf16.mxu0 0
  %5180 = vmatpush1.bf16.msra.mxu0 0
  %5181 = vmatprep.subr.bf16.mxu0 0
  %5182 = vmatpush1.bf16.msra.mxu0 0
  %5183 = vmatprep.subr.bf16.mxu0 0
  %5184 = vmatpush1.bf16.msra.mxu0 0
  %5185 = vmatprep.subr.bf16.mxu0 0
  %5186 = vmatpush1.bf16.msra.mxu0 0
  %5187 = vmatprep.subr.bf16.mxu0 0
  %5188 = vmatpush1.bf16.msra.mxu0 0
  %5189 = vmatprep.subr.bf16.mxu0 0
  %5190 = vmatpush1.bf16.msra.mxu0 0
  %5191 = vmatprep.subr.bf16.mxu0 0
  %5192 = vmatpush1.bf16.msra.mxu0 0
  %5193 = vmatprep.subr.bf16.mxu0 0
  %5194 = vmatpush1.bf16.msra.mxu0 0
  %5195 = vmatprep.subr.bf16.mxu0 0
  %5196 = vmatpush1.bf16.msra.mxu0 0
  %5197 = vmatprep.subr.bf16.mxu0 0
  %5198 = vmatpush1.bf16.msra.mxu0 0
  %5199 = vmatprep.subr.bf16.mxu0 0
  %5200 = vmatpush1.bf16.msra.mxu0 0
  %5201 = vmatprep.subr.bf16.mxu0 0
  %5202 = vmatpush1.bf16.msra.mxu0 0
  %5203 = vmatprep.subr.bf16.mxu0 0
  %5204 = vmatpush1.bf16.msra.mxu0 0
  %5205 = vmatprep.mubr.bf16.mxu0 0
  %5206 = vmatmul.mubr.bf16.gmra.mrb[0].mxu0 %v5168
  %v5207 = vpop.f32.mrb[0].mxu0
  %v5208 = vadd.f32 %v5151, %v5207
  %v5209 = vpop.f32.mrb[0].mxu0
  %v5210 = vpop.f32.mrb[0].mxu0
  %v5211 = vpop.f32.mrb[0].mxu0
  %5212 = vdwg.mxu0
  %vm5213 = vcmp.ge.s32.totalorder %v1363, 22
  %vm5214 = vcmp.ge.s32.totalorder %v1364, 22
  %vm5215 = vcmp.ge.s32.totalorder %v1365, 22
  %vm5216 = vcmp.ge.s32.totalorder %v1366, 22
  %vm5217 = vcmp.ge.s32.totalorder %v1367, 22
  %vm5218 = vcmp.ge.s32.totalorder %v1729, 22
  %vm5219 = vcmp.lt.s32.totalorder %v1363, 44
  %vm5220 = vcmp.lt.s32.totalorder %v1364, 44
  %vm5221 = vcmp.lt.s32.totalorder %v1365, 44
  %vm5222 = vcmp.lt.s32.totalorder %v1366, 44
  %vm5223 = vcmp.lt.s32.totalorder %v1367, 44
  %vm5224 = vcmp.lt.s32.totalorder %v1729, 44
  %vm5225 = vmand %vm5213, %vm5219
  %vm5226 = vmand %vm5214, %vm5220
  %vm5227 = vmand %vm5215, %vm5221
  %vm5228 = vmand %vm5216, %vm5222
  %vm5229 = vmand %vm5217, %vm5223
  %vm5230 = vmand %vm5218, %vm5224
  %v5231 = vsel %vm5225, %v4999, -1e+09
  %v5232 = vsel %vm5226, %v5000, -1e+09
  %v5233 = vsel %vm5227, %v5001, -1e+09
  %v5234 = vsel %vm5228, %v5002, -1e+09
  %v5235 = vsel %vm5229, %v5003, -1e+09
  %v5236 = vsel %vm5230, %v5004, -1e+09
  %v5237 = vsel %vm1388, %v5231, -inf
  %v5238 = vsel %vm1388, %v5232, -inf
  %v5239 = vsel %vm1388, %v5233, -inf
  %v5240 = vsel %vm1388, %v5234, -inf
  %v5241 = vsel %vm1388, %v5235, -inf
  %v5242 = vmax.f32 %v5237, %v5241
  %v5243 = vsel %vm5029, %v5236, -inf
  %v5244 = vmax.f32 %v5238, %v5243
  %v5245 = vmax.f32 %v5242, %v5244
  %v5246 = vmax.f32 %v5239, %v5240
  %v5247 = vmax.f32 %v5245, %v5246
  %v5248 = vrot.slane %v5247, 4
  %v5249 = vmax.f32 %v5247, %v5248
  %v5250 = vrot.slane %v5249, 2
  %v5251 = vmax.f32 %v5249, %v5250
  %v5252 = vrot.slane %v5251, 1
  %v5253 = vmax.f32 %v5251, %v5252
  %v5254 = vsub.f32 %v4999, %v5253
  %v5255 = vsub.f32 %v5000, %v5253
  %v5256 = vsub.f32 %v5001, %v5253
  %v5257 = vsub.f32 %v5002, %v5253
  %v5258 = vsub.f32 %v5003, %v5253
  %v5259 = vsub.f32 %v5004, %v5253
  %v5260 = vmul.f32 %v5254, 1.442695
  %v5261 = vpow.pop %v5260
  %v5262 = vmul.f32 %v5255, 1.442695
  %v5263 = vpow.pop %v5262
  %v5264 = vmul.f32 %v5256, 1.442695
  %v5265 = vpow.pop %v5264
  %v5266 = vmul.f32 %v5257, 1.442695
  %v5267 = vpow.pop %v5266
  %v5268 = vmul.f32 %v5258, 1.442695
  %v5269 = vpow.pop %v5268
  %v5270 = vmul.f32 %v5259, 1.442695
  %v5271 = vpow.pop %v5270
  %v5272 = vsel %vm5225, %v5261, 0.0
  %v5273 = vsel %vm5226, %v5263, 0.0
  %v5274 = vsel %vm5227, %v5265, 0.0
  %v5275 = vsel %vm5228, %v5267, 0.0
  %v5276 = vsel %vm5229, %v5269, 0.0
  %v5277 = vsel %vm5230, %v5271, 0.0
  %v5278 = vsel %vm1388, %v5272, 0.0
  %v5279 = vsel %vm1388, %v5273, 0.0
  %v5280 = vadd.f32 %v5278, %v5279
  %v5281 = vsel %vm1388, %v5274, 0.0
  %v5282 = vadd.f32 %v5280, %v5281
  %v5283 = vsel %vm1388, %v5275, 0.0
  %v5284 = vadd.f32 %v5282, %v5283
  %v5285 = vsel %vm1388, %v5276, 0.0
  %v5286 = vadd.f32 %v5284, %v5285
  %v5287 = vsel %vm5029, %v5277, 0.0
  %v5288 = vadd.f32 %v5286, %v5287
  %v5289 = vrot.slane %v5288, 4
  %v5290 = vadd.f32 %v5288, %v5289
  %v5291 = vrot.slane %v5290, 2
  %v5292 = vadd.f32 %v5290, %v5291
  %v5293 = vrot.slane %v5292, 1
  %v5294 = vadd.f32 %v5292, %v5293
  %v5295 = vrcp.pop %v5294
  %v5296 = vmul.f32 %v5272, %v5295
  %v5297 = vmul.f32 %v5273, %v5295
  %v5298 = vmul.f32 %v5274, %v5295
  %v5299 = vmul.f32 %v5275, %v5295
  %v5300 = vmul.f32 %v5276, %v5295
  %v5301 = vmul.f32 %v5277, %v5295
  %5303 = vset.pattern.permute.xlu0 0
  %5304 = vperm.xlu0 %5303, %v5296
  %v5305 = vpop.permute.xlu0 %5304
  %5308 = vset.pattern.permute.xlu0 0
  %5309 = vperm.xlu0 %5308, %v5297
  %v5310 = vpop.permute.xlu0 %5309
  %5313 = vset.pattern.permute.xlu0 0
  %5314 = vperm.xlu0 %5313, %v5298
  %v5315 = vpop.permute.xlu0 %5314
  %5318 = vset.pattern.permute.xlu0 0
  %5319 = vperm.xlu0 %5318, %v5299
  %v5320 = vpop.permute.xlu0 %5319
  %5323 = vset.pattern.permute.xlu0 0
  %5324 = vperm.xlu0 %5323, %v5300
  %v5325 = vpop.permute.xlu0 %5324
  %5328 = vset.pattern.permute.xlu0 0
  %5329 = vperm.xlu0 %5328, %v5301
  %v5330 = vpop.permute.xlu0 %5329
  %v5332 = vmul.f32 %v5305, %v4811
  %v5333 = vmul.f32 %v5310, %v4814
  %v5334 = vmul.f32 %v5315, %v4819
  %v5335 = vmul.f32 %v5320, %v4822
  %v5336 = vmul.f32 %v5325, %v4827
  %v5337 = vmul.f32 %v5330, %v4830
  %v5338 = vsel %vm84, %v5332, 0.0
  %v5339 = vsel %vm84, %v5333, 0.0
  %v5340 = vadd.f32 %v5338, %v5339
  %v5341 = vsel %vm84, %v5334, 0.0
  %v5342 = vadd.f32 %v5340, %v5341
  %v5343 = vsel %vm84, %v5335, 0.0
  %v5344 = vadd.f32 %v5342, %v5343
  %v5345 = vsel %vm84, %v5336, 0.0
  %v5346 = vadd.f32 %v5344, %v5345
  %v5347 = vsel %vm5134, %v5337, 0.0
  %v5348 = vadd.f32 %v5346, %v5347
  %v5349 = vrot.slane %v5348, 4
  %v5350 = vadd.f32 %v5348, %v5349
  %v5351 = vrot.slane %v5350, 2
  %v5352 = vadd.f32 %v5350, %v5351
  %v5353 = vrot.slane %v5352, 1
  %v5354 = vadd.f32 %v5352, %v5353
  %v5355 = vpack.c.bf16 %v5354, %v5354
  %v5357 = vsel %vm84, %v5355, 0
  %5359 = vmatprep.subr.bf16.mxu0 0
  %5360 = vmatpush1.bf16.msra.mxu0 %v5162
  %5361 = vmatprep.subr.bf16.mxu0 0
  %5362 = vmatpush1.bf16.msra.mxu0 %v5163
  %5363 = vmatprep.subr.bf16.mxu0 0
  %5364 = vmatpush1.bf16.msra.mxu0 %v5171
  %5365 = vmatprep.subr.bf16.mxu0 0
  %5366 = vmatpush1.bf16.msra.mxu0 0
  %5367 = vmatprep.subr.bf16.mxu0 0
  %5368 = vmatpush1.bf16.msra.mxu0 0
  %5369 = vmatprep.subr.bf16.mxu0 0
  %5370 = vmatpush1.bf16.msra.mxu0 0
  %5371 = vmatprep.subr.bf16.mxu0 0
  %5372 = vmatpush1.bf16.msra.mxu0 0
  %5373 = vmatprep.subr.bf16.mxu0 0
  %5374 = vmatpush1.bf16.msra.mxu0 0
  %5375 = vmatprep.subr.bf16.mxu0 0
  %5376 = vmatpush1.bf16.msra.mxu0 0
  %5377 = vmatprep.subr.bf16.mxu0 0
  %5378 = vmatpush1.bf16.msra.mxu0 0
  %5379 = vmatprep.subr.bf16.mxu0 0
  %5380 = vmatpush1.bf16.msra.mxu0 0
  %5381 = vmatprep.subr.bf16.mxu0 0
  %5382 = vmatpush1.bf16.msra.mxu0 0
  %5383 = vmatprep.subr.bf16.mxu0 0
  %5384 = vmatpush1.bf16.msra.mxu0 0
  %5385 = vmatprep.subr.bf16.mxu0 0
  %5386 = vmatpush1.bf16.msra.mxu0 0
  %5387 = vmatprep.subr.bf16.mxu0 0
  %5388 = vmatpush1.bf16.msra.mxu0 0
  %5389 = vmatprep.subr.bf16.mxu0 0
  %5390 = vmatpush1.bf16.msra.mxu0 0
  %5391 = vmatprep.mubr.bf16.mxu0 0
  %5392 = vmatmul.mubr.bf16.gmra.mrb[0].mxu0 %v5357
  %v5393 = vpop.f32.mrb[0].mxu0
  %v5394 = vadd.f32 %v5151, %v5393
  %v5395 = vpop.f32.mrb[0].mxu0
  %v5396 = vpop.f32.mrb[0].mxu0
  %v5397 = vpop.f32.mrb[0].mxu0
  %5398 = vdwg.mxu0
  %v5399 = vld [vmem:[%s3] sm:$0xff]
  %v5400 = vld [vmem:[%s3 + $0x8] sm:$0xff]
  %v5401 = vld [vmem:[%s3 + $0x10] sm:$0xff]
  %v5402 = vld [vmem:[%s3 + $0x18] sm:$0xff]
  %v5403 = vld [vmem:[%s3 + $0x20] sm:$0xff]
  %v5404 = vld [vmem:[%s3 + $0x28] sm:$0x3f]
  %v5405 = vadd.f32 %v5399, %v1752
  %v5406 = vadd.f32 %v5400, %v1753
  %v5407 = vadd.f32 %v5401, %v1754
  %v5408 = vadd.f32 %v5402, %v1755
  %v5409 = vadd.f32 %v5403, %v1756
  %v5410 = vadd.f32 %v5404, %v1757
  %v5411 = vmul.f32 %v3632, %v1785
  %v5412 = vmul.f32 %v3633, %v1785
  %v5413 = vmul.f32 %v3634, %v1785
  %v5414 = vmul.f32 %v3635, %v1785
  %v5415 = vmul.f32 %v3636, %v1785
  %v5416 = vmul.f32 %v3637, %v1785
  %v5417 = vadd.f32 %v5405, %v5411
  %v5418 = vadd.f32 %v5406, %v5412
  %v5419 = vadd.f32 %v5407, %v5413
  %v5420 = vadd.f32 %v5408, %v5414
  %v5421 = vadd.f32 %v5409, %v5415
  %v5422 = vadd.f32 %v5410, %v5416
  %v5423 = vadd.f32 %v5417, %v3608
  %v5424 = vadd.f32 %v5418, %v3609
  %v5425 = vadd.f32 %v5419, %v3610
  %v5426 = vadd.f32 %v5420, %v3611
  %v5427 = vadd.f32 %v5421, %v3612
  %v5428 = vadd.f32 %v5422, %v3613
  %vm5429 = vcmp.eq.s32.totalorder %v1363, 44
  %vm5430 = vcmp.eq.s32.totalorder %v1364, 44
  %vm5431 = vcmp.eq.s32.totalorder %v1365, 44
  %vm5432 = vcmp.eq.s32.totalorder %v1366, 44
  %vm5433 = vcmp.eq.s32.totalorder %v1367, 44
  %vm5434 = vcmp.eq.s32.totalorder %v1729, 44
  %v5435 = vsel %vm5429, 1, 0
  %v5436 = vsel %vm5430, 1, 0
  %v5437 = vsel %vm5431, 1, 0
  %v5438 = vsel %vm5432, 1, 0
  %v5439 = vsel %vm5433, 1, 0
  %v5440 = vsel %vm5434, 1, 0
  %v5441 = vcvt.s32.f32 %v5435
  %v5442 = vcvt.s32.f32 %v5436
  %v5443 = vcvt.s32.f32 %v5437
  %v5444 = vcvt.s32.f32 %v5438
  %v5445 = vcvt.s32.f32 %v5439
  %v5446 = vcvt.s32.f32 %v5440
  %v5447 = vmul.f32 %v5441, %v3641
  %v5448 = vmul.f32 %v5442, %v3641
  %v5449 = vmul.f32 %v5443, %v3641
  %v5450 = vmul.f32 %v5444, %v3641
  %v5451 = vmul.f32 %v5445, %v3641
  %v5452 = vmul.f32 %v5446, %v3641
  %v5453 = vadd.f32 %v5423, %v5447
  %v5454 = vadd.f32 %v5424, %v5448
  %v5455 = vadd.f32 %v5425, %v5449
  %v5456 = vadd.f32 %v5426, %v5450
  %v5457 = vadd.f32 %v5427, %v5451
  %v5458 = vadd.f32 %v5428, %v5452
  %vm5459 = vcmp.eq.s32.totalorder %v1363, 22
  %vm5460 = vcmp.eq.s32.totalorder %v1364, 22
  %vm5461 = vcmp.eq.s32.totalorder %v1365, 22
  %vm5462 = vcmp.eq.s32.totalorder %v1366, 22
  %vm5463 = vcmp.eq.s32.totalorder %v1367, 22
  %vm5464 = vcmp.eq.s32.totalorder %v1729, 22
  %v5465 = vsel %vm5459, 1, 0
  %v5466 = vsel %vm5460, 1, 0
  %v5467 = vsel %vm5461, 1, 0
  %v5468 = vsel %vm5462, 1, 0
  %v5469 = vsel %vm5463, 1, 0
  %v5470 = vsel %vm5464, 1, 0
  %v5471 = vcvt.s32.f32 %v5465
  %v5472 = vcvt.s32.f32 %v5466
  %v5473 = vcvt.s32.f32 %v5467
  %v5474 = vcvt.s32.f32 %v5468
  %v5475 = vcvt.s32.f32 %v5469
  %v5476 = vcvt.s32.f32 %v5470
  %v5477 = vlaneseq
  %v5478 = vshrl.u32 %v5477, 7
  %v5479 = vsub.s32 0, %v5478
  %v5480 = vrot.slane %v5208, %v5479
  %v5481 = vmul.f32 %v5471, %v5480
  %v5482 = vmul.f32 %v5472, %v5480
  %v5483 = vmul.f32 %v5473, %v5480
  %v5484 = vmul.f32 %v5474, %v5480
  %v5485 = vmul.f32 %v5475, %v5480
  %v5486 = vmul.f32 %v5476, %v5480
  %v5487 = vadd.f32 %v5453, %v5481
  %v5488 = vadd.f32 %v5454, %v5482
  %v5489 = vadd.f32 %v5455, %v5483
  %v5490 = vadd.f32 %v5456, %v5484
  %v5491 = vadd.f32 %v5457, %v5485
  %v5492 = vadd.f32 %v5458, %v5486
  %vm5493 = vcmp.eq.s32.totalorder %v1363, 45
  %vm5494 = vcmp.eq.s32.totalorder %v1364, 45
  %vm5495 = vcmp.eq.s32.totalorder %v1365, 45
  %vm5496 = vcmp.eq.s32.totalorder %v1366, 45
  %vm5497 = vcmp.eq.s32.totalorder %v1367, 45
  %vm5498 = vcmp.eq.s32.totalorder %v1729, 45
  %v5499 = vsel %vm5493, 1, 0
  %v5500 = vsel %vm5494, 1, 0
  %v5501 = vsel %vm5495, 1, 0
  %v5502 = vsel %vm5496, 1, 0
  %v5503 = vsel %vm5497, 1, 0
  %v5504 = vsel %vm5498, 1, 0
  %v5505 = vcvt.s32.f32 %v5499
  %v5506 = vcvt.s32.f32 %v5500
  %v5507 = vcvt.s32.f32 %v5501
  %v5508 = vcvt.s32.f32 %v5502
  %v5509 = vcvt.s32.f32 %v5503
  %v5510 = vcvt.s32.f32 %v5504
  %v5511 = vlaneseq
  %v5512 = vshrl.u32 %v5511, 7
  %v5513 = vsub.s32 0, %v5512
  %v5514 = vrot.slane %v5394, %v5513
  %v5515 = vmul.f32 %v5505, %v5514
  %v5516 = vmul.f32 %v5506, %v5514
  %v5517 = vmul.f32 %v5507, %v5514
  %v5518 = vmul.f32 %v5508, %v5514
  %v5519 = vmul.f32 %v5509, %v5514
  %v5520 = vmul.f32 %v5510, %v5514
  %v5521 = vadd.f32 %v5487, %v5515
  %v5522 = vadd.f32 %v5488, %v5516
  %v5523 = vadd.f32 %v5489, %v5517
  %v5524 = vadd.f32 %v5490, %v5518
  %v5525 = vadd.f32 %v5491, %v5519
  %v5526 = vadd.f32 %v5492, %v5520
  %v5527 = vld [vmem:[%s7] sm:$0xf]
  %v5528 = vld [vmem:[%s7 + $0x4] sm:$0xf]
  %v5529 = vld [vmem:[%s7 + $0x8] sm:$0xf]
  %v5530 = vld [vmem:[%s7 + $0xc] sm:$0xf]
  %v5531 = vld [vmem:[%s7 + $0x10] sm:$0xf]
  %v5532 = vld [vmem:[%s7 + $0x14] sm:$0x7]
  %v5533 = vunpack.c.l.bf16 %v5527
  %v5534 = vunpack.c.l.bf16 %v5528
  %v5535 = vunpack.c.l.bf16 %v5529
  %v5536 = vunpack.c.l.bf16 %v5530
  %v5537 = vunpack.c.l.bf16 %v5531
  %v5538 = vunpack.c.l.bf16 %v5532
  %vm5539 = vcmask 375808
  %v5540 = vsel %vm5539, %v5533, 0.0
  %5541 = vadd.xlane.f32.xlu0 %v5540
  %v5542 = vpop.xlane.xlu0 %5541
  %v5543 = vsel %vm5539, %v5534, 0.0
  %5544 = vadd.xlane.f32.xlu0 %v5543
  %v5545 = vpop.xlane.xlu0 %5544
  %v5546 = vsel %vm5539, %v5535, 0.0
  %5547 = vadd.xlane.f32.xlu0 %v5546
  %v5548 = vpop.xlane.xlu0 %5547
  %v5549 = vsel %vm5539, %v5536, 0.0
  %5550 = vadd.xlane.f32.xlu0 %v5549
  %v5551 = vpop.xlane.xlu0 %5550
  %v5552 = vsel %vm5539, %v5537, 0.0
  %5553 = vadd.xlane.f32.xlu0 %v5552
  %v5554 = vpop.xlane.xlu0 %5553
  %vm5555 = vcmask 373760
  %v5556 = vsel %vm5555, %v5538, 0.0
  %5557 = vadd.xlane.f32.xlu0 %v5556
  %v5558 = vpop.xlane.xlu0 %5557
  %v5559 = vrcp.pop %v5542
  %v5560 = vmul.f32 1.0, %v5559
  %v5561 = vrcp.pop %v5545
  %v5562 = vmul.f32 1.0, %v5561
  %v5563 = vrcp.pop %v5548
  %v5564 = vmul.f32 1.0, %v5563
  %v5565 = vrcp.pop %v5551
  %v5566 = vmul.f32 1.0, %v5565
  %v5567 = vrcp.pop %v5554
  %v5568 = vmul.f32 1.0, %v5567
  %v5569 = vrcp.pop %v5558
  %v5570 = vmul.f32 1.0, %v5569
  %v5571 = vpack.c.bf16 %v5522, %v5521
  %v5572 = vpack.c.bf16 %v5524, %v5523
  %v5573 = vpack.c.bf16 %v5526, %v5525
  %s5574 = scalar_lea.vmem %s11, 108
  %v5575 = vld [vmem:[%s5574] sm:$0xf]
  %v5576 = vld [vmem:[%s5574 + $0x4] sm:$0xf]
  %v5577 = vld [vmem:[%s5574 + $0x8] sm:$0xf]
  %v5578 = vld [vmem:[%s5574 + $0xc] sm:$0xf]
  %v5579 = vld [vmem:[%s5574 + $0x10] sm:$0xf]
  %v5580 = vld [vmem:[%s5574 + $0x14] sm:$0xf]
  %v5581 = vld [vmem:[%s5574 + $0x18] sm:$0xf]
  %v5582 = vld [vmem:[%s5574 + $0x1c] sm:$0xf]
  %v5583 = vld [vmem:[%s5574 + $0x20] sm:$0xf]
  %s5584 = scalar_lea.vmem %s12, 24
  %v5585 = vld [vmem:[%s5584] sm:$0x1f]
  %v5592 = vunpack.c.l.b16 %v5527
  %v5593 = vunpack.c.l.b16 %v5528
  %v5594 = vunpack.c.l.b16 %v5529
  %v5595 = vunpack.c.l.b16 %v5530
  %v5596 = vunpack.c.l.b16 %v5531
  %v5597 = vunpack.c.l.b16 %v5532
  %v5598 = vpack.c.b16 %v5593, %v5592
  %v5599 = vpack.c.b16 %v5595, %v5594
  %v5600 = vpack.c.b16 %v5597, %v5596
  %v5602 = vsel %vm5539, %v5598, 0
  %v5605 = vsel %vm5539, %v5599, 0
  %v5608 = vsel %vm5539, %v5600, 0
  %vm5610 = vcmask 1046528
  %v5612 = vsel %vm5610, %v5573, 0
  %5614 = vmatprep.subr.bf16.mxu0 0
  %5615 = vmatpush1.bf16.msra.mxu0 %v5571
  %5616 = vmatprep.subr.bf16.mxu0 0
  %5617 = vmatpush1.bf16.msra.mxu0 %v5572
  %5618 = vmatprep.subr.bf16.mxu0 0
  %5619 = vmatpush1.bf16.msra.mxu0 %v5612
  %5620 = vmatprep.subr.bf16.mxu0 0
  %5621 = vmatpush1.bf16.msra.mxu0 0
  %5622 = vmatprep.subr.bf16.mxu0 0
  %5623 = vmatpush1.bf16.msra.mxu0 0
  %5624 = vmatprep.subr.bf16.mxu0 0
  %5625 = vmatpush1.bf16.msra.mxu0 0
  %5626 = vmatprep.subr.bf16.mxu0 0
  %5627 = vmatpush1.bf16.msra.mxu0 0
  %5628 = vmatprep.subr.bf16.mxu0 0
  %5629 = vmatpush1.bf16.msra.mxu0 0
  %5630 = vmatprep.subr.bf16.mxu0 0
  %5631 = vmatpush1.bf16.msra.mxu0 0
  %5632 = vmatprep.subr.bf16.mxu0 0
  %5633 = vmatpush1.bf16.msra.mxu0 0
  %5634 = vmatprep.subr.bf16.mxu0 0
  %5635 = vmatpush1.bf16.msra.mxu0 0
  %5636 = vmatprep.subr.bf16.mxu0 0
  %5637 = vmatpush1.bf16.msra.mxu0 0
  %5638 = vmatprep.subr.bf16.mxu0 0
  %5639 = vmatpush1.bf16.msra.mxu0 0
  %5640 = vmatprep.subr.bf16.mxu0 0
  %5641 = vmatpush1.bf16.msra.mxu0 0
  %5642 = vmatprep.subr.bf16.mxu0 0
  %5643 = vmatpush1.bf16.msra.mxu0 0
  %5644 = vmatprep.subr.bf16.mxu0 0
  %5645 = vmatpush1.bf16.msra.mxu0 0
  %5646 = vmatprep.mubr.bf16.mxu0 0
  %5647 = vmatmul.mubr.bf16.gmra.mrb[0].mxu0 %v5602
  %v5648 = vpop.f32.mrb[0].mxu0
  %v5649 = vadd.f32 %v5521, %v5648
  %v5650 = vpop.f32.mrb[0].mxu0
  %v5651 = vpop.f32.mrb[0].mxu0
  %v5652 = vadd.f32 %v5522, %v5651
  %v5653 = vpop.f32.mrb[0].mxu0
  %5654 = vmatprep.mubr.bf16.mxu0 0
  %5655 = vmatmul.mubr.bf16.gmra.mrb[0].mxu0 %v5605
  %v5656 = vpop.f32.mrb[0].mxu0
  %v5657 = vadd.f32 %v5523, %v5656
  %v5658 = vpop.f32.mrb[0].mxu0
  %v5659 = vpop.f32.mrb[0].mxu0
  %v5660 = vadd.f32 %v5524, %v5659
  %v5661 = vpop.f32.mrb[0].mxu0
  %5662 = vmatprep.mubr.bf16.mxu0 0
  %5663 = vmatmul.mubr.bf16.gmra.mrb[0].mxu0 %v5608
  %v5664 = vpop.f32.mrb[0].mxu0
  %v5665 = vadd.f32 %v5525, %v5664
  %v5666 = vpop.f32.mrb[0].mxu0
  %v5667 = vpop.f32.mrb[0].mxu0
  %v5668 = vadd.f32 %v5526, %v5667
  %v5669 = vpop.f32.mrb[0].mxu0
  %5670 = vdwg.mxu0
  %v5671 = vpack.c.bf16 %v5652, %v5649
  %v5672 = vpack.c.bf16 %v5660, %v5657
  %v5673 = vpack.c.bf16 %v5668, %v5665
  %v5674 = vmul.f32 %v5585, 2.0
  %v5675 = vlaneseq
  %v5676 = vshrl.u32 %v5675, 7
  %v5677 = vsub.s32 0, %v5676
  %v5678 = vrot.slane %v5674, %v5677
  %v5684 = vunpack.c.l.b16 %v5575
  %v5685 = vunpack.c.l.b16 %v5576
  %v5686 = vunpack.c.l.b16 %v5577
  %v5687 = vunpack.c.l.b16 %v5578
  %v5688 = vunpack.c.l.b16 %v5579
  %v5689 = vpack.c.b16 %v5685, %v5684
  %v5690 = vpack.c.b16 %v5687, %v5686
  %v5691 = vpack.c.b16 %v5688, %v5688
  %v5695 = vsel %vm84, %v5671, 0
  %v5698 = vsel %vm84, %v5672, 0
  %v5701 = vsel %vm84, %v5673, 0
  %v5704 = vsel %vm145, %v5691, 0
  %5706 = vmatprep.subr.bf16.mxu0 0
  %5707 = vmatpush1.bf16.msra.mxu0 %v5689
  %5708 = vmatprep.subr.bf16.mxu0 0
  %5709 = vmatpush1.bf16.msra.mxu0 %v5690
  %5710 = vmatprep.subr.bf16.mxu0 0
  %5711 = vmatpush1.bf16.msra.mxu0 %v5704
  %5712 = vmatprep.subr.bf16.mxu0 0
  %5713 = vmatpush1.bf16.msra.mxu0 0
  %5714 = vmatprep.subr.bf16.mxu0 0
  %5715 = vmatpush1.bf16.msra.mxu0 0
  %5716 = vmatprep.subr.bf16.mxu0 0
  %5717 = vmatpush1.bf16.msra.mxu0 0
  %5718 = vmatprep.subr.bf16.mxu0 0
  %5719 = vmatpush1.bf16.msra.mxu0 0
  %5720 = vmatprep.subr.bf16.mxu0 0
  %5721 = vmatpush1.bf16.msra.mxu0 0
  %5722 = vmatprep.subr.bf16.mxu0 0
  %5723 = vmatpush1.bf16.msra.mxu0 0
  %5724 = vmatprep.subr.bf16.mxu0 0
  %5725 = vmatpush1.bf16.msra.mxu0 0
  %5726 = vmatprep.subr.bf16.mxu0 0
  %5727 = vmatpush1.bf16.msra.mxu0 0
  %5728 = vmatprep.subr.bf16.mxu0 0
  %5729 = vmatpush1.bf16.msra.mxu0 0
  %5730 = vmatprep.subr.bf16.mxu0 0
  %5731 = vmatpush1.bf16.msra.mxu0 0
  %5732 = vmatprep.subr.bf16.mxu0 0
  %5733 = vmatpush1.bf16.msra.mxu0 0
  %5734 = vmatprep.subr.bf16.mxu0 0
  %5735 = vmatpush1.bf16.msra.mxu0 0
  %5736 = vmatprep.subr.bf16.mxu0 0
  %5737 = vmatpush1.bf16.msra.mxu0 0
  %5738 = vmatprep.mubr.bf16.mxu0 0
  %5739 = vmatmul.mubr.bf16.gmra.mrb[0].mxu0 %v5695
  %v5740 = vpop.f32.mrb[0].mxu0
  %v5741 = vadd.f32 %v5678, %v5740
  %v5742 = vpop.f32.mrb[0].mxu0
  %v5743 = vpop.f32.mrb[0].mxu0
  %v5744 = vadd.f32 %v5678, %v5743
  %v5745 = vpop.f32.mrb[0].mxu0
  %5746 = vmatprep.mubr.bf16.mxu0 0
  %5747 = vmatmul.mubr.bf16.gmra.mrb[0].mxu0 %v5698
  %v5748 = vpop.f32.mrb[0].mxu0
  %v5749 = vadd.f32 %v5678, %v5748
  %v5750 = vpop.f32.mrb[0].mxu0
  %v5751 = vpop.f32.mrb[0].mxu0
  %v5752 = vadd.f32 %v5678, %v5751
  %v5753 = vpop.f32.mrb[0].mxu0
  %5754 = vmatprep.mubr.bf16.mxu0 0
  %5755 = vmatmul.mubr.bf16.gmra.mrb[0].mxu0 %v5701
  %v5756 = vpop.f32.mrb[0].mxu0
  %v5757 = vadd.f32 %v5678, %v5756
  %v5758 = vpop.f32.mrb[0].mxu0
  %v5759 = vpop.f32.mrb[0].mxu0
  %v5760 = vadd.f32 %v5678, %v5759
  %v5761 = vpop.f32.mrb[0].mxu0
  %5762 = vdwg.mxu0
  %v5763 = vmul.f32 %v5741, %v5560
  %v5764 = vmul.f32 %v5744, %v5562
  %v5765 = vmul.f32 %v5749, %v5564
  %v5766 = vmul.f32 %v5752, %v5566
  %v5767 = vmul.f32 %v5757, %v5568
  %v5768 = vmul.f32 %v5760, %v5570
  %v5769 = vmax.f32 %v5763, 0.0
  %v5770 = vmax.f32 %v5764, 0.0
  %v5771 = vmax.f32 %v5765, 0.0
  %v5772 = vmax.f32 %v5766, 0.0
  %v5773 = vmax.f32 %v5767, 0.0
  %v5774 = vmax.f32 %v5768, 0.0
  %v5775 = vpack.c.bf16 %v5770, %v5769
  %v5776 = vpack.c.bf16 %v5772, %v5771
  %v5777 = vpack.c.bf16 %v5774, %v5773
  %v5779 = vsel %vm5610, %v5777, 0
  %5781 = vmatprep.subr.bf16.mxu0 0
  %5782 = vmatpush1.bf16.msra.mxu0 %v5775
  %5783 = vmatprep.subr.bf16.mxu0 0
  %5784 = vmatpush1.bf16.msra.mxu0 %v5776
  %5785 = vmatprep.subr.bf16.mxu0 0
  %5786 = vmatpush1.bf16.msra.mxu0 %v5779
  %5787 = vmatprep.subr.bf16.mxu0 0
  %5788 = vmatpush1.bf16.msra.mxu0 0
  %5789 = vmatprep.subr.bf16.mxu0 0
  %5790 = vmatpush1.bf16.msra.mxu0 0
  %5791 = vmatprep.subr.bf16.mxu0 0
  %5792 = vmatpush1.bf16.msra.mxu0 0
  %5793 = vmatprep.subr.bf16.mxu0 0
  %5794 = vmatpush1.bf16.msra.mxu0 0
  %5795 = vmatprep.subr.bf16.mxu0 0
  %5796 = vmatpush1.bf16.msra.mxu0 0
  %5797 = vmatprep.subr.bf16.mxu0 0
  %5798 = vmatpush1.bf16.msra.mxu0 0
  %5799 = vmatprep.subr.bf16.mxu0 0
  %5800 = vmatpush1.bf16.msra.mxu0 0
  %5801 = vmatprep.subr.bf16.mxu0 0
  %5802 = vmatpush1.bf16.msra.mxu0 0
  %5803 = vmatprep.subr.bf16.mxu0 0
  %5804 = vmatpush1.bf16.msra.mxu0 0
  %5805 = vmatprep.subr.bf16.mxu0 0
  %5806 = vmatpush1.bf16.msra.mxu0 0
  %5807 = vmatprep.subr.bf16.mxu0 0
  %5808 = vmatpush1.bf16.msra.mxu0 0
  %5809 = vmatprep.subr.bf16.mxu0 0
  %5810 = vmatpush1.bf16.msra.mxu0 0
  %5811 = vmatprep.subr.bf16.mxu0 0
  %5812 = vmatpush1.bf16.msra.mxu0 0
  %5813 = vmatprep.mubr.bf16.mxu0 0
  %5814 = vmatmul.mubr.bf16.gmra.mrb[0].mxu0 %v5602
  %v5815 = vpop.f32.mrb[0].mxu0
  %v5816 = vadd.f32 %v5769, %v5815
  %v5817 = vpop.f32.mrb[0].mxu0
  %v5818 = vpop.f32.mrb[0].mxu0
  %v5819 = vadd.f32 %v5770, %v5818
  %v5820 = vpop.f32.mrb[0].mxu0
  %5821 = vmatprep.mubr.bf16.mxu0 0
  %5822 = vmatmul.mubr.bf16.gmra.mrb[0].mxu0 %v5605
  %v5823 = vpop.f32.mrb[0].mxu0
  %v5824 = vadd.f32 %v5771, %v5823
  %v5825 = vpop.f32.mrb[0].mxu0
  %v5826 = vpop.f32.mrb[0].mxu0
  %v5827 = vadd.f32 %v5772, %v5826
  %v5828 = vpop.f32.mrb[0].mxu0
  %5829 = vmatprep.mubr.bf16.mxu0 0
  %5830 = vmatmul.mubr.bf16.gmra.mrb[0].mxu0 %v5608
  %v5831 = vpop.f32.mrb[0].mxu0
  %v5832 = vadd.f32 %v5773, %v5831
  %v5833 = vpop.f32.mrb[0].mxu0
  %v5834 = vpop.f32.mrb[0].mxu0
  %v5835 = vadd.f32 %v5774, %v5834
  %v5836 = vpop.f32.mrb[0].mxu0
  %5837 = vdwg.mxu0
  %v5838 = vpack.c.bf16 %v5819, %v5816
  %v5839 = vpack.c.bf16 %v5827, %v5824
  %v5840 = vpack.c.bf16 %v5835, %v5832
  %5844 = vrot.lane.b32.xlu0 %v5838, 40
  %v5845 = vpop.permute.xlu0 %5844
  %5846 = vrot.lane.b32.xlu0 %v5839, 40
  %v5847 = vpop.permute.xlu0 %5846
  %5848 = vrot.lane.b32.xlu0 %v5840, 40
  %v5849 = vpop.permute.xlu0 %5848
  %v5851 = vsel %vm84, %v5671, %v5845
  %v5853 = vsel %vm84, %v5672, %v5847
  %v5855 = vsel %vm84, %v5673, %v5849
  %v5856 = vlaneseq
  %v5857 = vshrl.u32 %v5856, 7
  %v5858 = vsub.s32 1, %v5857
  %v5859 = vrot.slane %v5674, %v5858
  %v5861 = vunpack.c.l.b16 %v5580
  %v5862 = vpack.c.b16 %v5861, %v5688
  %5863 = vrot.lane.b32.xlu0 %v5689, 120
  %v5864 = vpop.permute.xlu0 %5863
  %5865 = vrot.lane.b32.xlu0 %v5690, 120
  %v5866 = vpop.permute.xlu0 %5865
  %5867 = vrot.lane.b32.xlu0 %v5862, 120
  %v5868 = vpop.permute.xlu0 %5867
  %v5872 = vsel %vm402, %v5851, 0
  %v5874 = vsel %vm402, %v5853, 0
  %v5876 = vsel %vm402, %v5855, 0
  %5878 = vmatprep.subr.bf16.mxu0 0
  %5879 = vmatpush1.bf16.msra.mxu0 %v5864
  %5880 = vmatprep.subr.bf16.mxu0 0
  %5881 = vmatpush1.bf16.msra.mxu0 %v5866
  %5882 = vmatprep.subr.bf16.mxu0 0
  %5883 = vmatpush1.bf16.msra.mxu0 %v5868
  %5884 = vmatprep.subr.bf16.mxu0 0
  %5885 = vmatpush1.bf16.msra.mxu0 0
  %5886 = vmatprep.subr.bf16.mxu0 0
  %5887 = vmatpush1.bf16.msra.mxu0 0
  %5888 = vmatprep.subr.bf16.mxu0 0
  %5889 = vmatpush1.bf16.msra.mxu0 0
  %5890 = vmatprep.subr.bf16.mxu0 0
  %5891 = vmatpush1.bf16.msra.mxu0 0
  %5892 = vmatprep.subr.bf16.mxu0 0
  %5893 = vmatpush1.bf16.msra.mxu0 0
  %5894 = vmatprep.subr.bf16.mxu0 0
  %5895 = vmatpush1.bf16.msra.mxu0 0
  %5896 = vmatprep.subr.bf16.mxu0 0
  %5897 = vmatpush1.bf16.msra.mxu0 0
  %5898 = vmatprep.subr.bf16.mxu0 0
  %5899 = vmatpush1.bf16.msra.mxu0 0
  %5900 = vmatprep.subr.bf16.mxu0 0
  %5901 = vmatpush1.bf16.msra.mxu0 0
  %5902 = vmatprep.subr.bf16.mxu0 0
  %5903 = vmatpush1.bf16.msra.mxu0 0
  %5904 = vmatprep.subr.bf16.mxu0 0
  %5905 = vmatpush1.bf16.msra.mxu0 0
  %5906 = vmatprep.subr.bf16.mxu0 0
  %5907 = vmatpush1.bf16.msra.mxu0 0
  %5908 = vmatprep.subr.bf16.mxu0 0
  %5909 = vmatpush1.bf16.msra.mxu0 0
  %5910 = vmatprep.mubr.bf16.mxu0 0
  %5911 = vmatmul.mubr.bf16.gmra.mrb[0].mxu0 %v5872
  %v5912 = vpop.f32.mrb[0].mxu0
  %v5913 = vadd.f32 %v5859, %v5912
  %v5914 = vpop.f32.mrb[0].mxu0
  %v5915 = vpop.f32.mrb[0].mxu0
  %v5916 = vadd.f32 %v5859, %v5915
  %v5917 = vpop.f32.mrb[0].mxu0
  %5918 = vmatprep.mubr.bf16.mxu0 0
  %5919 = vmatmul.mubr.bf16.gmra.mrb[0].mxu0 %v5874
  %v5920 = vpop.f32.mrb[0].mxu0
  %v5921 = vadd.f32 %v5859, %v5920
  %v5922 = vpop.f32.mrb[0].mxu0
  %v5923 = vpop.f32.mrb[0].mxu0
  %v5924 = vadd.f32 %v5859, %v5923
  %v5925 = vpop.f32.mrb[0].mxu0
  %5926 = vmatprep.mubr.bf16.mxu0 0
  %5927 = vmatmul.mubr.bf16.gmra.mrb[0].mxu0 %v5876
  %v5928 = vpop.f32.mrb[0].mxu0
  %v5929 = vadd.f32 %v5859, %v5928
  %v5930 = vpop.f32.mrb[0].mxu0
  %v5931 = vpop.f32.mrb[0].mxu0
  %v5932 = vadd.f32 %v5859, %v5931
  %v5933 = vpop.f32.mrb[0].mxu0
  %5934 = vdwg.mxu0
  %v5935 = vmul.f32 %v5913, %v5560
  %v5936 = vmul.f32 %v5916, %v5562
  %v5937 = vmul.f32 %v5921, %v5564
  %v5938 = vmul.f32 %v5924, %v5566
  %v5939 = vmul.f32 %v5929, %v5568
  %v5940 = vmul.f32 %v5932, %v5570
  %v5941 = vmax.f32 %v5935, 0.0
  %v5942 = vmax.f32 %v5936, 0.0
  %v5943 = vmax.f32 %v5937, 0.0
  %v5944 = vmax.f32 %v5938, 0.0
  %v5945 = vmax.f32 %v5939, 0.0
  %v5946 = vmax.f32 %v5940, 0.0
  %v5947 = vpack.c.bf16 %v5942, %v5941
  %v5948 = vpack.c.bf16 %v5944, %v5943
  %v5949 = vpack.c.bf16 %v5946, %v5945
  %v5951 = vsel %vm5610, %v5949, 0
  %5953 = vmatprep.subr.bf16.mxu0 0
  %5954 = vmatpush1.bf16.msra.mxu0 %v5947
  %5955 = vmatprep.subr.bf16.mxu0 0
  %5956 = vmatpush1.bf16.msra.mxu0 %v5948
  %5957 = vmatprep.subr.bf16.mxu0 0
  %5958 = vmatpush1.bf16.msra.mxu0 %v5951
  %5959 = vmatprep.subr.bf16.mxu0 0
  %5960 = vmatpush1.bf16.msra.mxu0 0
  %5961 = vmatprep.subr.bf16.mxu0 0
  %5962 = vmatpush1.bf16.msra.mxu0 0
  %5963 = vmatprep.subr.bf16.mxu0 0
  %5964 = vmatpush1.bf16.msra.mxu0 0
  %5965 = vmatprep.subr.bf16.mxu0 0
  %5966 = vmatpush1.bf16.msra.mxu0 0
  %5967 = vmatprep.subr.bf16.mxu0 0
  %5968 = vmatpush1.bf16.msra.mxu0 0
  %5969 = vmatprep.subr.bf16.mxu0 0
  %5970 = vmatpush1.bf16.msra.mxu0 0
  %5971 = vmatprep.subr.bf16.mxu0 0
  %5972 = vmatpush1.bf16.msra.mxu0 0
  %5973 = vmatprep.subr.bf16.mxu0 0
  %5974 = vmatpush1.bf16.msra.mxu0 0
  %5975 = vmatprep.subr.bf16.mxu0 0
  %5976 = vmatpush1.bf16.msra.mxu0 0
  %5977 = vmatprep.subr.bf16.mxu0 0
  %5978 = vmatpush1.bf16.msra.mxu0 0
  %5979 = vmatprep.subr.bf16.mxu0 0
  %5980 = vmatpush1.bf16.msra.mxu0 0
  %5981 = vmatprep.subr.bf16.mxu0 0
  %5982 = vmatpush1.bf16.msra.mxu0 0
  %5983 = vmatprep.subr.bf16.mxu0 0
  %5984 = vmatpush1.bf16.msra.mxu0 0
  %5985 = vmatprep.mubr.bf16.mxu0 0
  %5986 = vmatmul.mubr.bf16.gmra.mrb[0].mxu0 %v5602
  %v5987 = vpop.f32.mrb[0].mxu0
  %v5988 = vadd.f32 %v5941, %v5987
  %v5989 = vpop.f32.mrb[0].mxu0
  %v5990 = vpop.f32.mrb[0].mxu0
  %v5991 = vadd.f32 %v5942, %v5990
  %v5992 = vpop.f32.mrb[0].mxu0
  %5993 = vmatprep.mubr.bf16.mxu0 0
  %5994 = vmatmul.mubr.bf16.gmra.mrb[0].mxu0 %v5605
  %v5995 = vpop.f32.mrb[0].mxu0
  %v5996 = vadd.f32 %v5943, %v5995
  %v5997 = vpop.f32.mrb[0].mxu0
  %v5998 = vpop.f32.mrb[0].mxu0
  %v5999 = vadd.f32 %v5944, %v5998
  %v6000 = vpop.f32.mrb[0].mxu0
  %6001 = vmatprep.mubr.bf16.mxu0 0
  %6002 = vmatmul.mubr.bf16.gmra.mrb[0].mxu0 %v5608
  %v6003 = vpop.f32.mrb[0].mxu0
  %v6004 = vadd.f32 %v5945, %v6003
  %v6005 = vpop.f32.mrb[0].mxu0
  %v6006 = vpop.f32.mrb[0].mxu0
  %v6007 = vadd.f32 %v5946, %v6006
  %v6008 = vpop.f32.mrb[0].mxu0
  %6009 = vdwg.mxu0
  %v6010 = vpack.c.bf16 %v5991, %v5988
  %v6011 = vpack.c.bf16 %v5999, %v5996
  %v6012 = vpack.c.bf16 %v6007, %v6004
  %6016 = vrot.lane.b32.xlu0 %v6010, 48
  %v6017 = vpop.permute.xlu0 %6016
  %6018 = vrot.lane.b32.xlu0 %v6011, 48
  %v6019 = vpop.permute.xlu0 %6018
  %6020 = vrot.lane.b32.xlu0 %v6012, 48
  %v6021 = vpop.permute.xlu0 %6020
  %v6023 = vsel %vm402, %v5851, %v6017
  %v6025 = vsel %vm402, %v5853, %v6019
  %v6027 = vsel %vm402, %v5855, %v6021
  %v6028 = vlaneseq
  %v6029 = vshrl.u32 %v6028, 7
  %v6030 = vsub.s32 2, %v6029
  %v6031 = vrot.slane %v5674, %v6030
  %v6033 = vunpack.c.l.b16 %v5581
  %v6034 = vpack.c.b16 %v6033, %v6033
  %6035 = vrot.lane.b32.xlu0 %v5689, 112
  %v6036 = vpop.permute.xlu0 %6035
  %6037 = vrot.lane.b32.xlu0 %v5690, 112
  %v6038 = vpop.permute.xlu0 %6037
  %6039 = vrot.lane.b32.xlu0 %v5862, 112
  %v6040 = vpop.permute.xlu0 %6039
  %6041 = vrot.lane.b32.xlu0 %v6034, 112
  %v6042 = vpop.permute.xlu0 %6041
  %v6046 = vsel %vm573, %v6023, 0
  %v6048 = vsel %vm573, %v6025, 0
  %v6050 = vsel %vm573, %v6027, 0
  %v6053 = vsel %vm145, %v6042, 0
  %6055 = vmatprep.subr.bf16.mxu0 0
  %6056 = vmatpush1.bf16.msra.mxu0 %v6036
  %6057 = vmatprep.subr.bf16.mxu0 0
  %6058 = vmatpush1.bf16.msra.mxu0 %v6038
  %6059 = vmatprep.subr.bf16.mxu0 0
  %6060 = vmatpush1.bf16.msra.mxu0 %v6040
  %6061 = vmatprep.subr.bf16.mxu0 0
  %6062 = vmatpush1.bf16.msra.mxu0 %v6053
  %6063 = vmatprep.subr.bf16.mxu0 0
  %6064 = vmatpush1.bf16.msra.mxu0 0
  %6065 = vmatprep.subr.bf16.mxu0 0
  %6066 = vmatpush1.bf16.msra.mxu0 0
  %6067 = vmatprep.subr.bf16.mxu0 0
  %6068 = vmatpush1.bf16.msra.mxu0 0
  %6069 = vmatprep.subr.bf16.mxu0 0
  %6070 = vmatpush1.bf16.msra.mxu0 0
  %6071 = vmatprep.subr.bf16.mxu0 0
  %6072 = vmatpush1.bf16.msra.mxu0 0
  %6073 = vmatprep.subr.bf16.mxu0 0
  %6074 = vmatpush1.bf16.msra.mxu0 0
  %6075 = vmatprep.subr.bf16.mxu0 0
  %6076 = vmatpush1.bf16.msra.mxu0 0
  %6077 = vmatprep.subr.bf16.mxu0 0
  %6078 = vmatpush1.bf16.msra.mxu0 0
  %6079 = vmatprep.subr.bf16.mxu0 0
  %6080 = vmatpush1.bf16.msra.mxu0 0
  %6081 = vmatprep.subr.bf16.mxu0 0
  %6082 = vmatpush1.bf16.msra.mxu0 0
  %6083 = vmatprep.subr.bf16.mxu0 0
  %6084 = vmatpush1.bf16.msra.mxu0 0
  %6085 = vmatprep.subr.bf16.mxu0 0
  %6086 = vmatpush1.bf16.msra.mxu0 0
  %6087 = vmatprep.mubr.bf16.mxu0 0
  %6088 = vmatmul.mubr.bf16.gmra.mrb[0].mxu0 %v6046
  %v6089 = vpop.f32.mrb[0].mxu0
  %v6090 = vadd.f32 %v6031, %v6089
  %v6091 = vpop.f32.mrb[0].mxu0
  %v6092 = vpop.f32.mrb[0].mxu0
  %v6093 = vadd.f32 %v6031, %v6092
  %v6094 = vpop.f32.mrb[0].mxu0
  %6095 = vmatprep.mubr.bf16.mxu0 0
  %6096 = vmatmul.mubr.bf16.gmra.mrb[0].mxu0 %v6048
  %v6097 = vpop.f32.mrb[0].mxu0
  %v6098 = vadd.f32 %v6031, %v6097
  %v6099 = vpop.f32.mrb[0].mxu0
  %v6100 = vpop.f32.mrb[0].mxu0
  %v6101 = vadd.f32 %v6031, %v6100
  %v6102 = vpop.f32.mrb[0].mxu0
  %6103 = vmatprep.mubr.bf16.mxu0 0
  %6104 = vmatmul.mubr.bf16.gmra.mrb[0].mxu0 %v6050
  %v6105 = vpop.f32.mrb[0].mxu0
  %v6106 = vadd.f32 %v6031, %v6105
  %v6107 = vpop.f32.mrb[0].mxu0
  %v6108 = vpop.f32.mrb[0].mxu0
  %v6109 = vadd.f32 %v6031, %v6108
  %v6110 = vpop.f32.mrb[0].mxu0
  %6111 = vdwg.mxu0
  %v6112 = vmul.f32 %v6090, %v5560
  %v6113 = vmul.f32 %v6093, %v5562
  %v6114 = vmul.f32 %v6098, %v5564
  %v6115 = vmul.f32 %v6101, %v5566
  %v6116 = vmul.f32 %v6106, %v5568
  %v6117 = vmul.f32 %v6109, %v5570
  %v6118 = vmax.f32 %v6112, 0.0
  %v6119 = vmax.f32 %v6113, 0.0
  %v6120 = vmax.f32 %v6114, 0.0
  %v6121 = vmax.f32 %v6115, 0.0
  %v6122 = vmax.f32 %v6116, 0.0
  %v6123 = vmax.f32 %v6117, 0.0
  %v6124 = vpack.c.bf16 %v6119, %v6118
  %v6125 = vpack.c.bf16 %v6121, %v6120
  %v6126 = vpack.c.bf16 %v6123, %v6122
  %v6128 = vsel %vm5610, %v6126, 0
  %6130 = vmatprep.subr.bf16.mxu0 0
  %6131 = vmatpush1.bf16.msra.mxu0 %v6124
  %6132 = vmatprep.subr.bf16.mxu0 0
  %6133 = vmatpush1.bf16.msra.mxu0 %v6125
  %6134 = vmatprep.subr.bf16.mxu0 0
  %6135 = vmatpush1.bf16.msra.mxu0 %v6128
  %6136 = vmatprep.subr.bf16.mxu0 0
  %6137 = vmatpush1.bf16.msra.mxu0 0
  %6138 = vmatprep.subr.bf16.mxu0 0
  %6139 = vmatpush1.bf16.msra.mxu0 0
  %6140 = vmatprep.subr.bf16.mxu0 0
  %6141 = vmatpush1.bf16.msra.mxu0 0
  %6142 = vmatprep.subr.bf16.mxu0 0
  %6143 = vmatpush1.bf16.msra.mxu0 0
  %6144 = vmatprep.subr.bf16.mxu0 0
  %6145 = vmatpush1.bf16.msra.mxu0 0
  %6146 = vmatprep.subr.bf16.mxu0 0
  %6147 = vmatpush1.bf16.msra.mxu0 0
  %6148 = vmatprep.subr.bf16.mxu0 0
  %6149 = vmatpush1.bf16.msra.mxu0 0
  %6150 = vmatprep.subr.bf16.mxu0 0
  %6151 = vmatpush1.bf16.msra.mxu0 0
  %6152 = vmatprep.subr.bf16.mxu0 0
  %6153 = vmatpush1.bf16.msra.mxu0 0
  %6154 = vmatprep.subr.bf16.mxu0 0
  %6155 = vmatpush1.bf16.msra.mxu0 0
  %6156 = vmatprep.subr.bf16.mxu0 0
  %6157 = vmatpush1.bf16.msra.mxu0 0
  %6158 = vmatprep.subr.bf16.mxu0 0
  %6159 = vmatpush1.bf16.msra.mxu0 0
  %6160 = vmatprep.subr.bf16.mxu0 0
  %6161 = vmatpush1.bf16.msra.mxu0 0
  %6162 = vmatprep.mubr.bf16.mxu0 0
  %6163 = vmatmul.mubr.bf16.gmra.mrb[0].mxu0 %v5602
  %v6164 = vpop.f32.mrb[0].mxu0
  %v6165 = vadd.f32 %v6118, %v6164
  %v6166 = vpop.f32.mrb[0].mxu0
  %v6167 = vpop.f32.mrb[0].mxu0
  %v6168 = vadd.f32 %v6119, %v6167
  %v6169 = vpop.f32.mrb[0].mxu0
  %6170 = vmatprep.mubr.bf16.mxu0 0
  %6171 = vmatmul.mubr.bf16.gmra.mrb[0].mxu0 %v5605
  %v6172 = vpop.f32.mrb[0].mxu0
  %v6173 = vadd.f32 %v6120, %v6172
  %v6174 = vpop.f32.mrb[0].mxu0
  %v6175 = vpop.f32.mrb[0].mxu0
  %v6176 = vadd.f32 %v6121, %v6175
  %v6177 = vpop.f32.mrb[0].mxu0
  %6178 = vmatprep.mubr.bf16.mxu0 0
  %6179 = vmatmul.mubr.bf16.gmra.mrb[0].mxu0 %v5608
  %v6180 = vpop.f32.mrb[0].mxu0
  %v6181 = vadd.f32 %v6122, %v6180
  %v6182 = vpop.f32.mrb[0].mxu0
  %v6183 = vpop.f32.mrb[0].mxu0
  %v6184 = vadd.f32 %v6123, %v6183
  %v6185 = vpop.f32.mrb[0].mxu0
  %6186 = vdwg.mxu0
  %v6187 = vpack.c.bf16 %v6168, %v6165
  %v6188 = vpack.c.bf16 %v6176, %v6173
  %v6189 = vpack.c.bf16 %v6184, %v6181
  %6193 = vrot.lane.b32.xlu0 %v6187, 56
  %v6194 = vpop.permute.xlu0 %6193
  %6195 = vrot.lane.b32.xlu0 %v6188, 56
  %v6196 = vpop.permute.xlu0 %6195
  %6197 = vrot.lane.b32.xlu0 %v6189, 56
  %v6198 = vpop.permute.xlu0 %6197
  %v6200 = vsel %vm573, %v6023, %v6194
  %v6202 = vsel %vm573, %v6025, %v6196
  %v6204 = vsel %vm573, %v6027, %v6198
  %v6205 = vlaneseq
  %v6206 = vshrl.u32 %v6205, 7
  %v6207 = vsub.s32 3, %v6206
  %v6208 = vrot.slane %v5674, %v6207
  %v6210 = vunpack.c.l.b16 %v5582
  %v6211 = vpack.c.b16 %v6210, %v6033
  %6212 = vrot.lane.b32.xlu0 %v5689, 104
  %v6213 = vpop.permute.xlu0 %6212
  %6214 = vrot.lane.b32.xlu0 %v5690, 104
  %v6215 = vpop.permute.xlu0 %6214
  %6216 = vrot.lane.b32.xlu0 %v5862, 104
  %v6217 = vpop.permute.xlu0 %6216
  %6218 = vrot.lane.b32.xlu0 %v6211, 104
  %v6219 = vpop.permute.xlu0 %6218
  %v6224 = vsel %vm748, %v6200, 0
  %v6226 = vsel %vm748, %v6202, 0
  %v6228 = vsel %vm748, %v6204, 0
  %6230 = vmatprep.subr.bf16.mxu0 0
  %6231 = vmatpush1.bf16.msra.mxu0 %v6213
  %6232 = vmatprep.subr.bf16.mxu0 0
  %6233 = vmatpush1.bf16.msra.mxu0 %v6215
  %6234 = vmatprep.subr.bf16.mxu0 0
  %6235 = vmatpush1.bf16.msra.mxu0 %v6217
  %6236 = vmatprep.subr.bf16.mxu0 0
  %6237 = vmatpush1.bf16.msra.mxu0 %v6219
  %6238 = vmatprep.subr.bf16.mxu0 0
  %6239 = vmatpush1.bf16.msra.mxu0 0
  %6240 = vmatprep.subr.bf16.mxu0 0
  %6241 = vmatpush1.bf16.msra.mxu0 0
  %6242 = vmatprep.subr.bf16.mxu0 0
  %6243 = vmatpush1.bf16.msra.mxu0 0
  %6244 = vmatprep.subr.bf16.mxu0 0
  %6245 = vmatpush1.bf16.msra.mxu0 0
  %6246 = vmatprep.subr.bf16.mxu0 0
  %6247 = vmatpush1.bf16.msra.mxu0 0
  %6248 = vmatprep.subr.bf16.mxu0 0
  %6249 = vmatpush1.bf16.msra.mxu0 0
  %6250 = vmatprep.subr.bf16.mxu0 0
  %6251 = vmatpush1.bf16.msra.mxu0 0
  %6252 = vmatprep.subr.bf16.mxu0 0
  %6253 = vmatpush1.bf16.msra.mxu0 0
  %6254 = vmatprep.subr.bf16.mxu0 0
  %6255 = vmatpush1.bf16.msra.mxu0 0
  %6256 = vmatprep.subr.bf16.mxu0 0
  %6257 = vmatpush1.bf16.msra.mxu0 0
  %6258 = vmatprep.subr.bf16.mxu0 0
  %6259 = vmatpush1.bf16.msra.mxu0 0
  %6260 = vmatprep.subr.bf16.mxu0 0
  %6261 = vmatpush1.bf16.msra.mxu0 0
  %6262 = vmatprep.mubr.bf16.mxu0 0
  %6263 = vmatmul.mubr.bf16.gmra.mrb[0].mxu0 %v6224
  %v6264 = vpop.f32.mrb[0].mxu0
  %v6265 = vadd.f32 %v6208, %v6264
  %v6266 = vpop.f32.mrb[0].mxu0
  %v6267 = vpop.f32.mrb[0].mxu0
  %v6268 = vadd.f32 %v6208, %v6267
  %v6269 = vpop.f32.mrb[0].mxu0
  %6270 = vmatprep.mubr.bf16.mxu0 0
  %6271 = vmatmul.mubr.bf16.gmra.mrb[0].mxu0 %v6226
  %v6272 = vpop.f32.mrb[0].mxu0
  %v6273 = vadd.f32 %v6208, %v6272
  %v6274 = vpop.f32.mrb[0].mxu0
  %v6275 = vpop.f32.mrb[0].mxu0
  %v6276 = vadd.f32 %v6208, %v6275
  %v6277 = vpop.f32.mrb[0].mxu0
  %6278 = vmatprep.mubr.bf16.mxu0 0
  %6279 = vmatmul.mubr.bf16.gmra.mrb[0].mxu0 %v6228
  %v6280 = vpop.f32.mrb[0].mxu0
  %v6281 = vadd.f32 %v6208, %v6280
  %v6282 = vpop.f32.mrb[0].mxu0
  %v6283 = vpop.f32.mrb[0].mxu0
  %v6284 = vadd.f32 %v6208, %v6283
  %v6285 = vpop.f32.mrb[0].mxu0
  %6286 = vdwg.mxu0
  %v6287 = vmul.f32 %v6265, %v5560
  %v6288 = vmul.f32 %v6268, %v5562
  %v6289 = vmul.f32 %v6273, %v5564
  %v6290 = vmul.f32 %v6276, %v5566
  %v6291 = vmul.f32 %v6281, %v5568
  %v6292 = vmul.f32 %v6284, %v5570
  %v6293 = vmax.f32 %v6287, 0.0
  %v6294 = vmax.f32 %v6288, 0.0
  %v6295 = vmax.f32 %v6289, 0.0
  %v6296 = vmax.f32 %v6290, 0.0
  %v6297 = vmax.f32 %v6291, 0.0
  %v6298 = vmax.f32 %v6292, 0.0
  %v6299 = vpack.c.bf16 %v6294, %v6293
  %v6300 = vpack.c.bf16 %v6296, %v6295
  %v6301 = vpack.c.bf16 %v6298, %v6297
  %v6303 = vsel %vm5610, %v6301, 0
  %6305 = vmatprep.subr.bf16.mxu0 0
  %6306 = vmatpush1.bf16.msra.mxu0 %v6299
  %6307 = vmatprep.subr.bf16.mxu0 0
  %6308 = vmatpush1.bf16.msra.mxu0 %v6300
  %6309 = vmatprep.subr.bf16.mxu0 0
  %6310 = vmatpush1.bf16.msra.mxu0 %v6303
  %6311 = vmatprep.subr.bf16.mxu0 0
  %6312 = vmatpush1.bf16.msra.mxu0 0
  %6313 = vmatprep.subr.bf16.mxu0 0
  %6314 = vmatpush1.bf16.msra.mxu0 0
  %6315 = vmatprep.subr.bf16.mxu0 0
  %6316 = vmatpush1.bf16.msra.mxu0 0
  %6317 = vmatprep.subr.bf16.mxu0 0
  %6318 = vmatpush1.bf16.msra.mxu0 0
  %6319 = vmatprep.subr.bf16.mxu0 0
  %6320 = vmatpush1.bf16.msra.mxu0 0
  %6321 = vmatprep.subr.bf16.mxu0 0
  %6322 = vmatpush1.bf16.msra.mxu0 0
  %6323 = vmatprep.subr.bf16.mxu0 0
  %6324 = vmatpush1.bf16.msra.mxu0 0
  %6325 = vmatprep.subr.bf16.mxu0 0
  %6326 = vmatpush1.bf16.msra.mxu0 0
  %6327 = vmatprep.subr.bf16.mxu0 0
  %6328 = vmatpush1.bf16.msra.mxu0 0
  %6329 = vmatprep.subr.bf16.mxu0 0
  %6330 = vmatpush1.bf16.msra.mxu0 0
  %6331 = vmatprep.subr.bf16.mxu0 0
  %6332 = vmatpush1.bf16.msra.mxu0 0
  %6333 = vmatprep.subr.bf16.mxu0 0
  %6334 = vmatpush1.bf16.msra.mxu0 0
  %6335 = vmatprep.subr.bf16.mxu0 0
  %6336 = vmatpush1.bf16.msra.mxu0 0
  %6337 = vmatprep.mubr.bf16.mxu0 0
  %6338 = vmatmul.mubr.bf16.gmra.mrb[0].mxu0 %v5602
  %v6339 = vpop.f32.mrb[0].mxu0
  %v6340 = vadd.f32 %v6293, %v6339
  %v6341 = vpop.f32.mrb[0].mxu0
  %v6342 = vpop.f32.mrb[0].mxu0
  %v6343 = vadd.f32 %v6294, %v6342
  %v6344 = vpop.f32.mrb[0].mxu0
  %6345 = vmatprep.mubr.bf16.mxu0 0
  %6346 = vmatmul.mubr.bf16.gmra.mrb[0].mxu0 %v5605
  %v6347 = vpop.f32.mrb[0].mxu0
  %v6348 = vadd.f32 %v6295, %v6347
  %v6349 = vpop.f32.mrb[0].mxu0
  %v6350 = vpop.f32.mrb[0].mxu0
  %v6351 = vadd.f32 %v6296, %v6350
  %v6352 = vpop.f32.mrb[0].mxu0
  %6353 = vmatprep.mubr.bf16.mxu0 0
  %6354 = vmatmul.mubr.bf16.gmra.mrb[0].mxu0 %v5608
  %v6355 = vpop.f32.mrb[0].mxu0
  %v6356 = vadd.f32 %v6297, %v6355
  %v6357 = vpop.f32.mrb[0].mxu0
  %v6358 = vpop.f32.mrb[0].mxu0
  %v6359 = vadd.f32 %v6298, %v6358
  %v6360 = vpop.f32.mrb[0].mxu0
  %6361 = vdwg.mxu0
  %v6362 = vpack.c.bf16 %v6343, %v6340
  %v6363 = vpack.c.bf16 %v6351, %v6348
  %v6364 = vpack.c.bf16 %v6359, %v6356
  %6368 = vrot.lane.b32.xlu0 %v6362, 64
  %v6369 = vpop.permute.xlu0 %6368
  %6370 = vrot.lane.b32.xlu0 %v6363, 64
  %v6371 = vpop.permute.xlu0 %6370
  %6372 = vrot.lane.b32.xlu0 %v6364, 64
  %v6373 = vpop.permute.xlu0 %6372
  %v6375 = vsel %vm748, %v6200, %v6369
  %v6377 = vsel %vm748, %v6202, %v6371
  %v6379 = vsel %vm748, %v6204, %v6373
  %v6380 = vlaneseq
  %v6381 = vshrl.u32 %v6380, 7
  %v6382 = vsub.s32 4, %v6381
  %v6383 = vrot.slane %v5674, %v6382
  %v6385 = vunpack.c.l.b16 %v5583
  %v6386 = vpack.c.b16 %v6385, %v6385
  %6387 = vrot.lane.b32.xlu0 %v5689, 96
  %v6388 = vpop.permute.xlu0 %6387
  %6389 = vrot.lane.b32.xlu0 %v5690, 96
  %v6390 = vpop.permute.xlu0 %6389
  %6391 = vrot.lane.b32.xlu0 %v5862, 96
  %v6392 = vpop.permute.xlu0 %6391
  %6393 = vrot.lane.b32.xlu0 %v6211, 96
  %v6394 = vpop.permute.xlu0 %6393
  %6395 = vrot.lane.b32.xlu0 %v6386, 96
  %v6396 = vpop.permute.xlu0 %6395
  %v6401 = vsel %vm922, %v6375, 0
  %v6403 = vsel %vm922, %v6377, 0
  %v6405 = vsel %vm922, %v6379, 0
  %v6408 = vsel %vm145, %v6396, 0
  %6410 = vmatprep.subr.bf16.mxu0 0
  %6411 = vmatpush1.bf16.msra.mxu0 %v6388
  %6412 = vmatprep.subr.bf16.mxu0 0
  %6413 = vmatpush1.bf16.msra.mxu0 %v6390
  %6414 = vmatprep.subr.bf16.mxu0 0
  %6415 = vmatpush1.bf16.msra.mxu0 %v6392
  %6416 = vmatprep.subr.bf16.mxu0 0
  %6417 = vmatpush1.bf16.msra.mxu0 %v6394
  %6418 = vmatprep.subr.bf16.mxu0 0
  %6419 = vmatpush1.bf16.msra.mxu0 %v6408
  %6420 = vmatprep.subr.bf16.mxu0 0
  %6421 = vmatpush1.bf16.msra.mxu0 0
  %6422 = vmatprep.subr.bf16.mxu0 0
  %6423 = vmatpush1.bf16.msra.mxu0 0
  %6424 = vmatprep.subr.bf16.mxu0 0
  %6425 = vmatpush1.bf16.msra.mxu0 0
  %6426 = vmatprep.subr.bf16.mxu0 0
  %6427 = vmatpush1.bf16.msra.mxu0 0
  %6428 = vmatprep.subr.bf16.mxu0 0
  %6429 = vmatpush1.bf16.msra.mxu0 0
  %6430 = vmatprep.subr.bf16.mxu0 0
  %6431 = vmatpush1.bf16.msra.mxu0 0
  %6432 = vmatprep.subr.bf16.mxu0 0
  %6433 = vmatpush1.bf16.msra.mxu0 0
  %6434 = vmatprep.subr.bf16.mxu0 0
  %6435 = vmatpush1.bf16.msra.mxu0 0
  %6436 = vmatprep.subr.bf16.mxu0 0
  %6437 = vmatpush1.bf16.msra.mxu0 0
  %6438 = vmatprep.subr.bf16.mxu0 0
  %6439 = vmatpush1.bf16.msra.mxu0 0
  %6440 = vmatprep.subr.bf16.mxu0 0
  %6441 = vmatpush1.bf16.msra.mxu0 0
  %6442 = vmatprep.mubr.bf16.mxu0 0
  %6443 = vmatmul.mubr.bf16.gmra.mrb[0].mxu0 %v6401
  %v6444 = vpop.f32.mrb[0].mxu0
  %v6445 = vadd.f32 %v6383, %v6444
  %v6446 = vpop.f32.mrb[0].mxu0
  %v6447 = vpop.f32.mrb[0].mxu0
  %v6448 = vadd.f32 %v6383, %v6447
  %v6449 = vpop.f32.mrb[0].mxu0
  %6450 = vmatprep.mubr.bf16.mxu0 0
  %6451 = vmatmul.mubr.bf16.gmra.mrb[0].mxu0 %v6403
  %v6452 = vpop.f32.mrb[0].mxu0
  %v6453 = vadd.f32 %v6383, %v6452
  %v6454 = vpop.f32.mrb[0].mxu0
  %v6455 = vpop.f32.mrb[0].mxu0
  %v6456 = vadd.f32 %v6383, %v6455
  %v6457 = vpop.f32.mrb[0].mxu0
  %6458 = vmatprep.mubr.bf16.mxu0 0
  %6459 = vmatmul.mubr.bf16.gmra.mrb[0].mxu0 %v6405
  %v6460 = vpop.f32.mrb[0].mxu0
  %v6461 = vadd.f32 %v6383, %v6460
  %v6462 = vpop.f32.mrb[0].mxu0
  %v6463 = vpop.f32.mrb[0].mxu0
  %v6464 = vadd.f32 %v6383, %v6463
  %v6465 = vpop.f32.mrb[0].mxu0
  %6466 = vdwg.mxu0
  %v6467 = vmul.f32 %v6445, %v5560
  %v6468 = vmul.f32 %v6448, %v5562
  %v6469 = vmul.f32 %v6453, %v5564
  %v6470 = vmul.f32 %v6456, %v5566
  %v6471 = vmul.f32 %v6461, %v5568
  %v6472 = vmul.f32 %v6464, %v5570
  %v6473 = vmax.f32 %v6467, 0.0
  %v6474 = vmax.f32 %v6468, 0.0
  %v6475 = vmax.f32 %v6469, 0.0
  %v6476 = vmax.f32 %v6470, 0.0
  %v6477 = vmax.f32 %v6471, 0.0
  %v6478 = vmax.f32 %v6472, 0.0
  %6485 = vrot.lane.b32.xlu0 %v5941, 8
  %v6486 = vpop.permute.xlu0 %6485
  %6487 = vrot.lane.b32.xlu0 %v5942, 8
  %v6488 = vpop.permute.xlu0 %6487
  %6489 = vrot.lane.b32.xlu0 %v5943, 8
  %v6490 = vpop.permute.xlu0 %6489
  %6491 = vrot.lane.b32.xlu0 %v5944, 8
  %v6492 = vpop.permute.xlu0 %6491
  %6493 = vrot.lane.b32.xlu0 %v5945, 8
  %v6494 = vpop.permute.xlu0 %6493
  %6495 = vrot.lane.b32.xlu0 %v5946, 8
  %v6496 = vpop.permute.xlu0 %6495
  %6509 = vrot.lane.b32.xlu0 %v6118, 16
  %v6510 = vpop.permute.xlu0 %6509
  %6511 = vrot.lane.b32.xlu0 %v6119, 16
  %v6512 = vpop.permute.xlu0 %6511
  %6513 = vrot.lane.b32.xlu0 %v6120, 16
  %v6514 = vpop.permute.xlu0 %6513
  %6515 = vrot.lane.b32.xlu0 %v6121, 16
  %v6516 = vpop.permute.xlu0 %6515
  %6517 = vrot.lane.b32.xlu0 %v6122, 16
  %v6518 = vpop.permute.xlu0 %6517
  %6519 = vrot.lane.b32.xlu0 %v6123, 16
  %v6520 = vpop.permute.xlu0 %6519
  %6533 = vrot.lane.b32.xlu0 %v6293, 24
  %v6534 = vpop.permute.xlu0 %6533
  %6535 = vrot.lane.b32.xlu0 %v6294, 24
  %v6536 = vpop.permute.xlu0 %6535
  %6537 = vrot.lane.b32.xlu0 %v6295, 24
  %v6538 = vpop.permute.xlu0 %6537
  %6539 = vrot.lane.b32.xlu0 %v6296, 24
  %v6540 = vpop.permute.xlu0 %6539
  %6541 = vrot.lane.b32.xlu0 %v6297, 24
  %v6542 = vpop.permute.xlu0 %6541
  %6543 = vrot.lane.b32.xlu0 %v6298, 24
  %v6544 = vpop.permute.xlu0 %6543
  %6557 = vrot.lane.b32.xlu0 %v6473, 32
  %v6558 = vpop.permute.xlu0 %6557
  %6559 = vrot.lane.b32.xlu0 %v6474, 32
  %v6560 = vpop.permute.xlu0 %6559
  %6561 = vrot.lane.b32.xlu0 %v6475, 32
  %v6562 = vpop.permute.xlu0 %6561
  %6563 = vrot.lane.b32.xlu0 %v6476, 32
  %v6564 = vpop.permute.xlu0 %6563
  %6565 = vrot.lane.b32.xlu0 %v6477, 32
  %v6566 = vpop.permute.xlu0 %6565
  %6567 = vrot.lane.b32.xlu0 %v6478, 32
  %v6568 = vpop.permute.xlu0 %6567
  %v6575 = vsel %vm1078, %v5769, %v6486
  %v6576 = vsel %vm1078, %v5770, %v6488
  %v6577 = vsel %vm1078, %v5771, %v6490
  %v6578 = vsel %vm1078, %v5772, %v6492
  %v6579 = vsel %vm1078, %v5773, %v6494
  %v6580 = vsel %vm1078, %v5774, %v6496
  %v6581 = vsel %vm1084, %v6575, %v6510
  %v6582 = vsel %vm1084, %v6576, %v6512
  %v6583 = vsel %vm1084, %v6577, %v6514
  %v6584 = vsel %vm1084, %v6578, %v6516
  %v6585 = vsel %vm1084, %v6579, %v6518
  %v6586 = vsel %vm1084, %v6580, %v6520
  %v6587 = vsel %vm1090, %v6581, %v6534
  %v6588 = vsel %vm1090, %v6582, %v6536
  %v6589 = vsel %vm1090, %v6583, %v6538
  %v6590 = vsel %vm1090, %v6584, %v6540
  %v6591 = vsel %vm1090, %v6585, %v6542
  %v6592 = vsel %vm1090, %v6586, %v6544
  %v6593 = vsel %vm1096, %v6587, %v6558
  %v6594 = vsel %vm1096, %v6588, %v6560
  %v6595 = vsel %vm1096, %v6589, %v6562
  %v6596 = vsel %vm1096, %v6590, %v6564
  %v6597 = vsel %vm1096, %v6591, %v6566
  %v6598 = vsel %vm1096, %v6592, %v6568
  %v6599 = vadd.f32 %v6593, %v5521
  %v6600 = vadd.f32 %v6594, %v5522
  %v6601 = vadd.f32 %v6595, %v5523
  %v6602 = vadd.f32 %v6596, %v5524
  %v6603 = vadd.f32 %v6597, %v5525
  %v6604 = vadd.f32 %v6598, %v5526
  %v6605 = vpack.c.bf16 %v6600, %v6599
  %v6606 = vpack.c.bf16 %v6602, %v6601
  %v6607 = vpack.c.bf16 %v6604, %v6603
  %s6608 = scalar_lea.vmem %s13, 60
  %v6609 = vld [vmem:[%s6608] sm:$0xf]
  %v6610 = vld [vmem:[%s6608 + $0x4] sm:$0xf]
  %v6611 = vld [vmem:[%s6608 + $0x8] sm:$0xf]
  %v6612 = vld [vmem:[%s6608 + $0xc] sm:$0xf]
  %v6613 = vld [vmem:[%s6608 + $0x10] sm:$0xf]
  %s6614 = scalar_lea.vmem %s14, 3
  %v6615 = vld [vmem:[%s6614] sm:$0x1]
  %v6617 = vlaneseq
  %v6618 = vshrl.u32 %v6617, 7
  %v6619 = vsub.s32 0, %v6618
  %v6620 = vrot.slane %v6615, %v6619
  %v6627 = vunpack.c.l.b16 %v6609
  %v6628 = vunpack.c.l.b16 %v6610
  %v6629 = vunpack.c.l.b16 %v6611
  %v6630 = vunpack.c.l.b16 %v6612
  %v6631 = vunpack.c.l.b16 %v6613
  %v6632 = vpack.c.b16 %v6628, %v6627
  %v6633 = vpack.c.b16 %v6630, %v6629
  %v6634 = vpack.c.b16 %v6631, %v6631
  %v6638 = vsel %vm84, %v6605, 0
  %v6641 = vsel %vm84, %v6606, 0
  %v6644 = vsel %vm84, %v6607, 0
  %v6647 = vsel %vm145, %v6634, 0
  %6649 = vmatprep.subr.bf16.mxu0 0
  %6650 = vmatpush1.bf16.msra.mxu0 %v6632
  %6651 = vmatprep.subr.bf16.mxu0 0
  %6652 = vmatpush1.bf16.msra.mxu0 %v6633
  %6653 = vmatprep.subr.bf16.mxu0 0
  %6654 = vmatpush1.bf16.msra.mxu0 %v6647
  %6655 = vmatprep.subr.bf16.mxu0 0
  %6656 = vmatpush1.bf16.msra.mxu0 0
  %6657 = vmatprep.subr.bf16.mxu0 0
  %6658 = vmatpush1.bf16.msra.mxu0 0
  %6659 = vmatprep.subr.bf16.mxu0 0
  %6660 = vmatpush1.bf16.msra.mxu0 0
  %6661 = vmatprep.subr.bf16.mxu0 0
  %6662 = vmatpush1.bf16.msra.mxu0 0
  %6663 = vmatprep.subr.bf16.mxu0 0
  %6664 = vmatpush1.bf16.msra.mxu0 0
  %6665 = vmatprep.subr.bf16.mxu0 0
  %6666 = vmatpush1.bf16.msra.mxu0 0
  %6667 = vmatprep.subr.bf16.mxu0 0
  %6668 = vmatpush1.bf16.msra.mxu0 0
  %6669 = vmatprep.subr.bf16.mxu0 0
  %6670 = vmatpush1.bf16.msra.mxu0 0
  %6671 = vmatprep.subr.bf16.mxu0 0
  %6672 = vmatpush1.bf16.msra.mxu0 0
  %6673 = vmatprep.subr.bf16.mxu0 0
  %6674 = vmatpush1.bf16.msra.mxu0 0
  %6675 = vmatprep.subr.bf16.mxu0 0
  %6676 = vmatpush1.bf16.msra.mxu0 0
  %6677 = vmatprep.subr.bf16.mxu0 0
  %6678 = vmatpush1.bf16.msra.mxu0 0
  %6679 = vmatprep.subr.bf16.mxu0 0
  %6680 = vmatpush1.bf16.msra.mxu0 0
  %6681 = vmatprep.mubr.bf16.mxu0 0
  %6682 = vmatmul.mubr.bf16.gmra.mrb[0].mxu0 %v6638
  %v6683 = vpop.f32.mrb[0].mxu0
  %v6684 = vadd.f32 %v6620, %v6683
  %v6685 = vpop.f32.mrb[0].mxu0
  %v6686 = vpop.f32.mrb[0].mxu0
  %v6687 = vadd.f32 %v6620, %v6686
  %v6688 = vpop.f32.mrb[0].mxu0
  %6689 = vmatprep.mubr.bf16.mxu0 0
  %6690 = vmatmul.mubr.bf16.gmra.mrb[0].mxu0 %v6641
  %v6691 = vpop.f32.mrb[0].mxu0
  %v6692 = vadd.f32 %v6620, %v6691
  %v6693 = vpop.f32.mrb[0].mxu0
  %v6694 = vpop.f32.mrb[0].mxu0
  %v6695 = vadd.f32 %v6620, %v6694
  %v6696 = vpop.f32.mrb[0].mxu0
  %6697 = vmatprep.mubr.bf16.mxu0 0
  %6698 = vmatmul.mubr.bf16.gmra.mrb[0].mxu0 %v6644
  %v6699 = vpop.f32.mrb[0].mxu0
  %v6700 = vadd.f32 %v6620, %v6699
  %v6701 = vpop.f32.mrb[0].mxu0
  %v6702 = vpop.f32.mrb[0].mxu0
  %v6703 = vadd.f32 %v6620, %v6702
  %v6704 = vpop.f32.mrb[0].mxu0
  %6705 = vdwg.mxu0
  %6706 = vst.msk [vmem:[%s21] sm:$0xff] %vm84, %v6684
  %6707 = vst.msk [vmem:[%s21 + $0x8] sm:$0xff] %vm84, %v6687
  %6708 = vst.msk [vmem:[%s21 + $0x10] sm:$0xff] %vm84, %v6692
  %6709 = vst.msk [vmem:[%s21 + $0x18] sm:$0xff] %vm84, %v6695
  %6710 = vst.msk [vmem:[%s21 + $0x20] sm:$0xff] %vm84, %v6700
  %vm6711 = vcmask 324608
  %6712 = vst.msk [vmem:[%s21 + $0x28] sm:$0x3f] %vm6711, %v6703
  // Predicated region
  $region86: #{gcn_module_forward.1} parent=0 // pred_check
    _
  $region87: #{gcn_module_forward.1} parent=0 // pred_check_branch
    %6714 = sbr.rel (0) target = $region89
  $region88: #{gcn_module_forward.1} parent=0 // pred_region
    _
  $region89: #{gcn_module_forward.1} parent=0 // pred_fallthru
    _
  // Predicated region
  $region90: #{gcn_module_forward.1} parent=0 // pred_check
    _
  $region91: #{gcn_module_forward.1} parent=0 // pred_check_branch
    %6716 = sbr.rel (0) target = $region93
  $region92: #{gcn_module_forward.1} parent=0 // pred_region
    _
  $region93: #{gcn_module_forward.1} parent=0 // pred_fallthru
    _

</llo_original>
